<compile_context>
chip_gen: v7x
topology: tpu7x:2x2x1
jax: 0.10.0
libtpu: 0.0.40
codegen_flags: <defaults>
</compile_context>

<pallas_src>
import functools

import numpy as np
import jax
import jax.numpy as jnp
from jax.experimental import pallas as pl
from jax.experimental.pallas import tpu as pltpu

LANE = 128


# ----------------------------------------------------------------------------- helpers
def _rup(x, m):
    return ((x + m - 1) // m) * m


@functools.lru_cache(maxsize=1)
def _num_tensorcores():
    try:
        kind = jax.devices()[0].device_kind.lower()
    except Exception:
        return 1
    return 2 if ("v7" in kind or "7x" in kind) else 1


def _row_tile(r):
    """Row tile: biggest that fits; >=2 tiles only where a 2nd TensorCore exists (v7x)."""
    r8 = _rup(r, 8)
    if r8 <= 256:
        if _num_tensorcores() > 1 and r8 >= 128:
            tm = _rup(r8 // 2, 8)
        else:
            tm = r8
    elif r8 <= 1024:
        tm = 256
    else:
        tm = 512
    return tm, _rup(r8, tm)


def _pad2(a, rows, cols, dtype):
    out = jnp.zeros((rows, cols), dtype)
    return out.at[: a.shape[0], : a.shape[1]].set(a.astype(dtype))


def _pad_vec(v, cols):
    out = jnp.zeros((1, cols), jnp.float32)
    return out.at[0, : v.shape[0]].set(v.astype(jnp.float32))


def _pool_matrix(h, w, s):
    """(Ho*Wo, H*W) average-pool matrix (entries 1/s^2 are exact in bf16)."""
    ho, wo = h // s, w // s
    m = np.zeros((ho * wo, h * w), np.float32)
    for oh in range(ho):
        for ow in range(wo):
            r = oh * wo + ow
            for dh in range(s):
                for dw in range(s):
                    m[r, (oh * s + dh) * w + (ow * s + dw)] = 1.0 / (s * s)
    return jnp.asarray(m, jnp.bfloat16)


def _bn_scale_bias(p, prefix, eps=1e-5):
    scale = p[prefix + "_g"] * jax.lax.rsqrt(p[prefix + "_rv"] + eps)
    bias = p[prefix + "_b"] - p[prefix + "_rm"] * scale
    return scale, bias


def _mosaic_params(*sem):
    return pltpu.CompilerParams(dimension_semantics=sem,
                                vmem_limit_bytes=32 * 1024 * 1024)


# ----------------------------------------------------------------------------- kernels
def _conv1x1_kernel(x_ref, w_ref, s_ref, b_ref, o_ref):
    """o = relu((x @ w) * scale + bias); single k step, f32 accumulate, bf16 store."""
    y = jnp.dot(x_ref[...], w_ref[...], preferred_element_type=jnp.float32)
    y = jnp.maximum(y * s_ref[...] + b_ref[...], 0.0)
    o_ref[...] = y.astype(o_ref.dtype)


def _conv3x3_kernel(*refs, H, W, C, O, stride):
    """Per-image 3x3 conv (pad=1) + BN + ReLU (+ fused stride-s avgpool).

    The 9 taps are shifted (H, W, C) windows of the padded input tile, built in VMEM
    and fed to 9 MXU passes (no HBM im2col)."""
    if stride > 1:
        x_ref, w_ref, s_ref, b_ref, pool_ref, o_ref = refs
    else:
        x_ref, w_ref, s_ref, b_ref, o_ref = refs

    # f32 intermediate keeps the (H, W, C) -> (H*W, C) merge sublane-tile aligned.
    xp = x_ref[0].astype(jnp.float32)                    # (H+2, W+2, C)
    acc = jnp.zeros((H * W, O), jnp.float32)
    for t in range(9):
        dh, dw = divmod(t, 3)
        patch = xp[dh:dh + H, dw:dw + W, :].reshape(H * W, C).astype(jnp.bfloat16)
        acc = acc + jnp.dot(patch, w_ref[t], preferred_element_type=jnp.float32)

    y = jnp.maximum(acc * s_ref[...] + b_ref[...], 0.0)
    if stride > 1:  # AvgPool2d(stride) fused as a tiny matmul (after the ReLU).
        y = jnp.dot(pool_ref[...], y.astype(jnp.bfloat16),
                    preferred_element_type=jnp.float32)
    o_ref[0] = y.astype(o_ref.dtype)


def _conv3_res_kernel(*refs, has_down, use_pool):
    """Per-image conv3 (1x1) + bn3 + residual (+ downsample pool/1x1/bn) + relu3."""
    if has_down:
        if use_pool:
            (y2_ref, x_ref, pool_ref, w3_ref, wd_ref,
             s3_ref, b3_ref, sd_ref, bd_ref, o_ref) = refs
        else:
            (y2_ref, x_ref, w3_ref, wd_ref,
             s3_ref, b3_ref, sd_ref, bd_ref, o_ref) = refs
    else:
        y2_ref, x_ref, w3_ref, s3_ref, b3_ref, o_ref = refs

    y = jnp.dot(y2_ref[0], w3_ref[...], preferred_element_type=jnp.float32)
    y = y * s3_ref[...] + b3_ref[...]

    if has_down:
        xr = x_ref[0]
        if use_pool:
            xr = jnp.dot(pool_ref[...], xr,
                         preferred_element_type=jnp.float32).astype(jnp.bfloat16)
        idn = jnp.dot(xr, wd_ref[...], preferred_element_type=jnp.float32)
        y = y + (idn * sd_ref[...] + bd_ref[...])
    else:
        y = y + x_ref[0].astype(jnp.float32)            # bf16 residual, f32 add

    o_ref[0] = jnp.maximum(y, 0.0).astype(o_ref.dtype)


# ----------------------------------------------------------------------------- wrappers
def conv1_1x1_bn_relu(x_rows, w4d, scale, bias):
    """x_rows: (N, HW, Cp) bf16 lane-padded. Returns (N, HW, Pp) bf16."""
    N, HW, Cp = x_rows.shape
    P, Cin = w4d.shape[0], w4d.shape[1]
    Pp = _rup(P, LANE)
    R = N * HW
    tm, Rp = _row_tile(R)

    x2d = x_rows.reshape(R, Cp)
    if Rp != R:
        x2d = jnp.zeros((Rp, Cp), x2d.dtype).at[:R].set(x2d)
    wp = _pad2(w4d.reshape(P, Cin).T, Cp, Pp, jnp.bfloat16)
    sp = _pad_vec(scale, Pp)
    bp = _pad_vec(bias, Pp)

    out = pl.pallas_call(
        _conv1x1_kernel,
        out_shape=jax.ShapeDtypeStruct((Rp, Pp), jnp.bfloat16),
        grid=(Rp // tm,),
        in_specs=[
            pl.BlockSpec((tm, Cp), lambda i: (i, 0)),
            pl.BlockSpec((Cp, Pp), lambda i: (0, 0)),
            pl.BlockSpec((1, Pp), lambda i: (0, 0)),
            pl.BlockSpec((1, Pp), lambda i: (0, 0)),
        ],
        out_specs=pl.BlockSpec((tm, Pp), lambda i: (i, 0)),
        compiler_params=_mosaic_params("parallel"),
        cost_estimate=pl.CostEstimate(
            flops=2 * Rp * Cp * Pp, transcendentals=0,
            bytes_accessed=2 * (Rp * Cp + Cp * Pp + Rp * Pp)),
    )(x2d, wp, sp, bp)
    return out[:R].reshape(N, HW, Pp)


def conv2_3x3_bn_relu_pool(y1_rows, H, W, w4d, scale, bias, stride):
    """y1_rows: (N, H*W, Cp) bf16. Returns (N, (H//s)*(W//s), Pp) bf16."""
    N, _, Cp = y1_rows.shape
    P, Cin = w4d.shape[0], w4d.shape[1]
    Pp = _rup(P, LANE)
    Ho, Wo = H // stride, W // stride

    # Spatial pad=1 on the bf16 lane-padded activation (only wrapper-side pad pass).
    xpad = jnp.pad(y1_rows.reshape(N, H, W, Cp), ((0, 0), (1, 1), (1, 1), (0, 0)))

    wt = jnp.transpose(w4d, (2, 3, 1, 0)).reshape(9, Cin, P)     # (kh, kw, in, out)
    wp = jnp.zeros((9, Cp, Pp), jnp.bfloat16).at[:, :Cin, :P].set(wt.astype(jnp.bfloat16))
    sp = _pad_vec(scale, Pp)
    bp = _pad_vec(bias, Pp)

    args = [xpad, wp, sp, bp]
    in_specs = [
        pl.BlockSpec((1, H + 2, W + 2, Cp), lambda n: (n, 0, 0, 0)),
        pl.BlockSpec((9, Cp, Pp), lambda n: (0, 0, 0)),
        pl.BlockSpec((1, Pp), lambda n: (0, 0)),
        pl.BlockSpec((1, Pp), lambda n: (0, 0)),
    ]
    if stride > 1:
        args.append(_pool_matrix(H, W, stride))
        in_specs.append(pl.BlockSpec((Ho * Wo, H * W), lambda n: (0, 0)))

    flops = 2 * N * H * W * 9 * Cp * Pp
    if stride > 1:
        flops += 2 * N * Ho * Wo * H * W * Pp
    return pl.pallas_call(
        functools.partial(_conv3x3_kernel, H=H, W=W, C=Cp, O=Pp, stride=stride),
        out_shape=jax.ShapeDtypeStruct((N, Ho * Wo, Pp), jnp.bfloat16),
        grid=(N,),
        in_specs=in_specs,
        out_specs=pl.BlockSpec((1, Ho * Wo, Pp), lambda n: (n, 0, 0)),
        compiler_params=_mosaic_params("parallel"),
        cost_estimate=pl.CostEstimate(
            flops=flops, transcendentals=0,
            bytes_accessed=2 * (N * (H + 2) * (W + 2) * Cp + 9 * Cp * Pp
                                + N * Ho * Wo * Pp)),
    )(*args)


def conv3_1x1_bn_res_relu(y2_rows, x_rows, H, W, w4d, scale, bias, down=None):
    """conv3 + bn3 + residual (+ fused downsample branch) + relu3. Returns (N, Rr, Op) f32."""
    N, Rr, Cp = y2_rows.shape
    O, Cin3 = w4d.shape[0], w4d.shape[1]
    Op = _rup(O, LANE)
    HW, Cin_p = x_rows.shape[1], x_rows.shape[2]

    w3p = _pad2(w4d.reshape(O, Cin3).T, Cp, Op, jnp.bfloat16)
    s3p = _pad_vec(scale, Op)
    b3p = _pad_vec(bias, Op)

    has_down = down is not None
    use_pool = has_down and down["stride"] > 1

    args = [y2_rows, x_rows]
    in_specs = [
        pl.BlockSpec((1, Rr, Cp), lambda n: (n, 0, 0)),
        pl.BlockSpec((1, HW, Cin_p), lambda n: (n, 0, 0)),
    ]
    if has_down:
        if use_pool:
            args.append(_pool_matrix(H, W, down["stride"]))
            in_specs.append(pl.BlockSpec((Rr, HW), lambda n: (0, 0)))
        wdp = _pad2(down["w4d"].reshape(O, down["w4d"].shape[1]).T, Cin_p, Op, jnp.bfloat16)
        sdp = _pad_vec(down["scale"], Op)
        bdp = _pad_vec(down["bias"], Op)
        args += [w3p, wdp, s3p, b3p, sdp, bdp]
        in_specs += [
            pl.BlockSpec((Cp, Op), lambda n: (0, 0)),
            pl.BlockSpec((Cin_p, Op), lambda n: (0, 0)),
            pl.BlockSpec((1, Op), lambda n: (0, 0)),
            pl.BlockSpec((1, Op), lambda n: (0, 0)),
            pl.BlockSpec((1, Op), lambda n: (0, 0)),
            pl.BlockSpec((1, Op), lambda n: (0, 0)),
        ]
    else:
        assert Cin_p == Op and HW == Rr, "identity residual shape mismatch"
        args += [w3p, s3p, b3p]
        in_specs += [
            pl.BlockSpec((Cp, Op), lambda n: (0, 0)),
            pl.BlockSpec((1, Op), lambda n: (0, 0)),
            pl.BlockSpec((1, Op), lambda n: (0, 0)),
        ]

    flops = 2 * N * Rr * Cp * Op
    if has_down:
        flops += 2 * N * Rr * Cin_p * Op
        if use_pool:
            flops += 2 * N * Rr * HW * Cin_p
    return pl.pallas_call(
        functools.partial(_conv3_res_kernel, has_down=has_down, use_pool=use_pool),
        out_shape=jax.ShapeDtypeStruct((N, Rr, Op), jnp.float32),
        grid=(N,),
        in_specs=in_specs,
        out_specs=pl.BlockSpec((1, Rr, Op), lambda n: (n, 0, 0)),
        compiler_params=_mosaic_params("parallel"),
        cost_estimate=pl.CostEstimate(
            flops=flops, transcendentals=0,
            bytes_accessed=2 * (N * Rr * Cp + N * HW * Cin_p) + 4 * N * Rr * Op),
    )(*args)


# ----------------------------------------------------------------------------- bottleneck
def bottleneck_forward(x_nchw, p):
    stride = p["stride"]
    N, Cin, H, W = x_nchw.shape
    O = p["conv3_w"].shape[0]
    if "down_w" not in p:
        assert stride == 1 and Cin == O, "downsample branch required for this config"

    Cin_p = _rup(Cin, LANE)
    x_nhwc = jnp.transpose(x_nchw, (0, 2, 3, 1)).astype(jnp.bfloat16)
    x_pad = jnp.zeros((N, H, W, Cin_p), jnp.bfloat16).at[..., :Cin].set(x_nhwc)
    x_rows = x_pad.reshape(N, H * W, Cin_p)

    s1, b1 = _bn_scale_bias(p, "bn1")
    y1 = conv1_1x1_bn_relu(x_rows, p["conv1_w"], s1, b1)               # (N, HW, P1p)

    s2, b2 = _bn_scale_bias(p, "bn2")
    y2 = conv2_3x3_bn_relu_pool(y1, H, W, p["conv2_w"], s2, b2, stride)

    s3, b3 = _bn_scale_bias(p, "bn3")
    down = None
    if "down_w" in p:
        sd, bd = _bn_scale_bias(p, "down_bn")
        down = dict(w4d=p["down_w"], scale=sd, bias=bd, stride=stride)
    y3 = conv3_1x1_bn_res_relu(y2, x_rows, H, W, p["conv3_w"], s3, b3, down=down)

    Ho, Wo = H // stride, W // stride
    out = y3.reshape(N, Ho, Wo, -1)[..., :O]
    return jnp.transpose(out, (0, 3, 1, 2))                            # back to NCHW


# ----------------------------------------------------------------------------- reference
def _conv_ref(x, w, stride=1, padding=0):
    return jax.lax.conv_general_dilated(
        x, w, window_strides=(stride, stride),
        padding=[(padding, padding), (padding, padding)],
        dimension_numbers=("NCHW", "OIHW", "NCHW"))


def _bn_ref(x, p, prefix, eps=1e-5):
    s = p[prefix + "_g"] / jnp.sqrt(p[prefix + "_rv"] + eps)
    b = p[prefix + "_b"] - p[prefix + "_rm"] * s
    return x * s[None, :, None, None] + b[None, :, None, None]


def _avgpool_ref(x, k):
    if k == 1:
        return x
    N, C, H, W = x.shape
    return x.reshape(N, C, H // k, k, W // k, k).mean(axis=(3, 5))


def bottleneck_reference(x, p):
    out = jax.nn.relu(_bn_ref(_conv_ref(x, p["conv1_w"]), p, "bn1"))
    out = jax.nn.relu(_bn_ref(_conv_ref(out, p["conv2_w"], padding=1), p, "bn2"))
    out = _avgpool_ref(out, p["stride"])
    out = _bn_ref(_conv_ref(out, p["conv3_w"]), p, "bn3")
    if "down_w" in p:
        identity = _bn_ref(_conv_ref(_avgpool_ref(x, p["stride"]), p["down_w"]), p, "down_bn")
    else:
        identity = x
    return jax.nn.relu(out + identity)


# ----------------------------------------------------------------------------- params
def init_bottleneck_params(key, inplanes, planes, stride=1):
    expansion = 4
    keys = jax.random.split(key, 8)

    def nrm(k, shape, std):
        return std * jax.random.normal(k, shape, jnp.float32)

    def bn_params(k, n, prefix, p):
        kg, kb = jax.random.split(k)
        p[prefix + "_g"] = 1.0 + 0.1 * jax.random.normal(kg, (n,), jnp.float32)
        p[prefix + "_b"] = 0.1 * jax.random.normal(kb, (n,), jnp.float32)
        p[prefix + "_rm"] = jnp.zeros((n,), jnp.float32)
        p[prefix + "_rv"] = jnp.ones((n,), jnp.float32)

    p = {"stride": stride}
    p["conv1_w"] = nrm(keys[0], (planes, inplanes, 1, 1), inplanes ** -0.5)
    bn_params(keys[1], planes, "bn1", p)
    p["conv2_w"] = nrm(keys[2], (planes, planes, 3, 3), (planes * 9) ** -0.5)
    bn_params(keys[3], planes, "bn2", p)
    p["conv3_w"] = nrm(keys[4], (planes * expansion, planes, 1, 1), planes ** -0.5)
    bn_params(keys[5], planes * expansion, "bn3", p)
    if stride > 1 or inplanes != planes * expansion:
        p["down_w"] = nrm(keys[6], (planes * expansion, inplanes, 1, 1), inplanes ** -0.5)
        bn_params(keys[7], planes * expansion, "down_bn", p)
    return p


# ----------------------------------------------------------------------------- main
if __name__ == "__main__":
    key = jax.random.PRNGKey(0)
    k_x, k_p1, k_p2 = jax.random.split(key, 3)

    inplanes, planes = 16, 8
    x = jax.random.normal(k_x, (2, inplanes, 16, 16), jnp.float32)

    # Block 1: stride=2 -> exercises fused avgpool + fused downsample branch.
    # Block 2: stride=1, inplanes == planes*4 -> identity (no downsample) residual.
    p1 = init_bottleneck_params(k_p1, inplanes, planes, stride=2)
    p2 = init_bottleneck_params(k_p2, planes * 4, planes, stride=1)

    fwd = jax.jit(lambda inp: bottleneck_forward(bottleneck_forward(inp, p1), p2))
    y = fwd(x)
    jax.block_until_ready(y)

    assert y.shape == (2, planes * 4, 8, 8), y.shape
    assert bool(jnp.all(jnp.isfinite(y)))
    assert bool(jnp.all(y >= 0.0))           # final ReLU

    ref = bottleneck_reference(bottleneck_reference(x, p1), p2)
    rel_err = float(jnp.max(jnp.abs(y - ref)) / (jnp.max(jnp.abs(ref)) + 1e-6))
    assert rel_err < 0.03, f"mismatch vs reference: rel_err={rel_err}"

    print("KERNEL_OK")
</pallas_src>

<mosaic_0001>
module attributes {stable_mosaic.version = 11 : i64} {
  func.func @_conv1x1_kernel(%arg0: i32, %arg1: memref<256x128xbf16, #tpu.memory_space<vmem>>, %arg2: memref<128x128xbf16, #tpu.memory_space<vmem>>, %arg3: memref<1x128xf32, #tpu.memory_space<vmem>>, %arg4: memref<1x128xf32, #tpu.memory_space<vmem>>, %arg5: memref<256x128xbf16, #tpu.memory_space<vmem>>) attributes {dimension_semantics = [#tpu.dimension_semantics<parallel>], iteration_bounds = array<i64: 2>, scalar_prefetch = 0 : i64, scratch_operands = 0 : i64, tpu.core_type = #tpu.core_type<tc>, window_params = [{transform_indices = @transform_0, window_bounds = array<i64: 256, 128>}, {pipeline_mode = #tpu.pipeline_mode<synchronous>, transform_indices = @transform_1, window_bounds = array<i64: 128, 128>}, {pipeline_mode = #tpu.pipeline_mode<synchronous>, transform_indices = @transform_2, window_bounds = array<i64: 1, 128>}, {pipeline_mode = #tpu.pipeline_mode<synchronous>, transform_indices = @transform_3, window_bounds = array<i64: 1, 128>}, {transform_indices = @transform_4, window_bounds = array<i64: 256, 128>}]} {
    %c0 = arith.constant 0 : index
    %c0_0 = arith.constant 0 : index
    %0 = vector.load %arg1[%c0, %c0_0] : memref<256x128xbf16, #tpu.memory_space<vmem>>, vector<256x128xbf16>
    %c0_1 = arith.constant 0 : index
    %c0_2 = arith.constant 0 : index
    %1 = vector.load %arg2[%c0_1, %c0_2] : memref<128x128xbf16, #tpu.memory_space<vmem>>, vector<128x128xbf16>
    %cst = arith.constant dense<0.000000e+00> : vector<256x128xf32>
    %2 = tpu.matmul %0, %1, %cst {dimension_numbers = #tpu.dot_dimension_numbers<[1], [0], [0], [1], [0, 0, 1, 1], [], []>} : vector<256x128xbf16>, vector<128x128xbf16>, vector<256x128xf32> -> vector<256x128xf32>
    %c0_3 = arith.constant 0 : index
    %c0_4 = arith.constant 0 : index
    %3 = vector.load %arg3[%c0_3, %c0_4] : memref<1x128xf32, #tpu.memory_space<vmem>>, vector<1x128xf32>
    %4 = vector.broadcast %3 : vector<1x128xf32> to vector<256x128xf32>
    %5 = arith.mulf %2, %4 : vector<256x128xf32>
    %c0_5 = arith.constant 0 : index
    %c0_6 = arith.constant 0 : index
    %6 = vector.load %arg4[%c0_5, %c0_6] : memref<1x128xf32, #tpu.memory_space<vmem>>, vector<1x128xf32>
    %7 = vector.broadcast %6 : vector<1x128xf32> to vector<256x128xf32>
    %8 = arith.addf %5, %7 : vector<256x128xf32>
    %cst_7 = arith.constant 0.000000e+00 : f32
    %9 = vector.broadcast %cst_7 : f32 to vector<256x128xf32>
    %10 = arith.maximumf %8, %9 : vector<256x128xf32>
    %11 = arith.truncf %10 : vector<256x128xf32> to vector<256x128xbf16>
    %c0_8 = arith.constant 0 : index
    %c0_9 = arith.constant 0 : index
    %12 = vector.load %arg5[%c0_8, %c0_9] : memref<256x128xbf16, #tpu.memory_space<vmem>>, vector<256x128xbf16>
    tpu.vector_store %arg5[%c0_8, %c0_9], %11 {strides = array<i32>} : memref<256x128xbf16, #tpu.memory_space<vmem>>, vector<256x128xbf16>,
    return
  }
  func.func @transform_0(%arg0: i32) -> (i32, i32) {
    %c0_i32 = arith.constant 0 : i32
    %c0_i32_0 = arith.constant 0 : i32
    return %arg0, %c0_i32 : i32, i32
  }
  func.func @transform_1(%arg0: i32) -> (i32, i32) {
    %c0_i32 = arith.constant 0 : i32
    %c0_i32_0 = arith.constant 0 : i32
    %c0_i32_1 = arith.constant 0 : i32
    return %c0_i32, %c0_i32_0 : i32, i32
  }
  func.func @transform_2(%arg0: i32) -> (i32, i32) {
    %c0_i32 = arith.constant 0 : i32
    %c0_i32_0 = arith.constant 0 : i32
    %c0_i32_1 = arith.constant 0 : i32
    return %c0_i32, %c0_i32_0 : i32, i32
  }
  func.func @transform_3(%arg0: i32) -> (i32, i32) {
    %c0_i32 = arith.constant 0 : i32
    %c0_i32_0 = arith.constant 0 : i32
    %c0_i32_1 = arith.constant 0 : i32
    return %c0_i32, %c0_i32_0 : i32, i32
  }
  func.func @transform_4(%arg0: i32) -> (i32, i32) {
    %c0_i32 = arith.constant 0 : i32
    %c0_i32_0 = arith.constant 0 : i32
    return %arg0, %c0_i32 : i32, i32
  }
}

module attributes {stable_mosaic.version = 11 : i64} {
  func.func @_conv3x3_kernel(%arg0: i32, %arg1: memref<1x18x18x128xbf16, #tpu.memory_space<vmem>>, %arg2: memref<9x128x128xbf16, #tpu.memory_space<vmem>>, %arg3: memref<1x128xf32, #tpu.memory_space<vmem>>, %arg4: memref<1x128xf32, #tpu.memory_space<vmem>>, %arg5: memref<64x256xbf16, #tpu.memory_space<vmem>>, %arg6: memref<1x64x128xbf16, #tpu.memory_space<vmem>>) attributes {dimension_semantics = [#tpu.dimension_semantics<parallel>], iteration_bounds = array<i64: 2>, scalar_prefetch = 0 : i64, scratch_operands = 0 : i64, tpu.core_type = #tpu.core_type<tc>, window_params = [{transform_indices = @transform_0, window_bounds = array<i64: 1, 18, 18, 128>}, {pipeline_mode = #tpu.pipeline_mode<synchronous>, transform_indices = @transform_1, window_bounds = array<i64: 9, 128, 128>}, {pipeline_mode = #tpu.pipeline_mode<synchronous>, transform_indices = @transform_2, window_bounds = array<i64: 1, 128>}, {pipeline_mode = #tpu.pipeline_mode<synchronous>, transform_indices = @transform_3, window_bounds = array<i64: 1, 128>}, {pipeline_mode = #tpu.pipeline_mode<synchronous>, transform_indices = @transform_4, window_bounds = array<i64: 64, 256>}, {transform_indices = @transform_5, window_bounds = array<i64: 1, 64, 128>}]} {
    %c0 = arith.constant 0 : index
    %c0_0 = arith.constant 0 : index
    %c0_1 = arith.constant 0 : index
    %c0_2 = arith.constant 0 : index
    %0 = vector.load %arg1[%c0, %c0_0, %c0_1, %c0_2] : memref<1x18x18x128xbf16, #tpu.memory_space<vmem>>, vector<1x18x18x128xbf16>
    %1 = vector.shape_cast %0 : vector<1x18x18x128xbf16> to vector<18x18x128xbf16>
    %2 = arith.extf %1 : vector<18x18x128xbf16> to vector<18x18x128xf32>
    %cst = arith.constant 0.000000e+00 : f32
    %3 = vector.broadcast %cst : f32 to vector<256x128xf32>
    %4 = vector.extract_strided_slice %2 {offsets = [0, 0, 0], sizes = [16, 16, 128], strides = [1, 1, 1]} : vector<18x18x128xf32> to vector<16x16x128xf32>
    %5 = vector.shape_cast %4 : vector<16x16x128xf32> to vector<256x128xf32>
    %6 = arith.truncf %5 : vector<256x128xf32> to vector<256x128xbf16>
    %c0_3 = arith.constant 0 : index
    %c0_4 = arith.constant 0 : index
    %c0_5 = arith.constant 0 : index
    %7 = vector.load %arg2[%c0_3, %c0_4, %c0_5] : memref<9x128x128xbf16, #tpu.memory_space<vmem>>, vector<1x128x128xbf16>
    %8 = vector.shape_cast %7 : vector<1x128x128xbf16> to vector<128x128xbf16>
    %cst_6 = arith.constant dense<0.000000e+00> : vector<256x128xf32>
    %9 = tpu.matmul %6, %8, %cst_6 {dimension_numbers = #tpu.dot_dimension_numbers<[1], [0], [0], [1], [0, 0, 1, 1], [], []>} : vector<256x128xbf16>, vector<128x128xbf16>, vector<256x128xf32> -> vector<256x128xf32>
    %10 = arith.addf %3, %9 : vector<256x128xf32>
    %11 = vector.extract_strided_slice %2 {offsets = [0, 1, 0], sizes = [16, 16, 128], strides = [1, 1, 1]} : vector<18x18x128xf32> to vector<16x16x128xf32>
    %12 = vector.shape_cast %11 : vector<16x16x128xf32> to vector<256x128xf32>
    %13 = arith.truncf %12 : vector<256x128xf32> to vector<256x128xbf16>
    %c1 = arith.constant 1 : index
    %c0_7 = arith.constant 0 : index
    %c0_8 = arith.constant 0 : index
    %14 = vector.load %arg2[%c1, %c0_7, %c0_8] : memref<9x128x128xbf16, #tpu.memory_space<vmem>>, vector<1x128x128xbf16>
    %15 = vector.shape_cast %14 : vector<1x128x128xbf16> to vector<128x128xbf16>
    %cst_9 = arith.constant dense<0.000000e+00> : vector<256x128xf32>
    %16 = tpu.matmul %13, %15, %cst_9 {dimension_numbers = #tpu.dot_dimension_numbers<[1], [0], [0], [1], [0, 0, 1, 1], [], []>} : vector<256x128xbf16>, vector<128x128xbf16>, vector<256x128xf32> -> vector<256x128xf32>
    %17 = arith.addf %10, %16 : vector<256x128xf32>
    %18 = vector.extract_strided_slice %2 {offsets = [0, 2, 0], sizes = [16, 16, 128], strides = [1, 1, 1]} : vector<18x18x128xf32> to vector<16x16x128xf32>
    %19 = vector.shape_cast %18 : vector<16x16x128xf32> to vector<256x128xf32>
    %20 = arith.truncf %19 : vector<256x128xf32> to vector<256x128xbf16>
    %c2 = arith.constant 2 : index
    %c0_10 = arith.constant 0 : index
    %c0_11 = arith.constant 0 : index
    %21 = vector.load %arg2[%c2, %c0_10, %c0_11] : memref<9x128x128xbf16, #tpu.memory_space<vmem>>, vector<1x128x128xbf16>
    %22 = vector.shape_cast %21 : vector<1x128x128xbf16> to vector<128x128xbf16>
    %cst_12 = arith.constant dense<0.000000e+00> : vector<256x128xf32>
    %23 = tpu.matmul %20, %22, %cst_12 {dimension_numbers = #tpu.dot_dimension_numbers<[1], [0], [0], [1], [0, 0, 1, 1], [], []>} : vector<256x128xbf16>, vector<128x128xbf16>, vector<256x128xf32> -> vector<256x128xf32>
    %24 = arith.addf %17, %23 : vector<256x128xf32>
    %25 = vector.extract_strided_slice %2 {offsets = [1, 0, 0], sizes = [16, 16, 128], strides = [1, 1, 1]} : vector<18x18x128xf32> to vector<16x16x128xf32>
    %26 = vector.shape_cast %25 : vector<16x16x128xf32> to vector<256x128xf32>
    %27 = arith.truncf %26 : vector<256x128xf32> to vector<256x128xbf16>
    %c3 = arith.constant 3 : index
    %c0_13 = arith.constant 0 : index
    %c0_14 = arith.constant 0 : index
    %28 = vector.load %arg2[%c3, %c0_13, %c0_14] : memref<9x128x128xbf16, #tpu.memory_space<vmem>>, vector<1x128x128xbf16>
    %29 = vector.shape_cast %28 : vector<1x128x128xbf16> to vector<128x128xbf16>
    %cst_15 = arith.constant dense<0.000000e+00> : vector<256x128xf32>
    %30 = tpu.matmul %27, %29, %cst_15 {dimension_numbers = #tpu.dot_dimension_numbers<[1], [0], [0], [1], [0, 0, 1, 1], [], []>} : vector<256x128xbf16>, vector<128x128xbf16>, vector<256x128xf32> -> vector<256x128xf32>
    %31 = arith.addf %24, %30 : vector<256x128xf32>
    %32 = vector.extract_strided_slice %2 {offsets = [1, 1, 0], sizes = [16, 16, 128], strides = [1, 1, 1]} : vector<18x18x128xf32> to vector<16x16x128xf32>
    %33 = vector.shape_cast %32 : vector<16x16x128xf32> to vector<256x128xf32>
    %34 = arith.truncf %33 : vector<256x128xf32> to vector<256x128xbf16>
    %c4 = arith.constant 4 : index
    %c0_16 = arith.constant 0 : index
    %c0_17 = arith.constant 0 : index
    %35 = vector.load %arg2[%c4, %c0_16, %c0_17] : memref<9x128x128xbf16, #tpu.memory_space<vmem>>, vector<1x128x128xbf16>
    %36 = vector.shape_cast %35 : vector<1x128x128xbf16> to vector<128x128xbf16>
    %cst_18 = arith.constant dense<0.000000e+00> : vector<256x128xf32>
    %37 = tpu.matmul %34, %36, %cst_18 {dimension_numbers = #tpu.dot_dimension_numbers<[1], [0], [0], [1], [0, 0, 1, 1], [], []>} : vector<256x128xbf16>, vector<128x128xbf16>, vector<256x128xf32> -> vector<256x128xf32>
    %38 = arith.addf %31, %37 : vector<256x128xf32>
    %39 = vector.extract_strided_slice %2 {offsets = [1, 2, 0], sizes = [16, 16, 128], strides = [1, 1, 1]} : vector<18x18x128xf32> to vector<16x16x128xf32>
    %40 = vector.shape_cast %39 : vector<16x16x128xf32> to vector<256x128xf32>
    %41 = arith.truncf %40 : vector<256x128xf32> to vector<256x128xbf16>
    %c5 = arith.constant 5 : index
    %c0_19 = arith.constant 0 : index
    %c0_20 = arith.constant 0 : index
    %42 = vector.load %arg2[%c5, %c0_19, %c0_20] : memref<9x128x128xbf16, #tpu.memory_space<vmem>>, vector<1x128x128xbf16>
    %43 = vector.shape_cast %42 : vector<1x128x128xbf16> to vector<128x128xbf16>
    %cst_21 = arith.constant dense<0.000000e+00> : vector<256x128xf32>
    %44 = tpu.matmul %41, %43, %cst_21 {dimension_numbers = #tpu.dot_dimension_numbers<[1], [0], [0], [1], [0, 0, 1, 1], [], []>} : vector<256x128xbf16>, vector<128x128xbf16>, vector<256x128xf32> -> vector<256x128xf32>
    %45 = arith.addf %38, %44 : vector<256x128xf32>
    %46 = vector.extract_strided_slice %2 {offsets = [2, 0, 0], sizes = [16, 16, 128], strides = [1, 1, 1]} : vector<18x18x128xf32> to vector<16x16x128xf32>
    %47 = vector.shape_cast %46 : vector<16x16x128xf32> to vector<256x128xf32>
    %48 = arith.truncf %47 : vector<256x128xf32> to vector<256x128xbf16>
    %c6 = arith.constant 6 : index
    %c0_22 = arith.constant 0 : index
    %c0_23 = arith.constant 0 : index
    %49 = vector.load %arg2[%c6, %c0_22, %c0_23] : memref<9x128x128xbf16, #tpu.memory_space<vmem>>, vector<1x128x128xbf16>
    %50 = vector.shape_cast %49 : vector<1x128x128xbf16> to vector<128x128xbf16>
    %cst_24 = arith.constant dense<0.000000e+00> : vector<256x128xf32>
    %51 = tpu.matmul %48, %50, %cst_24 {dimension_numbers = #tpu.dot_dimension_numbers<[1], [0], [0], [1], [0, 0, 1, 1], [], []>} : vector<256x128xbf16>, vector<128x128xbf16>, vector<256x128xf32> -> vector<256x128xf32>
    %52 = arith.addf %45, %51 : vector<256x128xf32>
    %53 = vector.extract_strided_slice %2 {offsets = [2, 1, 0], sizes = [16, 16, 128], strides = [1, 1, 1]} : vector<18x18x128xf32> to vector<16x16x128xf32>
    %54 = vector.shape_cast %53 : vector<16x16x128xf32> to vector<256x128xf32>
    %55 = arith.truncf %54 : vector<256x128xf32> to vector<256x128xbf16>
    %c7 = arith.constant 7 : index
    %c0_25 = arith.constant 0 : index
    %c0_26 = arith.constant 0 : index
    %56 = vector.load %arg2[%c7, %c0_25, %c0_26] : memref<9x128x128xbf16, #tpu.memory_space<vmem>>, vector<1x128x128xbf16>
    %57 = vector.shape_cast %56 : vector<1x128x128xbf16> to vector<128x128xbf16>
    %cst_27 = arith.constant dense<0.000000e+00> : vector<256x128xf32>
    %58 = tpu.matmul %55, %57, %cst_27 {dimension_numbers = #tpu.dot_dimension_numbers<[1], [0], [0], [1], [0, 0, 1, 1], [], []>} : vector<256x128xbf16>, vector<128x128xbf16>, vector<256x128xf32> -> vector<256x128xf32>
    %59 = arith.addf %52, %58 : vector<256x128xf32>
    %60 = vector.extract_strided_slice %2 {offsets = [2, 2, 0], sizes = [16, 16, 128], strides = [1, 1, 1]} : vector<18x18x128xf32> to vector<16x16x128xf32>
    %61 = vector.shape_cast %60 : vector<16x16x128xf32> to vector<256x128xf32>
    %62 = arith.truncf %61 : vector<256x128xf32> to vector<256x128xbf16>
    %c8 = arith.constant 8 : index
    %c0_28 = arith.constant 0 : index
    %c0_29 = arith.constant 0 : index
    %63 = vector.load %arg2[%c8, %c0_28, %c0_29] : memref<9x128x128xbf16, #tpu.memory_space<vmem>>, vector<1x128x128xbf16>
    %64 = vector.shape_cast %63 : vector<1x128x128xbf16> to vector<128x128xbf16>
    %cst_30 = arith.constant dense<0.000000e+00> : vector<256x128xf32>
    %65 = tpu.matmul %62, %64, %cst_30 {dimension_numbers = #tpu.dot_dimension_numbers<[1], [0], [0], [1], [0, 0, 1, 1], [], []>} : vector<256x128xbf16>, vector<128x128xbf16>, vector<256x128xf32> -> vector<256x128xf32>
    %66 = arith.addf %59, %65 : vector<256x128xf32>
    %c0_31 = arith.constant 0 : index
    %c0_32 = arith.constant 0 : index
    %67 = vector.load %arg3[%c0_31, %c0_32] : memref<1x128xf32, #tpu.memory_space<vmem>>, vector<1x128xf32>
    %68 = vector.broadcast %67 : vector<1x128xf32> to vector<256x128xf32>
    %69 = arith.mulf %66, %68 : vector<256x128xf32>
    %c0_33 = arith.constant 0 : index
    %c0_34 = arith.constant 0 : index
    %70 = vector.load %arg4[%c0_33, %c0_34] : memref<1x128xf32, #tpu.memory_space<vmem>>, vector<1x128xf32>
    %71 = vector.broadcast %70 : vector<1x128xf32> to vector<256x128xf32>
    %72 = arith.addf %69, %71 : vector<256x128xf32>
    %cst_35 = arith.constant 0.000000e+00 : f32
    %73 = vector.broadcast %cst_35 : f32 to vector<256x128xf32>
    %74 = arith.maximumf %72, %73 : vector<256x128xf32>
    %c0_36 = arith.constant 0 : index
    %c0_37 = arith.constant 0 : index
    %75 = vector.load %arg5[%c0_36, %c0_37] : memref<64x256xbf16, #tpu.memory_space<vmem>>, vector<64x256xbf16>
    %76 = arith.truncf %74 : vector<256x128xf32> to vector<256x128xbf16>
    %cst_38 = arith.constant dense<0.000000e+00> : vector<64x128xf32>
    %77 = tpu.matmul %75, %76, %cst_38 {dimension_numbers = #tpu.dot_dimension_numbers<[1], [0], [0], [1], [0, 0, 1, 1], [], []>} : vector<64x256xbf16>, vector<256x128xbf16>, vector<64x128xf32> -> vector<64x128xf32>
    %78 = arith.truncf %77 : vector<64x128xf32> to vector<64x128xbf16>
    %c0_39 = arith.constant 0 : index
    %c0_40 = arith.constant 0 : index
    %c0_41 = arith.constant 0 : index
    %79 = vector.load %arg6[%c0_39, %c0_40, %c0_41] : memref<1x64x128xbf16, #tpu.memory_space<vmem>>, vector<1x64x128xbf16>
    %80 = vector.shape_cast %79 : vector<1x64x128xbf16> to vector<64x128xbf16>
    %81 = vector.shape_cast %78 : vector<64x128xbf16> to vector<1x64x128xbf16>
    tpu.vector_store %arg6[%c0_39, %c0_40, %c0_41], %81 {strides = array<i32>} : memref<1x64x128xbf16, #tpu.memory_space<vmem>>, vector<1x64x128xbf16>,
    return
  }
  func.func @transform_0(%arg0: i32) -> (i32, i32, i32, i32) {
    %c0_i32 = arith.constant 0 : i32
    %c0_i32_0 = arith.constant 0 : i32
    %c0_i32_1 = arith.constant 0 : i32
    %c0_i32_2 = arith.constant 0 : i32
    return %arg0, %c0_i32, %c0_i32_0, %c0_i32_1 : i32, i32, i32, i32
  }
  func.func @transform_1(%arg0: i32) -> (i32, i32, i32) {
    %c0_i32 = arith.constant 0 : i32
    %c0_i32_0 = arith.constant 0 : i32
    %c0_i32_1 = arith.constant 0 : i32
    %c0_i32_2 = arith.constant 0 : i32
    return %c0_i32, %c0_i32_0, %c0_i32_1 : i32, i32, i32
  }
  func.func @transform_2(%arg0: i32) -> (i32, i32) {
    %c0_i32 = arith.constant 0 : i32
    %c0_i32_0 = arith.constant 0 : i32
    %c0_i32_1 = arith.constant 0 : i32
    return %c0_i32, %c0_i32_0 : i32, i32
  }
  func.func @transform_3(%arg0: i32) -> (i32, i32) {
    %c0_i32 = arith.constant 0 : i32
    %c0_i32_0 = arith.constant 0 : i32
    %c0_i32_1 = arith.constant 0 : i32
    return %c0_i32, %c0_i32_0 : i32, i32
  }
  func.func @transform_4(%arg0: i32) -> (i32, i32) {
    %c0_i32 = arith.constant 0 : i32
    %c0_i32_0 = arith.constant 0 : i32
    %c0_i32_1 = arith.constant 0 : i32
    return %c0_i32, %c0_i32_0 : i32, i32
  }
  func.func @transform_5(%arg0: i32) -> (i32, i32, i32) {
    %c0_i32 = arith.constant 0 : i32
    %c0_i32_0 = arith.constant 0 : i32
    %c0_i32_1 = arith.constant 0 : i32
    return %arg0, %c0_i32, %c0_i32_0 : i32, i32, i32
  }
}

module attributes {stable_mosaic.version = 11 : i64} {
  func.func @_conv3_res_kernel(%arg0: i32, %arg1: memref<1x64x128xbf16, #tpu.memory_space<vmem>>, %arg2: memref<1x256x128xbf16, #tpu.memory_space<vmem>>, %arg3: memref<64x256xbf16, #tpu.memory_space<vmem>>, %arg4: memref<128x128xbf16, #tpu.memory_space<vmem>>, %arg5: memref<128x128xbf16, #tpu.memory_space<vmem>>, %arg6: memref<1x128xf32, #tpu.memory_space<vmem>>, %arg7: memref<1x128xf32, #tpu.memory_space<vmem>>, %arg8: memref<1x128xf32, #tpu.memory_space<vmem>>, %arg9: memref<1x128xf32, #tpu.memory_space<vmem>>, %arg10: memref<1x64x128xf32, #tpu.memory_space<vmem>>) attributes {dimension_semantics = [#tpu.dimension_semantics<parallel>], iteration_bounds = array<i64: 2>, scalar_prefetch = 0 : i64, scratch_operands = 0 : i64, tpu.core_type = #tpu.core_type<tc>, window_params = [{transform_indices = @transform_0, window_bounds = array<i64: 1, 64, 128>}, {transform_indices = @transform_1, window_bounds = array<i64: 1, 256, 128>}, {pipeline_mode = #tpu.pipeline_mode<synchronous>, transform_indices = @transform_2, window_bounds = array<i64: 64, 256>}, {pipeline_mode = #tpu.pipeline_mode<synchronous>, transform_indices = @transform_3, window_bounds = array<i64: 128, 128>}, {pipeline_mode = #tpu.pipeline_mode<synchronous>, transform_indices = @transform_4, window_bounds = array<i64: 128, 128>}, {pipeline_mode = #tpu.pipeline_mode<synchronous>, transform_indices = @transform_5, window_bounds = array<i64: 1, 128>}, {pipeline_mode = #tpu.pipeline_mode<synchronous>, transform_indices = @transform_6, window_bounds = array<i64: 1, 128>}, {pipeline_mode = #tpu.pipeline_mode<synchronous>, transform_indices = @transform_7, window_bounds = array<i64: 1, 128>}, {pipeline_mode = #tpu.pipeline_mode<synchronous>, transform_indices = @transform_8, window_bounds = array<i64: 1, 128>}, {transform_indices = @transform_9, window_bounds = array<i64: 1, 64, 128>}]} {
    %c0 = arith.constant 0 : index
    %c0_0 = arith.constant 0 : index
    %c0_1 = arith.constant 0 : index
    %0 = vector.load %arg1[%c0, %c0_0, %c0_1] : memref<1x64x128xbf16, #tpu.memory_space<vmem>>, vector<1x64x128xbf16>
    %1 = vector.shape_cast %0 : vector<1x64x128xbf16> to vector<64x128xbf16>
    %c0_2 = arith.constant 0 : index
    %c0_3 = arith.constant 0 : index
    %2 = vector.load %arg4[%c0_2, %c0_3] : memref<128x128xbf16, #tpu.memory_space<vmem>>, vector<128x128xbf16>
    %cst = arith.constant dense<0.000000e+00> : vector<64x128xf32>
    %3 = tpu.matmul %1, %2, %cst {dimension_numbers = #tpu.dot_dimension_numbers<[1], [0], [0], [1], [0, 0, 1, 1], [], []>} : vector<64x128xbf16>, vector<128x128xbf16>, vector<64x128xf32> -> vector<64x128xf32>
    %c0_4 = arith.constant 0 : index
    %c0_5 = arith.constant 0 : index
    %4 = vector.load %arg6[%c0_4, %c0_5] : memref<1x128xf32, #tpu.memory_space<vmem>>, vector<1x128xf32>
    %5 = vector.broadcast %4 : vector<1x128xf32> to vector<64x128xf32>
    %6 = arith.mulf %3, %5 : vector<64x128xf32>
    %c0_6 = arith.constant 0 : index
    %c0_7 = arith.constant 0 : index
    %7 = vector.load %arg7[%c0_6, %c0_7] : memref<1x128xf32, #tpu.memory_space<vmem>>, vector<1x128xf32>
    %8 = vector.broadcast %7 : vector<1x128xf32> to vector<64x128xf32>
    %9 = arith.addf %6, %8 : vector<64x128xf32>
    %c0_8 = arith.constant 0 : index
    %c0_9 = arith.constant 0 : index
    %c0_10 = arith.constant 0 : index
    %10 = vector.load %arg2[%c0_8, %c0_9, %c0_10] : memref<1x256x128xbf16, #tpu.memory_space<vmem>>, vector<1x256x128xbf16>
    %11 = vector.shape_cast %10 : vector<1x256x128xbf16> to vector<256x128xbf16>
    %c0_11 = arith.constant 0 : index
    %c0_12 = arith.constant 0 : index
    %12 = vector.load %arg3[%c0_11, %c0_12] : memref<64x256xbf16, #tpu.memory_space<vmem>>, vector<64x256xbf16>
    %cst_13 = arith.constant dense<0.000000e+00> : vector<64x128xf32>
    %13 = tpu.matmul %12, %11, %cst_13 {dimension_numbers = #tpu.dot_dimension_numbers<[1], [0], [0], [1], [0, 0, 1, 1], [], []>} : vector<64x256xbf16>, vector<256x128xbf16>, vector<64x128xf32> -> vector<64x128xf32>
    %14 = arith.truncf %13 : vector<64x128xf32> to vector<64x128xbf16>
    %c0_14 = arith.constant 0 : index
    %c0_15 = arith.constant 0 : index
    %15 = vector.load %arg5[%c0_14, %c0_15] : memref<128x128xbf16, #tpu.memory_space<vmem>>, vector<128x128xbf16>
    %cst_16 = arith.constant dense<0.000000e+00> : vector<64x128xf32>
    %16 = tpu.matmul %14, %15, %cst_16 {dimension_numbers = #tpu.dot_dimension_numbers<[1], [0], [0], [1], [0, 0, 1, 1], [], []>} : vector<64x128xbf16>, vector<128x128xbf16>, vector<64x128xf32> -> vector<64x128xf32>
    %c0_17 = arith.constant 0 : index
    %c0_18 = arith.constant 0 : index
    %17 = vector.load %arg8[%c0_17, %c0_18] : memref<1x128xf32, #tpu.memory_space<vmem>>, vector<1x128xf32>
    %18 = vector.broadcast %17 : vector<1x128xf32> to vector<64x128xf32>
    %19 = arith.mulf %16, %18 : vector<64x128xf32>
    %c0_19 = arith.constant 0 : index
    %c0_20 = arith.constant 0 : index
    %20 = vector.load %arg9[%c0_19, %c0_20] : memref<1x128xf32, #tpu.memory_space<vmem>>, vector<1x128xf32>
    %21 = vector.broadcast %20 : vector<1x128xf32> to vector<64x128xf32>
    %22 = arith.addf %19, %21 : vector<64x128xf32>
    %23 = arith.addf %9, %22 : vector<64x128xf32>
    %cst_21 = arith.constant 0.000000e+00 : f32
    %24 = vector.broadcast %cst_21 : f32 to vector<64x128xf32>
    %25 = arith.maximumf %23, %24 : vector<64x128xf32>
    %c0_22 = arith.constant 0 : index
    %c0_23 = arith.constant 0 : index
    %c0_24 = arith.constant 0 : index
    %26 = vector.load %arg10[%c0_22, %c0_23, %c0_24] : memref<1x64x128xf32, #tpu.memory_space<vmem>>, vector<1x64x128xf32>
    %27 = vector.shape_cast %26 : vector<1x64x128xf32> to vector<64x128xf32>
    %28 = vector.shape_cast %25 : vector<64x128xf32> to vector<1x64x128xf32>
    tpu.vector_store %arg10[%c0_22, %c0_23, %c0_24], %28 {strides = array<i32>} : memref<1x64x128xf32, #tpu.memory_space<vmem>>, vector<1x64x128xf32>,
    return
  }
  func.func @transform_0(%arg0: i32) -> (i32, i32, i32) {
    %c0_i32 = arith.constant 0 : i32
    %c0_i32_0 = arith.constant 0 : i32
    %c0_i32_1 = arith.constant 0 : i32
    return %arg0, %c0_i32, %c0_i32_0 : i32, i32, i32
  }
  func.func @transform_1(%arg0: i32) -> (i32, i32, i32) {
    %c0_i32 = arith.constant 0 : i32
    %c0_i32_0 = arith.constant 0 : i32
    %c0_i32_1 = arith.constant 0 : i32
    return %arg0, %c0_i32, %c0_i32_0 : i32, i32, i32
  }
  func.func @transform_2(%arg0: i32) -> (i32, i32) {
    %c0_i32 = arith.constant 0 : i32
    %c0_i32_0 = arith.constant 0 : i32
    %c0_i32_1 = arith.constant 0 : i32
    return %c0_i32, %c0_i32_0 : i32, i32
  }
  func.func @transform_3(%arg0: i32) -> (i32, i32) {
    %c0_i32 = arith.constant 0 : i32
    %c0_i32_0 = arith.constant 0 : i32
    %c0_i32_1 = arith.constant 0 : i32
    return %c0_i32, %c0_i32_0 : i32, i32
  }
  func.func @transform_4(%arg0: i32) -> (i32, i32) {
    %c0_i32 = arith.constant 0 : i32
    %c0_i32_0 = arith.constant 0 : i32
    %c0_i32_1 = arith.constant 0 : i32
    return %c0_i32, %c0_i32_0 : i32, i32
  }
  func.func @transform_5(%arg0: i32) -> (i32, i32) {
    %c0_i32 = arith.constant 0 : i32
    %c0_i32_0 = arith.constant 0 : i32
    %c0_i32_1 = arith.constant 0 : i32
    return %c0_i32, %c0_i32_0 : i32, i32
  }
  func.func @transform_6(%arg0: i32) -> (i32, i32) {
    %c0_i32 = arith.constant 0 : i32
    %c0_i32_0 = arith.constant 0 : i32
    %c0_i32_1 = arith.constant 0 : i32
    return %c0_i32, %c0_i32_0 : i32, i32
  }
  func.func @transform_7(%arg0: i32) -> (i32, i32) {
    %c0_i32 = arith.constant 0 : i32
    %c0_i32_0 = arith.constant 0 : i32
    %c0_i32_1 = arith.constant 0 : i32
    return %c0_i32, %c0_i32_0 : i32, i32
  }
  func.func @transform_8(%arg0: i32) -> (i32, i32) {
    %c0_i32 = arith.constant 0 : i32
    %c0_i32_0 = arith.constant 0 : i32
    %c0_i32_1 = arith.constant 0 : i32
    return %c0_i32, %c0_i32_0 : i32, i32
  }
  func.func @transform_9(%arg0: i32) -> (i32, i32, i32) {
    %c0_i32 = arith.constant 0 : i32
    %c0_i32_0 = arith.constant 0 : i32
    %c0_i32_1 = arith.constant 0 : i32
    return %arg0, %c0_i32, %c0_i32_0 : i32, i32, i32
  }
}

module attributes {stable_mosaic.version = 11 : i64} {
  func.func @_conv1x1_kernel(%arg0: i32, %arg1: memref<128x128xbf16, #tpu.memory_space<vmem>>, %arg2: memref<128x128xbf16, #tpu.memory_space<vmem>>, %arg3: memref<1x128xf32, #tpu.memory_space<vmem>>, %arg4: memref<1x128xf32, #tpu.memory_space<vmem>>, %arg5: memref<128x128xbf16, #tpu.memory_space<vmem>>) attributes {dimension_semantics = [#tpu.dimension_semantics<parallel>], iteration_bounds = array<i64: 1>, scalar_prefetch = 0 : i64, scratch_operands = 0 : i64, tpu.core_type = #tpu.core_type<tc>, window_params = [{transform_indices = @transform_0, window_bounds = array<i64: 128, 128>}, {pipeline_mode = #tpu.pipeline_mode<synchronous>, transform_indices = @transform_1, window_bounds = array<i64: 128, 128>}, {pipeline_mode = #tpu.pipeline_mode<synchronous>, transform_indices = @transform_2, window_bounds = array<i64: 1, 128>}, {pipeline_mode = #tpu.pipeline_mode<synchronous>, transform_indices = @transform_3, window_bounds = array<i64: 1, 128>}, {transform_indices = @transform_4, window_bounds = array<i64: 128, 128>}]} {
    %c0 = arith.constant 0 : index
    %c0_0 = arith.constant 0 : index
    %0 = vector.load %arg1[%c0, %c0_0] : memref<128x128xbf16, #tpu.memory_space<vmem>>, vector<128x128xbf16>
    %c0_1 = arith.constant 0 : index
    %c0_2 = arith.constant 0 : index
    %1 = vector.load %arg2[%c0_1, %c0_2] : memref<128x128xbf16, #tpu.memory_space<vmem>>, vector<128x128xbf16>
    %cst = arith.constant dense<0.000000e+00> : vector<128x128xf32>
    %2 = tpu.matmul %0, %1, %cst {dimension_numbers = #tpu.dot_dimension_numbers<[1], [0], [0], [1], [0, 0, 1, 1], [], []>} : vector<128x128xbf16>, vector<128x128xbf16>, vector<128x128xf32> -> vector<128x128xf32>
    %c0_3 = arith.constant 0 : index
    %c0_4 = arith.constant 0 : index
    %3 = vector.load %arg3[%c0_3, %c0_4] : memref<1x128xf32, #tpu.memory_space<vmem>>, vector<1x128xf32>
    %4 = vector.broadcast %3 : vector<1x128xf32> to vector<128x128xf32>
    %5 = arith.mulf %2, %4 : vector<128x128xf32>
    %c0_5 = arith.constant 0 : index
    %c0_6 = arith.constant 0 : index
    %6 = vector.load %arg4[%c0_5, %c0_6] : memref<1x128xf32, #tpu.memory_space<vmem>>, vector<1x128xf32>
    %7 = vector.broadcast %6 : vector<1x128xf32> to vector<128x128xf32>
    %8 = arith.addf %5, %7 : vector<128x128xf32>
    %cst_7 = arith.constant 0.000000e+00 : f32
    %9 = vector.broadcast %cst_7 : f32 to vector<128x128xf32>
    %10 = arith.maximumf %8, %9 : vector<128x128xf32>
    %11 = arith.truncf %10 : vector<128x128xf32> to vector<128x128xbf16>
    %c0_8 = arith.constant 0 : index
    %c0_9 = arith.constant 0 : index
    %12 = vector.load %arg5[%c0_8, %c0_9] : memref<128x128xbf16, #tpu.memory_space<vmem>>, vector<128x128xbf16>
    tpu.vector_store %arg5[%c0_8, %c0_9], %11 {strides = array<i32>} : memref<128x128xbf16, #tpu.memory_space<vmem>>, vector<128x128xbf16>,
    return
  }
  func.func @transform_0(%arg0: i32) -> (i32, i32) {
    %c0_i32 = arith.constant 0 : i32
    %c0_i32_0 = arith.constant 0 : i32
    return %arg0, %c0_i32 : i32, i32
  }
  func.func @transform_1(%arg0: i32) -> (i32, i32) {
    %c0_i32 = arith.constant 0 : i32
    %c0_i32_0 = arith.constant 0 : i32
    %c0_i32_1 = arith.constant 0 : i32
    return %c0_i32, %c0_i32_0 : i32, i32
  }
  func.func @transform_2(%arg0: i32) -> (i32, i32) {
    %c0_i32 = arith.constant 0 : i32
    %c0_i32_0 = arith.constant 0 : i32
    %c0_i32_1 = arith.constant 0 : i32
    return %c0_i32, %c0_i32_0 : i32, i32
  }
  func.func @transform_3(%arg0: i32) -> (i32, i32) {
    %c0_i32 = arith.constant 0 : i32
    %c0_i32_0 = arith.constant 0 : i32
    %c0_i32_1 = arith.constant 0 : i32
    return %c0_i32, %c0_i32_0 : i32, i32
  }
  func.func @transform_4(%arg0: i32) -> (i32, i32) {
    %c0_i32 = arith.constant 0 : i32
    %c0_i32_0 = arith.constant 0 : i32
    return %arg0, %c0_i32 : i32, i32
  }
}

module attributes {stable_mosaic.version = 11 : i64} {
  func.func @_conv3x3_kernel(%arg0: i32, %arg1: memref<1x10x10x128xbf16, #tpu.memory_space<vmem>>, %arg2: memref<9x128x128xbf16, #tpu.memory_space<vmem>>, %arg3: memref<1x128xf32, #tpu.memory_space<vmem>>, %arg4: memref<1x128xf32, #tpu.memory_space<vmem>>, %arg5: memref<1x64x128xbf16, #tpu.memory_space<vmem>>) attributes {dimension_semantics = [#tpu.dimension_semantics<parallel>], iteration_bounds = array<i64: 2>, scalar_prefetch = 0 : i64, scratch_operands = 0 : i64, tpu.core_type = #tpu.core_type<tc>, window_params = [{transform_indices = @transform_0, window_bounds = array<i64: 1, 10, 10, 128>}, {pipeline_mode = #tpu.pipeline_mode<synchronous>, transform_indices = @transform_1, window_bounds = array<i64: 9, 128, 128>}, {pipeline_mode = #tpu.pipeline_mode<synchronous>, transform_indices = @transform_2, window_bounds = array<i64: 1, 128>}, {pipeline_mode = #tpu.pipeline_mode<synchronous>, transform_indices = @transform_3, window_bounds = array<i64: 1, 128>}, {transform_indices = @transform_4, window_bounds = array<i64: 1, 64, 128>}]} {
    %c0 = arith.constant 0 : index
    %c0_0 = arith.constant 0 : index
    %c0_1 = arith.constant 0 : index
    %c0_2 = arith.constant 0 : index
    %0 = vector.load %arg1[%c0, %c0_0, %c0_1, %c0_2] : memref<1x10x10x128xbf16, #tpu.memory_space<vmem>>, vector<1x10x10x128xbf16>
    %1 = vector.shape_cast %0 : vector<1x10x10x128xbf16> to vector<10x10x128xbf16>
    %2 = arith.extf %1 : vector<10x10x128xbf16> to vector<10x10x128xf32>
    %cst = arith.constant 0.000000e+00 : f32
    %3 = vector.broadcast %cst : f32 to vector<64x128xf32>
    %4 = vector.extract_strided_slice %2 {offsets = [0, 0, 0], sizes = [8, 8, 128], strides = [1, 1, 1]} : vector<10x10x128xf32> to vector<8x8x128xf32>
    %5 = vector.shape_cast %4 : vector<8x8x128xf32> to vector<64x128xf32>
    %6 = arith.truncf %5 : vector<64x128xf32> to vector<64x128xbf16>
    %c0_3 = arith.constant 0 : index
    %c0_4 = arith.constant 0 : index
    %c0_5 = arith.constant 0 : index
    %7 = vector.load %arg2[%c0_3, %c0_4, %c0_5] : memref<9x128x128xbf16, #tpu.memory_space<vmem>>, vector<1x128x128xbf16>
    %8 = vector.shape_cast %7 : vector<1x128x128xbf16> to vector<128x128xbf16>
    %cst_6 = arith.constant dense<0.000000e+00> : vector<64x128xf32>
    %9 = tpu.matmul %6, %8, %cst_6 {dimension_numbers = #tpu.dot_dimension_numbers<[1], [0], [0], [1], [0, 0, 1, 1], [], []>} : vector<64x128xbf16>, vector<128x128xbf16>, vector<64x128xf32> -> vector<64x128xf32>
    %10 = arith.addf %3, %9 : vector<64x128xf32>
    %11 = vector.extract_strided_slice %2 {offsets = [0, 1, 0], sizes = [8, 8, 128], strides = [1, 1, 1]} : vector<10x10x128xf32> to vector<8x8x128xf32>
    %12 = vector.shape_cast %11 : vector<8x8x128xf32> to vector<64x128xf32>
    %13 = arith.truncf %12 : vector<64x128xf32> to vector<64x128xbf16>
    %c1 = arith.constant 1 : index
    %c0_7 = arith.constant 0 : index
    %c0_8 = arith.constant 0 : index
    %14 = vector.load %arg2[%c1, %c0_7, %c0_8] : memref<9x128x128xbf16, #tpu.memory_space<vmem>>, vector<1x128x128xbf16>
    %15 = vector.shape_cast %14 : vector<1x128x128xbf16> to vector<128x128xbf16>
    %cst_9 = arith.constant dense<0.000000e+00> : vector<64x128xf32>
    %16 = tpu.matmul %13, %15, %cst_9 {dimension_numbers = #tpu.dot_dimension_numbers<[1], [0], [0], [1], [0, 0, 1, 1], [], []>} : vector<64x128xbf16>, vector<128x128xbf16>, vector<64x128xf32> -> vector<64x128xf32>
    %17 = arith.addf %10, %16 : vector<64x128xf32>
    %18 = vector.extract_strided_slice %2 {offsets = [0, 2, 0], sizes = [8, 8, 128], strides = [1, 1, 1]} : vector<10x10x128xf32> to vector<8x8x128xf32>
    %19 = vector.shape_cast %18 : vector<8x8x128xf32> to vector<64x128xf32>
    %20 = arith.truncf %19 : vector<64x128xf32> to vector<64x128xbf16>
    %c2 = arith.constant 2 : index
    %c0_10 = arith.constant 0 : index
    %c0_11 = arith.constant 0 : index
    %21 = vector.load %arg2[%c2, %c0_10, %c0_11] : memref<9x128x128xbf16, #tpu.memory_space<vmem>>, vector<1x128x128xbf16>
    %22 = vector.shape_cast %21 : vector<1x128x128xbf16> to vector<128x128xbf16>
    %cst_12 = arith.constant dense<0.000000e+00> : vector<64x128xf32>
    %23 = tpu.matmul %20, %22, %cst_12 {dimension_numbers = #tpu.dot_dimension_numbers<[1], [0], [0], [1], [0, 0, 1, 1], [], []>} : vector<64x128xbf16>, vector<128x128xbf16>, vector<64x128xf32> -> vector<64x128xf32>
    %24 = arith.addf %17, %23 : vector<64x128xf32>
    %25 = vector.extract_strided_slice %2 {offsets = [1, 0, 0], sizes = [8, 8, 128], strides = [1, 1, 1]} : vector<10x10x128xf32> to vector<8x8x128xf32>
    %26 = vector.shape_cast %25 : vector<8x8x128xf32> to vector<64x128xf32>
    %27 = arith.truncf %26 : vector<64x128xf32> to vector<64x128xbf16>
    %c3 = arith.constant 3 : index
    %c0_13 = arith.constant 0 : index
    %c0_14 = arith.constant 0 : index
    %28 = vector.load %arg2[%c3, %c0_13, %c0_14] : memref<9x128x128xbf16, #tpu.memory_space<vmem>>, vector<1x128x128xbf16>
    %29 = vector.shape_cast %28 : vector<1x128x128xbf16> to vector<128x128xbf16>
    %cst_15 = arith.constant dense<0.000000e+00> : vector<64x128xf32>
    %30 = tpu.matmul %27, %29, %cst_15 {dimension_numbers = #tpu.dot_dimension_numbers<[1], [0], [0], [1], [0, 0, 1, 1], [], []>} : vector<64x128xbf16>, vector<128x128xbf16>, vector<64x128xf32> -> vector<64x128xf32>
    %31 = arith.addf %24, %30 : vector<64x128xf32>
    %32 = vector.extract_strided_slice %2 {offsets = [1, 1, 0], sizes = [8, 8, 128], strides = [1, 1, 1]} : vector<10x10x128xf32> to vector<8x8x128xf32>
    %33 = vector.shape_cast %32 : vector<8x8x128xf32> to vector<64x128xf32>
    %34 = arith.truncf %33 : vector<64x128xf32> to vector<64x128xbf16>
    %c4 = arith.constant 4 : index
    %c0_16 = arith.constant 0 : index
    %c0_17 = arith.constant 0 : index
    %35 = vector.load %arg2[%c4, %c0_16, %c0_17] : memref<9x128x128xbf16, #tpu.memory_space<vmem>>, vector<1x128x128xbf16>
    %36 = vector.shape_cast %35 : vector<1x128x128xbf16> to vector<128x128xbf16>
    %cst_18 = arith.constant dense<0.000000e+00> : vector<64x128xf32>
    %37 = tpu.matmul %34, %36, %cst_18 {dimension_numbers = #tpu.dot_dimension_numbers<[1], [0], [0], [1], [0, 0, 1, 1], [], []>} : vector<64x128xbf16>, vector<128x128xbf16>, vector<64x128xf32> -> vector<64x128xf32>
    %38 = arith.addf %31, %37 : vector<64x128xf32>
    %39 = vector.extract_strided_slice %2 {offsets = [1, 2, 0], sizes = [8, 8, 128], strides = [1, 1, 1]} : vector<10x10x128xf32> to vector<8x8x128xf32>
    %40 = vector.shape_cast %39 : vector<8x8x128xf32> to vector<64x128xf32>
    %41 = arith.truncf %40 : vector<64x128xf32> to vector<64x128xbf16>
    %c5 = arith.constant 5 : index
    %c0_19 = arith.constant 0 : index
    %c0_20 = arith.constant 0 : index
    %42 = vector.load %arg2[%c5, %c0_19, %c0_20] : memref<9x128x128xbf16, #tpu.memory_space<vmem>>, vector<1x128x128xbf16>
    %43 = vector.shape_cast %42 : vector<1x128x128xbf16> to vector<128x128xbf16>
    %cst_21 = arith.constant dense<0.000000e+00> : vector<64x128xf32>
    %44 = tpu.matmul %41, %43, %cst_21 {dimension_numbers = #tpu.dot_dimension_numbers<[1], [0], [0], [1], [0, 0, 1, 1], [], []>} : vector<64x128xbf16>, vector<128x128xbf16>, vector<64x128xf32> -> vector<64x128xf32>
    %45 = arith.addf %38, %44 : vector<64x128xf32>
    %46 = vector.extract_strided_slice %2 {offsets = [2, 0, 0], sizes = [8, 8, 128], strides = [1, 1, 1]} : vector<10x10x128xf32> to vector<8x8x128xf32>
    %47 = vector.shape_cast %46 : vector<8x8x128xf32> to vector<64x128xf32>
    %48 = arith.truncf %47 : vector<64x128xf32> to vector<64x128xbf16>
    %c6 = arith.constant 6 : index
    %c0_22 = arith.constant 0 : index
    %c0_23 = arith.constant 0 : index
    %49 = vector.load %arg2[%c6, %c0_22, %c0_23] : memref<9x128x128xbf16, #tpu.memory_space<vmem>>, vector<1x128x128xbf16>
    %50 = vector.shape_cast %49 : vector<1x128x128xbf16> to vector<128x128xbf16>
    %cst_24 = arith.constant dense<0.000000e+00> : vector<64x128xf32>
    %51 = tpu.matmul %48, %50, %cst_24 {dimension_numbers = #tpu.dot_dimension_numbers<[1], [0], [0], [1], [0, 0, 1, 1], [], []>} : vector<64x128xbf16>, vector<128x128xbf16>, vector<64x128xf32> -> vector<64x128xf32>
    %52 = arith.addf %45, %51 : vector<64x128xf32>
    %53 = vector.extract_strided_slice %2 {offsets = [2, 1, 0], sizes = [8, 8, 128], strides = [1, 1, 1]} : vector<10x10x128xf32> to vector<8x8x128xf32>
    %54 = vector.shape_cast %53 : vector<8x8x128xf32> to vector<64x128xf32>
    %55 = arith.truncf %54 : vector<64x128xf32> to vector<64x128xbf16>
    %c7 = arith.constant 7 : index
    %c0_25 = arith.constant 0 : index
    %c0_26 = arith.constant 0 : index
    %56 = vector.load %arg2[%c7, %c0_25, %c0_26] : memref<9x128x128xbf16, #tpu.memory_space<vmem>>, vector<1x128x128xbf16>
    %57 = vector.shape_cast %56 : vector<1x128x128xbf16> to vector<128x128xbf16>
    %cst_27 = arith.constant dense<0.000000e+00> : vector<64x128xf32>
    %58 = tpu.matmul %55, %57, %cst_27 {dimension_numbers = #tpu.dot_dimension_numbers<[1], [0], [0], [1], [0, 0, 1, 1], [], []>} : vector<64x128xbf16>, vector<128x128xbf16>, vector<64x128xf32> -> vector<64x128xf32>
    %59 = arith.addf %52, %58 : vector<64x128xf32>
    %60 = vector.extract_strided_slice %2 {offsets = [2, 2, 0], sizes = [8, 8, 128], strides = [1, 1, 1]} : vector<10x10x128xf32> to vector<8x8x128xf32>
    %61 = vector.shape_cast %60 : vector<8x8x128xf32> to vector<64x128xf32>
    %62 = arith.truncf %61 : vector<64x128xf32> to vector<64x128xbf16>
    %c8 = arith.constant 8 : index
    %c0_28 = arith.constant 0 : index
    %c0_29 = arith.constant 0 : index
    %63 = vector.load %arg2[%c8, %c0_28, %c0_29] : memref<9x128x128xbf16, #tpu.memory_space<vmem>>, vector<1x128x128xbf16>
    %64 = vector.shape_cast %63 : vector<1x128x128xbf16> to vector<128x128xbf16>
    %cst_30 = arith.constant dense<0.000000e+00> : vector<64x128xf32>
    %65 = tpu.matmul %62, %64, %cst_30 {dimension_numbers = #tpu.dot_dimension_numbers<[1], [0], [0], [1], [0, 0, 1, 1], [], []>} : vector<64x128xbf16>, vector<128x128xbf16>, vector<64x128xf32> -> vector<64x128xf32>
    %66 = arith.addf %59, %65 : vector<64x128xf32>
    %c0_31 = arith.constant 0 : index
    %c0_32 = arith.constant 0 : index
    %67 = vector.load %arg3[%c0_31, %c0_32] : memref<1x128xf32, #tpu.memory_space<vmem>>, vector<1x128xf32>
    %68 = vector.broadcast %67 : vector<1x128xf32> to vector<64x128xf32>
    %69 = arith.mulf %66, %68 : vector<64x128xf32>
    %c0_33 = arith.constant 0 : index
    %c0_34 = arith.constant 0 : index
    %70 = vector.load %arg4[%c0_33, %c0_34] : memref<1x128xf32, #tpu.memory_space<vmem>>, vector<1x128xf32>
    %71 = vector.broadcast %70 : vector<1x128xf32> to vector<64x128xf32>
    %72 = arith.addf %69, %71 : vector<64x128xf32>
    %cst_35 = arith.constant 0.000000e+00 : f32
    %73 = vector.broadcast %cst_35 : f32 to vector<64x128xf32>
    %74 = arith.maximumf %72, %73 : vector<64x128xf32>
    %75 = arith.truncf %74 : vector<64x128xf32> to vector<64x128xbf16>
    %c0_36 = arith.constant 0 : index
    %c0_37 = arith.constant 0 : index
    %c0_38 = arith.constant 0 : index
    %76 = vector.load %arg5[%c0_36, %c0_37, %c0_38] : memref<1x64x128xbf16, #tpu.memory_space<vmem>>, vector<1x64x128xbf16>
    %77 = vector.shape_cast %76 : vector<1x64x128xbf16> to vector<64x128xbf16>
    %78 = vector.shape_cast %75 : vector<64x128xbf16> to vector<1x64x128xbf16>
    tpu.vector_store %arg5[%c0_36, %c0_37, %c0_38], %78 {strides = array<i32>} : memref<1x64x128xbf16, #tpu.memory_space<vmem>>, vector<1x64x128xbf16>,
    return
  }
  func.func @transform_0(%arg0: i32) -> (i32, i32, i32, i32) {
    %c0_i32 = arith.constant 0 : i32
    %c0_i32_0 = arith.constant 0 : i32
    %c0_i32_1 = arith.constant 0 : i32
    %c0_i32_2 = arith.constant 0 : i32
    return %arg0, %c0_i32, %c0_i32_0, %c0_i32_1 : i32, i32, i32, i32
  }
  func.func @transform_1(%arg0: i32) -> (i32, i32, i32) {
    %c0_i32 = arith.constant 0 : i32
    %c0_i32_0 = arith.constant 0 : i32
    %c0_i32_1 = arith.constant 0 : i32
    %c0_i32_2 = arith.constant 0 : i32
    return %c0_i32, %c0_i32_0, %c0_i32_1 : i32, i32, i32
  }
  func.func @transform_2(%arg0: i32) -> (i32, i32) {
    %c0_i32 = arith.constant 0 : i32
    %c0_i32_0 = arith.constant 0 : i32
    %c0_i32_1 = arith.constant 0 : i32
    return %c0_i32, %c0_i32_0 : i32, i32
  }
  func.func @transform_3(%arg0: i32) -> (i32, i32) {
    %c0_i32 = arith.constant 0 : i32
    %c0_i32_0 = arith.constant 0 : i32
    %c0_i32_1 = arith.constant 0 : i32
    return %c0_i32, %c0_i32_0 : i32, i32
  }
  func.func @transform_4(%arg0: i32) -> (i32, i32, i32) {
    %c0_i32 = arith.constant 0 : i32
    %c0_i32_0 = arith.constant 0 : i32
    %c0_i32_1 = arith.constant 0 : i32
    return %arg0, %c0_i32, %c0_i32_0 : i32, i32, i32
  }
}

module attributes {stable_mosaic.version = 11 : i64} {
  func.func @_conv3_res_kernel(%arg0: i32, %arg1: memref<1x64x128xbf16, #tpu.memory_space<vmem>>, %arg2: memref<1x64x128xbf16, #tpu.memory_space<vmem>>, %arg3: memref<128x128xbf16, #tpu.memory_space<vmem>>, %arg4: memref<1x128xf32, #tpu.memory_space<vmem>>, %arg5: memref<1x128xf32, #tpu.memory_space<vmem>>, %arg6: memref<1x64x128xf32, #tpu.memory_space<vmem>>) attributes {dimension_semantics = [#tpu.dimension_semantics<parallel>], iteration_bounds = array<i64: 2>, scalar_prefetch = 0 : i64, scratch_operands = 0 : i64, tpu.core_type = #tpu.core_type<tc>, window_params = [{transform_indices = @transform_0, window_bounds = array<i64: 1, 64, 128>}, {transform_indices = @transform_1, window_bounds = array<i64: 1, 64, 128>}, {pipeline_mode = #tpu.pipeline_mode<synchronous>, transform_indices = @transform_2, window_bounds = array<i64: 128, 128>}, {pipeline_mode = #tpu.pipeline_mode<synchronous>, transform_indices = @transform_3, window_bounds = array<i64: 1, 128>}, {pipeline_mode = #tpu.pipeline_mode<synchronous>, transform_indices = @transform_4, window_bounds = array<i64: 1, 128>}, {transform_indices = @transform_5, window_bounds = array<i64: 1, 64, 128>}]} {
    %c0 = arith.constant 0 : index
    %c0_0 = arith.constant 0 : index
    %c0_1 = arith.constant 0 : index
    %0 = vector.load %arg1[%c0, %c0_0, %c0_1] : memref<1x64x128xbf16, #tpu.memory_space<vmem>>, vector<1x64x128xbf16>
    %1 = vector.shape_cast %0 : vector<1x64x128xbf16> to vector<64x128xbf16>
    %c0_2 = arith.constant 0 : index
    %c0_3 = arith.constant 0 : index
    %2 = vector.load %arg3[%c0_2, %c0_3] : memref<128x128xbf16, #tpu.memory_space<vmem>>, vector<128x128xbf16>
    %cst = arith.constant dense<0.000000e+00> : vector<64x128xf32>
    %3 = tpu.matmul %1, %2, %cst {dimension_numbers = #tpu.dot_dimension_numbers<[1], [0], [0], [1], [0, 0, 1, 1], [], []>} : vector<64x128xbf16>, vector<128x128xbf16>, vector<64x128xf32> -> vector<64x128xf32>
    %c0_4 = arith.constant 0 : index
    %c0_5 = arith.constant 0 : index
    %4 = vector.load %arg4[%c0_4, %c0_5] : memref<1x128xf32, #tpu.memory_space<vmem>>, vector<1x128xf32>
    %5 = vector.broadcast %4 : vector<1x128xf32> to vector<64x128xf32>
    %6 = arith.mulf %3, %5 : vector<64x128xf32>
    %c0_6 = arith.constant 0 : index
    %c0_7 = arith.constant 0 : index
    %7 = vector.load %arg5[%c0_6, %c0_7] : memref<1x128xf32, #tpu.memory_space<vmem>>, vector<1x128xf32>
    %8 = vector.broadcast %7 : vector<1x128xf32> to vector<64x128xf32>
    %9 = arith.addf %6, %8 : vector<64x128xf32>
    %c0_8 = arith.constant 0 : index
    %c0_9 = arith.constant 0 : index
    %c0_10 = arith.constant 0 : index
    %10 = vector.load %arg2[%c0_8, %c0_9, %c0_10] : memref<1x64x128xbf16, #tpu.memory_space<vmem>>, vector<1x64x128xbf16>
    %11 = vector.shape_cast %10 : vector<1x64x128xbf16> to vector<64x128xbf16>
    %12 = arith.extf %11 : vector<64x128xbf16> to vector<64x128xf32>
    %13 = arith.addf %9, %12 : vector<64x128xf32>
    %cst_11 = arith.constant 0.000000e+00 : f32
    %14 = vector.broadcast %cst_11 : f32 to vector<64x128xf32>
    %15 = arith.maximumf %13, %14 : vector<64x128xf32>
    %c0_12 = arith.constant 0 : index
    %c0_13 = arith.constant 0 : index
    %c0_14 = arith.constant 0 : index
    %16 = vector.load %arg6[%c0_12, %c0_13, %c0_14] : memref<1x64x128xf32, #tpu.memory_space<vmem>>, vector<1x64x128xf32>
    %17 = vector.shape_cast %16 : vector<1x64x128xf32> to vector<64x128xf32>
    %18 = vector.shape_cast %15 : vector<64x128xf32> to vector<1x64x128xf32>
    tpu.vector_store %arg6[%c0_12, %c0_13, %c0_14], %18 {strides = array<i32>} : memref<1x64x128xf32, #tpu.memory_space<vmem>>, vector<1x64x128xf32>,
    return
  }
  func.func @transform_0(%arg0: i32) -> (i32, i32, i32) {
    %c0_i32 = arith.constant 0 : i32
    %c0_i32_0 = arith.constant 0 : i32
    %c0_i32_1 = arith.constant 0 : i32
    return %arg0, %c0_i32, %c0_i32_0 : i32, i32, i32
  }
  func.func @transform_1(%arg0: i32) -> (i32, i32, i32) {
    %c0_i32 = arith.constant 0 : i32
    %c0_i32_0 = arith.constant 0 : i32
    %c0_i32_1 = arith.constant 0 : i32
    return %arg0, %c0_i32, %c0_i32_0 : i32, i32, i32
  }
  func.func @transform_2(%arg0: i32) -> (i32, i32) {
    %c0_i32 = arith.constant 0 : i32
    %c0_i32_0 = arith.constant 0 : i32
    %c0_i32_1 = arith.constant 0 : i32
    return %c0_i32, %c0_i32_0 : i32, i32
  }
  func.func @transform_3(%arg0: i32) -> (i32, i32) {
    %c0_i32 = arith.constant 0 : i32
    %c0_i32_0 = arith.constant 0 : i32
    %c0_i32_1 = arith.constant 0 : i32
    return %c0_i32, %c0_i32_0 : i32, i32
  }
  func.func @transform_4(%arg0: i32) -> (i32, i32) {
    %c0_i32 = arith.constant 0 : i32
    %c0_i32_0 = arith.constant 0 : i32
    %c0_i32_1 = arith.constant 0 : i32
    return %c0_i32, %c0_i32_0 : i32, i32
  }
  func.func @transform_5(%arg0: i32) -> (i32, i32, i32) {
    %c0_i32 = arith.constant 0 : i32
    %c0_i32_0 = arith.constant 0 : i32
    %c0_i32_1 = arith.constant 0 : i32
    return %arg0, %c0_i32, %c0_i32_0 : i32, i32, i32
  }
}

</mosaic_0001>

<llo_original>
// kernel: _lambda_.6
$region0: #{_lambda_.6}
  #allocation0 [shape = 'u32[]', space=smem, size = 0x4, offset = 0x4, fixed_abs, tag = 'smem constant byte address 0x4 - core index']
  #allocation1 [shape = 'u32[144,128]{1,0:T(1,128)}', space=vmem, size = 0x12000, scoped, tag = 'internal scratch']
  %s0 = inlined_call_operand.vmem [shape: bf16[512,128], index: 0, kind: input, shape index: {}]
  %s1 = inlined_call_operand.vmem [shape: bf16[128,128], index: 1, kind: input, shape index: {}]
  %s2 = inlined_call_operand.vmem [shape: f32[1,128], index: 2, kind: input, shape index: {}]
  %s3 = inlined_call_operand.vmem [shape: f32[1,128], index: 3, kind: input, shape index: {}]
  %s4 = inlined_call_operand.vmem [shape: bf16[512,128], index: 4, kind: output, shape index: {}]
  %s5 = sld [smem:[#allocation0]]
  $region49: #{_lambda_.6} parent=0
    _
  %s7 = ssub.s32 1, %s5
  %s8 = scalar_select 0, %s7, %s5
  loop: start=0, step=1, limit=4
  $region2: #{_lambda_.6} parent=0 // loop_pre_header
    _
  $region3: #{_lambda_.6} parent=0 // loop_header
    %s10 = sphi 0, %s14
    %p11 = scmp.ge.s32.totalorder %s10, 4
    %s20 = sphi 0, %s22
    %s23 = sphi 0, %s20
    %s24 = sphi 0, %s23
    %s40 = sphi 0, %s24
    %s44 = sphi 0, %s44
    %s46 = sphi 0, %s44
    %s47 = sphi 0, %s46
    %s61 = sphi 0, %s47
    %s65 = sphi 0, %s65
    %s67 = sphi 0, %s65
    %s68 = sphi 0, %s67
    %s82 = sphi 0, %s68
    %s86 = sphi 0, %s86
    %s88 = sphi 0, %s86
    %s89 = sphi 0, %s88
    %s103 = sphi 0, %s89
    %s109 = sphi 0, %s111
    %s112 = sphi 0, %s109
    %s113 = sphi 0, %s112
    %s129 = sphi 0, %s113
  $region4: #{_lambda_.6} parent=0 // loop_header_branch
    %13 = sbr.rel (%p11) target = $region8
  $region5: #{_lambda_.6} parent=0 // loop_body
    %s15 = ssub.s32 %s10, 1
    %s16 = ssub.s32 %s10, 2
    %s17 = sadd.s32 %s10, 1
    %s18 = ssub.s32 %s10, %s17
    %p19 = scmp.eq.s32.totalorder %s18, 0
    %s21 = sadd.s32 %s20, 1
    %s22 = scalar_select %p19, %s20, %s21
    %p25 = pneg %p19
    %p26 = scmp.eq.s32.totalorder %s10, 1
    %p27 = por %p25, %p26
    %p28 = scmp.ne.s32.totalorder %s20, %s23
    %p29 = scmp.eq.s32.totalorder %s10, 0
    %p30 = por %p28, %p29
    %p31 = scmp.ne.s32.totalorder %s20, %s23
    %p32 = scmp.eq.s32.totalorder %s15, 1
    %p33 = por %p31, %p32
    %p34 = scmp.ne.s32.totalorder %s23, %s24
    %p35 = scmp.eq.s32.totalorder %s15, 0
    %p36 = por %p34, %p35
    %p37 = scmp.ne.s32.totalorder %s23, %s24
    %p38 = scmp.eq.s32.totalorder %s16, 1
    %p39 = por %p37, %p38
    %p41 = scmp.ne.s32.totalorder %s24, %s40
    %p42 = scmp.eq.s32.totalorder %s16, 0
    %p43 = por %p41, %p42
    %s45 = sadd.s32 %s44, 1
    %p48 = scmp.eq.s32.totalorder %s10, 1
    %p49 = scmp.ne.s32.totalorder %s44, %s46
    %p50 = scmp.eq.s32.totalorder %s10, 0
    %p51 = por %p49, %p50
    %p52 = scmp.ne.s32.totalorder %s44, %s46
    %p53 = scmp.eq.s32.totalorder %s15, 1
    %p54 = por %p52, %p53
    %p55 = scmp.ne.s32.totalorder %s46, %s47
    %p56 = scmp.eq.s32.totalorder %s15, 0
    %p57 = por %p55, %p56
    %p58 = scmp.ne.s32.totalorder %s46, %s47
    %p59 = scmp.eq.s32.totalorder %s16, 1
    %p60 = por %p58, %p59
    %p62 = scmp.ne.s32.totalorder %s47, %s61
    %p63 = scmp.eq.s32.totalorder %s16, 0
    %p64 = por %p62, %p63
    %s66 = sadd.s32 %s65, 1
    %p69 = scmp.eq.s32.totalorder %s10, 1
    %p70 = scmp.ne.s32.totalorder %s65, %s67
    %p71 = scmp.eq.s32.totalorder %s10, 0
    %p72 = por %p70, %p71
    %p73 = scmp.ne.s32.totalorder %s65, %s67
    %p74 = scmp.eq.s32.totalorder %s15, 1
    %p75 = por %p73, %p74
    %p76 = scmp.ne.s32.totalorder %s67, %s68
    %p77 = scmp.eq.s32.totalorder %s15, 0
    %p78 = por %p76, %p77
    %p79 = scmp.ne.s32.totalorder %s67, %s68
    %p80 = scmp.eq.s32.totalorder %s16, 1
    %p81 = por %p79, %p80
    %p83 = scmp.ne.s32.totalorder %s68, %s82
    %p84 = scmp.eq.s32.totalorder %s16, 0
    %p85 = por %p83, %p84
    %s87 = sadd.s32 %s86, 1
    %p90 = scmp.eq.s32.totalorder %s10, 1
    %p91 = scmp.ne.s32.totalorder %s86, %s88
    %p92 = scmp.eq.s32.totalorder %s10, 0
    %p93 = por %p91, %p92
    %p94 = scmp.ne.s32.totalorder %s86, %s88
    %p95 = scmp.eq.s32.totalorder %s15, 1
    %p96 = por %p94, %p95
    %p97 = scmp.ne.s32.totalorder %s88, %s89
    %p98 = scmp.eq.s32.totalorder %s15, 0
    %p99 = por %p97, %p98
    %p100 = scmp.ne.s32.totalorder %s88, %s89
    %p101 = scmp.eq.s32.totalorder %s16, 1
    %p102 = por %p100, %p101
    %p104 = scmp.ne.s32.totalorder %s89, %s103
    %p105 = scmp.eq.s32.totalorder %s16, 0
    %p106 = por %p104, %p105
    %s107 = ssub.s32 %s10, %s17
    %p108 = scmp.eq.s32.totalorder %s107, 0
    %s110 = sadd.s32 %s109, 1
    %s111 = scalar_select %p108, %s109, %s110
    %p114 = pneg %p108
    %p115 = scmp.eq.s32.totalorder %s10, 1
    %p116 = por %p114, %p115
    %p117 = scmp.ne.s32.totalorder %s109, %s112
    %p118 = scmp.eq.s32.totalorder %s10, 0
    %p119 = por %p117, %p118
    %p120 = scmp.ne.s32.totalorder %s109, %s112
    %p121 = scmp.eq.s32.totalorder %s15, 1
    %p122 = por %p120, %p121
    %p123 = scmp.ne.s32.totalorder %s112, %s113
    %p124 = scmp.eq.s32.totalorder %s15, 0
    %p125 = por %p123, %p124
    %p126 = scmp.ne.s32.totalorder %s112, %s113
    %p127 = scmp.eq.s32.totalorder %s16, 1
    %p128 = por %p126, %p127
    %p130 = scmp.ne.s32.totalorder %s113, %s129
    %p131 = scmp.eq.s32.totalorder %s16, 0
    %p132 = por %p130, %p131
    %p133 = scmp.le.s32.totalorder 1, %s10
    %p134 = scmp.lt.s32.totalorder %s10, 3
    %p135 = pnand %p133, %p134
    %p136 = pneg %p135
    // Predicated region
    $region9: #{_lambda_.6} parent=5 // pred_check
      _
    $region10: #{_lambda_.6} parent=5 // pred_check_branch
      %138 = sbr.rel (%p135) target = $region12
    $region11: #{_lambda_.6} parent=5 // pred_region
      %s139 = ssub.s32 %s10, 1
      // Predicated region
      $region13: #{_lambda_.6} parent=11 // pred_check
        %p140 = pneg %p57
      $region14: #{_lambda_.6} parent=11 // pred_check_branch
        %142 = sbr.rel (%p140) target = $region16
      $region15: #{_lambda_.6} parent=11 // pred_region
        _
      $region16: #{_lambda_.6} parent=11 // pred_fallthru
        _
      // Predicated region
      $region17: #{_lambda_.6} parent=11 // pred_check
        %p143 = pneg %p78
      $region18: #{_lambda_.6} parent=11 // pred_check_branch
        %145 = sbr.rel (%p143) target = $region20
      $region19: #{_lambda_.6} parent=11 // pred_region
        _
      $region20: #{_lambda_.6} parent=11 // pred_fallthru
        _
      // Predicated region
      $region21: #{_lambda_.6} parent=11 // pred_check
        %p146 = pneg %p99
      $region22: #{_lambda_.6} parent=11 // pred_check_branch
        %148 = sbr.rel (%p146) target = $region24
      $region23: #{_lambda_.6} parent=11 // pred_region
        _
      $region24: #{_lambda_.6} parent=11 // pred_fallthru
        _
    $region12: #{_lambda_.6} parent=5 // pred_fallthru
      _
    %p149 = scmp.lt.s32.totalorder %s10, 2
    // Predicated region
    $region25: #{_lambda_.6} parent=5 // pred_check
      %p150 = pneg %p149
    $region26: #{_lambda_.6} parent=5 // pred_check_branch
      %152 = sbr.rel (%p150) target = $region28
    $region27: #{_lambda_.6} parent=5 // pred_region
      // Predicated region
      $region29: #{_lambda_.6} parent=27 // pred_check
        %p153 = pneg %p30
      $region30: #{_lambda_.6} parent=27 // pred_check_branch
        %155 = sbr.rel (%p153) target = $region32
      $region31: #{_lambda_.6} parent=27 // pred_region
        %s156 = smul.u32 32, %s10
        %p157 = scmp.lt.s32.totalorder %s156, 63
        %s158 = scalar_select %p157, %s156, 63
        %s159 = smul.addr %s158, 4
        %s160 = scalar_lea.vmem %s0, %s159
        %s161 = smul.u32 32, %s10
      $region32: #{_lambda_.6} parent=27 // pred_fallthru
        _
    $region28: #{_lambda_.6} parent=5 // pred_fallthru
      _
    %p162 = scmp.le.s32.totalorder 1, %s10
    %p163 = scmp.lt.s32.totalorder %s10, 3
    %p164 = pnand %p162, %p163
    %p165 = pneg %p164
    // Predicated region
    $region33: #{_lambda_.6} parent=5 // pred_check
      _
    $region34: #{_lambda_.6} parent=5 // pred_check_branch
      %167 = sbr.rel (%p164) target = $region36
    $region35: #{_lambda_.6} parent=5 // pred_region
      %s168 = ssub.s32 %s10, 1
      %s169 = smul.u32 32, %s15
      %p170 = scmp.lt.s32.totalorder %s169, 63
      %s171 = scalar_select %p170, %s169, 63
      %s172 = smul.addr %s171, 4
      %s173 = scalar_lea.vmem %s0, %s172
      %p174 = pneg %p36
      %p175 = pneg %p33
      %p176 = pneg %p57
      %p177 = pneg %p54
      %p178 = pneg %p78
      %p179 = pneg %p75
      %p180 = pneg %p99
      %p181 = pneg %p96
      %p182 = pneg %p125
      %p183 = pneg %p122
      %s184 = smul.u32 32, %s15
      %p185 = scmp.lt.s32.totalorder %s184, 63
      %s186 = scalar_select %p185, %s184, 63
      %s187 = smul.addr %s186, 4
      %s188 = scalar_lea.vmem %s4, %s187
      %s189 = smul.u32 32, %s15
      %p190 = scmp.lt.s32.totalorder %s189, 63
      %s191 = scalar_select %p190, %s189, 63
      %s192 = smul.addr %s191, 4
      %s193 = scalar_lea.vmem %s0, %s192
      %s194 = smul.u32 32, %s15
      %s195 = smul.u32 32, %s15
      %p196 = scmp.lt.s32.totalorder %s195, 63
      %s197 = scalar_select %p196, %s195, 63
      %s198 = smul.addr %s197, 4
      %s199 = scalar_lea.vmem %s4, %s198
      %s200 = smul.u32 32, %s15
      %v202 = vld [vmem:[%s193] sm:$0xf]
      %v203 = vld [vmem:[%s193 + $0x4] sm:$0xf]
      %v204 = vld [vmem:[%s193 + $0x8] sm:$0xf]
      %v205 = vld [vmem:[%s193 + $0xc] sm:$0xf]
      %v206 = vld [vmem:[%s193 + $0x10] sm:$0xf]
      %v207 = vld [vmem:[%s193 + $0x14] sm:$0xf]
      %v208 = vld [vmem:[%s193 + $0x18] sm:$0xf]
      %v209 = vld [vmem:[%s193 + $0x1c] sm:$0xf]
      %v210 = vld [vmem:[%s193 + $0x20] sm:$0xf]
      %v211 = vld [vmem:[%s193 + $0x24] sm:$0xf]
      %v212 = vld [vmem:[%s193 + $0x28] sm:$0xf]
      %v213 = vld [vmem:[%s193 + $0x2c] sm:$0xf]
      %v214 = vld [vmem:[%s193 + $0x30] sm:$0xf]
      %v215 = vld [vmem:[%s193 + $0x34] sm:$0xf]
      %v216 = vld [vmem:[%s193 + $0x38] sm:$0xf]
      %v217 = vld [vmem:[%s193 + $0x3c] sm:$0xf]
      %v218 = vld [vmem:[%s193 + $0x40] sm:$0xf]
      %v219 = vld [vmem:[%s193 + $0x44] sm:$0xf]
      %v220 = vld [vmem:[%s193 + $0x48] sm:$0xf]
      %v221 = vld [vmem:[%s193 + $0x4c] sm:$0xf]
      %v222 = vld [vmem:[%s193 + $0x50] sm:$0xf]
      %v223 = vld [vmem:[%s193 + $0x54] sm:$0xf]
      %v224 = vld [vmem:[%s193 + $0x58] sm:$0xf]
      %v225 = vld [vmem:[%s193 + $0x5c] sm:$0xf]
      %v226 = vld [vmem:[%s193 + $0x60] sm:$0xf]
      %v227 = vld [vmem:[%s193 + $0x64] sm:$0xf]
      %v228 = vld [vmem:[%s193 + $0x68] sm:$0xf]
      %v229 = vld [vmem:[%s193 + $0x6c] sm:$0xf]
      %v230 = vld [vmem:[%s193 + $0x70] sm:$0xf]
      %v231 = vld [vmem:[%s193 + $0x74] sm:$0xf]
      %v232 = vld [vmem:[%s193 + $0x78] sm:$0xf]
      %v233 = vld [vmem:[%s193 + $0x7c] sm:$0xf]
      %v234 = vld [vmem:[%s1] sm:$0xf]
      %v235 = vld [vmem:[%s1 + $0x4] sm:$0xf]
      %v236 = vld [vmem:[%s1 + $0x8] sm:$0xf]
      %v237 = vld [vmem:[%s1 + $0xc] sm:$0xf]
      %v238 = vld [vmem:[%s1 + $0x10] sm:$0xf]
      %v239 = vld [vmem:[%s1 + $0x14] sm:$0xf]
      %v240 = vld [vmem:[%s1 + $0x18] sm:$0xf]
      %v241 = vld [vmem:[%s1 + $0x1c] sm:$0xf]
      %v242 = vld [vmem:[%s1 + $0x20] sm:$0xf]
      %v243 = vld [vmem:[%s1 + $0x24] sm:$0xf]
      %v244 = vld [vmem:[%s1 + $0x28] sm:$0xf]
      %v245 = vld [vmem:[%s1 + $0x2c] sm:$0xf]
      %v246 = vld [vmem:[%s1 + $0x30] sm:$0xf]
      %v247 = vld [vmem:[%s1 + $0x34] sm:$0xf]
      %v248 = vld [vmem:[%s1 + $0x38] sm:$0xf]
      %v249 = vld [vmem:[%s1 + $0x3c] sm:$0xf]
      %v282 = vunpack.c.l.b16 %v202
      %v283 = vunpack.c.l.b16 %v203
      %v284 = vunpack.c.l.b16 %v204
      %v285 = vunpack.c.l.b16 %v205
      %v286 = vunpack.c.l.b16 %v206
      %v287 = vunpack.c.l.b16 %v207
      %v288 = vunpack.c.l.b16 %v208
      %v289 = vunpack.c.l.b16 %v209
      %v290 = vunpack.c.l.b16 %v210
      %v291 = vunpack.c.l.b16 %v211
      %v292 = vunpack.c.l.b16 %v212
      %v293 = vunpack.c.l.b16 %v213
      %v294 = vunpack.c.l.b16 %v214
      %v295 = vunpack.c.l.b16 %v215
      %v296 = vunpack.c.l.b16 %v216
      %v297 = vunpack.c.l.b16 %v217
      %v298 = vunpack.c.l.b16 %v218
      %v299 = vunpack.c.l.b16 %v219
      %v300 = vunpack.c.l.b16 %v220
      %v301 = vunpack.c.l.b16 %v221
      %v302 = vunpack.c.l.b16 %v222
      %v303 = vunpack.c.l.b16 %v223
      %v304 = vunpack.c.l.b16 %v224
      %v305 = vunpack.c.l.b16 %v225
      %v306 = vunpack.c.l.b16 %v226
      %v307 = vunpack.c.l.b16 %v227
      %v308 = vunpack.c.l.b16 %v228
      %v309 = vunpack.c.l.b16 %v229
      %v310 = vunpack.c.l.b16 %v230
      %v311 = vunpack.c.l.b16 %v231
      %v312 = vunpack.c.l.b16 %v232
      %v313 = vunpack.c.l.b16 %v233
      %v314 = vpack.c.b16 %v283, %v282
      %v315 = vpack.c.b16 %v285, %v284
      %v316 = vpack.c.b16 %v287, %v286
      %v317 = vpack.c.b16 %v289, %v288
      %v318 = vpack.c.b16 %v291, %v290
      %v319 = vpack.c.b16 %v293, %v292
      %v320 = vpack.c.b16 %v295, %v294
      %v321 = vpack.c.b16 %v297, %v296
      %v322 = vpack.c.b16 %v299, %v298
      %v323 = vpack.c.b16 %v301, %v300
      %v324 = vpack.c.b16 %v303, %v302
      %v325 = vpack.c.b16 %v305, %v304
      %v326 = vpack.c.b16 %v307, %v306
      %v327 = vpack.c.b16 %v309, %v308
      %v328 = vpack.c.b16 %v311, %v310
      %v329 = vpack.c.b16 %v313, %v312
      %v362 = vunpack.c.l.b16 %v234
      %v363 = vunpack.c.l.b16 %v235
      %v364 = vunpack.c.l.b16 %v236
      %v365 = vunpack.c.l.b16 %v237
      %v366 = vunpack.c.l.b16 %v238
      %v367 = vunpack.c.l.b16 %v239
      %v368 = vunpack.c.l.b16 %v240
      %v369 = vunpack.c.l.b16 %v241
      %v370 = vunpack.c.l.b16 %v242
      %v371 = vunpack.c.l.b16 %v243
      %v372 = vunpack.c.l.b16 %v244
      %v373 = vunpack.c.l.b16 %v245
      %v374 = vunpack.c.l.b16 %v246
      %v375 = vunpack.c.l.b16 %v247
      %v376 = vunpack.c.l.b16 %v248
      %v377 = vunpack.c.l.b16 %v249
      %v378 = vpack.c.b16 %v363, %v362
      %v379 = vpack.c.b16 %v365, %v364
      %v380 = vpack.c.b16 %v367, %v366
      %v381 = vpack.c.b16 %v369, %v368
      %v382 = vpack.c.b16 %v371, %v370
      %v383 = vpack.c.b16 %v373, %v372
      %v384 = vpack.c.b16 %v375, %v374
      %v385 = vpack.c.b16 %v377, %v376
      %394 = vmatprep.subr.bf16.mxu0 0
      %395 = vmatpush1.bf16.msra.mxu0 %v378
      %396 = vmatprep.subr.bf16.mxu0 0
      %397 = vmatpush1.bf16.msra.mxu0 %v379
      %398 = vmatprep.subr.bf16.mxu0 0
      %399 = vmatpush1.bf16.msra.mxu0 %v380
      %400 = vmatprep.subr.bf16.mxu0 0
      %401 = vmatpush1.bf16.msra.mxu0 %v381
      %402 = vmatprep.subr.bf16.mxu0 0
      %403 = vmatpush1.bf16.msra.mxu0 %v382
      %404 = vmatprep.subr.bf16.mxu0 0
      %405 = vmatpush1.bf16.msra.mxu0 %v383
      %406 = vmatprep.subr.bf16.mxu0 0
      %407 = vmatpush1.bf16.msra.mxu0 %v384
      %408 = vmatprep.subr.bf16.mxu0 0
      %409 = vmatpush1.bf16.msra.mxu0 %v385
      %410 = vmatprep.subr.bf16.mxu0 0
      %411 = vmatpush1.bf16.msra.mxu0 0
      %412 = vmatprep.subr.bf16.mxu0 0
      %413 = vmatpush1.bf16.msra.mxu0 0
      %414 = vmatprep.subr.bf16.mxu0 0
      %415 = vmatpush1.bf16.msra.mxu0 0
      %416 = vmatprep.subr.bf16.mxu0 0
      %417 = vmatpush1.bf16.msra.mxu0 0
      %418 = vmatprep.subr.bf16.mxu0 0
      %419 = vmatpush1.bf16.msra.mxu0 0
      %420 = vmatprep.subr.bf16.mxu0 0
      %421 = vmatpush1.bf16.msra.mxu0 0
      %422 = vmatprep.subr.bf16.mxu0 0
      %423 = vmatpush1.bf16.msra.mxu0 0
      %424 = vmatprep.subr.bf16.mxu0 0
      %425 = vmatpush1.bf16.msra.mxu0 0
      %426 = vmatprep.mubr.bf16.mxu0 0
      %427 = vmatmul.mubr.bf16.gmra.mrb[0].mxu0 %v314
      %v428 = vpop.f32.mrb[0].mxu0
      %v429 = vadd.f32 0.0, %v428
      %v430 = vpop.f32.mrb[0].mxu0
      %v431 = vpop.f32.mrb[0].mxu0
      %v432 = vadd.f32 0.0, %v431
      %v433 = vpop.f32.mrb[0].mxu0
      %434 = vmatprep.mubr.bf16.mxu0 0
      %435 = vmatmul.mubr.bf16.gmra.mrb[0].mxu0 %v315
      %v436 = vpop.f32.mrb[0].mxu0
      %v437 = vadd.f32 0.0, %v436
      %v438 = vpop.f32.mrb[0].mxu0
      %v439 = vpop.f32.mrb[0].mxu0
      %v440 = vadd.f32 0.0, %v439
      %v441 = vpop.f32.mrb[0].mxu0
      %442 = vmatprep.mubr.bf16.mxu0 0
      %443 = vmatmul.mubr.bf16.gmra.mrb[0].mxu0 %v316
      %v444 = vpop.f32.mrb[0].mxu0
      %v445 = vadd.f32 0.0, %v444
      %v446 = vpop.f32.mrb[0].mxu0
      %v447 = vpop.f32.mrb[0].mxu0
      %v448 = vadd.f32 0.0, %v447
      %v449 = vpop.f32.mrb[0].mxu0
      %450 = vmatprep.mubr.bf16.mxu0 0
      %451 = vmatmul.mubr.bf16.gmra.mrb[0].mxu0 %v317
      %v452 = vpop.f32.mrb[0].mxu0
      %v453 = vadd.f32 0.0, %v452
      %v454 = vpop.f32.mrb[0].mxu0
      %v455 = vpop.f32.mrb[0].mxu0
      %v456 = vadd.f32 0.0, %v455
      %v457 = vpop.f32.mrb[0].mxu0
      %458 = vmatprep.mubr.bf16.mxu0 0
      %459 = vmatmul.mubr.bf16.gmra.mrb[0].mxu0 %v318
      %v460 = vpop.f32.mrb[0].mxu0
      %v461 = vadd.f32 0.0, %v460
      %v462 = vpop.f32.mrb[0].mxu0
      %v463 = vpop.f32.mrb[0].mxu0
      %v464 = vadd.f32 0.0, %v463
      %v465 = vpop.f32.mrb[0].mxu0
      %466 = vmatprep.mubr.bf16.mxu0 0
      %467 = vmatmul.mubr.bf16.gmra.mrb[0].mxu0 %v319
      %v468 = vpop.f32.mrb[0].mxu0
      %v469 = vadd.f32 0.0, %v468
      %v470 = vpop.f32.mrb[0].mxu0
      %v471 = vpop.f32.mrb[0].mxu0
      %v472 = vadd.f32 0.0, %v471
      %v473 = vpop.f32.mrb[0].mxu0
      %474 = vmatprep.mubr.bf16.mxu0 0
      %475 = vmatmul.mubr.bf16.gmra.mrb[0].mxu0 %v320
      %v476 = vpop.f32.mrb[0].mxu0
      %v477 = vadd.f32 0.0, %v476
      %v478 = vpop.f32.mrb[0].mxu0
      %v479 = vpop.f32.mrb[0].mxu0
      %v480 = vadd.f32 0.0, %v479
      %v481 = vpop.f32.mrb[0].mxu0
      %482 = vmatprep.mubr.bf16.mxu0 0
      %483 = vmatmul.mubr.bf16.gmra.mrb[0].mxu0 %v321
      %v484 = vpop.f32.mrb[0].mxu0
      %v485 = vadd.f32 0.0, %v484
      %v486 = vpop.f32.mrb[0].mxu0
      %v487 = vpop.f32.mrb[0].mxu0
      %v488 = vadd.f32 0.0, %v487
      %v489 = vpop.f32.mrb[0].mxu0
      %490 = vmatprep.mubr.bf16.mxu0 0
      %491 = vmatmul.mubr.bf16.gmra.mrb[0].mxu0 %v322
      %v492 = vpop.f32.mrb[0].mxu0
      %v493 = vadd.f32 0.0, %v492
      %v494 = vpop.f32.mrb[0].mxu0
      %v495 = vpop.f32.mrb[0].mxu0
      %v496 = vadd.f32 0.0, %v495
      %v497 = vpop.f32.mrb[0].mxu0
      %498 = vmatprep.mubr.bf16.mxu0 0
      %499 = vmatmul.mubr.bf16.gmra.mrb[0].mxu0 %v323
      %v500 = vpop.f32.mrb[0].mxu0
      %v501 = vadd.f32 0.0, %v500
      %v502 = vpop.f32.mrb[0].mxu0
      %v503 = vpop.f32.mrb[0].mxu0
      %v504 = vadd.f32 0.0, %v503
      %v505 = vpop.f32.mrb[0].mxu0
      %506 = vmatprep.mubr.bf16.mxu0 0
      %507 = vmatmul.mubr.bf16.gmra.mrb[0].mxu0 %v324
      %v508 = vpop.f32.mrb[0].mxu0
      %v509 = vadd.f32 0.0, %v508
      %v510 = vpop.f32.mrb[0].mxu0
      %v511 = vpop.f32.mrb[0].mxu0
      %v512 = vadd.f32 0.0, %v511
      %v513 = vpop.f32.mrb[0].mxu0
      %514 = vmatprep.mubr.bf16.mxu0 0
      %515 = vmatmul.mubr.bf16.gmra.mrb[0].mxu0 %v325
      %v516 = vpop.f32.mrb[0].mxu0
      %v517 = vadd.f32 0.0, %v516
      %v518 = vpop.f32.mrb[0].mxu0
      %v519 = vpop.f32.mrb[0].mxu0
      %v520 = vadd.f32 0.0, %v519
      %v521 = vpop.f32.mrb[0].mxu0
      %522 = vmatprep.mubr.bf16.mxu0 0
      %523 = vmatmul.mubr.bf16.gmra.mrb[0].mxu0 %v326
      %v524 = vpop.f32.mrb[0].mxu0
      %v525 = vadd.f32 0.0, %v524
      %v526 = vpop.f32.mrb[0].mxu0
      %v527 = vpop.f32.mrb[0].mxu0
      %v528 = vadd.f32 0.0, %v527
      %v529 = vpop.f32.mrb[0].mxu0
      %530 = vmatprep.mubr.bf16.mxu0 0
      %531 = vmatmul.mubr.bf16.gmra.mrb[0].mxu0 %v327
      %v532 = vpop.f32.mrb[0].mxu0
      %v533 = vadd.f32 0.0, %v532
      %v534 = vpop.f32.mrb[0].mxu0
      %v535 = vpop.f32.mrb[0].mxu0
      %v536 = vadd.f32 0.0, %v535
      %v537 = vpop.f32.mrb[0].mxu0
      %538 = vmatprep.mubr.bf16.mxu0 0
      %539 = vmatmul.mubr.bf16.gmra.mrb[0].mxu0 %v328
      %v540 = vpop.f32.mrb[0].mxu0
      %v541 = vadd.f32 0.0, %v540
      %v542 = vpop.f32.mrb[0].mxu0
      %v543 = vpop.f32.mrb[0].mxu0
      %v544 = vadd.f32 0.0, %v543
      %v545 = vpop.f32.mrb[0].mxu0
      %546 = vmatprep.mubr.bf16.mxu0 0
      %547 = vmatmul.mubr.bf16.gmra.mrb[0].mxu0 %v329
      %v548 = vpop.f32.mrb[0].mxu0
      %v549 = vadd.f32 0.0, %v548
      %v550 = vpop.f32.mrb[0].mxu0
      %v551 = vpop.f32.mrb[0].mxu0
      %v552 = vadd.f32 0.0, %v551
      %v553 = vpop.f32.mrb[0].mxu0
      %554 = vdwg.mxu0
      %v555 = vld [vmem:[%s2] sm:$0x1]
      %v557 = vlaneseq
      %v558 = vshrl.u32 %v557, 7
      %v559 = vsub.s32 0, %v558
      %v560 = vrot.slane %v555, %v559
      %v562 = vmul.f32 %v429, %v560
      %v563 = vmul.f32 %v432, %v560
      %v564 = vmul.f32 %v437, %v560
      %v565 = vmul.f32 %v440, %v560
      %v566 = vmul.f32 %v445, %v560
      %v567 = vmul.f32 %v448, %v560
      %v568 = vmul.f32 %v453, %v560
      %v569 = vmul.f32 %v456, %v560
      %v570 = vmul.f32 %v461, %v560
      %v571 = vmul.f32 %v464, %v560
      %v572 = vmul.f32 %v469, %v560
      %v573 = vmul.f32 %v472, %v560
      %v574 = vmul.f32 %v477, %v560
      %v575 = vmul.f32 %v480, %v560
      %v576 = vmul.f32 %v485, %v560
      %v577 = vmul.f32 %v488, %v560
      %v578 = vmul.f32 %v493, %v560
      %v579 = vmul.f32 %v496, %v560
      %v580 = vmul.f32 %v501, %v560
      %v581 = vmul.f32 %v504, %v560
      %v582 = vmul.f32 %v509, %v560
      %v583 = vmul.f32 %v512, %v560
      %v584 = vmul.f32 %v517, %v560
      %v585 = vmul.f32 %v520, %v560
      %v586 = vmul.f32 %v525, %v560
      %v587 = vmul.f32 %v528, %v560
      %v588 = vmul.f32 %v533, %v560
      %v589 = vmul.f32 %v536, %v560
      %v590 = vmul.f32 %v541, %v560
      %v591 = vmul.f32 %v544, %v560
      %v592 = vmul.f32 %v549, %v560
      %v593 = vmul.f32 %v552, %v560
      %v594 = vld [vmem:[%s3] sm:$0x1]
      %v596 = vlaneseq
      %v597 = vshrl.u32 %v596, 7
      %v598 = vsub.s32 0, %v597
      %v599 = vrot.slane %v594, %v598
      %v601 = vadd.f32 %v562, %v599
      %v602 = vadd.f32 %v563, %v599
      %v603 = vadd.f32 %v564, %v599
      %v604 = vadd.f32 %v565, %v599
      %v605 = vadd.f32 %v566, %v599
      %v606 = vadd.f32 %v567, %v599
      %v607 = vadd.f32 %v568, %v599
      %v608 = vadd.f32 %v569, %v599
      %v609 = vadd.f32 %v570, %v599
      %v610 = vadd.f32 %v571, %v599
      %v611 = vadd.f32 %v572, %v599
      %v612 = vadd.f32 %v573, %v599
      %v613 = vadd.f32 %v574, %v599
      %v614 = vadd.f32 %v575, %v599
      %v615 = vadd.f32 %v576, %v599
      %v616 = vadd.f32 %v577, %v599
      %v617 = vadd.f32 %v578, %v599
      %v618 = vadd.f32 %v579, %v599
      %v619 = vadd.f32 %v580, %v599
      %v620 = vadd.f32 %v581, %v599
      %v621 = vadd.f32 %v582, %v599
      %v622 = vadd.f32 %v583, %v599
      %v623 = vadd.f32 %v584, %v599
      %v624 = vadd.f32 %v585, %v599
      %v625 = vadd.f32 %v586, %v599
      %v626 = vadd.f32 %v587, %v599
      %v627 = vadd.f32 %v588, %v599
      %v628 = vadd.f32 %v589, %v599
      %v629 = vadd.f32 %v590, %v599
      %v630 = vadd.f32 %v591, %v599
      %v631 = vadd.f32 %v592, %v599
      %v632 = vadd.f32 %v593, %v599
      %v633 = vmax.f32 %v601, 0.0
      %v634 = vmax.f32 %v602, 0.0
      %v635 = vmax.f32 %v603, 0.0
      %v636 = vmax.f32 %v604, 0.0
      %v637 = vmax.f32 %v605, 0.0
      %v638 = vmax.f32 %v606, 0.0
      %v639 = vmax.f32 %v607, 0.0
      %v640 = vmax.f32 %v608, 0.0
      %v641 = vmax.f32 %v609, 0.0
      %v642 = vmax.f32 %v610, 0.0
      %v643 = vmax.f32 %v611, 0.0
      %v644 = vmax.f32 %v612, 0.0
      %v645 = vmax.f32 %v613, 0.0
      %v646 = vmax.f32 %v614, 0.0
      %v647 = vmax.f32 %v615, 0.0
      %v648 = vmax.f32 %v616, 0.0
      %v649 = vmax.f32 %v617, 0.0
      %v650 = vmax.f32 %v618, 0.0
      %v651 = vmax.f32 %v619, 0.0
      %v652 = vmax.f32 %v620, 0.0
      %v653 = vmax.f32 %v621, 0.0
      %v654 = vmax.f32 %v622, 0.0
      %v655 = vmax.f32 %v623, 0.0
      %v656 = vmax.f32 %v624, 0.0
      %v657 = vmax.f32 %v625, 0.0
      %v658 = vmax.f32 %v626, 0.0
      %v659 = vmax.f32 %v627, 0.0
      %v660 = vmax.f32 %v628, 0.0
      %v661 = vmax.f32 %v629, 0.0
      %v662 = vmax.f32 %v630, 0.0
      %v663 = vmax.f32 %v631, 0.0
      %v664 = vmax.f32 %v632, 0.0
      %v665 = vpack.c.bf16 %v634, %v633
      %v666 = vpack.c.bf16 %v636, %v635
      %v667 = vpack.c.bf16 %v638, %v637
      %v668 = vpack.c.bf16 %v640, %v639
      %v669 = vpack.c.bf16 %v642, %v641
      %v670 = vpack.c.bf16 %v644, %v643
      %v671 = vpack.c.bf16 %v646, %v645
      %v672 = vpack.c.bf16 %v648, %v647
      %v673 = vpack.c.bf16 %v650, %v649
      %v674 = vpack.c.bf16 %v652, %v651
      %v675 = vpack.c.bf16 %v654, %v653
      %v676 = vpack.c.bf16 %v656, %v655
      %v677 = vpack.c.bf16 %v658, %v657
      %v678 = vpack.c.bf16 %v660, %v659
      %v679 = vpack.c.bf16 %v662, %v661
      %v680 = vpack.c.bf16 %v664, %v663
      %v697 = vunpack.c.l.b16 %v665
      %v698 = vunpack.c.h.b16 %v665
      %v699 = vunpack.c.l.b16 %v666
      %v700 = vunpack.c.h.b16 %v666
      %v701 = vunpack.c.l.b16 %v667
      %v702 = vunpack.c.h.b16 %v667
      %v703 = vunpack.c.l.b16 %v668
      %v704 = vunpack.c.h.b16 %v668
      %v705 = vunpack.c.l.b16 %v669
      %v706 = vunpack.c.h.b16 %v669
      %v707 = vunpack.c.l.b16 %v670
      %v708 = vunpack.c.h.b16 %v670
      %v709 = vunpack.c.l.b16 %v671
      %v710 = vunpack.c.h.b16 %v671
      %v711 = vunpack.c.l.b16 %v672
      %v712 = vunpack.c.h.b16 %v672
      %v713 = vunpack.c.l.b16 %v673
      %v714 = vunpack.c.h.b16 %v673
      %v715 = vunpack.c.l.b16 %v674
      %v716 = vunpack.c.h.b16 %v674
      %v717 = vunpack.c.l.b16 %v675
      %v718 = vunpack.c.h.b16 %v675
      %v719 = vunpack.c.l.b16 %v676
      %v720 = vunpack.c.h.b16 %v676
      %v721 = vunpack.c.l.b16 %v677
      %v722 = vunpack.c.h.b16 %v677
      %v723 = vunpack.c.l.b16 %v678
      %v724 = vunpack.c.h.b16 %v678
      %v725 = vunpack.c.l.b16 %v679
      %v726 = vunpack.c.h.b16 %v679
      %v727 = vunpack.c.l.b16 %v680
      %v728 = vunpack.c.h.b16 %v680
      %v729 = vpack.c.b16 %v697, %v697
      %v730 = vpack.c.b16 %v698, %v698
      %v731 = vpack.c.b16 %v699, %v699
      %v732 = vpack.c.b16 %v700, %v700
      %v733 = vpack.c.b16 %v701, %v701
      %v734 = vpack.c.b16 %v702, %v702
      %v735 = vpack.c.b16 %v703, %v703
      %v736 = vpack.c.b16 %v704, %v704
      %v737 = vpack.c.b16 %v705, %v705
      %v738 = vpack.c.b16 %v706, %v706
      %v739 = vpack.c.b16 %v707, %v707
      %v740 = vpack.c.b16 %v708, %v708
      %v741 = vpack.c.b16 %v709, %v709
      %v742 = vpack.c.b16 %v710, %v710
      %v743 = vpack.c.b16 %v711, %v711
      %v744 = vpack.c.b16 %v712, %v712
      %v745 = vpack.c.b16 %v713, %v713
      %v746 = vpack.c.b16 %v714, %v714
      %v747 = vpack.c.b16 %v715, %v715
      %v748 = vpack.c.b16 %v716, %v716
      %v749 = vpack.c.b16 %v717, %v717
      %v750 = vpack.c.b16 %v718, %v718
      %v751 = vpack.c.b16 %v719, %v719
      %v752 = vpack.c.b16 %v720, %v720
      %v753 = vpack.c.b16 %v721, %v721
      %v754 = vpack.c.b16 %v722, %v722
      %v755 = vpack.c.b16 %v723, %v723
      %v756 = vpack.c.b16 %v724, %v724
      %v757 = vpack.c.b16 %v725, %v725
      %v758 = vpack.c.b16 %v726, %v726
      %v759 = vpack.c.b16 %v727, %v727
      %v760 = vpack.c.b16 %v728, %v728
      %793 = vst [vmem:[%s199] sm:$0xf] %v729
      %794 = vst [vmem:[%s199 + $0x4] sm:$0xf] %v730
      %795 = vst [vmem:[%s199 + $0x8] sm:$0xf] %v731
      %796 = vst [vmem:[%s199 + $0xc] sm:$0xf] %v732
      %797 = vst [vmem:[%s199 + $0x10] sm:$0xf] %v733
      %798 = vst [vmem:[%s199 + $0x14] sm:$0xf] %v734
      %799 = vst [vmem:[%s199 + $0x18] sm:$0xf] %v735
      %800 = vst [vmem:[%s199 + $0x1c] sm:$0xf] %v736
      %801 = vst [vmem:[%s199 + $0x20] sm:$0xf] %v737
      %802 = vst [vmem:[%s199 + $0x24] sm:$0xf] %v738
      %803 = vst [vmem:[%s199 + $0x28] sm:$0xf] %v739
      %804 = vst [vmem:[%s199 + $0x2c] sm:$0xf] %v740
      %805 = vst [vmem:[%s199 + $0x30] sm:$0xf] %v741
      %806 = vst [vmem:[%s199 + $0x34] sm:$0xf] %v742
      %807 = vst [vmem:[%s199 + $0x38] sm:$0xf] %v743
      %808 = vst [vmem:[%s199 + $0x3c] sm:$0xf] %v744
      %809 = vst [vmem:[%s199 + $0x40] sm:$0xf] %v745
      %810 = vst [vmem:[%s199 + $0x44] sm:$0xf] %v746
      %811 = vst [vmem:[%s199 + $0x48] sm:$0xf] %v747
      %812 = vst [vmem:[%s199 + $0x4c] sm:$0xf] %v748
      %813 = vst [vmem:[%s199 + $0x50] sm:$0xf] %v749
      %814 = vst [vmem:[%s199 + $0x54] sm:$0xf] %v750
      %815 = vst [vmem:[%s199 + $0x58] sm:$0xf] %v751
      %816 = vst [vmem:[%s199 + $0x5c] sm:$0xf] %v752
      %817 = vst [vmem:[%s199 + $0x60] sm:$0xf] %v753
      %818 = vst [vmem:[%s199 + $0x64] sm:$0xf] %v754
      %819 = vst [vmem:[%s199 + $0x68] sm:$0xf] %v755
      %820 = vst [vmem:[%s199 + $0x6c] sm:$0xf] %v756
      %821 = vst [vmem:[%s199 + $0x70] sm:$0xf] %v757
      %822 = vst [vmem:[%s199 + $0x74] sm:$0xf] %v758
      %823 = vst [vmem:[%s199 + $0x78] sm:$0xf] %v759
      %824 = vst [vmem:[%s199 + $0x7c] sm:$0xf] %v760
      %s825 = smul.u32 32, %s15
      %p826 = scmp.lt.s32.totalorder %s825, 63
      %s827 = scalar_select %p826, %s825, 63
      %s828 = smul.addr %s827, 4
      %s829 = scalar_lea.vmem %s4, %s828
      // Predicated region
      $region37: #{_lambda_.6} parent=35 // pred_check
        %p830 = pneg %p122
      $region38: #{_lambda_.6} parent=35 // pred_check_branch
        %832 = sbr.rel (%p830) target = $region40
      $region39: #{_lambda_.6} parent=35 // pred_region
        %s833 = smul.u32 32, %s15
      $region40: #{_lambda_.6} parent=35 // pred_fallthru
        _
    $region36: #{_lambda_.6} parent=5 // pred_fallthru
      _
    %p834 = scmp.le.s32.totalorder 2, %s10
    // Predicated region
    $region41: #{_lambda_.6} parent=5 // pred_check
      %p835 = pneg %p834
    $region42: #{_lambda_.6} parent=5 // pred_check_branch
      %837 = sbr.rel (%p835) target = $region44
    $region43: #{_lambda_.6} parent=5 // pred_region
      %s838 = ssub.s32 %s10, 2
      // Predicated region
      $region45: #{_lambda_.6} parent=43 // pred_check
        %p839 = pneg %p128
      $region46: #{_lambda_.6} parent=43 // pred_check_branch
        %841 = sbr.rel (%p839) target = $region48
      $region47: #{_lambda_.6} parent=43 // pred_region
        %s842 = smul.u32 32, %s16
        %p843 = scmp.lt.s32.totalorder %s842, 63
        %s844 = scalar_select %p843, %s842, 63
        %s845 = smul.addr %s844, 4
        %s846 = scalar_lea.vmem %s4, %s845
      $region48: #{_lambda_.6} parent=43 // pred_fallthru
        _
    $region44: #{_lambda_.6} parent=5 // pred_fallthru
      _
  $region6: #{_lambda_.6} parent=0 // loop_footer
    %s14 = sadd.s32 1, %s10
  $region7: #{_lambda_.6} parent=0 // loop_footer_branch
    %9 = sbr.rel target = $region3
  $region8: #{_lambda_.6} parent=0 // loop_exit
    _

// kernel: _lambda_.8
$region0: #{_lambda_.8}
  #allocation0 [shape = 'u32[]', space=smem, size = 0x4, offset = 0x4, fixed_abs, tag = 'smem constant byte address 0x4 - core index']
  #allocation1 [shape = 'u32[144,128]{1,0:T(1,128)}', space=vmem, size = 0x12000, scoped, tag = 'internal scratch']
  %s0 = inlined_call_operand.vmem [shape: bf16[2,64,128], index: 0, kind: input, shape index: {}]
  %s1 = inlined_call_operand.vmem [shape: bf16[2,256,128], index: 1, kind: input, shape index: {}]
  %s2 = inlined_call_operand.vmem [shape: bf16[64,256], index: 2, kind: input, shape index: {}]
  %s3 = inlined_call_operand.vmem [shape: bf16[128,128], index: 3, kind: input, shape index: {}]
  %s4 = inlined_call_operand.vmem [shape: bf16[128,128], index: 4, kind: input, shape index: {}]
  %s5 = inlined_call_operand.vmem [shape: f32[1,128], index: 5, kind: input, shape index: {}]
  %s6 = inlined_call_operand.vmem [shape: f32[1,128], index: 6, kind: input, shape index: {}]
  %s7 = inlined_call_operand.vmem [shape: f32[1,128], index: 7, kind: input, shape index: {}]
  %s8 = inlined_call_operand.vmem [shape: f32[1,128], index: 8, kind: input, shape index: {}]
  %s9 = inlined_call_operand.vmem [shape: f32[2,64,128], index: 9, kind: output, shape index: {}]
  %s10 = sld [smem:[#allocation0]]
  $region69: #{_lambda_.8} parent=0
    _
  %s12 = ssub.s32 1, %s10
  %s13 = scalar_select 0, %s12, %s10
  loop: start=0, step=1, limit=4
  $region2: #{_lambda_.8} parent=0 // loop_pre_header
    _
  $region3: #{_lambda_.8} parent=0 // loop_header
    %s15 = sphi 0, %s19
    %p16 = scmp.ge.s32.totalorder %s15, 4
    %s25 = sphi 0, %s27
    %s28 = sphi 0, %s25
    %s29 = sphi 0, %s28
    %s45 = sphi 0, %s29
    %s51 = sphi 0, %s53
    %s54 = sphi 0, %s51
    %s55 = sphi 0, %s54
    %s71 = sphi 0, %s55
    %s75 = sphi 0, %s75
    %s77 = sphi 0, %s75
    %s78 = sphi 0, %s77
    %s92 = sphi 0, %s78
    %s96 = sphi 0, %s96
    %s98 = sphi 0, %s96
    %s99 = sphi 0, %s98
    %s113 = sphi 0, %s99
    %s117 = sphi 0, %s117
    %s119 = sphi 0, %s117
    %s120 = sphi 0, %s119
    %s134 = sphi 0, %s120
    %s138 = sphi 0, %s138
    %s140 = sphi 0, %s138
    %s141 = sphi 0, %s140
    %s155 = sphi 0, %s141
    %s159 = sphi 0, %s159
    %s161 = sphi 0, %s159
    %s162 = sphi 0, %s161
    %s176 = sphi 0, %s162
    %s180 = sphi 0, %s180
    %s182 = sphi 0, %s180
    %s183 = sphi 0, %s182
    %s197 = sphi 0, %s183
    %s201 = sphi 0, %s201
    %s203 = sphi 0, %s201
    %s204 = sphi 0, %s203
    %s218 = sphi 0, %s204
    %s224 = sphi 0, %s226
    %s227 = sphi 0, %s224
    %s228 = sphi 0, %s227
    %s244 = sphi 0, %s228
  $region4: #{_lambda_.8} parent=0 // loop_header_branch
    %18 = sbr.rel (%p16) target = $region8
  $region5: #{_lambda_.8} parent=0 // loop_body
    %s20 = ssub.s32 %s15, 1
    %s21 = ssub.s32 %s15, 2
    %s22 = sadd.s32 %s15, 1
    %s23 = ssub.s32 %s15, %s22
    %p24 = scmp.eq.s32.totalorder %s23, 0
    %s26 = sadd.s32 %s25, 1
    %s27 = scalar_select %p24, %s25, %s26
    %p30 = pneg %p24
    %p31 = scmp.eq.s32.totalorder %s15, 1
    %p32 = por %p30, %p31
    %p33 = scmp.ne.s32.totalorder %s25, %s28
    %p34 = scmp.eq.s32.totalorder %s15, 0
    %p35 = por %p33, %p34
    %p36 = scmp.ne.s32.totalorder %s25, %s28
    %p37 = scmp.eq.s32.totalorder %s20, 1
    %p38 = por %p36, %p37
    %p39 = scmp.ne.s32.totalorder %s28, %s29
    %p40 = scmp.eq.s32.totalorder %s20, 0
    %p41 = por %p39, %p40
    %p42 = scmp.ne.s32.totalorder %s28, %s29
    %p43 = scmp.eq.s32.totalorder %s21, 1
    %p44 = por %p42, %p43
    %p46 = scmp.ne.s32.totalorder %s29, %s45
    %p47 = scmp.eq.s32.totalorder %s21, 0
    %p48 = por %p46, %p47
    %s49 = ssub.s32 %s15, %s22
    %p50 = scmp.eq.s32.totalorder %s49, 0
    %s52 = sadd.s32 %s51, 1
    %s53 = scalar_select %p50, %s51, %s52
    %p56 = pneg %p50
    %p57 = scmp.eq.s32.totalorder %s15, 1
    %p58 = por %p56, %p57
    %p59 = scmp.ne.s32.totalorder %s51, %s54
    %p60 = scmp.eq.s32.totalorder %s15, 0
    %p61 = por %p59, %p60
    %p62 = scmp.ne.s32.totalorder %s51, %s54
    %p63 = scmp.eq.s32.totalorder %s20, 1
    %p64 = por %p62, %p63
    %p65 = scmp.ne.s32.totalorder %s54, %s55
    %p66 = scmp.eq.s32.totalorder %s20, 0
    %p67 = por %p65, %p66
    %p68 = scmp.ne.s32.totalorder %s54, %s55
    %p69 = scmp.eq.s32.totalorder %s21, 1
    %p70 = por %p68, %p69
    %p72 = scmp.ne.s32.totalorder %s55, %s71
    %p73 = scmp.eq.s32.totalorder %s21, 0
    %p74 = por %p72, %p73
    %s76 = sadd.s32 %s75, 1
    %p79 = scmp.eq.s32.totalorder %s15, 1
    %p80 = scmp.ne.s32.totalorder %s75, %s77
    %p81 = scmp.eq.s32.totalorder %s15, 0
    %p82 = por %p80, %p81
    %p83 = scmp.ne.s32.totalorder %s75, %s77
    %p84 = scmp.eq.s32.totalorder %s20, 1
    %p85 = por %p83, %p84
    %p86 = scmp.ne.s32.totalorder %s77, %s78
    %p87 = scmp.eq.s32.totalorder %s20, 0
    %p88 = por %p86, %p87
    %p89 = scmp.ne.s32.totalorder %s77, %s78
    %p90 = scmp.eq.s32.totalorder %s21, 1
    %p91 = por %p89, %p90
    %p93 = scmp.ne.s32.totalorder %s78, %s92
    %p94 = scmp.eq.s32.totalorder %s21, 0
    %p95 = por %p93, %p94
    %s97 = sadd.s32 %s96, 1
    %p100 = scmp.eq.s32.totalorder %s15, 1
    %p101 = scmp.ne.s32.totalorder %s96, %s98
    %p102 = scmp.eq.s32.totalorder %s15, 0
    %p103 = por %p101, %p102
    %p104 = scmp.ne.s32.totalorder %s96, %s98
    %p105 = scmp.eq.s32.totalorder %s20, 1
    %p106 = por %p104, %p105
    %p107 = scmp.ne.s32.totalorder %s98, %s99
    %p108 = scmp.eq.s32.totalorder %s20, 0
    %p109 = por %p107, %p108
    %p110 = scmp.ne.s32.totalorder %s98, %s99
    %p111 = scmp.eq.s32.totalorder %s21, 1
    %p112 = por %p110, %p111
    %p114 = scmp.ne.s32.totalorder %s99, %s113
    %p115 = scmp.eq.s32.totalorder %s21, 0
    %p116 = por %p114, %p115
    %s118 = sadd.s32 %s117, 1
    %p121 = scmp.eq.s32.totalorder %s15, 1
    %p122 = scmp.ne.s32.totalorder %s117, %s119
    %p123 = scmp.eq.s32.totalorder %s15, 0
    %p124 = por %p122, %p123
    %p125 = scmp.ne.s32.totalorder %s117, %s119
    %p126 = scmp.eq.s32.totalorder %s20, 1
    %p127 = por %p125, %p126
    %p128 = scmp.ne.s32.totalorder %s119, %s120
    %p129 = scmp.eq.s32.totalorder %s20, 0
    %p130 = por %p128, %p129
    %p131 = scmp.ne.s32.totalorder %s119, %s120
    %p132 = scmp.eq.s32.totalorder %s21, 1
    %p133 = por %p131, %p132
    %p135 = scmp.ne.s32.totalorder %s120, %s134
    %p136 = scmp.eq.s32.totalorder %s21, 0
    %p137 = por %p135, %p136
    %s139 = sadd.s32 %s138, 1
    %p142 = scmp.eq.s32.totalorder %s15, 1
    %p143 = scmp.ne.s32.totalorder %s138, %s140
    %p144 = scmp.eq.s32.totalorder %s15, 0
    %p145 = por %p143, %p144
    %p146 = scmp.ne.s32.totalorder %s138, %s140
    %p147 = scmp.eq.s32.totalorder %s20, 1
    %p148 = por %p146, %p147
    %p149 = scmp.ne.s32.totalorder %s140, %s141
    %p150 = scmp.eq.s32.totalorder %s20, 0
    %p151 = por %p149, %p150
    %p152 = scmp.ne.s32.totalorder %s140, %s141
    %p153 = scmp.eq.s32.totalorder %s21, 1
    %p154 = por %p152, %p153
    %p156 = scmp.ne.s32.totalorder %s141, %s155
    %p157 = scmp.eq.s32.totalorder %s21, 0
    %p158 = por %p156, %p157
    %s160 = sadd.s32 %s159, 1
    %p163 = scmp.eq.s32.totalorder %s15, 1
    %p164 = scmp.ne.s32.totalorder %s159, %s161
    %p165 = scmp.eq.s32.totalorder %s15, 0
    %p166 = por %p164, %p165
    %p167 = scmp.ne.s32.totalorder %s159, %s161
    %p168 = scmp.eq.s32.totalorder %s20, 1
    %p169 = por %p167, %p168
    %p170 = scmp.ne.s32.totalorder %s161, %s162
    %p171 = scmp.eq.s32.totalorder %s20, 0
    %p172 = por %p170, %p171
    %p173 = scmp.ne.s32.totalorder %s161, %s162
    %p174 = scmp.eq.s32.totalorder %s21, 1
    %p175 = por %p173, %p174
    %p177 = scmp.ne.s32.totalorder %s162, %s176
    %p178 = scmp.eq.s32.totalorder %s21, 0
    %p179 = por %p177, %p178
    %s181 = sadd.s32 %s180, 1
    %p184 = scmp.eq.s32.totalorder %s15, 1
    %p185 = scmp.ne.s32.totalorder %s180, %s182
    %p186 = scmp.eq.s32.totalorder %s15, 0
    %p187 = por %p185, %p186
    %p188 = scmp.ne.s32.totalorder %s180, %s182
    %p189 = scmp.eq.s32.totalorder %s20, 1
    %p190 = por %p188, %p189
    %p191 = scmp.ne.s32.totalorder %s182, %s183
    %p192 = scmp.eq.s32.totalorder %s20, 0
    %p193 = por %p191, %p192
    %p194 = scmp.ne.s32.totalorder %s182, %s183
    %p195 = scmp.eq.s32.totalorder %s21, 1
    %p196 = por %p194, %p195
    %p198 = scmp.ne.s32.totalorder %s183, %s197
    %p199 = scmp.eq.s32.totalorder %s21, 0
    %p200 = por %p198, %p199
    %s202 = sadd.s32 %s201, 1
    %p205 = scmp.eq.s32.totalorder %s15, 1
    %p206 = scmp.ne.s32.totalorder %s201, %s203
    %p207 = scmp.eq.s32.totalorder %s15, 0
    %p208 = por %p206, %p207
    %p209 = scmp.ne.s32.totalorder %s201, %s203
    %p210 = scmp.eq.s32.totalorder %s20, 1
    %p211 = por %p209, %p210
    %p212 = scmp.ne.s32.totalorder %s203, %s204
    %p213 = scmp.eq.s32.totalorder %s20, 0
    %p214 = por %p212, %p213
    %p215 = scmp.ne.s32.totalorder %s203, %s204
    %p216 = scmp.eq.s32.totalorder %s21, 1
    %p217 = por %p215, %p216
    %p219 = scmp.ne.s32.totalorder %s204, %s218
    %p220 = scmp.eq.s32.totalorder %s21, 0
    %p221 = por %p219, %p220
    %s222 = ssub.s32 %s15, %s22
    %p223 = scmp.eq.s32.totalorder %s222, 0
    %s225 = sadd.s32 %s224, 1
    %s226 = scalar_select %p223, %s224, %s225
    %p229 = pneg %p223
    %p230 = scmp.eq.s32.totalorder %s15, 1
    %p231 = por %p229, %p230
    %p232 = scmp.ne.s32.totalorder %s224, %s227
    %p233 = scmp.eq.s32.totalorder %s15, 0
    %p234 = por %p232, %p233
    %p235 = scmp.ne.s32.totalorder %s224, %s227
    %p236 = scmp.eq.s32.totalorder %s20, 1
    %p237 = por %p235, %p236
    %p238 = scmp.ne.s32.totalorder %s227, %s228
    %p239 = scmp.eq.s32.totalorder %s20, 0
    %p240 = por %p238, %p239
    %p241 = scmp.ne.s32.totalorder %s227, %s228
    %p242 = scmp.eq.s32.totalorder %s21, 1
    %p243 = por %p241, %p242
    %p245 = scmp.ne.s32.totalorder %s228, %s244
    %p246 = scmp.eq.s32.totalorder %s21, 0
    %p247 = por %p245, %p246
    %p248 = scmp.le.s32.totalorder 1, %s15
    %p249 = scmp.lt.s32.totalorder %s15, 3
    %p250 = pnand %p248, %p249
    %p251 = pneg %p250
    // Predicated region
    $region9: #{_lambda_.8} parent=5 // pred_check
      _
    $region10: #{_lambda_.8} parent=5 // pred_check_branch
      %253 = sbr.rel (%p250) target = $region12
    $region11: #{_lambda_.8} parent=5 // pred_region
      %s254 = ssub.s32 %s15, 1
      // Predicated region
      $region13: #{_lambda_.8} parent=11 // pred_check
        %p255 = pneg %p88
      $region14: #{_lambda_.8} parent=11 // pred_check_branch
        %257 = sbr.rel (%p255) target = $region16
      $region15: #{_lambda_.8} parent=11 // pred_region
        _
      $region16: #{_lambda_.8} parent=11 // pred_fallthru
        _
      // Predicated region
      $region17: #{_lambda_.8} parent=11 // pred_check
        %p258 = pneg %p109
      $region18: #{_lambda_.8} parent=11 // pred_check_branch
        %260 = sbr.rel (%p258) target = $region20
      $region19: #{_lambda_.8} parent=11 // pred_region
        _
      $region20: #{_lambda_.8} parent=11 // pred_fallthru
        _
      // Predicated region
      $region21: #{_lambda_.8} parent=11 // pred_check
        %p261 = pneg %p130
      $region22: #{_lambda_.8} parent=11 // pred_check_branch
        %263 = sbr.rel (%p261) target = $region24
      $region23: #{_lambda_.8} parent=11 // pred_region
        _
      $region24: #{_lambda_.8} parent=11 // pred_fallthru
        _
      // Predicated region
      $region25: #{_lambda_.8} parent=11 // pred_check
        %p264 = pneg %p151
      $region26: #{_lambda_.8} parent=11 // pred_check_branch
        %266 = sbr.rel (%p264) target = $region28
      $region27: #{_lambda_.8} parent=11 // pred_region
        _
      $region28: #{_lambda_.8} parent=11 // pred_fallthru
        _
      // Predicated region
      $region29: #{_lambda_.8} parent=11 // pred_check
        %p267 = pneg %p172
      $region30: #{_lambda_.8} parent=11 // pred_check_branch
        %269 = sbr.rel (%p267) target = $region32
      $region31: #{_lambda_.8} parent=11 // pred_region
        _
      $region32: #{_lambda_.8} parent=11 // pred_fallthru
        _
      // Predicated region
      $region33: #{_lambda_.8} parent=11 // pred_check
        %p270 = pneg %p193
      $region34: #{_lambda_.8} parent=11 // pred_check_branch
        %272 = sbr.rel (%p270) target = $region36
      $region35: #{_lambda_.8} parent=11 // pred_region
        _
      $region36: #{_lambda_.8} parent=11 // pred_fallthru
        _
      // Predicated region
      $region37: #{_lambda_.8} parent=11 // pred_check
        %p273 = pneg %p214
      $region38: #{_lambda_.8} parent=11 // pred_check_branch
        %275 = sbr.rel (%p273) target = $region40
      $region39: #{_lambda_.8} parent=11 // pred_region
        _
      $region40: #{_lambda_.8} parent=11 // pred_fallthru
        _
    $region12: #{_lambda_.8} parent=5 // pred_fallthru
      _
    %p276 = scmp.lt.s32.totalorder %s15, 2
    // Predicated region
    $region41: #{_lambda_.8} parent=5 // pred_check
      %p277 = pneg %p276
    $region42: #{_lambda_.8} parent=5 // pred_check_branch
      %279 = sbr.rel (%p277) target = $region44
    $region43: #{_lambda_.8} parent=5 // pred_region
      // Predicated region
      $region45: #{_lambda_.8} parent=43 // pred_check
        %p280 = pneg %p35
      $region46: #{_lambda_.8} parent=43 // pred_check_branch
        %282 = sbr.rel (%p280) target = $region48
      $region47: #{_lambda_.8} parent=43 // pred_region
        %p283 = scmp.lt.s32.totalorder %s15, 1
        %s284 = scalar_select %p283, %s15, 1
        %s285 = smul.addr %s284, 8
        %s286 = smul.addr %s285, 4
        %s287 = scalar_lea.vmem %s0, %s286
      $region48: #{_lambda_.8} parent=43 // pred_fallthru
        _
      // Predicated region
      $region49: #{_lambda_.8} parent=43 // pred_check
        %p288 = pneg %p61
      $region50: #{_lambda_.8} parent=43 // pred_check_branch
        %290 = sbr.rel (%p288) target = $region52
      $region51: #{_lambda_.8} parent=43 // pred_region
        %p291 = scmp.lt.s32.totalorder %s15, 1
        %s292 = scalar_select %p291, %s15, 1
        %s293 = smul.addr %s292, 32
        %s294 = smul.addr %s293, 4
        %s295 = scalar_lea.vmem %s1, %s294
      $region52: #{_lambda_.8} parent=43 // pred_fallthru
        _
    $region44: #{_lambda_.8} parent=5 // pred_fallthru
      _
    %p296 = scmp.le.s32.totalorder 1, %s15
    %p297 = scmp.lt.s32.totalorder %s15, 3
    %p298 = pnand %p296, %p297
    %p299 = pneg %p298
    // Predicated region
    $region53: #{_lambda_.8} parent=5 // pred_check
      _
    $region54: #{_lambda_.8} parent=5 // pred_check_branch
      %301 = sbr.rel (%p298) target = $region56
    $region55: #{_lambda_.8} parent=5 // pred_region
      %s302 = ssub.s32 %s15, 1
      %p303 = scmp.lt.s32.totalorder %s20, 1
      %s304 = scalar_select %p303, %s20, 1
      %s305 = smul.addr %s304, 8
      %s306 = smul.addr %s305, 4
      %s307 = scalar_lea.vmem %s0, %s306
      %p308 = pneg %p41
      %p309 = pneg %p38
      %p310 = scmp.lt.s32.totalorder %s20, 1
      %s311 = scalar_select %p310, %s20, 1
      %s312 = smul.addr %s311, 32
      %s313 = smul.addr %s312, 4
      %s314 = scalar_lea.vmem %s1, %s313
      %p315 = pneg %p67
      %p316 = pneg %p64
      %p317 = pneg %p88
      %p318 = pneg %p85
      %p319 = pneg %p109
      %p320 = pneg %p106
      %p321 = pneg %p130
      %p322 = pneg %p127
      %p323 = pneg %p151
      %p324 = pneg %p148
      %p325 = pneg %p172
      %p326 = pneg %p169
      %p327 = pneg %p193
      %p328 = pneg %p190
      %p329 = pneg %p214
      %p330 = pneg %p211
      %p331 = pneg %p240
      %p332 = pneg %p237
      %p333 = scmp.lt.s32.totalorder %s20, 1
      %s334 = scalar_select %p333, %s20, 1
      %s335 = smul.addr %s334, 8
      %s336 = smul.addr %s335, 8
      %s337 = scalar_lea.vmem %s9, %s336
      %p338 = scmp.lt.s32.totalorder %s20, 1
      %s339 = scalar_select %p338, %s20, 1
      %s340 = smul.addr %s339, 8
      %s341 = smul.addr %s340, 4
      %s342 = scalar_lea.vmem %s0, %s341
      %p343 = scmp.lt.s32.totalorder %s20, 1
      %s344 = scalar_select %p343, %s20, 1
      %s345 = smul.addr %s344, 32
      %s346 = smul.addr %s345, 4
      %s347 = scalar_lea.vmem %s1, %s346
      %p348 = scmp.lt.s32.totalorder %s20, 1
      %s349 = scalar_select %p348, %s20, 1
      %s350 = smul.addr %s349, 8
      %s351 = smul.addr %s350, 8
      %s352 = scalar_lea.vmem %s9, %s351
      %v354 = vld [vmem:[%s342] sm:$0xf]
      %v355 = vld [vmem:[%s342 + $0x4] sm:$0xf]
      %v356 = vld [vmem:[%s342 + $0x8] sm:$0xf]
      %v357 = vld [vmem:[%s342 + $0xc] sm:$0xf]
      %v358 = vld [vmem:[%s342 + $0x10] sm:$0xf]
      %v359 = vld [vmem:[%s342 + $0x14] sm:$0xf]
      %v360 = vld [vmem:[%s342 + $0x18] sm:$0xf]
      %v361 = vld [vmem:[%s342 + $0x1c] sm:$0xf]
      %v362 = vld [vmem:[%s3] sm:$0xf]
      %v363 = vld [vmem:[%s3 + $0x4] sm:$0xf]
      %v364 = vld [vmem:[%s3 + $0x8] sm:$0xf]
      %v365 = vld [vmem:[%s3 + $0xc] sm:$0xf]
      %v366 = vld [vmem:[%s3 + $0x10] sm:$0xf]
      %v367 = vld [vmem:[%s3 + $0x14] sm:$0xf]
      %v368 = vld [vmem:[%s3 + $0x18] sm:$0xf]
      %v369 = vld [vmem:[%s3 + $0x1c] sm:$0xf]
      %v370 = vld [vmem:[%s3 + $0x20] sm:$0xf]
      %v371 = vld [vmem:[%s3 + $0x24] sm:$0xf]
      %v372 = vld [vmem:[%s3 + $0x28] sm:$0xf]
      %v373 = vld [vmem:[%s3 + $0x2c] sm:$0xf]
      %v374 = vld [vmem:[%s3 + $0x30] sm:$0xf]
      %v375 = vld [vmem:[%s3 + $0x34] sm:$0xf]
      %v376 = vld [vmem:[%s3 + $0x38] sm:$0xf]
      %v377 = vld [vmem:[%s3 + $0x3c] sm:$0xf]
      %v386 = vunpack.c.l.b16 %v354
      %v387 = vunpack.c.l.b16 %v355
      %v388 = vunpack.c.l.b16 %v356
      %v389 = vunpack.c.l.b16 %v357
      %v390 = vunpack.c.l.b16 %v358
      %v391 = vunpack.c.l.b16 %v359
      %v392 = vunpack.c.l.b16 %v360
      %v393 = vunpack.c.l.b16 %v361
      %v394 = vpack.c.b16 %v387, %v386
      %v395 = vpack.c.b16 %v389, %v388
      %v396 = vpack.c.b16 %v391, %v390
      %v397 = vpack.c.b16 %v393, %v392
      %v418 = vunpack.c.l.b16 %v362
      %v419 = vunpack.c.l.b16 %v363
      %v420 = vunpack.c.l.b16 %v364
      %v421 = vunpack.c.l.b16 %v365
      %v422 = vunpack.c.l.b16 %v366
      %v423 = vunpack.c.l.b16 %v367
      %v424 = vunpack.c.l.b16 %v368
      %v425 = vunpack.c.l.b16 %v369
      %v426 = vunpack.c.l.b16 %v370
      %v427 = vunpack.c.l.b16 %v371
      %v428 = vunpack.c.l.b16 %v372
      %v429 = vunpack.c.l.b16 %v373
      %v430 = vunpack.c.l.b16 %v374
      %v431 = vunpack.c.l.b16 %v375
      %v432 = vunpack.c.l.b16 %v376
      %v433 = vunpack.c.l.b16 %v377
      %v434 = vpack.c.b16 %v419, %v418
      %v435 = vpack.c.b16 %v421, %v420
      %v436 = vpack.c.b16 %v423, %v422
      %v437 = vpack.c.b16 %v425, %v424
      %v438 = vpack.c.b16 %v427, %v426
      %v439 = vpack.c.b16 %v429, %v428
      %v440 = vpack.c.b16 %v431, %v430
      %v441 = vpack.c.b16 %v433, %v432
      %450 = vmatprep.subr.bf16.mxu0 0
      %451 = vmatpush1.bf16.msra.mxu0 %v434
      %452 = vmatprep.subr.bf16.mxu0 0
      %453 = vmatpush1.bf16.msra.mxu0 %v435
      %454 = vmatprep.subr.bf16.mxu0 0
      %455 = vmatpush1.bf16.msra.mxu0 %v436
      %456 = vmatprep.subr.bf16.mxu0 0
      %457 = vmatpush1.bf16.msra.mxu0 %v437
      %458 = vmatprep.subr.bf16.mxu0 0
      %459 = vmatpush1.bf16.msra.mxu0 %v438
      %460 = vmatprep.subr.bf16.mxu0 0
      %461 = vmatpush1.bf16.msra.mxu0 %v439
      %462 = vmatprep.subr.bf16.mxu0 0
      %463 = vmatpush1.bf16.msra.mxu0 %v440
      %464 = vmatprep.subr.bf16.mxu0 0
      %465 = vmatpush1.bf16.msra.mxu0 %v441
      %466 = vmatprep.subr.bf16.mxu0 0
      %467 = vmatpush1.bf16.msra.mxu0 0
      %468 = vmatprep.subr.bf16.mxu0 0
      %469 = vmatpush1.bf16.msra.mxu0 0
      %470 = vmatprep.subr.bf16.mxu0 0
      %471 = vmatpush1.bf16.msra.mxu0 0
      %472 = vmatprep.subr.bf16.mxu0 0
      %473 = vmatpush1.bf16.msra.mxu0 0
      %474 = vmatprep.subr.bf16.mxu0 0
      %475 = vmatpush1.bf16.msra.mxu0 0
      %476 = vmatprep.subr.bf16.mxu0 0
      %477 = vmatpush1.bf16.msra.mxu0 0
      %478 = vmatprep.subr.bf16.mxu0 0
      %479 = vmatpush1.bf16.msra.mxu0 0
      %480 = vmatprep.subr.bf16.mxu0 0
      %481 = vmatpush1.bf16.msra.mxu0 0
      %482 = vmatprep.mubr.bf16.mxu0 0
      %483 = vmatmul.mubr.bf16.gmra.mrb[0].mxu0 %v394
      %v484 = vpop.f32.mrb[0].mxu0
      %v485 = vadd.f32 0.0, %v484
      %v486 = vpop.f32.mrb[0].mxu0
      %v487 = vpop.f32.mrb[0].mxu0
      %v488 = vadd.f32 0.0, %v487
      %v489 = vpop.f32.mrb[0].mxu0
      %490 = vmatprep.mubr.bf16.mxu0 0
      %491 = vmatmul.mubr.bf16.gmra.mrb[0].mxu0 %v395
      %v492 = vpop.f32.mrb[0].mxu0
      %v493 = vadd.f32 0.0, %v492
      %v494 = vpop.f32.mrb[0].mxu0
      %v495 = vpop.f32.mrb[0].mxu0
      %v496 = vadd.f32 0.0, %v495
      %v497 = vpop.f32.mrb[0].mxu0
      %498 = vmatprep.mubr.bf16.mxu0 0
      %499 = vmatmul.mubr.bf16.gmra.mrb[0].mxu0 %v396
      %v500 = vpop.f32.mrb[0].mxu0
      %v501 = vadd.f32 0.0, %v500
      %v502 = vpop.f32.mrb[0].mxu0
      %v503 = vpop.f32.mrb[0].mxu0
      %v504 = vadd.f32 0.0, %v503
      %v505 = vpop.f32.mrb[0].mxu0
      %506 = vmatprep.mubr.bf16.mxu0 0
      %507 = vmatmul.mubr.bf16.gmra.mrb[0].mxu0 %v397
      %v508 = vpop.f32.mrb[0].mxu0
      %v509 = vadd.f32 0.0, %v508
      %v510 = vpop.f32.mrb[0].mxu0
      %v511 = vpop.f32.mrb[0].mxu0
      %v512 = vadd.f32 0.0, %v511
      %v513 = vpop.f32.mrb[0].mxu0
      %514 = vdwg.mxu0
      %v515 = vld [vmem:[%s5] sm:$0x1]
      %v517 = vlaneseq
      %v518 = vshrl.u32 %v517, 7
      %v519 = vsub.s32 0, %v518
      %v520 = vrot.slane %v515, %v519
      %v522 = vmul.f32 %v485, %v520
      %v523 = vmul.f32 %v488, %v520
      %v524 = vmul.f32 %v493, %v520
      %v525 = vmul.f32 %v496, %v520
      %v526 = vmul.f32 %v501, %v520
      %v527 = vmul.f32 %v504, %v520
      %v528 = vmul.f32 %v509, %v520
      %v529 = vmul.f32 %v512, %v520
      %v530 = vld [vmem:[%s6] sm:$0x1]
      %v532 = vlaneseq
      %v533 = vshrl.u32 %v532, 7
      %v534 = vsub.s32 0, %v533
      %v535 = vrot.slane %v530, %v534
      %v537 = vadd.f32 %v522, %v535
      %v538 = vadd.f32 %v523, %v535
      %v539 = vadd.f32 %v524, %v535
      %v540 = vadd.f32 %v525, %v535
      %v541 = vadd.f32 %v526, %v535
      %v542 = vadd.f32 %v527, %v535
      %v543 = vadd.f32 %v528, %v535
      %v544 = vadd.f32 %v529, %v535
      %v545 = vld [vmem:[%s347] sm:$0xf]
      %v546 = vld [vmem:[%s347 + $0x4] sm:$0xf]
      %v547 = vld [vmem:[%s347 + $0x8] sm:$0xf]
      %v548 = vld [vmem:[%s347 + $0xc] sm:$0xf]
      %v549 = vld [vmem:[%s347 + $0x10] sm:$0xf]
      %v550 = vld [vmem:[%s347 + $0x14] sm:$0xf]
      %v551 = vld [vmem:[%s347 + $0x18] sm:$0xf]
      %v552 = vld [vmem:[%s347 + $0x1c] sm:$0xf]
      %v553 = vld [vmem:[%s347 + $0x20] sm:$0xf]
      %v554 = vld [vmem:[%s347 + $0x24] sm:$0xf]
      %v555 = vld [vmem:[%s347 + $0x28] sm:$0xf]
      %v556 = vld [vmem:[%s347 + $0x2c] sm:$0xf]
      %v557 = vld [vmem:[%s347 + $0x30] sm:$0xf]
      %v558 = vld [vmem:[%s347 + $0x34] sm:$0xf]
      %v559 = vld [vmem:[%s347 + $0x38] sm:$0xf]
      %v560 = vld [vmem:[%s347 + $0x3c] sm:$0xf]
      %v561 = vld [vmem:[%s347 + $0x40] sm:$0xf]
      %v562 = vld [vmem:[%s347 + $0x44] sm:$0xf]
      %v563 = vld [vmem:[%s347 + $0x48] sm:$0xf]
      %v564 = vld [vmem:[%s347 + $0x4c] sm:$0xf]
      %v565 = vld [vmem:[%s347 + $0x50] sm:$0xf]
      %v566 = vld [vmem:[%s347 + $0x54] sm:$0xf]
      %v567 = vld [vmem:[%s347 + $0x58] sm:$0xf]
      %v568 = vld [vmem:[%s347 + $0x5c] sm:$0xf]
      %v569 = vld [vmem:[%s347 + $0x60] sm:$0xf]
      %v570 = vld [vmem:[%s347 + $0x64] sm:$0xf]
      %v571 = vld [vmem:[%s347 + $0x68] sm:$0xf]
      %v572 = vld [vmem:[%s347 + $0x6c] sm:$0xf]
      %v573 = vld [vmem:[%s347 + $0x70] sm:$0xf]
      %v574 = vld [vmem:[%s347 + $0x74] sm:$0xf]
      %v575 = vld [vmem:[%s347 + $0x78] sm:$0xf]
      %v576 = vld [vmem:[%s347 + $0x7c] sm:$0xf]
      %v577 = vld [vmem:[%s2] sm:$0xff]
      %v578 = vld [vmem:[%s2 + $0x8] sm:$0xff]
      %v579 = vld [vmem:[%s2 + $0x10] sm:$0xff]
      %v580 = vld [vmem:[%s2 + $0x18] sm:$0xff]
      %v581 = vld [vmem:[%s2 + $0x20] sm:$0xff]
      %v582 = vld [vmem:[%s2 + $0x28] sm:$0xff]
      %v583 = vld [vmem:[%s2 + $0x30] sm:$0xff]
      %v584 = vld [vmem:[%s2 + $0x38] sm:$0xff]
      %v593 = vunpack.c.l.b16 %v577
      %v594 = vunpack.c.h.b16 %v577
      %v595 = vunpack.c.l.b16 %v578
      %v596 = vunpack.c.h.b16 %v578
      %v597 = vunpack.c.l.b16 %v579
      %v598 = vunpack.c.h.b16 %v579
      %v599 = vunpack.c.l.b16 %v580
      %v600 = vunpack.c.h.b16 %v580
      %v601 = vunpack.c.l.b16 %v581
      %v602 = vunpack.c.h.b16 %v581
      %v603 = vunpack.c.l.b16 %v582
      %v604 = vunpack.c.h.b16 %v582
      %v605 = vunpack.c.l.b16 %v583
      %v606 = vunpack.c.h.b16 %v583
      %v607 = vunpack.c.l.b16 %v584
      %v608 = vunpack.c.h.b16 %v584
      %v609 = vpack.c.b16 %v595, %v593
      %v610 = vpack.c.b16 %v596, %v594
      %v611 = vpack.c.b16 %v599, %v597
      %v612 = vpack.c.b16 %v600, %v598
      %v613 = vpack.c.b16 %v603, %v601
      %v614 = vpack.c.b16 %v604, %v602
      %v615 = vpack.c.b16 %v607, %v605
      %v616 = vpack.c.b16 %v608, %v606
      %v657 = vunpack.c.l.b16 %v545
      %v658 = vunpack.c.l.b16 %v546
      %v659 = vunpack.c.l.b16 %v547
      %v660 = vunpack.c.l.b16 %v548
      %v661 = vunpack.c.l.b16 %v549
      %v662 = vunpack.c.l.b16 %v550
      %v663 = vunpack.c.l.b16 %v551
      %v664 = vunpack.c.l.b16 %v552
      %v665 = vunpack.c.l.b16 %v553
      %v666 = vunpack.c.l.b16 %v554
      %v667 = vunpack.c.l.b16 %v555
      %v668 = vunpack.c.l.b16 %v556
      %v669 = vunpack.c.l.b16 %v557
      %v670 = vunpack.c.l.b16 %v558
      %v671 = vunpack.c.l.b16 %v559
      %v672 = vunpack.c.l.b16 %v560
      %v673 = vunpack.c.l.b16 %v561
      %v674 = vunpack.c.l.b16 %v562
      %v675 = vunpack.c.l.b16 %v563
      %v676 = vunpack.c.l.b16 %v564
      %v677 = vunpack.c.l.b16 %v565
      %v678 = vunpack.c.l.b16 %v566
      %v679 = vunpack.c.l.b16 %v567
      %v680 = vunpack.c.l.b16 %v568
      %v681 = vunpack.c.l.b16 %v569
      %v682 = vunpack.c.l.b16 %v570
      %v683 = vunpack.c.l.b16 %v571
      %v684 = vunpack.c.l.b16 %v572
      %v685 = vunpack.c.l.b16 %v573
      %v686 = vunpack.c.l.b16 %v574
      %v687 = vunpack.c.l.b16 %v575
      %v688 = vunpack.c.l.b16 %v576
      %v689 = vpack.c.b16 %v658, %v657
      %v690 = vpack.c.b16 %v660, %v659
      %v691 = vpack.c.b16 %v662, %v661
      %v692 = vpack.c.b16 %v664, %v663
      %v693 = vpack.c.b16 %v666, %v665
      %v694 = vpack.c.b16 %v668, %v667
      %v695 = vpack.c.b16 %v670, %v669
      %v696 = vpack.c.b16 %v672, %v671
      %v697 = vpack.c.b16 %v674, %v673
      %v698 = vpack.c.b16 %v676, %v675
      %v699 = vpack.c.b16 %v678, %v677
      %v700 = vpack.c.b16 %v680, %v679
      %v701 = vpack.c.b16 %v682, %v681
      %v702 = vpack.c.b16 %v684, %v683
      %v703 = vpack.c.b16 %v686, %v685
      %v704 = vpack.c.b16 %v688, %v687
      %721 = vmatprep.subr.bf16.mxu0 0
      %722 = vmatpush1.bf16.msra.mxu0 %v689
      %723 = vmatprep.subr.bf16.mxu0 0
      %724 = vmatpush1.bf16.msra.mxu0 %v690
      %725 = vmatprep.subr.bf16.mxu0 0
      %726 = vmatpush1.bf16.msra.mxu0 %v691
      %727 = vmatprep.subr.bf16.mxu0 0
      %728 = vmatpush1.bf16.msra.mxu0 %v692
      %729 = vmatprep.subr.bf16.mxu0 0
      %730 = vmatpush1.bf16.msra.mxu0 %v693
      %731 = vmatprep.subr.bf16.mxu0 0
      %732 = vmatpush1.bf16.msra.mxu0 %v694
      %733 = vmatprep.subr.bf16.mxu0 0
      %734 = vmatpush1.bf16.msra.mxu0 %v695
      %735 = vmatprep.subr.bf16.mxu0 0
      %736 = vmatpush1.bf16.msra.mxu0 %v696
      %737 = vmatprep.subr.bf16.mxu0 0
      %738 = vmatpush1.bf16.msra.mxu0 %v697
      %739 = vmatprep.subr.bf16.mxu0 0
      %740 = vmatpush1.bf16.msra.mxu0 %v698
      %741 = vmatprep.subr.bf16.mxu0 0
      %742 = vmatpush1.bf16.msra.mxu0 %v699
      %743 = vmatprep.subr.bf16.mxu0 0
      %744 = vmatpush1.bf16.msra.mxu0 %v700
      %745 = vmatprep.subr.bf16.mxu0 0
      %746 = vmatpush1.bf16.msra.mxu0 %v701
      %747 = vmatprep.subr.bf16.mxu0 0
      %748 = vmatpush1.bf16.msra.mxu0 %v702
      %749 = vmatprep.subr.bf16.mxu0 0
      %750 = vmatpush1.bf16.msra.mxu0 %v703
      %751 = vmatprep.subr.bf16.mxu0 0
      %752 = vmatpush1.bf16.msra.mxu0 %v704
      %753 = vmatprep.mubr.bf16.mxu0 %v610
      %754 = vmatmul.mubr.bf16.gmra.mrb[0].mxu0 %v609
      %v755 = vpop.f32.mrb[0].mxu0
      %v756 = vadd.f32 0.0, %v755
      %v757 = vpop.f32.mrb[0].mxu0
      %v758 = vpop.f32.mrb[0].mxu0
      %v759 = vadd.f32 0.0, %v758
      %v760 = vpop.f32.mrb[0].mxu0
      %761 = vmatprep.mubr.bf16.mxu0 %v612
      %762 = vmatmul.mubr.bf16.gmra.mrb[0].mxu0 %v611
      %v763 = vpop.f32.mrb[0].mxu0
      %v764 = vadd.f32 0.0, %v763
      %v765 = vpop.f32.mrb[0].mxu0
      %v766 = vpop.f32.mrb[0].mxu0
      %v767 = vadd.f32 0.0, %v766
      %v768 = vpop.f32.mrb[0].mxu0
      %769 = vmatprep.mubr.bf16.mxu0 %v614
      %770 = vmatmul.mubr.bf16.gmra.mrb[0].mxu0 %v613
      %v771 = vpop.f32.mrb[0].mxu0
      %v772 = vadd.f32 0.0, %v771
      %v773 = vpop.f32.mrb[0].mxu0
      %v774 = vpop.f32.mrb[0].mxu0
      %v775 = vadd.f32 0.0, %v774
      %v776 = vpop.f32.mrb[0].mxu0
      %777 = vmatprep.mubr.bf16.mxu0 %v616
      %778 = vmatmul.mubr.bf16.gmra.mrb[0].mxu0 %v615
      %v779 = vpop.f32.mrb[0].mxu0
      %v780 = vadd.f32 0.0, %v779
      %v781 = vpop.f32.mrb[0].mxu0
      %v782 = vpop.f32.mrb[0].mxu0
      %v783 = vadd.f32 0.0, %v782
      %v784 = vpop.f32.mrb[0].mxu0
      %785 = vdwg.mxu0
      %v786 = vpack.c.bf16 %v759, %v756
      %v787 = vpack.c.bf16 %v767, %v764
      %v788 = vpack.c.bf16 %v775, %v772
      %v789 = vpack.c.bf16 %v783, %v780
      %v790 = vld [vmem:[%s4] sm:$0xf]
      %v791 = vld [vmem:[%s4 + $0x4] sm:$0xf]
      %v792 = vld [vmem:[%s4 + $0x8] sm:$0xf]
      %v793 = vld [vmem:[%s4 + $0xc] sm:$0xf]
      %v794 = vld [vmem:[%s4 + $0x10] sm:$0xf]
      %v795 = vld [vmem:[%s4 + $0x14] sm:$0xf]
      %v796 = vld [vmem:[%s4 + $0x18] sm:$0xf]
      %v797 = vld [vmem:[%s4 + $0x1c] sm:$0xf]
      %v798 = vld [vmem:[%s4 + $0x20] sm:$0xf]
      %v799 = vld [vmem:[%s4 + $0x24] sm:$0xf]
      %v800 = vld [vmem:[%s4 + $0x28] sm:$0xf]
      %v801 = vld [vmem:[%s4 + $0x2c] sm:$0xf]
      %v802 = vld [vmem:[%s4 + $0x30] sm:$0xf]
      %v803 = vld [vmem:[%s4 + $0x34] sm:$0xf]
      %v804 = vld [vmem:[%s4 + $0x38] sm:$0xf]
      %v805 = vld [vmem:[%s4 + $0x3c] sm:$0xf]
      %v822 = vunpack.c.l.b16 %v790
      %v823 = vunpack.c.l.b16 %v791
      %v824 = vunpack.c.l.b16 %v792
      %v825 = vunpack.c.l.b16 %v793
      %v826 = vunpack.c.l.b16 %v794
      %v827 = vunpack.c.l.b16 %v795
      %v828 = vunpack.c.l.b16 %v796
      %v829 = vunpack.c.l.b16 %v797
      %v830 = vunpack.c.l.b16 %v798
      %v831 = vunpack.c.l.b16 %v799
      %v832 = vunpack.c.l.b16 %v800
      %v833 = vunpack.c.l.b16 %v801
      %v834 = vunpack.c.l.b16 %v802
      %v835 = vunpack.c.l.b16 %v803
      %v836 = vunpack.c.l.b16 %v804
      %v837 = vunpack.c.l.b16 %v805
      %v838 = vpack.c.b16 %v823, %v822
      %v839 = vpack.c.b16 %v825, %v824
      %v840 = vpack.c.b16 %v827, %v826
      %v841 = vpack.c.b16 %v829, %v828
      %v842 = vpack.c.b16 %v831, %v830
      %v843 = vpack.c.b16 %v833, %v832
      %v844 = vpack.c.b16 %v835, %v834
      %v845 = vpack.c.b16 %v837, %v836
      %854 = vmatprep.subr.bf16.mxu0 0
      %855 = vmatpush1.bf16.msra.mxu0 %v838
      %856 = vmatprep.subr.bf16.mxu0 0
      %857 = vmatpush1.bf16.msra.mxu0 %v839
      %858 = vmatprep.subr.bf16.mxu0 0
      %859 = vmatpush1.bf16.msra.mxu0 %v840
      %860 = vmatprep.subr.bf16.mxu0 0
      %861 = vmatpush1.bf16.msra.mxu0 %v841
      %862 = vmatprep.subr.bf16.mxu0 0
      %863 = vmatpush1.bf16.msra.mxu0 %v842
      %864 = vmatprep.subr.bf16.mxu0 0
      %865 = vmatpush1.bf16.msra.mxu0 %v843
      %866 = vmatprep.subr.bf16.mxu0 0
      %867 = vmatpush1.bf16.msra.mxu0 %v844
      %868 = vmatprep.subr.bf16.mxu0 0
      %869 = vmatpush1.bf16.msra.mxu0 %v845
      %870 = vmatprep.subr.bf16.mxu0 0
      %871 = vmatpush1.bf16.msra.mxu0 0
      %872 = vmatprep.subr.bf16.mxu0 0
      %873 = vmatpush1.bf16.msra.mxu0 0
      %874 = vmatprep.subr.bf16.mxu0 0
      %875 = vmatpush1.bf16.msra.mxu0 0
      %876 = vmatprep.subr.bf16.mxu0 0
      %877 = vmatpush1.bf16.msra.mxu0 0
      %878 = vmatprep.subr.bf16.mxu0 0
      %879 = vmatpush1.bf16.msra.mxu0 0
      %880 = vmatprep.subr.bf16.mxu0 0
      %881 = vmatpush1.bf16.msra.mxu0 0
      %882 = vmatprep.subr.bf16.mxu0 0
      %883 = vmatpush1.bf16.msra.mxu0 0
      %884 = vmatprep.subr.bf16.mxu0 0
      %885 = vmatpush1.bf16.msra.mxu0 0
      %886 = vmatprep.mubr.bf16.mxu0 0
      %887 = vmatmul.mubr.bf16.gmra.mrb[0].mxu0 %v786
      %v888 = vpop.f32.mrb[0].mxu0
      %v889 = vadd.f32 0.0, %v888
      %v890 = vpop.f32.mrb[0].mxu0
      %v891 = vpop.f32.mrb[0].mxu0
      %v892 = vadd.f32 0.0, %v891
      %v893 = vpop.f32.mrb[0].mxu0
      %894 = vmatprep.mubr.bf16.mxu0 0
      %895 = vmatmul.mubr.bf16.gmra.mrb[0].mxu0 %v787
      %v896 = vpop.f32.mrb[0].mxu0
      %v897 = vadd.f32 0.0, %v896
      %v898 = vpop.f32.mrb[0].mxu0
      %v899 = vpop.f32.mrb[0].mxu0
      %v900 = vadd.f32 0.0, %v899
      %v901 = vpop.f32.mrb[0].mxu0
      %902 = vmatprep.mubr.bf16.mxu0 0
      %903 = vmatmul.mubr.bf16.gmra.mrb[0].mxu0 %v788
      %v904 = vpop.f32.mrb[0].mxu0
      %v905 = vadd.f32 0.0, %v904
      %v906 = vpop.f32.mrb[0].mxu0
      %v907 = vpop.f32.mrb[0].mxu0
      %v908 = vadd.f32 0.0, %v907
      %v909 = vpop.f32.mrb[0].mxu0
      %910 = vmatprep.mubr.bf16.mxu0 0
      %911 = vmatmul.mubr.bf16.gmra.mrb[0].mxu0 %v789
      %v912 = vpop.f32.mrb[0].mxu0
      %v913 = vadd.f32 0.0, %v912
      %v914 = vpop.f32.mrb[0].mxu0
      %v915 = vpop.f32.mrb[0].mxu0
      %v916 = vadd.f32 0.0, %v915
      %v917 = vpop.f32.mrb[0].mxu0
      %918 = vdwg.mxu0
      %v919 = vld [vmem:[%s7] sm:$0x1]
      %v921 = vlaneseq
      %v922 = vshrl.u32 %v921, 7
      %v923 = vsub.s32 0, %v922
      %v924 = vrot.slane %v919, %v923
      %v926 = vmul.f32 %v889, %v924
      %v927 = vmul.f32 %v892, %v924
      %v928 = vmul.f32 %v897, %v924
      %v929 = vmul.f32 %v900, %v924
      %v930 = vmul.f32 %v905, %v924
      %v931 = vmul.f32 %v908, %v924
      %v932 = vmul.f32 %v913, %v924
      %v933 = vmul.f32 %v916, %v924
      %v934 = vld [vmem:[%s8] sm:$0x1]
      %v936 = vlaneseq
      %v937 = vshrl.u32 %v936, 7
      %v938 = vsub.s32 0, %v937
      %v939 = vrot.slane %v934, %v938
      %v941 = vadd.f32 %v926, %v939
      %v942 = vadd.f32 %v927, %v939
      %v943 = vadd.f32 %v928, %v939
      %v944 = vadd.f32 %v929, %v939
      %v945 = vadd.f32 %v930, %v939
      %v946 = vadd.f32 %v931, %v939
      %v947 = vadd.f32 %v932, %v939
      %v948 = vadd.f32 %v933, %v939
      %v949 = vadd.f32 %v537, %v941
      %v950 = vadd.f32 %v538, %v942
      %v951 = vadd.f32 %v539, %v943
      %v952 = vadd.f32 %v540, %v944
      %v953 = vadd.f32 %v541, %v945
      %v954 = vadd.f32 %v542, %v946
      %v955 = vadd.f32 %v543, %v947
      %v956 = vadd.f32 %v544, %v948
      %v957 = vmax.f32 %v949, 0.0
      %v958 = vmax.f32 %v950, 0.0
      %v959 = vmax.f32 %v951, 0.0
      %v960 = vmax.f32 %v952, 0.0
      %v961 = vmax.f32 %v953, 0.0
      %v962 = vmax.f32 %v954, 0.0
      %v963 = vmax.f32 %v955, 0.0
      %v964 = vmax.f32 %v956, 0.0
      %965 = vst [vmem:[%s352] sm:$0xff] %v957
      %966 = vst [vmem:[%s352 + $0x8] sm:$0xff] %v958
      %967 = vst [vmem:[%s352 + $0x10] sm:$0xff] %v959
      %968 = vst [vmem:[%s352 + $0x18] sm:$0xff] %v960
      %969 = vst [vmem:[%s352 + $0x20] sm:$0xff] %v961
      %970 = vst [vmem:[%s352 + $0x28] sm:$0xff] %v962
      %971 = vst [vmem:[%s352 + $0x30] sm:$0xff] %v963
      %972 = vst [vmem:[%s352 + $0x38] sm:$0xff] %v964
      %p973 = scmp.lt.s32.totalorder %s20, 1
      %s974 = scalar_select %p973, %s20, 1
      %s975 = smul.addr %s974, 8
      %s976 = smul.addr %s975, 8
      %s977 = scalar_lea.vmem %s9, %s976
      // Predicated region
      $region57: #{_lambda_.8} parent=55 // pred_check
        %p978 = pneg %p237
      $region58: #{_lambda_.8} parent=55 // pred_check_branch
        %980 = sbr.rel (%p978) target = $region60
      $region59: #{_lambda_.8} parent=55 // pred_region
        _
      $region60: #{_lambda_.8} parent=55 // pred_fallthru
        _
    $region56: #{_lambda_.8} parent=5 // pred_fallthru
      _
    %p981 = scmp.le.s32.totalorder 2, %s15
    // Predicated region
    $region61: #{_lambda_.8} parent=5 // pred_check
      %p982 = pneg %p981
    $region62: #{_lambda_.8} parent=5 // pred_check_branch
      %984 = sbr.rel (%p982) target = $region64
    $region63: #{_lambda_.8} parent=5 // pred_region
      %s985 = ssub.s32 %s15, 2
      // Predicated region
      $region65: #{_lambda_.8} parent=63 // pred_check
        %p986 = pneg %p243
      $region66: #{_lambda_.8} parent=63 // pred_check_branch
        %988 = sbr.rel (%p986) target = $region68
      $region67: #{_lambda_.8} parent=63 // pred_region
        %p989 = scmp.lt.s32.totalorder %s21, 1
        %s990 = scalar_select %p989, %s21, 1
        %s991 = smul.addr %s990, 8
        %s992 = smul.addr %s991, 8
        %s993 = scalar_lea.vmem %s9, %s992
      $region68: #{_lambda_.8} parent=63 // pred_fallthru
        _
    $region64: #{_lambda_.8} parent=5 // pred_fallthru
      _
  $region6: #{_lambda_.8} parent=0 // loop_footer
    %s19 = sadd.s32 1, %s15
  $region7: #{_lambda_.8} parent=0 // loop_footer_branch
    %14 = sbr.rel target = $region3
  $region8: #{_lambda_.8} parent=0 // loop_exit
    _

// kernel: _lambda_.9
$region0: #{_lambda_.9}
  #allocation0 [shape = 'u32[]', space=smem, size = 0x4, offset = 0x4, fixed_abs, tag = 'smem constant byte address 0x4 - core index']
  #allocation1 [shape = 'u32[144,128]{1,0:T(1,128)}', space=vmem, size = 0x12000, scoped, tag = 'internal scratch']
  %s0 = inlined_call_operand.vmem [shape: bf16[128,128], index: 0, kind: input, shape index: {}]
  %s1 = inlined_call_operand.vmem [shape: bf16[128,128], index: 1, kind: input, shape index: {}]
  %s2 = inlined_call_operand.vmem [shape: f32[1,128], index: 2, kind: input, shape index: {}]
  %s3 = inlined_call_operand.vmem [shape: f32[1,128], index: 3, kind: input, shape index: {}]
  %s4 = inlined_call_operand.vmem [shape: bf16[128,128], index: 4, kind: output, shape index: {}]
  %s5 = sld [smem:[#allocation0]]
  $region26: #{_lambda_.9} parent=0
    _
  %s7 = ssub.s32 1, %s5
  %s8 = scalar_select 0, %s7, %s5
  // Predicated region
  $region2: #{_lambda_.9} parent=0 // pred_check
    _
  $region3: #{_lambda_.9} parent=0 // pred_check_branch
    %10 = sbr.rel (0) target = $region5
  $region4: #{_lambda_.9} parent=0 // pred_region
    _
  $region5: #{_lambda_.9} parent=0 // pred_fallthru
    _
  // Predicated region
  $region6: #{_lambda_.9} parent=0 // pred_check
    _
  $region7: #{_lambda_.9} parent=0 // pred_check_branch
    %12 = sbr.rel (0) target = $region9
  $region8: #{_lambda_.9} parent=0 // pred_region
    _
  $region9: #{_lambda_.9} parent=0 // pred_fallthru
    _
  // Predicated region
  $region10: #{_lambda_.9} parent=0 // pred_check
    _
  $region11: #{_lambda_.9} parent=0 // pred_check_branch
    %14 = sbr.rel (0) target = $region13
  $region12: #{_lambda_.9} parent=0 // pred_region
    _
  $region13: #{_lambda_.9} parent=0 // pred_fallthru
    _
  // Predicated region
  $region14: #{_lambda_.9} parent=0 // pred_check
    _
  $region15: #{_lambda_.9} parent=0 // pred_check_branch
    %16 = sbr.rel (0) target = $region17
  $region16: #{_lambda_.9} parent=0 // pred_region
    _
  $region17: #{_lambda_.9} parent=0 // pred_fallthru
    _
  %v18 = vld [vmem:[%s0] sm:$0xf]
  %v19 = vld [vmem:[%s0 + $0x4] sm:$0xf]
  %v20 = vld [vmem:[%s0 + $0x8] sm:$0xf]
  %v21 = vld [vmem:[%s0 + $0xc] sm:$0xf]
  %v22 = vld [vmem:[%s0 + $0x10] sm:$0xf]
  %v23 = vld [vmem:[%s0 + $0x14] sm:$0xf]
  %v24 = vld [vmem:[%s0 + $0x18] sm:$0xf]
  %v25 = vld [vmem:[%s0 + $0x1c] sm:$0xf]
  %v26 = vld [vmem:[%s0 + $0x20] sm:$0xf]
  %v27 = vld [vmem:[%s0 + $0x24] sm:$0xf]
  %v28 = vld [vmem:[%s0 + $0x28] sm:$0xf]
  %v29 = vld [vmem:[%s0 + $0x2c] sm:$0xf]
  %v30 = vld [vmem:[%s0 + $0x30] sm:$0xf]
  %v31 = vld [vmem:[%s0 + $0x34] sm:$0xf]
  %v32 = vld [vmem:[%s0 + $0x38] sm:$0xf]
  %v33 = vld [vmem:[%s0 + $0x3c] sm:$0xf]
  %v34 = vld [vmem:[%s1] sm:$0xf]
  %v35 = vld [vmem:[%s1 + $0x4] sm:$0xf]
  %v36 = vld [vmem:[%s1 + $0x8] sm:$0xf]
  %v37 = vld [vmem:[%s1 + $0xc] sm:$0xf]
  %v38 = vld [vmem:[%s1 + $0x10] sm:$0xf]
  %v39 = vld [vmem:[%s1 + $0x14] sm:$0xf]
  %v40 = vld [vmem:[%s1 + $0x18] sm:$0xf]
  %v41 = vld [vmem:[%s1 + $0x1c] sm:$0xf]
  %v42 = vld [vmem:[%s1 + $0x20] sm:$0xf]
  %v43 = vld [vmem:[%s1 + $0x24] sm:$0xf]
  %v44 = vld [vmem:[%s1 + $0x28] sm:$0xf]
  %v45 = vld [vmem:[%s1 + $0x2c] sm:$0xf]
  %v46 = vld [vmem:[%s1 + $0x30] sm:$0xf]
  %v47 = vld [vmem:[%s1 + $0x34] sm:$0xf]
  %v48 = vld [vmem:[%s1 + $0x38] sm:$0xf]
  %v49 = vld [vmem:[%s1 + $0x3c] sm:$0xf]
  %v66 = vunpack.c.l.b16 %v18
  %v67 = vunpack.c.l.b16 %v19
  %v68 = vunpack.c.l.b16 %v20
  %v69 = vunpack.c.l.b16 %v21
  %v70 = vunpack.c.l.b16 %v22
  %v71 = vunpack.c.l.b16 %v23
  %v72 = vunpack.c.l.b16 %v24
  %v73 = vunpack.c.l.b16 %v25
  %v74 = vunpack.c.l.b16 %v26
  %v75 = vunpack.c.l.b16 %v27
  %v76 = vunpack.c.l.b16 %v28
  %v77 = vunpack.c.l.b16 %v29
  %v78 = vunpack.c.l.b16 %v30
  %v79 = vunpack.c.l.b16 %v31
  %v80 = vunpack.c.l.b16 %v32
  %v81 = vunpack.c.l.b16 %v33
  %v82 = vpack.c.b16 %v67, %v66
  %v83 = vpack.c.b16 %v69, %v68
  %v84 = vpack.c.b16 %v71, %v70
  %v85 = vpack.c.b16 %v73, %v72
  %v86 = vpack.c.b16 %v75, %v74
  %v87 = vpack.c.b16 %v77, %v76
  %v88 = vpack.c.b16 %v79, %v78
  %v89 = vpack.c.b16 %v81, %v80
  %v114 = vunpack.c.l.b16 %v34
  %v115 = vunpack.c.l.b16 %v35
  %v116 = vunpack.c.l.b16 %v36
  %v117 = vunpack.c.l.b16 %v37
  %v118 = vunpack.c.l.b16 %v38
  %v119 = vunpack.c.l.b16 %v39
  %v120 = vunpack.c.l.b16 %v40
  %v121 = vunpack.c.l.b16 %v41
  %v122 = vunpack.c.l.b16 %v42
  %v123 = vunpack.c.l.b16 %v43
  %v124 = vunpack.c.l.b16 %v44
  %v125 = vunpack.c.l.b16 %v45
  %v126 = vunpack.c.l.b16 %v46
  %v127 = vunpack.c.l.b16 %v47
  %v128 = vunpack.c.l.b16 %v48
  %v129 = vunpack.c.l.b16 %v49
  %v130 = vpack.c.b16 %v115, %v114
  %v131 = vpack.c.b16 %v117, %v116
  %v132 = vpack.c.b16 %v119, %v118
  %v133 = vpack.c.b16 %v121, %v120
  %v134 = vpack.c.b16 %v123, %v122
  %v135 = vpack.c.b16 %v125, %v124
  %v136 = vpack.c.b16 %v127, %v126
  %v137 = vpack.c.b16 %v129, %v128
  %146 = vmatprep.subr.bf16.mxu0 0
  %147 = vmatpush1.bf16.msra.mxu0 %v130
  %148 = vmatprep.subr.bf16.mxu0 0
  %149 = vmatpush1.bf16.msra.mxu0 %v131
  %150 = vmatprep.subr.bf16.mxu0 0
  %151 = vmatpush1.bf16.msra.mxu0 %v132
  %152 = vmatprep.subr.bf16.mxu0 0
  %153 = vmatpush1.bf16.msra.mxu0 %v133
  %154 = vmatprep.subr.bf16.mxu0 0
  %155 = vmatpush1.bf16.msra.mxu0 %v134
  %156 = vmatprep.subr.bf16.mxu0 0
  %157 = vmatpush1.bf16.msra.mxu0 %v135
  %158 = vmatprep.subr.bf16.mxu0 0
  %159 = vmatpush1.bf16.msra.mxu0 %v136
  %160 = vmatprep.subr.bf16.mxu0 0
  %161 = vmatpush1.bf16.msra.mxu0 %v137
  %162 = vmatprep.subr.bf16.mxu0 0
  %163 = vmatpush1.bf16.msra.mxu0 0
  %164 = vmatprep.subr.bf16.mxu0 0
  %165 = vmatpush1.bf16.msra.mxu0 0
  %166 = vmatprep.subr.bf16.mxu0 0
  %167 = vmatpush1.bf16.msra.mxu0 0
  %168 = vmatprep.subr.bf16.mxu0 0
  %169 = vmatpush1.bf16.msra.mxu0 0
  %170 = vmatprep.subr.bf16.mxu0 0
  %171 = vmatpush1.bf16.msra.mxu0 0
  %172 = vmatprep.subr.bf16.mxu0 0
  %173 = vmatpush1.bf16.msra.mxu0 0
  %174 = vmatprep.subr.bf16.mxu0 0
  %175 = vmatpush1.bf16.msra.mxu0 0
  %176 = vmatprep.subr.bf16.mxu0 0
  %177 = vmatpush1.bf16.msra.mxu0 0
  %178 = vmatprep.mubr.bf16.mxu0 0
  %179 = vmatmul.mubr.bf16.gmra.mrb[0].mxu0 %v82
  %v180 = vpop.f32.mrb[0].mxu0
  %v181 = vadd.f32 0.0, %v180
  %v182 = vpop.f32.mrb[0].mxu0
  %v183 = vpop.f32.mrb[0].mxu0
  %v184 = vadd.f32 0.0, %v183
  %v185 = vpop.f32.mrb[0].mxu0
  %186 = vmatprep.mubr.bf16.mxu0 0
  %187 = vmatmul.mubr.bf16.gmra.mrb[0].mxu0 %v83
  %v188 = vpop.f32.mrb[0].mxu0
  %v189 = vadd.f32 0.0, %v188
  %v190 = vpop.f32.mrb[0].mxu0
  %v191 = vpop.f32.mrb[0].mxu0
  %v192 = vadd.f32 0.0, %v191
  %v193 = vpop.f32.mrb[0].mxu0
  %194 = vmatprep.mubr.bf16.mxu0 0
  %195 = vmatmul.mubr.bf16.gmra.mrb[0].mxu0 %v84
  %v196 = vpop.f32.mrb[0].mxu0
  %v197 = vadd.f32 0.0, %v196
  %v198 = vpop.f32.mrb[0].mxu0
  %v199 = vpop.f32.mrb[0].mxu0
  %v200 = vadd.f32 0.0, %v199
  %v201 = vpop.f32.mrb[0].mxu0
  %202 = vmatprep.mubr.bf16.mxu0 0
  %203 = vmatmul.mubr.bf16.gmra.mrb[0].mxu0 %v85
  %v204 = vpop.f32.mrb[0].mxu0
  %v205 = vadd.f32 0.0, %v204
  %v206 = vpop.f32.mrb[0].mxu0
  %v207 = vpop.f32.mrb[0].mxu0
  %v208 = vadd.f32 0.0, %v207
  %v209 = vpop.f32.mrb[0].mxu0
  %210 = vmatprep.mubr.bf16.mxu0 0
  %211 = vmatmul.mubr.bf16.gmra.mrb[0].mxu0 %v86
  %v212 = vpop.f32.mrb[0].mxu0
  %v213 = vadd.f32 0.0, %v212
  %v214 = vpop.f32.mrb[0].mxu0
  %v215 = vpop.f32.mrb[0].mxu0
  %v216 = vadd.f32 0.0, %v215
  %v217 = vpop.f32.mrb[0].mxu0
  %218 = vmatprep.mubr.bf16.mxu0 0
  %219 = vmatmul.mubr.bf16.gmra.mrb[0].mxu0 %v87
  %v220 = vpop.f32.mrb[0].mxu0
  %v221 = vadd.f32 0.0, %v220
  %v222 = vpop.f32.mrb[0].mxu0
  %v223 = vpop.f32.mrb[0].mxu0
  %v224 = vadd.f32 0.0, %v223
  %v225 = vpop.f32.mrb[0].mxu0
  %226 = vmatprep.mubr.bf16.mxu0 0
  %227 = vmatmul.mubr.bf16.gmra.mrb[0].mxu0 %v88
  %v228 = vpop.f32.mrb[0].mxu0
  %v229 = vadd.f32 0.0, %v228
  %v230 = vpop.f32.mrb[0].mxu0
  %v231 = vpop.f32.mrb[0].mxu0
  %v232 = vadd.f32 0.0, %v231
  %v233 = vpop.f32.mrb[0].mxu0
  %234 = vmatprep.mubr.bf16.mxu0 0
  %235 = vmatmul.mubr.bf16.gmra.mrb[0].mxu0 %v89
  %v236 = vpop.f32.mrb[0].mxu0
  %v237 = vadd.f32 0.0, %v236
  %v238 = vpop.f32.mrb[0].mxu0
  %v239 = vpop.f32.mrb[0].mxu0
  %v240 = vadd.f32 0.0, %v239
  %v241 = vpop.f32.mrb[0].mxu0
  %242 = vdwg.mxu0
  %v243 = vld [vmem:[%s2] sm:$0x1]
  %v245 = vlaneseq
  %v246 = vshrl.u32 %v245, 7
  %v247 = vsub.s32 0, %v246
  %v248 = vrot.slane %v243, %v247
  %v250 = vmul.f32 %v181, %v248
  %v251 = vmul.f32 %v184, %v248
  %v252 = vmul.f32 %v189, %v248
  %v253 = vmul.f32 %v192, %v248
  %v254 = vmul.f32 %v197, %v248
  %v255 = vmul.f32 %v200, %v248
  %v256 = vmul.f32 %v205, %v248
  %v257 = vmul.f32 %v208, %v248
  %v258 = vmul.f32 %v213, %v248
  %v259 = vmul.f32 %v216, %v248
  %v260 = vmul.f32 %v221, %v248
  %v261 = vmul.f32 %v224, %v248
  %v262 = vmul.f32 %v229, %v248
  %v263 = vmul.f32 %v232, %v248
  %v264 = vmul.f32 %v237, %v248
  %v265 = vmul.f32 %v240, %v248
  %v266 = vld [vmem:[%s3] sm:$0x1]
  %v268 = vlaneseq
  %v269 = vshrl.u32 %v268, 7
  %v270 = vsub.s32 0, %v269
  %v271 = vrot.slane %v266, %v270
  %v273 = vadd.f32 %v250, %v271
  %v274 = vadd.f32 %v251, %v271
  %v275 = vadd.f32 %v252, %v271
  %v276 = vadd.f32 %v253, %v271
  %v277 = vadd.f32 %v254, %v271
  %v278 = vadd.f32 %v255, %v271
  %v279 = vadd.f32 %v256, %v271
  %v280 = vadd.f32 %v257, %v271
  %v281 = vadd.f32 %v258, %v271
  %v282 = vadd.f32 %v259, %v271
  %v283 = vadd.f32 %v260, %v271
  %v284 = vadd.f32 %v261, %v271
  %v285 = vadd.f32 %v262, %v271
  %v286 = vadd.f32 %v263, %v271
  %v287 = vadd.f32 %v264, %v271
  %v288 = vadd.f32 %v265, %v271
  %v289 = vmax.f32 %v273, 0.0
  %v290 = vmax.f32 %v274, 0.0
  %v291 = vmax.f32 %v275, 0.0
  %v292 = vmax.f32 %v276, 0.0
  %v293 = vmax.f32 %v277, 0.0
  %v294 = vmax.f32 %v278, 0.0
  %v295 = vmax.f32 %v279, 0.0
  %v296 = vmax.f32 %v280, 0.0
  %v297 = vmax.f32 %v281, 0.0
  %v298 = vmax.f32 %v282, 0.0
  %v299 = vmax.f32 %v283, 0.0
  %v300 = vmax.f32 %v284, 0.0
  %v301 = vmax.f32 %v285, 0.0
  %v302 = vmax.f32 %v286, 0.0
  %v303 = vmax.f32 %v287, 0.0
  %v304 = vmax.f32 %v288, 0.0
  %v305 = vpack.c.bf16 %v290, %v289
  %v306 = vpack.c.bf16 %v292, %v291
  %v307 = vpack.c.bf16 %v294, %v293
  %v308 = vpack.c.bf16 %v296, %v295
  %v309 = vpack.c.bf16 %v298, %v297
  %v310 = vpack.c.bf16 %v300, %v299
  %v311 = vpack.c.bf16 %v302, %v301
  %v312 = vpack.c.bf16 %v304, %v303
  %v321 = vunpack.c.l.b16 %v305
  %v322 = vunpack.c.h.b16 %v305
  %v323 = vunpack.c.l.b16 %v306
  %v324 = vunpack.c.h.b16 %v306
  %v325 = vunpack.c.l.b16 %v307
  %v326 = vunpack.c.h.b16 %v307
  %v327 = vunpack.c.l.b16 %v308
  %v328 = vunpack.c.h.b16 %v308
  %v329 = vunpack.c.l.b16 %v309
  %v330 = vunpack.c.h.b16 %v309
  %v331 = vunpack.c.l.b16 %v310
  %v332 = vunpack.c.h.b16 %v310
  %v333 = vunpack.c.l.b16 %v311
  %v334 = vunpack.c.h.b16 %v311
  %v335 = vunpack.c.l.b16 %v312
  %v336 = vunpack.c.h.b16 %v312
  %v337 = vpack.c.b16 %v321, %v321
  %v338 = vpack.c.b16 %v322, %v322
  %v339 = vpack.c.b16 %v323, %v323
  %v340 = vpack.c.b16 %v324, %v324
  %v341 = vpack.c.b16 %v325, %v325
  %v342 = vpack.c.b16 %v326, %v326
  %v343 = vpack.c.b16 %v327, %v327
  %v344 = vpack.c.b16 %v328, %v328
  %v345 = vpack.c.b16 %v329, %v329
  %v346 = vpack.c.b16 %v330, %v330
  %v347 = vpack.c.b16 %v331, %v331
  %v348 = vpack.c.b16 %v332, %v332
  %v349 = vpack.c.b16 %v333, %v333
  %v350 = vpack.c.b16 %v334, %v334
  %v351 = vpack.c.b16 %v335, %v335
  %v352 = vpack.c.b16 %v336, %v336
  %369 = vst [vmem:[%s4] sm:$0xf] %v337
  %370 = vst [vmem:[%s4 + $0x4] sm:$0xf] %v338
  %371 = vst [vmem:[%s4 + $0x8] sm:$0xf] %v339
  %372 = vst [vmem:[%s4 + $0xc] sm:$0xf] %v340
  %373 = vst [vmem:[%s4 + $0x10] sm:$0xf] %v341
  %374 = vst [vmem:[%s4 + $0x14] sm:$0xf] %v342
  %375 = vst [vmem:[%s4 + $0x18] sm:$0xf] %v343
  %376 = vst [vmem:[%s4 + $0x1c] sm:$0xf] %v344
  %377 = vst [vmem:[%s4 + $0x20] sm:$0xf] %v345
  %378 = vst [vmem:[%s4 + $0x24] sm:$0xf] %v346
  %379 = vst [vmem:[%s4 + $0x28] sm:$0xf] %v347
  %380 = vst [vmem:[%s4 + $0x2c] sm:$0xf] %v348
  %381 = vst [vmem:[%s4 + $0x30] sm:$0xf] %v349
  %382 = vst [vmem:[%s4 + $0x34] sm:$0xf] %v350
  %383 = vst [vmem:[%s4 + $0x38] sm:$0xf] %v351
  %384 = vst [vmem:[%s4 + $0x3c] sm:$0xf] %v352
  // Predicated region
  $region18: #{_lambda_.9} parent=0 // pred_check
    _
  $region19: #{_lambda_.9} parent=0 // pred_check_branch
    %386 = sbr.rel (0) target = $region21
  $region20: #{_lambda_.9} parent=0 // pred_region
    _
  $region21: #{_lambda_.9} parent=0 // pred_fallthru
    _
  // Predicated region
  $region22: #{_lambda_.9} parent=0 // pred_check
    _
  $region23: #{_lambda_.9} parent=0 // pred_check_branch
    %388 = sbr.rel (0) target = $region25
  $region24: #{_lambda_.9} parent=0 // pred_region
    _
  $region25: #{_lambda_.9} parent=0 // pred_fallthru
    _

// kernel: _lambda_.11
$region0: #{_lambda_.11}
  #allocation0 [shape = 'u32[]', space=smem, size = 0x4, offset = 0x4, fixed_abs, tag = 'smem constant byte address 0x4 - core index']
  #allocation1 [shape = 'u32[144,128]{1,0:T(1,128)}', space=vmem, size = 0x12000, scoped, tag = 'internal scratch']
  %s0 = inlined_call_operand.vmem [shape: bf16[2,64,128], index: 0, kind: input, shape index: {}]
  %s1 = inlined_call_operand.vmem [shape: bf16[2,64,128], index: 1, kind: input, shape index: {}]
  %s2 = inlined_call_operand.vmem [shape: bf16[128,128], index: 2, kind: input, shape index: {}]
  %s3 = inlined_call_operand.vmem [shape: f32[1,128], index: 3, kind: input, shape index: {}]
  %s4 = inlined_call_operand.vmem [shape: f32[1,128], index: 4, kind: input, shape index: {}]
  %s5 = inlined_call_operand.vmem [shape: f32[2,64,128], index: 5, kind: output, shape index: {}]
  %s6 = sld [smem:[#allocation0]]
  $region53: #{_lambda_.11} parent=0
    _
  %s8 = ssub.s32 1, %s6
  %s9 = scalar_select 0, %s8, %s6
  loop: start=0, step=1, limit=4
  $region2: #{_lambda_.11} parent=0 // loop_pre_header
    _
  $region3: #{_lambda_.11} parent=0 // loop_header
    %s11 = sphi 0, %s15
    %p12 = scmp.ge.s32.totalorder %s11, 4
    %s21 = sphi 0, %s23
    %s24 = sphi 0, %s21
    %s25 = sphi 0, %s24
    %s41 = sphi 0, %s25
    %s47 = sphi 0, %s49
    %s50 = sphi 0, %s47
    %s51 = sphi 0, %s50
    %s67 = sphi 0, %s51
    %s71 = sphi 0, %s71
    %s73 = sphi 0, %s71
    %s74 = sphi 0, %s73
    %s88 = sphi 0, %s74
    %s92 = sphi 0, %s92
    %s94 = sphi 0, %s92
    %s95 = sphi 0, %s94
    %s109 = sphi 0, %s95
    %s113 = sphi 0, %s113
    %s115 = sphi 0, %s113
    %s116 = sphi 0, %s115
    %s130 = sphi 0, %s116
    %s136 = sphi 0, %s138
    %s139 = sphi 0, %s136
    %s140 = sphi 0, %s139
    %s156 = sphi 0, %s140
  $region4: #{_lambda_.11} parent=0 // loop_header_branch
    %14 = sbr.rel (%p12) target = $region8
  $region5: #{_lambda_.11} parent=0 // loop_body
    %s16 = ssub.s32 %s11, 1
    %s17 = ssub.s32 %s11, 2
    %s18 = sadd.s32 %s11, 1
    %s19 = ssub.s32 %s11, %s18
    %p20 = scmp.eq.s32.totalorder %s19, 0
    %s22 = sadd.s32 %s21, 1
    %s23 = scalar_select %p20, %s21, %s22
    %p26 = pneg %p20
    %p27 = scmp.eq.s32.totalorder %s11, 1
    %p28 = por %p26, %p27
    %p29 = scmp.ne.s32.totalorder %s21, %s24
    %p30 = scmp.eq.s32.totalorder %s11, 0
    %p31 = por %p29, %p30
    %p32 = scmp.ne.s32.totalorder %s21, %s24
    %p33 = scmp.eq.s32.totalorder %s16, 1
    %p34 = por %p32, %p33
    %p35 = scmp.ne.s32.totalorder %s24, %s25
    %p36 = scmp.eq.s32.totalorder %s16, 0
    %p37 = por %p35, %p36
    %p38 = scmp.ne.s32.totalorder %s24, %s25
    %p39 = scmp.eq.s32.totalorder %s17, 1
    %p40 = por %p38, %p39
    %p42 = scmp.ne.s32.totalorder %s25, %s41
    %p43 = scmp.eq.s32.totalorder %s17, 0
    %p44 = por %p42, %p43
    %s45 = ssub.s32 %s11, %s18
    %p46 = scmp.eq.s32.totalorder %s45, 0
    %s48 = sadd.s32 %s47, 1
    %s49 = scalar_select %p46, %s47, %s48
    %p52 = pneg %p46
    %p53 = scmp.eq.s32.totalorder %s11, 1
    %p54 = por %p52, %p53
    %p55 = scmp.ne.s32.totalorder %s47, %s50
    %p56 = scmp.eq.s32.totalorder %s11, 0
    %p57 = por %p55, %p56
    %p58 = scmp.ne.s32.totalorder %s47, %s50
    %p59 = scmp.eq.s32.totalorder %s16, 1
    %p60 = por %p58, %p59
    %p61 = scmp.ne.s32.totalorder %s50, %s51
    %p62 = scmp.eq.s32.totalorder %s16, 0
    %p63 = por %p61, %p62
    %p64 = scmp.ne.s32.totalorder %s50, %s51
    %p65 = scmp.eq.s32.totalorder %s17, 1
    %p66 = por %p64, %p65
    %p68 = scmp.ne.s32.totalorder %s51, %s67
    %p69 = scmp.eq.s32.totalorder %s17, 0
    %p70 = por %p68, %p69
    %s72 = sadd.s32 %s71, 1
    %p75 = scmp.eq.s32.totalorder %s11, 1
    %p76 = scmp.ne.s32.totalorder %s71, %s73
    %p77 = scmp.eq.s32.totalorder %s11, 0
    %p78 = por %p76, %p77
    %p79 = scmp.ne.s32.totalorder %s71, %s73
    %p80 = scmp.eq.s32.totalorder %s16, 1
    %p81 = por %p79, %p80
    %p82 = scmp.ne.s32.totalorder %s73, %s74
    %p83 = scmp.eq.s32.totalorder %s16, 0
    %p84 = por %p82, %p83
    %p85 = scmp.ne.s32.totalorder %s73, %s74
    %p86 = scmp.eq.s32.totalorder %s17, 1
    %p87 = por %p85, %p86
    %p89 = scmp.ne.s32.totalorder %s74, %s88
    %p90 = scmp.eq.s32.totalorder %s17, 0
    %p91 = por %p89, %p90
    %s93 = sadd.s32 %s92, 1
    %p96 = scmp.eq.s32.totalorder %s11, 1
    %p97 = scmp.ne.s32.totalorder %s92, %s94
    %p98 = scmp.eq.s32.totalorder %s11, 0
    %p99 = por %p97, %p98
    %p100 = scmp.ne.s32.totalorder %s92, %s94
    %p101 = scmp.eq.s32.totalorder %s16, 1
    %p102 = por %p100, %p101
    %p103 = scmp.ne.s32.totalorder %s94, %s95
    %p104 = scmp.eq.s32.totalorder %s16, 0
    %p105 = por %p103, %p104
    %p106 = scmp.ne.s32.totalorder %s94, %s95
    %p107 = scmp.eq.s32.totalorder %s17, 1
    %p108 = por %p106, %p107
    %p110 = scmp.ne.s32.totalorder %s95, %s109
    %p111 = scmp.eq.s32.totalorder %s17, 0
    %p112 = por %p110, %p111
    %s114 = sadd.s32 %s113, 1
    %p117 = scmp.eq.s32.totalorder %s11, 1
    %p118 = scmp.ne.s32.totalorder %s113, %s115
    %p119 = scmp.eq.s32.totalorder %s11, 0
    %p120 = por %p118, %p119
    %p121 = scmp.ne.s32.totalorder %s113, %s115
    %p122 = scmp.eq.s32.totalorder %s16, 1
    %p123 = por %p121, %p122
    %p124 = scmp.ne.s32.totalorder %s115, %s116
    %p125 = scmp.eq.s32.totalorder %s16, 0
    %p126 = por %p124, %p125
    %p127 = scmp.ne.s32.totalorder %s115, %s116
    %p128 = scmp.eq.s32.totalorder %s17, 1
    %p129 = por %p127, %p128
    %p131 = scmp.ne.s32.totalorder %s116, %s130
    %p132 = scmp.eq.s32.totalorder %s17, 0
    %p133 = por %p131, %p132
    %s134 = ssub.s32 %s11, %s18
    %p135 = scmp.eq.s32.totalorder %s134, 0
    %s137 = sadd.s32 %s136, 1
    %s138 = scalar_select %p135, %s136, %s137
    %p141 = pneg %p135
    %p142 = scmp.eq.s32.totalorder %s11, 1
    %p143 = por %p141, %p142
    %p144 = scmp.ne.s32.totalorder %s136, %s139
    %p145 = scmp.eq.s32.totalorder %s11, 0
    %p146 = por %p144, %p145
    %p147 = scmp.ne.s32.totalorder %s136, %s139
    %p148 = scmp.eq.s32.totalorder %s16, 1
    %p149 = por %p147, %p148
    %p150 = scmp.ne.s32.totalorder %s139, %s140
    %p151 = scmp.eq.s32.totalorder %s16, 0
    %p152 = por %p150, %p151
    %p153 = scmp.ne.s32.totalorder %s139, %s140
    %p154 = scmp.eq.s32.totalorder %s17, 1
    %p155 = por %p153, %p154
    %p157 = scmp.ne.s32.totalorder %s140, %s156
    %p158 = scmp.eq.s32.totalorder %s17, 0
    %p159 = por %p157, %p158
    %p160 = scmp.le.s32.totalorder 1, %s11
    %p161 = scmp.lt.s32.totalorder %s11, 3
    %p162 = pnand %p160, %p161
    %p163 = pneg %p162
    // Predicated region
    $region9: #{_lambda_.11} parent=5 // pred_check
      _
    $region10: #{_lambda_.11} parent=5 // pred_check_branch
      %165 = sbr.rel (%p162) target = $region12
    $region11: #{_lambda_.11} parent=5 // pred_region
      %s166 = ssub.s32 %s11, 1
      // Predicated region
      $region13: #{_lambda_.11} parent=11 // pred_check
        %p167 = pneg %p84
      $region14: #{_lambda_.11} parent=11 // pred_check_branch
        %169 = sbr.rel (%p167) target = $region16
      $region15: #{_lambda_.11} parent=11 // pred_region
        _
      $region16: #{_lambda_.11} parent=11 // pred_fallthru
        _
      // Predicated region
      $region17: #{_lambda_.11} parent=11 // pred_check
        %p170 = pneg %p105
      $region18: #{_lambda_.11} parent=11 // pred_check_branch
        %172 = sbr.rel (%p170) target = $region20
      $region19: #{_lambda_.11} parent=11 // pred_region
        _
      $region20: #{_lambda_.11} parent=11 // pred_fallthru
        _
      // Predicated region
      $region21: #{_lambda_.11} parent=11 // pred_check
        %p173 = pneg %p126
      $region22: #{_lambda_.11} parent=11 // pred_check_branch
        %175 = sbr.rel (%p173) target = $region24
      $region23: #{_lambda_.11} parent=11 // pred_region
        _
      $region24: #{_lambda_.11} parent=11 // pred_fallthru
        _
    $region12: #{_lambda_.11} parent=5 // pred_fallthru
      _
    %p176 = scmp.lt.s32.totalorder %s11, 2
    // Predicated region
    $region25: #{_lambda_.11} parent=5 // pred_check
      %p177 = pneg %p176
    $region26: #{_lambda_.11} parent=5 // pred_check_branch
      %179 = sbr.rel (%p177) target = $region28
    $region27: #{_lambda_.11} parent=5 // pred_region
      // Predicated region
      $region29: #{_lambda_.11} parent=27 // pred_check
        %p180 = pneg %p31
      $region30: #{_lambda_.11} parent=27 // pred_check_branch
        %182 = sbr.rel (%p180) target = $region32
      $region31: #{_lambda_.11} parent=27 // pred_region
        %p183 = scmp.lt.s32.totalorder %s11, 1
        %s184 = scalar_select %p183, %s11, 1
        %s185 = smul.addr %s184, 8
        %s186 = smul.addr %s185, 4
        %s187 = scalar_lea.vmem %s0, %s186
      $region32: #{_lambda_.11} parent=27 // pred_fallthru
        _
      // Predicated region
      $region33: #{_lambda_.11} parent=27 // pred_check
        %p188 = pneg %p57
      $region34: #{_lambda_.11} parent=27 // pred_check_branch
        %190 = sbr.rel (%p188) target = $region36
      $region35: #{_lambda_.11} parent=27 // pred_region
        %p191 = scmp.lt.s32.totalorder %s11, 1
        %s192 = scalar_select %p191, %s11, 1
        %s193 = smul.addr %s192, 8
        %s194 = smul.addr %s193, 4
        %s195 = scalar_lea.vmem %s1, %s194
      $region36: #{_lambda_.11} parent=27 // pred_fallthru
        _
    $region28: #{_lambda_.11} parent=5 // pred_fallthru
      _
    %p196 = scmp.le.s32.totalorder 1, %s11
    %p197 = scmp.lt.s32.totalorder %s11, 3
    %p198 = pnand %p196, %p197
    %p199 = pneg %p198
    // Predicated region
    $region37: #{_lambda_.11} parent=5 // pred_check
      _
    $region38: #{_lambda_.11} parent=5 // pred_check_branch
      %201 = sbr.rel (%p198) target = $region40
    $region39: #{_lambda_.11} parent=5 // pred_region
      %s202 = ssub.s32 %s11, 1
      %p203 = scmp.lt.s32.totalorder %s16, 1
      %s204 = scalar_select %p203, %s16, 1
      %s205 = smul.addr %s204, 8
      %s206 = smul.addr %s205, 4
      %s207 = scalar_lea.vmem %s0, %s206
      %p208 = pneg %p37
      %p209 = pneg %p34
      %p210 = scmp.lt.s32.totalorder %s16, 1
      %s211 = scalar_select %p210, %s16, 1
      %s212 = smul.addr %s211, 8
      %s213 = smul.addr %s212, 4
      %s214 = scalar_lea.vmem %s1, %s213
      %p215 = pneg %p63
      %p216 = pneg %p60
      %p217 = pneg %p84
      %p218 = pneg %p81
      %p219 = pneg %p105
      %p220 = pneg %p102
      %p221 = pneg %p126
      %p222 = pneg %p123
      %p223 = pneg %p152
      %p224 = pneg %p149
      %p225 = scmp.lt.s32.totalorder %s16, 1
      %s226 = scalar_select %p225, %s16, 1
      %s227 = smul.addr %s226, 8
      %s228 = smul.addr %s227, 8
      %s229 = scalar_lea.vmem %s5, %s228
      %p230 = scmp.lt.s32.totalorder %s16, 1
      %s231 = scalar_select %p230, %s16, 1
      %s232 = smul.addr %s231, 8
      %s233 = smul.addr %s232, 4
      %s234 = scalar_lea.vmem %s0, %s233
      %p235 = scmp.lt.s32.totalorder %s16, 1
      %s236 = scalar_select %p235, %s16, 1
      %s237 = smul.addr %s236, 8
      %s238 = smul.addr %s237, 4
      %s239 = scalar_lea.vmem %s1, %s238
      %p240 = scmp.lt.s32.totalorder %s16, 1
      %s241 = scalar_select %p240, %s16, 1
      %s242 = smul.addr %s241, 8
      %s243 = smul.addr %s242, 8
      %s244 = scalar_lea.vmem %s5, %s243
      %v246 = vld [vmem:[%s234] sm:$0xf]
      %v247 = vld [vmem:[%s234 + $0x4] sm:$0xf]
      %v248 = vld [vmem:[%s234 + $0x8] sm:$0xf]
      %v249 = vld [vmem:[%s234 + $0xc] sm:$0xf]
      %v250 = vld [vmem:[%s234 + $0x10] sm:$0xf]
      %v251 = vld [vmem:[%s234 + $0x14] sm:$0xf]
      %v252 = vld [vmem:[%s234 + $0x18] sm:$0xf]
      %v253 = vld [vmem:[%s234 + $0x1c] sm:$0xf]
      %v254 = vld [vmem:[%s2] sm:$0xf]
      %v255 = vld [vmem:[%s2 + $0x4] sm:$0xf]
      %v256 = vld [vmem:[%s2 + $0x8] sm:$0xf]
      %v257 = vld [vmem:[%s2 + $0xc] sm:$0xf]
      %v258 = vld [vmem:[%s2 + $0x10] sm:$0xf]
      %v259 = vld [vmem:[%s2 + $0x14] sm:$0xf]
      %v260 = vld [vmem:[%s2 + $0x18] sm:$0xf]
      %v261 = vld [vmem:[%s2 + $0x1c] sm:$0xf]
      %v262 = vld [vmem:[%s2 + $0x20] sm:$0xf]
      %v263 = vld [vmem:[%s2 + $0x24] sm:$0xf]
      %v264 = vld [vmem:[%s2 + $0x28] sm:$0xf]
      %v265 = vld [vmem:[%s2 + $0x2c] sm:$0xf]
      %v266 = vld [vmem:[%s2 + $0x30] sm:$0xf]
      %v267 = vld [vmem:[%s2 + $0x34] sm:$0xf]
      %v268 = vld [vmem:[%s2 + $0x38] sm:$0xf]
      %v269 = vld [vmem:[%s2 + $0x3c] sm:$0xf]
      %v278 = vunpack.c.l.b16 %v246
      %v279 = vunpack.c.l.b16 %v247
      %v280 = vunpack.c.l.b16 %v248
      %v281 = vunpack.c.l.b16 %v249
      %v282 = vunpack.c.l.b16 %v250
      %v283 = vunpack.c.l.b16 %v251
      %v284 = vunpack.c.l.b16 %v252
      %v285 = vunpack.c.l.b16 %v253
      %v286 = vpack.c.b16 %v279, %v278
      %v287 = vpack.c.b16 %v281, %v280
      %v288 = vpack.c.b16 %v283, %v282
      %v289 = vpack.c.b16 %v285, %v284
      %v310 = vunpack.c.l.b16 %v254
      %v311 = vunpack.c.l.b16 %v255
      %v312 = vunpack.c.l.b16 %v256
      %v313 = vunpack.c.l.b16 %v257
      %v314 = vunpack.c.l.b16 %v258
      %v315 = vunpack.c.l.b16 %v259
      %v316 = vunpack.c.l.b16 %v260
      %v317 = vunpack.c.l.b16 %v261
      %v318 = vunpack.c.l.b16 %v262
      %v319 = vunpack.c.l.b16 %v263
      %v320 = vunpack.c.l.b16 %v264
      %v321 = vunpack.c.l.b16 %v265
      %v322 = vunpack.c.l.b16 %v266
      %v323 = vunpack.c.l.b16 %v267
      %v324 = vunpack.c.l.b16 %v268
      %v325 = vunpack.c.l.b16 %v269
      %v326 = vpack.c.b16 %v311, %v310
      %v327 = vpack.c.b16 %v313, %v312
      %v328 = vpack.c.b16 %v315, %v314
      %v329 = vpack.c.b16 %v317, %v316
      %v330 = vpack.c.b16 %v319, %v318
      %v331 = vpack.c.b16 %v321, %v320
      %v332 = vpack.c.b16 %v323, %v322
      %v333 = vpack.c.b16 %v325, %v324
      %342 = vmatprep.subr.bf16.mxu0 0
      %343 = vmatpush1.bf16.msra.mxu0 %v326
      %344 = vmatprep.subr.bf16.mxu0 0
      %345 = vmatpush1.bf16.msra.mxu0 %v327
      %346 = vmatprep.subr.bf16.mxu0 0
      %347 = vmatpush1.bf16.msra.mxu0 %v328
      %348 = vmatprep.subr.bf16.mxu0 0
      %349 = vmatpush1.bf16.msra.mxu0 %v329
      %350 = vmatprep.subr.bf16.mxu0 0
      %351 = vmatpush1.bf16.msra.mxu0 %v330
      %352 = vmatprep.subr.bf16.mxu0 0
      %353 = vmatpush1.bf16.msra.mxu0 %v331
      %354 = vmatprep.subr.bf16.mxu0 0
      %355 = vmatpush1.bf16.msra.mxu0 %v332
      %356 = vmatprep.subr.bf16.mxu0 0
      %357 = vmatpush1.bf16.msra.mxu0 %v333
      %358 = vmatprep.subr.bf16.mxu0 0
      %359 = vmatpush1.bf16.msra.mxu0 0
      %360 = vmatprep.subr.bf16.mxu0 0
      %361 = vmatpush1.bf16.msra.mxu0 0
      %362 = vmatprep.subr.bf16.mxu0 0
      %363 = vmatpush1.bf16.msra.mxu0 0
      %364 = vmatprep.subr.bf16.mxu0 0
      %365 = vmatpush1.bf16.msra.mxu0 0
      %366 = vmatprep.subr.bf16.mxu0 0
      %367 = vmatpush1.bf16.msra.mxu0 0
      %368 = vmatprep.subr.bf16.mxu0 0
      %369 = vmatpush1.bf16.msra.mxu0 0
      %370 = vmatprep.subr.bf16.mxu0 0
      %371 = vmatpush1.bf16.msra.mxu0 0
      %372 = vmatprep.subr.bf16.mxu0 0
      %373 = vmatpush1.bf16.msra.mxu0 0
      %374 = vmatprep.mubr.bf16.mxu0 0
      %375 = vmatmul.mubr.bf16.gmra.mrb[0].mxu0 %v286
      %v376 = vpop.f32.mrb[0].mxu0
      %v377 = vadd.f32 0.0, %v376
      %v378 = vpop.f32.mrb[0].mxu0
      %v379 = vpop.f32.mrb[0].mxu0
      %v380 = vadd.f32 0.0, %v379
      %v381 = vpop.f32.mrb[0].mxu0
      %382 = vmatprep.mubr.bf16.mxu0 0
      %383 = vmatmul.mubr.bf16.gmra.mrb[0].mxu0 %v287
      %v384 = vpop.f32.mrb[0].mxu0
      %v385 = vadd.f32 0.0, %v384
      %v386 = vpop.f32.mrb[0].mxu0
      %v387 = vpop.f32.mrb[0].mxu0
      %v388 = vadd.f32 0.0, %v387
      %v389 = vpop.f32.mrb[0].mxu0
      %390 = vmatprep.mubr.bf16.mxu0 0
      %391 = vmatmul.mubr.bf16.gmra.mrb[0].mxu0 %v288
      %v392 = vpop.f32.mrb[0].mxu0
      %v393 = vadd.f32 0.0, %v392
      %v394 = vpop.f32.mrb[0].mxu0
      %v395 = vpop.f32.mrb[0].mxu0
      %v396 = vadd.f32 0.0, %v395
      %v397 = vpop.f32.mrb[0].mxu0
      %398 = vmatprep.mubr.bf16.mxu0 0
      %399 = vmatmul.mubr.bf16.gmra.mrb[0].mxu0 %v289
      %v400 = vpop.f32.mrb[0].mxu0
      %v401 = vadd.f32 0.0, %v400
      %v402 = vpop.f32.mrb[0].mxu0
      %v403 = vpop.f32.mrb[0].mxu0
      %v404 = vadd.f32 0.0, %v403
      %v405 = vpop.f32.mrb[0].mxu0
      %406 = vdwg.mxu0
      %v407 = vld [vmem:[%s3] sm:$0x1]
      %v409 = vlaneseq
      %v410 = vshrl.u32 %v409, 7
      %v411 = vsub.s32 0, %v410
      %v412 = vrot.slane %v407, %v411
      %v414 = vmul.f32 %v377, %v412
      %v415 = vmul.f32 %v380, %v412
      %v416 = vmul.f32 %v385, %v412
      %v417 = vmul.f32 %v388, %v412
      %v418 = vmul.f32 %v393, %v412
      %v419 = vmul.f32 %v396, %v412
      %v420 = vmul.f32 %v401, %v412
      %v421 = vmul.f32 %v404, %v412
      %v422 = vld [vmem:[%s4] sm:$0x1]
      %v424 = vlaneseq
      %v425 = vshrl.u32 %v424, 7
      %v426 = vsub.s32 0, %v425
      %v427 = vrot.slane %v422, %v426
      %v429 = vadd.f32 %v414, %v427
      %v430 = vadd.f32 %v415, %v427
      %v431 = vadd.f32 %v416, %v427
      %v432 = vadd.f32 %v417, %v427
      %v433 = vadd.f32 %v418, %v427
      %v434 = vadd.f32 %v419, %v427
      %v435 = vadd.f32 %v420, %v427
      %v436 = vadd.f32 %v421, %v427
      %v437 = vld [vmem:[%s239] sm:$0xf]
      %v438 = vld [vmem:[%s239 + $0x4] sm:$0xf]
      %v439 = vld [vmem:[%s239 + $0x8] sm:$0xf]
      %v440 = vld [vmem:[%s239 + $0xc] sm:$0xf]
      %v441 = vld [vmem:[%s239 + $0x10] sm:$0xf]
      %v442 = vld [vmem:[%s239 + $0x14] sm:$0xf]
      %v443 = vld [vmem:[%s239 + $0x18] sm:$0xf]
      %v444 = vld [vmem:[%s239 + $0x1c] sm:$0xf]
      %v445 = vunpack.c.l.bf16 %v437
      %v446 = vunpack.c.l.bf16 %v438
      %v447 = vunpack.c.l.bf16 %v439
      %v448 = vunpack.c.l.bf16 %v440
      %v449 = vunpack.c.l.bf16 %v441
      %v450 = vunpack.c.l.bf16 %v442
      %v451 = vunpack.c.l.bf16 %v443
      %v452 = vunpack.c.l.bf16 %v444
      %v453 = vadd.f32 %v429, %v445
      %v454 = vadd.f32 %v430, %v446
      %v455 = vadd.f32 %v431, %v447
      %v456 = vadd.f32 %v432, %v448
      %v457 = vadd.f32 %v433, %v449
      %v458 = vadd.f32 %v434, %v450
      %v459 = vadd.f32 %v435, %v451
      %v460 = vadd.f32 %v436, %v452
      %v461 = vmax.f32 %v453, 0.0
      %v462 = vmax.f32 %v454, 0.0
      %v463 = vmax.f32 %v455, 0.0
      %v464 = vmax.f32 %v456, 0.0
      %v465 = vmax.f32 %v457, 0.0
      %v466 = vmax.f32 %v458, 0.0
      %v467 = vmax.f32 %v459, 0.0
      %v468 = vmax.f32 %v460, 0.0
      %469 = vst [vmem:[%s244] sm:$0xff] %v461
      %470 = vst [vmem:[%s244 + $0x8] sm:$0xff] %v462
      %471 = vst [vmem:[%s244 + $0x10] sm:$0xff] %v463
      %472 = vst [vmem:[%s244 + $0x18] sm:$0xff] %v464
      %473 = vst [vmem:[%s244 + $0x20] sm:$0xff] %v465
      %474 = vst [vmem:[%s244 + $0x28] sm:$0xff] %v466
      %475 = vst [vmem:[%s244 + $0x30] sm:$0xff] %v467
      %476 = vst [vmem:[%s244 + $0x38] sm:$0xff] %v468
      %p477 = scmp.lt.s32.totalorder %s16, 1
      %s478 = scalar_select %p477, %s16, 1
      %s479 = smul.addr %s478, 8
      %s480 = smul.addr %s479, 8
      %s481 = scalar_lea.vmem %s5, %s480
      // Predicated region
      $region41: #{_lambda_.11} parent=39 // pred_check
        %p482 = pneg %p149
      $region42: #{_lambda_.11} parent=39 // pred_check_branch
        %484 = sbr.rel (%p482) target = $region44
      $region43: #{_lambda_.11} parent=39 // pred_region
        _
      $region44: #{_lambda_.11} parent=39 // pred_fallthru
        _
    $region40: #{_lambda_.11} parent=5 // pred_fallthru
      _
    %p485 = scmp.le.s32.totalorder 2, %s11
    // Predicated region
    $region45: #{_lambda_.11} parent=5 // pred_check
      %p486 = pneg %p485
    $region46: #{_lambda_.11} parent=5 // pred_check_branch
      %488 = sbr.rel (%p486) target = $region48
    $region47: #{_lambda_.11} parent=5 // pred_region
      %s489 = ssub.s32 %s11, 2
      // Predicated region
      $region49: #{_lambda_.11} parent=47 // pred_check
        %p490 = pneg %p155
      $region50: #{_lambda_.11} parent=47 // pred_check_branch
        %492 = sbr.rel (%p490) target = $region52
      $region51: #{_lambda_.11} parent=47 // pred_region
        %p493 = scmp.lt.s32.totalorder %s17, 1
        %s494 = scalar_select %p493, %s17, 1
        %s495 = smul.addr %s494, 8
        %s496 = smul.addr %s495, 8
        %s497 = scalar_lea.vmem %s5, %s496
      $region52: #{_lambda_.11} parent=47 // pred_fallthru
        _
    $region48: #{_lambda_.11} parent=5 // pred_fallthru
      _
  $region6: #{_lambda_.11} parent=0 // loop_footer
    %s15 = sadd.s32 1, %s11
  $region7: #{_lambda_.11} parent=0 // loop_footer_branch
    %10 = sbr.rel target = $region3
  $region8: #{_lambda_.11} parent=0 // loop_exit
    _

// kernel: _lambda_.10
$region0: #{_lambda_.10}
  #allocation0 [shape = 'u32[]', space=smem, size = 0x4, offset = 0x4, fixed_abs, tag = 'smem constant byte address 0x4 - core index']
  #allocation1 [shape = 'u32[144,128]{1,0:T(1,128)}', space=vmem, size = 0x12000, scoped, tag = 'internal scratch']
  %s0 = inlined_call_operand.vmem [shape: bf16[2,10,10,128], index: 0, kind: input, shape index: {}]
  %s1 = inlined_call_operand.vmem [shape: bf16[9,128,128], index: 1, kind: input, shape index: {}]
  %s2 = inlined_call_operand.vmem [shape: f32[1,128], index: 2, kind: input, shape index: {}]
  %s3 = inlined_call_operand.vmem [shape: f32[1,128], index: 3, kind: input, shape index: {}]
  %s4 = inlined_call_operand.vmem [shape: bf16[2,64,128], index: 4, kind: output, shape index: {}]
  %s5 = sld [smem:[#allocation0]]
  $region49: #{_lambda_.10} parent=0
    _
  %s7 = ssub.s32 1, %s5
  %s8 = scalar_select 0, %s7, %s5
  loop: start=0, step=1, limit=4
  $region2: #{_lambda_.10} parent=0 // loop_pre_header
    _
  $region3: #{_lambda_.10} parent=0 // loop_header
    %s10 = sphi 0, %s14
    %p11 = scmp.ge.s32.totalorder %s10, 4
    %s20 = sphi 0, %s22
    %s23 = sphi 0, %s20
    %s24 = sphi 0, %s23
    %s40 = sphi 0, %s24
    %s44 = sphi 0, %s44
    %s46 = sphi 0, %s44
    %s47 = sphi 0, %s46
    %s61 = sphi 0, %s47
    %s65 = sphi 0, %s65
    %s67 = sphi 0, %s65
    %s68 = sphi 0, %s67
    %s82 = sphi 0, %s68
    %s86 = sphi 0, %s86
    %s88 = sphi 0, %s86
    %s89 = sphi 0, %s88
    %s103 = sphi 0, %s89
    %s109 = sphi 0, %s111
    %s112 = sphi 0, %s109
    %s113 = sphi 0, %s112
    %s129 = sphi 0, %s113
  $region4: #{_lambda_.10} parent=0 // loop_header_branch
    %13 = sbr.rel (%p11) target = $region8
  $region5: #{_lambda_.10} parent=0 // loop_body
    %s15 = ssub.s32 %s10, 1
    %s16 = ssub.s32 %s10, 2
    %s17 = sadd.s32 %s10, 1
    %s18 = ssub.s32 %s10, %s17
    %p19 = scmp.eq.s32.totalorder %s18, 0
    %s21 = sadd.s32 %s20, 1
    %s22 = scalar_select %p19, %s20, %s21
    %p25 = pneg %p19
    %p26 = scmp.eq.s32.totalorder %s10, 1
    %p27 = por %p25, %p26
    %p28 = scmp.ne.s32.totalorder %s20, %s23
    %p29 = scmp.eq.s32.totalorder %s10, 0
    %p30 = por %p28, %p29
    %p31 = scmp.ne.s32.totalorder %s20, %s23
    %p32 = scmp.eq.s32.totalorder %s15, 1
    %p33 = por %p31, %p32
    %p34 = scmp.ne.s32.totalorder %s23, %s24
    %p35 = scmp.eq.s32.totalorder %s15, 0
    %p36 = por %p34, %p35
    %p37 = scmp.ne.s32.totalorder %s23, %s24
    %p38 = scmp.eq.s32.totalorder %s16, 1
    %p39 = por %p37, %p38
    %p41 = scmp.ne.s32.totalorder %s24, %s40
    %p42 = scmp.eq.s32.totalorder %s16, 0
    %p43 = por %p41, %p42
    %s45 = sadd.s32 %s44, 1
    %p48 = scmp.eq.s32.totalorder %s10, 1
    %p49 = scmp.ne.s32.totalorder %s44, %s46
    %p50 = scmp.eq.s32.totalorder %s10, 0
    %p51 = por %p49, %p50
    %p52 = scmp.ne.s32.totalorder %s44, %s46
    %p53 = scmp.eq.s32.totalorder %s15, 1
    %p54 = por %p52, %p53
    %p55 = scmp.ne.s32.totalorder %s46, %s47
    %p56 = scmp.eq.s32.totalorder %s15, 0
    %p57 = por %p55, %p56
    %p58 = scmp.ne.s32.totalorder %s46, %s47
    %p59 = scmp.eq.s32.totalorder %s16, 1
    %p60 = por %p58, %p59
    %p62 = scmp.ne.s32.totalorder %s47, %s61
    %p63 = scmp.eq.s32.totalorder %s16, 0
    %p64 = por %p62, %p63
    %s66 = sadd.s32 %s65, 1
    %p69 = scmp.eq.s32.totalorder %s10, 1
    %p70 = scmp.ne.s32.totalorder %s65, %s67
    %p71 = scmp.eq.s32.totalorder %s10, 0
    %p72 = por %p70, %p71
    %p73 = scmp.ne.s32.totalorder %s65, %s67
    %p74 = scmp.eq.s32.totalorder %s15, 1
    %p75 = por %p73, %p74
    %p76 = scmp.ne.s32.totalorder %s67, %s68
    %p77 = scmp.eq.s32.totalorder %s15, 0
    %p78 = por %p76, %p77
    %p79 = scmp.ne.s32.totalorder %s67, %s68
    %p80 = scmp.eq.s32.totalorder %s16, 1
    %p81 = por %p79, %p80
    %p83 = scmp.ne.s32.totalorder %s68, %s82
    %p84 = scmp.eq.s32.totalorder %s16, 0
    %p85 = por %p83, %p84
    %s87 = sadd.s32 %s86, 1
    %p90 = scmp.eq.s32.totalorder %s10, 1
    %p91 = scmp.ne.s32.totalorder %s86, %s88
    %p92 = scmp.eq.s32.totalorder %s10, 0
    %p93 = por %p91, %p92
    %p94 = scmp.ne.s32.totalorder %s86, %s88
    %p95 = scmp.eq.s32.totalorder %s15, 1
    %p96 = por %p94, %p95
    %p97 = scmp.ne.s32.totalorder %s88, %s89
    %p98 = scmp.eq.s32.totalorder %s15, 0
    %p99 = por %p97, %p98
    %p100 = scmp.ne.s32.totalorder %s88, %s89
    %p101 = scmp.eq.s32.totalorder %s16, 1
    %p102 = por %p100, %p101
    %p104 = scmp.ne.s32.totalorder %s89, %s103
    %p105 = scmp.eq.s32.totalorder %s16, 0
    %p106 = por %p104, %p105
    %s107 = ssub.s32 %s10, %s17
    %p108 = scmp.eq.s32.totalorder %s107, 0
    %s110 = sadd.s32 %s109, 1
    %s111 = scalar_select %p108, %s109, %s110
    %p114 = pneg %p108
    %p115 = scmp.eq.s32.totalorder %s10, 1
    %p116 = por %p114, %p115
    %p117 = scmp.ne.s32.totalorder %s109, %s112
    %p118 = scmp.eq.s32.totalorder %s10, 0
    %p119 = por %p117, %p118
    %p120 = scmp.ne.s32.totalorder %s109, %s112
    %p121 = scmp.eq.s32.totalorder %s15, 1
    %p122 = por %p120, %p121
    %p123 = scmp.ne.s32.totalorder %s112, %s113
    %p124 = scmp.eq.s32.totalorder %s15, 0
    %p125 = por %p123, %p124
    %p126 = scmp.ne.s32.totalorder %s112, %s113
    %p127 = scmp.eq.s32.totalorder %s16, 1
    %p128 = por %p126, %p127
    %p130 = scmp.ne.s32.totalorder %s113, %s129
    %p131 = scmp.eq.s32.totalorder %s16, 0
    %p132 = por %p130, %p131
    %p133 = scmp.le.s32.totalorder 1, %s10
    %p134 = scmp.lt.s32.totalorder %s10, 3
    %p135 = pnand %p133, %p134
    %p136 = pneg %p135
    // Predicated region
    $region9: #{_lambda_.10} parent=5 // pred_check
      _
    $region10: #{_lambda_.10} parent=5 // pred_check_branch
      %138 = sbr.rel (%p135) target = $region12
    $region11: #{_lambda_.10} parent=5 // pred_region
      %s139 = ssub.s32 %s10, 1
      // Predicated region
      $region13: #{_lambda_.10} parent=11 // pred_check
        %p140 = pneg %p57
      $region14: #{_lambda_.10} parent=11 // pred_check_branch
        %142 = sbr.rel (%p140) target = $region16
      $region15: #{_lambda_.10} parent=11 // pred_region
        _
      $region16: #{_lambda_.10} parent=11 // pred_fallthru
        _
      // Predicated region
      $region17: #{_lambda_.10} parent=11 // pred_check
        %p143 = pneg %p78
      $region18: #{_lambda_.10} parent=11 // pred_check_branch
        %145 = sbr.rel (%p143) target = $region20
      $region19: #{_lambda_.10} parent=11 // pred_region
        _
      $region20: #{_lambda_.10} parent=11 // pred_fallthru
        _
      // Predicated region
      $region21: #{_lambda_.10} parent=11 // pred_check
        %p146 = pneg %p99
      $region22: #{_lambda_.10} parent=11 // pred_check_branch
        %148 = sbr.rel (%p146) target = $region24
      $region23: #{_lambda_.10} parent=11 // pred_region
        _
      $region24: #{_lambda_.10} parent=11 // pred_fallthru
        _
    $region12: #{_lambda_.10} parent=5 // pred_fallthru
      _
    %p149 = scmp.lt.s32.totalorder %s10, 2
    // Predicated region
    $region25: #{_lambda_.10} parent=5 // pred_check
      %p150 = pneg %p149
    $region26: #{_lambda_.10} parent=5 // pred_check_branch
      %152 = sbr.rel (%p150) target = $region28
    $region27: #{_lambda_.10} parent=5 // pred_region
      // Predicated region
      $region29: #{_lambda_.10} parent=27 // pred_check
        %p153 = pneg %p30
      $region30: #{_lambda_.10} parent=27 // pred_check_branch
        %155 = sbr.rel (%p153) target = $region32
      $region31: #{_lambda_.10} parent=27 // pred_region
        %p156 = scmp.lt.s32.totalorder %s10, 1
        %s157 = scalar_select %p156, %s10, 1
        %s158 = smul.addr %s157, 20
        %s159 = smul.addr %s158, 4
        %s160 = scalar_lea.vmem %s0, %s159
      $region32: #{_lambda_.10} parent=27 // pred_fallthru
        _
    $region28: #{_lambda_.10} parent=5 // pred_fallthru
      _
    %p161 = scmp.le.s32.totalorder 1, %s10
    %p162 = scmp.lt.s32.totalorder %s10, 3
    %p163 = pnand %p161, %p162
    %p164 = pneg %p163
    // Predicated region
    $region33: #{_lambda_.10} parent=5 // pred_check
      _
    $region34: #{_lambda_.10} parent=5 // pred_check_branch
      %166 = sbr.rel (%p163) target = $region36
    $region35: #{_lambda_.10} parent=5 // pred_region
      %s167 = ssub.s32 %s10, 1
      %p168 = scmp.lt.s32.totalorder %s15, 1
      %s169 = scalar_select %p168, %s15, 1
      %s170 = smul.addr %s169, 20
      %s171 = smul.addr %s170, 4
      %s172 = scalar_lea.vmem %s0, %s171
      %p173 = pneg %p36
      %p174 = pneg %p33
      %p175 = pneg %p57
      %p176 = pneg %p54
      %p177 = pneg %p78
      %p178 = pneg %p75
      %p179 = pneg %p99
      %p180 = pneg %p96
      %p181 = pneg %p125
      %p182 = pneg %p122
      %p183 = scmp.lt.s32.totalorder %s15, 1
      %s184 = scalar_select %p183, %s15, 1
      %s185 = smul.addr %s184, 8
      %s186 = smul.addr %s185, 4
      %s187 = scalar_lea.vmem %s4, %s186
      %p188 = scmp.lt.s32.totalorder %s15, 1
      %s189 = scalar_select %p188, %s15, 1
      %s190 = smul.addr %s189, 20
      %s191 = smul.addr %s190, 4
      %s192 = scalar_lea.vmem %s0, %s191
      %p193 = scmp.lt.s32.totalorder %s15, 1
      %s194 = scalar_select %p193, %s15, 1
      %s195 = smul.addr %s194, 8
      %s196 = smul.addr %s195, 4
      %s197 = scalar_lea.vmem %s4, %s196
      %v199 = vld [vmem:[%s192] sm:$0xf]
      %v200 = vld [vmem:[%s192 + $0x4] sm:$0x1]
      %v201 = vld [vmem:[%s192 + $0x8] sm:$0xf]
      %v202 = vld [vmem:[%s192 + $0xc] sm:$0x1]
      %v203 = vld [vmem:[%s192 + $0x10] sm:$0xf]
      %v204 = vld [vmem:[%s192 + $0x14] sm:$0x1]
      %v205 = vld [vmem:[%s192 + $0x18] sm:$0xf]
      %v206 = vld [vmem:[%s192 + $0x1c] sm:$0x1]
      %v207 = vld [vmem:[%s192 + $0x20] sm:$0xf]
      %v208 = vld [vmem:[%s192 + $0x24] sm:$0x1]
      %v209 = vld [vmem:[%s192 + $0x28] sm:$0xf]
      %v210 = vld [vmem:[%s192 + $0x2c] sm:$0x1]
      %v211 = vld [vmem:[%s192 + $0x30] sm:$0xf]
      %v212 = vld [vmem:[%s192 + $0x34] sm:$0x1]
      %v213 = vld [vmem:[%s192 + $0x38] sm:$0xf]
      %v214 = vld [vmem:[%s192 + $0x3c] sm:$0x1]
      %v215 = vld [vmem:[%s192 + $0x40] sm:$0xf]
      %v216 = vld [vmem:[%s192 + $0x44] sm:$0x1]
      %v217 = vld [vmem:[%s192 + $0x48] sm:$0xf]
      %v218 = vld [vmem:[%s192 + $0x4c] sm:$0x1]
      %v219 = vunpack.c.l.bf16 %v199
      %v220 = vunpack.c.l.bf16 %v200
      %v221 = vunpack.c.l.bf16 %v201
      %v222 = vunpack.c.l.bf16 %v202
      %v223 = vunpack.c.l.bf16 %v203
      %v224 = vunpack.c.l.bf16 %v204
      %v225 = vunpack.c.l.bf16 %v205
      %v226 = vunpack.c.l.bf16 %v206
      %v227 = vunpack.c.l.bf16 %v207
      %v228 = vunpack.c.l.bf16 %v208
      %v229 = vunpack.c.l.bf16 %v209
      %v230 = vunpack.c.l.bf16 %v210
      %v231 = vunpack.c.l.bf16 %v211
      %v232 = vunpack.c.l.bf16 %v212
      %v233 = vunpack.c.l.bf16 %v213
      %v234 = vunpack.c.l.bf16 %v214
      %v235 = vunpack.c.l.bf16 %v215
      %v236 = vunpack.c.l.bf16 %v216
      %v237 = vunpack.c.l.bf16 %v217
      %v238 = vunpack.c.l.bf16 %v218
      %v239 = vpack.c.bf16 %v221, %v219
      %v240 = vpack.c.bf16 %v225, %v223
      %v241 = vpack.c.bf16 %v229, %v227
      %v242 = vpack.c.bf16 %v233, %v231
      %v243 = vld [vmem:[%s1] sm:$0xf]
      %v244 = vld [vmem:[%s1 + $0x4] sm:$0xf]
      %v245 = vld [vmem:[%s1 + $0x8] sm:$0xf]
      %v246 = vld [vmem:[%s1 + $0xc] sm:$0xf]
      %v247 = vld [vmem:[%s1 + $0x10] sm:$0xf]
      %v248 = vld [vmem:[%s1 + $0x14] sm:$0xf]
      %v249 = vld [vmem:[%s1 + $0x18] sm:$0xf]
      %v250 = vld [vmem:[%s1 + $0x1c] sm:$0xf]
      %v251 = vld [vmem:[%s1 + $0x20] sm:$0xf]
      %v252 = vld [vmem:[%s1 + $0x24] sm:$0xf]
      %v253 = vld [vmem:[%s1 + $0x28] sm:$0xf]
      %v254 = vld [vmem:[%s1 + $0x2c] sm:$0xf]
      %v255 = vld [vmem:[%s1 + $0x30] sm:$0xf]
      %v256 = vld [vmem:[%s1 + $0x34] sm:$0xf]
      %v257 = vld [vmem:[%s1 + $0x38] sm:$0xf]
      %v258 = vld [vmem:[%s1 + $0x3c] sm:$0xf]
      %vm275 = vcmask 1046528
      %v276 = vrot.slane %v219, 1
      %v277 = vrot.slane %v220, 1
      %v278 = vsel %vm275, %v276, %v277
      %v279 = vrot.slane %v221, 1
      %v280 = vrot.slane %v222, 1
      %v281 = vsel %vm275, %v279, %v280
      %v282 = vrot.slane %v223, 1
      %v283 = vrot.slane %v224, 1
      %v284 = vsel %vm275, %v282, %v283
      %v285 = vrot.slane %v225, 1
      %v286 = vrot.slane %v226, 1
      %v287 = vsel %vm275, %v285, %v286
      %v288 = vrot.slane %v227, 1
      %v289 = vrot.slane %v228, 1
      %v290 = vsel %vm275, %v288, %v289
      %v291 = vrot.slane %v229, 1
      %v292 = vrot.slane %v230, 1
      %v293 = vsel %vm275, %v291, %v292
      %v294 = vrot.slane %v231, 1
      %v295 = vrot.slane %v232, 1
      %v296 = vsel %vm275, %v294, %v295
      %v297 = vrot.slane %v233, 1
      %v298 = vrot.slane %v234, 1
      %v299 = vsel %vm275, %v297, %v298
      %v308 = vpack.c.bf16 %v281, %v278
      %v309 = vpack.c.bf16 %v287, %v284
      %v310 = vpack.c.bf16 %v293, %v290
      %v311 = vpack.c.bf16 %v299, %v296
      %s312 = scalar_lea.vmem %s1, 64
      %v313 = vld [vmem:[%s312] sm:$0xf]
      %v314 = vld [vmem:[%s312 + $0x4] sm:$0xf]
      %v315 = vld [vmem:[%s312 + $0x8] sm:$0xf]
      %v316 = vld [vmem:[%s312 + $0xc] sm:$0xf]
      %v317 = vld [vmem:[%s312 + $0x10] sm:$0xf]
      %v318 = vld [vmem:[%s312 + $0x14] sm:$0xf]
      %v319 = vld [vmem:[%s312 + $0x18] sm:$0xf]
      %v320 = vld [vmem:[%s312 + $0x1c] sm:$0xf]
      %v321 = vld [vmem:[%s312 + $0x20] sm:$0xf]
      %v322 = vld [vmem:[%s312 + $0x24] sm:$0xf]
      %v323 = vld [vmem:[%s312 + $0x28] sm:$0xf]
      %v324 = vld [vmem:[%s312 + $0x2c] sm:$0xf]
      %v325 = vld [vmem:[%s312 + $0x30] sm:$0xf]
      %v326 = vld [vmem:[%s312 + $0x34] sm:$0xf]
      %v327 = vld [vmem:[%s312 + $0x38] sm:$0xf]
      %v328 = vld [vmem:[%s312 + $0x3c] sm:$0xf]
      %v345 = vunpack.c.l.b16 %v313
      %v346 = vunpack.c.l.b16 %v314
      %v347 = vunpack.c.l.b16 %v315
      %v348 = vunpack.c.l.b16 %v316
      %v349 = vunpack.c.l.b16 %v317
      %v350 = vunpack.c.l.b16 %v318
      %v351 = vunpack.c.l.b16 %v319
      %v352 = vunpack.c.l.b16 %v320
      %v353 = vunpack.c.l.b16 %v321
      %v354 = vunpack.c.l.b16 %v322
      %v355 = vunpack.c.l.b16 %v323
      %v356 = vunpack.c.l.b16 %v324
      %v357 = vunpack.c.l.b16 %v325
      %v358 = vunpack.c.l.b16 %v326
      %v359 = vunpack.c.l.b16 %v327
      %v360 = vunpack.c.l.b16 %v328
      %v361 = vpack.c.b16 %v346, %v345
      %v362 = vpack.c.b16 %v348, %v347
      %v363 = vpack.c.b16 %v350, %v349
      %v364 = vpack.c.b16 %v352, %v351
      %v365 = vpack.c.b16 %v354, %v353
      %v366 = vpack.c.b16 %v356, %v355
      %v367 = vpack.c.b16 %v358, %v357
      %v368 = vpack.c.b16 %v360, %v359
      %377 = vmatprep.subr.bf16.mxu0 0
      %378 = vmatpush1.bf16.msra.mxu0 %v361
      %379 = vmatprep.subr.bf16.mxu0 0
      %380 = vmatpush1.bf16.msra.mxu0 %v362
      %381 = vmatprep.subr.bf16.mxu0 0
      %382 = vmatpush1.bf16.msra.mxu0 %v363
      %383 = vmatprep.subr.bf16.mxu0 0
      %384 = vmatpush1.bf16.msra.mxu0 %v364
      %385 = vmatprep.subr.bf16.mxu0 0
      %386 = vmatpush1.bf16.msra.mxu0 %v365
      %387 = vmatprep.subr.bf16.mxu0 0
      %388 = vmatpush1.bf16.msra.mxu0 %v366
      %389 = vmatprep.subr.bf16.mxu0 0
      %390 = vmatpush1.bf16.msra.mxu0 %v367
      %391 = vmatprep.subr.bf16.mxu0 0
      %392 = vmatpush1.bf16.msra.mxu0 %v368
      %393 = vmatprep.subr.bf16.mxu0 0
      %394 = vmatpush1.bf16.msra.mxu0 0
      %395 = vmatprep.subr.bf16.mxu0 0
      %396 = vmatpush1.bf16.msra.mxu0 0
      %397 = vmatprep.subr.bf16.mxu0 0
      %398 = vmatpush1.bf16.msra.mxu0 0
      %399 = vmatprep.subr.bf16.mxu0 0
      %400 = vmatpush1.bf16.msra.mxu0 0
      %401 = vmatprep.subr.bf16.mxu0 0
      %402 = vmatpush1.bf16.msra.mxu0 0
      %403 = vmatprep.subr.bf16.mxu0 0
      %404 = vmatpush1.bf16.msra.mxu0 0
      %405 = vmatprep.subr.bf16.mxu0 0
      %406 = vmatpush1.bf16.msra.mxu0 0
      %407 = vmatprep.subr.bf16.mxu0 0
      %408 = vmatpush1.bf16.msra.mxu0 0
      %409 = vmatprep.mubr.bf16.mxu0 0
      %410 = vmatmul.mubr.bf16.gmra.mrb[0].mxu0 %v308
      %v411 = vpop.f32.mrb[0].mxu0
      %v412 = vadd.f32 0.0, %v411
      %v413 = vpop.f32.mrb[0].mxu0
      %v414 = vpop.f32.mrb[0].mxu0
      %v415 = vadd.f32 0.0, %v414
      %v416 = vpop.f32.mrb[0].mxu0
      %417 = vmatprep.mubr.bf16.mxu0 0
      %418 = vmatmul.mubr.bf16.gmra.mrb[0].mxu0 %v309
      %v419 = vpop.f32.mrb[0].mxu0
      %v420 = vadd.f32 0.0, %v419
      %v421 = vpop.f32.mrb[0].mxu0
      %v422 = vpop.f32.mrb[0].mxu0
      %v423 = vadd.f32 0.0, %v422
      %v424 = vpop.f32.mrb[0].mxu0
      %425 = vmatprep.mubr.bf16.mxu0 0
      %426 = vmatmul.mubr.bf16.gmra.mrb[0].mxu0 %v310
      %v427 = vpop.f32.mrb[0].mxu0
      %v428 = vadd.f32 0.0, %v427
      %v429 = vpop.f32.mrb[0].mxu0
      %v430 = vpop.f32.mrb[0].mxu0
      %v431 = vadd.f32 0.0, %v430
      %v432 = vpop.f32.mrb[0].mxu0
      %433 = vmatprep.mubr.bf16.mxu0 0
      %434 = vmatmul.mubr.bf16.gmra.mrb[0].mxu0 %v311
      %v435 = vpop.f32.mrb[0].mxu0
      %v436 = vadd.f32 0.0, %v435
      %v437 = vpop.f32.mrb[0].mxu0
      %v438 = vpop.f32.mrb[0].mxu0
      %v439 = vadd.f32 0.0, %v438
      %v440 = vpop.f32.mrb[0].mxu0
      %441 = vdwg.mxu0
      %v458 = vunpack.c.l.b16 %v243
      %v459 = vunpack.c.l.b16 %v244
      %v460 = vunpack.c.l.b16 %v245
      %v461 = vunpack.c.l.b16 %v246
      %v462 = vunpack.c.l.b16 %v247
      %v463 = vunpack.c.l.b16 %v248
      %v464 = vunpack.c.l.b16 %v249
      %v465 = vunpack.c.l.b16 %v250
      %v466 = vunpack.c.l.b16 %v251
      %v467 = vunpack.c.l.b16 %v252
      %v468 = vunpack.c.l.b16 %v253
      %v469 = vunpack.c.l.b16 %v254
      %v470 = vunpack.c.l.b16 %v255
      %v471 = vunpack.c.l.b16 %v256
      %v472 = vunpack.c.l.b16 %v257
      %v473 = vunpack.c.l.b16 %v258
      %v474 = vpack.c.b16 %v459, %v458
      %v475 = vpack.c.b16 %v461, %v460
      %v476 = vpack.c.b16 %v463, %v462
      %v477 = vpack.c.b16 %v465, %v464
      %v478 = vpack.c.b16 %v467, %v466
      %v479 = vpack.c.b16 %v469, %v468
      %v480 = vpack.c.b16 %v471, %v470
      %v481 = vpack.c.b16 %v473, %v472
      %490 = vmatprep.subr.bf16.mxu0 0
      %491 = vmatpush1.bf16.msra.mxu0 %v474
      %492 = vmatprep.subr.bf16.mxu0 0
      %493 = vmatpush1.bf16.msra.mxu0 %v475
      %494 = vmatprep.subr.bf16.mxu0 0
      %495 = vmatpush1.bf16.msra.mxu0 %v476
      %496 = vmatprep.subr.bf16.mxu0 0
      %497 = vmatpush1.bf16.msra.mxu0 %v477
      %498 = vmatprep.subr.bf16.mxu0 0
      %499 = vmatpush1.bf16.msra.mxu0 %v478
      %500 = vmatprep.subr.bf16.mxu0 0
      %501 = vmatpush1.bf16.msra.mxu0 %v479
      %502 = vmatprep.subr.bf16.mxu0 0
      %503 = vmatpush1.bf16.msra.mxu0 %v480
      %504 = vmatprep.subr.bf16.mxu0 0
      %505 = vmatpush1.bf16.msra.mxu0 %v481
      %506 = vmatprep.subr.bf16.mxu0 0
      %507 = vmatpush1.bf16.msra.mxu0 0
      %508 = vmatprep.subr.bf16.mxu0 0
      %509 = vmatpush1.bf16.msra.mxu0 0
      %510 = vmatprep.subr.bf16.mxu0 0
      %511 = vmatpush1.bf16.msra.mxu0 0
      %512 = vmatprep.subr.bf16.mxu0 0
      %513 = vmatpush1.bf16.msra.mxu0 0
      %514 = vmatprep.subr.bf16.mxu0 0
      %515 = vmatpush1.bf16.msra.mxu0 0
      %516 = vmatprep.subr.bf16.mxu0 0
      %517 = vmatpush1.bf16.msra.mxu0 0
      %518 = vmatprep.subr.bf16.mxu0 0
      %519 = vmatpush1.bf16.msra.mxu0 0
      %520 = vmatprep.subr.bf16.mxu0 0
      %521 = vmatpush1.bf16.msra.mxu0 0
      %522 = vmatprep.mubr.bf16.mxu0 0
      %523 = vmatmul.mubr.bf16.gmra.mrb[0].mxu0 %v239
      %v524 = vpop.f32.mrb[0].mxu0
      %v525 = vadd.f32 %v412, %v524
      %v526 = vpop.f32.mrb[0].mxu0
      %v527 = vpop.f32.mrb[0].mxu0
      %v528 = vadd.f32 %v415, %v527
      %v529 = vpop.f32.mrb[0].mxu0
      %530 = vmatprep.mubr.bf16.mxu0 0
      %531 = vmatmul.mubr.bf16.gmra.mrb[0].mxu0 %v240
      %v532 = vpop.f32.mrb[0].mxu0
      %v533 = vadd.f32 %v420, %v532
      %v534 = vpop.f32.mrb[0].mxu0
      %v535 = vpop.f32.mrb[0].mxu0
      %v536 = vadd.f32 %v423, %v535
      %v537 = vpop.f32.mrb[0].mxu0
      %538 = vmatprep.mubr.bf16.mxu0 0
      %539 = vmatmul.mubr.bf16.gmra.mrb[0].mxu0 %v241
      %v540 = vpop.f32.mrb[0].mxu0
      %v541 = vadd.f32 %v428, %v540
      %v542 = vpop.f32.mrb[0].mxu0
      %v543 = vpop.f32.mrb[0].mxu0
      %v544 = vadd.f32 %v431, %v543
      %v545 = vpop.f32.mrb[0].mxu0
      %546 = vmatprep.mubr.bf16.mxu0 0
      %547 = vmatmul.mubr.bf16.gmra.mrb[0].mxu0 %v242
      %v548 = vpop.f32.mrb[0].mxu0
      %v549 = vadd.f32 %v436, %v548
      %v550 = vpop.f32.mrb[0].mxu0
      %v551 = vpop.f32.mrb[0].mxu0
      %v552 = vadd.f32 %v439, %v551
      %v553 = vpop.f32.mrb[0].mxu0
      %554 = vdwg.mxu0
      %vm555 = vcmask 1045504
      %v556 = vrot.slane %v219, 2
      %v557 = vrot.slane %v220, 2
      %v558 = vsel %vm555, %v556, %v557
      %v559 = vrot.slane %v221, 2
      %v560 = vrot.slane %v222, 2
      %v561 = vsel %vm555, %v559, %v560
      %v562 = vrot.slane %v223, 2
      %v563 = vrot.slane %v224, 2
      %v564 = vsel %vm555, %v562, %v563
      %v565 = vrot.slane %v225, 2
      %v566 = vrot.slane %v226, 2
      %v567 = vsel %vm555, %v565, %v566
      %v568 = vrot.slane %v227, 2
      %v569 = vrot.slane %v228, 2
      %v570 = vsel %vm555, %v568, %v569
      %v571 = vrot.slane %v229, 2
      %v572 = vrot.slane %v230, 2
      %v573 = vsel %vm555, %v571, %v572
      %v574 = vrot.slane %v231, 2
      %v575 = vrot.slane %v232, 2
      %v576 = vsel %vm555, %v574, %v575
      %v577 = vrot.slane %v233, 2
      %v578 = vrot.slane %v234, 2
      %v579 = vsel %vm555, %v577, %v578
      %v588 = vpack.c.bf16 %v561, %v558
      %v589 = vpack.c.bf16 %v567, %v564
      %v590 = vpack.c.bf16 %v573, %v570
      %v591 = vpack.c.bf16 %v579, %v576
      %s592 = scalar_lea.vmem %s1, 128
      %v593 = vld [vmem:[%s592] sm:$0xf]
      %v594 = vld [vmem:[%s592 + $0x4] sm:$0xf]
      %v595 = vld [vmem:[%s592 + $0x8] sm:$0xf]
      %v596 = vld [vmem:[%s592 + $0xc] sm:$0xf]
      %v597 = vld [vmem:[%s592 + $0x10] sm:$0xf]
      %v598 = vld [vmem:[%s592 + $0x14] sm:$0xf]
      %v599 = vld [vmem:[%s592 + $0x18] sm:$0xf]
      %v600 = vld [vmem:[%s592 + $0x1c] sm:$0xf]
      %v601 = vld [vmem:[%s592 + $0x20] sm:$0xf]
      %v602 = vld [vmem:[%s592 + $0x24] sm:$0xf]
      %v603 = vld [vmem:[%s592 + $0x28] sm:$0xf]
      %v604 = vld [vmem:[%s592 + $0x2c] sm:$0xf]
      %v605 = vld [vmem:[%s592 + $0x30] sm:$0xf]
      %v606 = vld [vmem:[%s592 + $0x34] sm:$0xf]
      %v607 = vld [vmem:[%s592 + $0x38] sm:$0xf]
      %v608 = vld [vmem:[%s592 + $0x3c] sm:$0xf]
      %v625 = vunpack.c.l.b16 %v593
      %v626 = vunpack.c.l.b16 %v594
      %v627 = vunpack.c.l.b16 %v595
      %v628 = vunpack.c.l.b16 %v596
      %v629 = vunpack.c.l.b16 %v597
      %v630 = vunpack.c.l.b16 %v598
      %v631 = vunpack.c.l.b16 %v599
      %v632 = vunpack.c.l.b16 %v600
      %v633 = vunpack.c.l.b16 %v601
      %v634 = vunpack.c.l.b16 %v602
      %v635 = vunpack.c.l.b16 %v603
      %v636 = vunpack.c.l.b16 %v604
      %v637 = vunpack.c.l.b16 %v605
      %v638 = vunpack.c.l.b16 %v606
      %v639 = vunpack.c.l.b16 %v607
      %v640 = vunpack.c.l.b16 %v608
      %v641 = vpack.c.b16 %v626, %v625
      %v642 = vpack.c.b16 %v628, %v627
      %v643 = vpack.c.b16 %v630, %v629
      %v644 = vpack.c.b16 %v632, %v631
      %v645 = vpack.c.b16 %v634, %v633
      %v646 = vpack.c.b16 %v636, %v635
      %v647 = vpack.c.b16 %v638, %v637
      %v648 = vpack.c.b16 %v640, %v639
      %657 = vmatprep.subr.bf16.mxu0 0
      %658 = vmatpush1.bf16.msra.mxu0 %v641
      %659 = vmatprep.subr.bf16.mxu0 0
      %660 = vmatpush1.bf16.msra.mxu0 %v642
      %661 = vmatprep.subr.bf16.mxu0 0
      %662 = vmatpush1.bf16.msra.mxu0 %v643
      %663 = vmatprep.subr.bf16.mxu0 0
      %664 = vmatpush1.bf16.msra.mxu0 %v644
      %665 = vmatprep.subr.bf16.mxu0 0
      %666 = vmatpush1.bf16.msra.mxu0 %v645
      %667 = vmatprep.subr.bf16.mxu0 0
      %668 = vmatpush1.bf16.msra.mxu0 %v646
      %669 = vmatprep.subr.bf16.mxu0 0
      %670 = vmatpush1.bf16.msra.mxu0 %v647
      %671 = vmatprep.subr.bf16.mxu0 0
      %672 = vmatpush1.bf16.msra.mxu0 %v648
      %673 = vmatprep.subr.bf16.mxu0 0
      %674 = vmatpush1.bf16.msra.mxu0 0
      %675 = vmatprep.subr.bf16.mxu0 0
      %676 = vmatpush1.bf16.msra.mxu0 0
      %677 = vmatprep.subr.bf16.mxu0 0
      %678 = vmatpush1.bf16.msra.mxu0 0
      %679 = vmatprep.subr.bf16.mxu0 0
      %680 = vmatpush1.bf16.msra.mxu0 0
      %681 = vmatprep.subr.bf16.mxu0 0
      %682 = vmatpush1.bf16.msra.mxu0 0
      %683 = vmatprep.subr.bf16.mxu0 0
      %684 = vmatpush1.bf16.msra.mxu0 0
      %685 = vmatprep.subr.bf16.mxu0 0
      %686 = vmatpush1.bf16.msra.mxu0 0
      %687 = vmatprep.subr.bf16.mxu0 0
      %688 = vmatpush1.bf16.msra.mxu0 0
      %689 = vmatprep.mubr.bf16.mxu0 0
      %690 = vmatmul.mubr.bf16.gmra.mrb[0].mxu0 %v588
      %v691 = vpop.f32.mrb[0].mxu0
      %v692 = vadd.f32 0.0, %v691
      %v693 = vpop.f32.mrb[0].mxu0
      %v694 = vpop.f32.mrb[0].mxu0
      %v695 = vadd.f32 0.0, %v694
      %v696 = vpop.f32.mrb[0].mxu0
      %697 = vmatprep.mubr.bf16.mxu0 0
      %698 = vmatmul.mubr.bf16.gmra.mrb[0].mxu0 %v589
      %v699 = vpop.f32.mrb[0].mxu0
      %v700 = vadd.f32 0.0, %v699
      %v701 = vpop.f32.mrb[0].mxu0
      %v702 = vpop.f32.mrb[0].mxu0
      %v703 = vadd.f32 0.0, %v702
      %v704 = vpop.f32.mrb[0].mxu0
      %705 = vmatprep.mubr.bf16.mxu0 0
      %706 = vmatmul.mubr.bf16.gmra.mrb[0].mxu0 %v590
      %v707 = vpop.f32.mrb[0].mxu0
      %v708 = vadd.f32 0.0, %v707
      %v709 = vpop.f32.mrb[0].mxu0
      %v710 = vpop.f32.mrb[0].mxu0
      %v711 = vadd.f32 0.0, %v710
      %v712 = vpop.f32.mrb[0].mxu0
      %713 = vmatprep.mubr.bf16.mxu0 0
      %714 = vmatmul.mubr.bf16.gmra.mrb[0].mxu0 %v591
      %v715 = vpop.f32.mrb[0].mxu0
      %v716 = vadd.f32 0.0, %v715
      %v717 = vpop.f32.mrb[0].mxu0
      %v718 = vpop.f32.mrb[0].mxu0
      %v719 = vadd.f32 0.0, %v718
      %v720 = vpop.f32.mrb[0].mxu0
      %721 = vdwg.mxu0
      %v722 = vadd.f32 %v525, %v692
      %v723 = vadd.f32 %v528, %v695
      %v724 = vadd.f32 %v533, %v700
      %v725 = vadd.f32 %v536, %v703
      %v726 = vadd.f32 %v541, %v708
      %v727 = vadd.f32 %v544, %v711
      %v728 = vadd.f32 %v549, %v716
      %v729 = vadd.f32 %v552, %v719
      %v730 = vpack.c.bf16 %v223, %v221
      %v731 = vpack.c.bf16 %v227, %v225
      %v732 = vpack.c.bf16 %v231, %v229
      %v733 = vpack.c.bf16 %v235, %v233
      %s734 = scalar_lea.vmem %s1, 192
      %v735 = vld [vmem:[%s734] sm:$0xf]
      %v736 = vld [vmem:[%s734 + $0x4] sm:$0xf]
      %v737 = vld [vmem:[%s734 + $0x8] sm:$0xf]
      %v738 = vld [vmem:[%s734 + $0xc] sm:$0xf]
      %v739 = vld [vmem:[%s734 + $0x10] sm:$0xf]
      %v740 = vld [vmem:[%s734 + $0x14] sm:$0xf]
      %v741 = vld [vmem:[%s734 + $0x18] sm:$0xf]
      %v742 = vld [vmem:[%s734 + $0x1c] sm:$0xf]
      %v743 = vld [vmem:[%s734 + $0x20] sm:$0xf]
      %v744 = vld [vmem:[%s734 + $0x24] sm:$0xf]
      %v745 = vld [vmem:[%s734 + $0x28] sm:$0xf]
      %v746 = vld [vmem:[%s734 + $0x2c] sm:$0xf]
      %v747 = vld [vmem:[%s734 + $0x30] sm:$0xf]
      %v748 = vld [vmem:[%s734 + $0x34] sm:$0xf]
      %v749 = vld [vmem:[%s734 + $0x38] sm:$0xf]
      %v750 = vld [vmem:[%s734 + $0x3c] sm:$0xf]
      %v767 = vunpack.c.l.b16 %v735
      %v768 = vunpack.c.l.b16 %v736
      %v769 = vunpack.c.l.b16 %v737
      %v770 = vunpack.c.l.b16 %v738
      %v771 = vunpack.c.l.b16 %v739
      %v772 = vunpack.c.l.b16 %v740
      %v773 = vunpack.c.l.b16 %v741
      %v774 = vunpack.c.l.b16 %v742
      %v775 = vunpack.c.l.b16 %v743
      %v776 = vunpack.c.l.b16 %v744
      %v777 = vunpack.c.l.b16 %v745
      %v778 = vunpack.c.l.b16 %v746
      %v779 = vunpack.c.l.b16 %v747
      %v780 = vunpack.c.l.b16 %v748
      %v781 = vunpack.c.l.b16 %v749
      %v782 = vunpack.c.l.b16 %v750
      %v783 = vpack.c.b16 %v768, %v767
      %v784 = vpack.c.b16 %v770, %v769
      %v785 = vpack.c.b16 %v772, %v771
      %v786 = vpack.c.b16 %v774, %v773
      %v787 = vpack.c.b16 %v776, %v775
      %v788 = vpack.c.b16 %v778, %v777
      %v789 = vpack.c.b16 %v780, %v779
      %v790 = vpack.c.b16 %v782, %v781
      %799 = vmatprep.subr.bf16.mxu0 0
      %800 = vmatpush1.bf16.msra.mxu0 %v783
      %801 = vmatprep.subr.bf16.mxu0 0
      %802 = vmatpush1.bf16.msra.mxu0 %v784
      %803 = vmatprep.subr.bf16.mxu0 0
      %804 = vmatpush1.bf16.msra.mxu0 %v785
      %805 = vmatprep.subr.bf16.mxu0 0
      %806 = vmatpush1.bf16.msra.mxu0 %v786
      %807 = vmatprep.subr.bf16.mxu0 0
      %808 = vmatpush1.bf16.msra.mxu0 %v787
      %809 = vmatprep.subr.bf16.mxu0 0
      %810 = vmatpush1.bf16.msra.mxu0 %v788
      %811 = vmatprep.subr.bf16.mxu0 0
      %812 = vmatpush1.bf16.msra.mxu0 %v789
      %813 = vmatprep.subr.bf16.mxu0 0
      %814 = vmatpush1.bf16.msra.mxu0 %v790
      %815 = vmatprep.subr.bf16.mxu0 0
      %816 = vmatpush1.bf16.msra.mxu0 0
      %817 = vmatprep.subr.bf16.mxu0 0
      %818 = vmatpush1.bf16.msra.mxu0 0
      %819 = vmatprep.subr.bf16.mxu0 0
      %820 = vmatpush1.bf16.msra.mxu0 0
      %821 = vmatprep.subr.bf16.mxu0 0
      %822 = vmatpush1.bf16.msra.mxu0 0
      %823 = vmatprep.subr.bf16.mxu0 0
      %824 = vmatpush1.bf16.msra.mxu0 0
      %825 = vmatprep.subr.bf16.mxu0 0
      %826 = vmatpush1.bf16.msra.mxu0 0
      %827 = vmatprep.subr.bf16.mxu0 0
      %828 = vmatpush1.bf16.msra.mxu0 0
      %829 = vmatprep.subr.bf16.mxu0 0
      %830 = vmatpush1.bf16.msra.mxu0 0
      %831 = vmatprep.mubr.bf16.mxu0 0
      %832 = vmatmul.mubr.bf16.gmra.mrb[0].mxu0 %v730
      %v833 = vpop.f32.mrb[0].mxu0
      %v834 = vadd.f32 0.0, %v833
      %v835 = vpop.f32.mrb[0].mxu0
      %v836 = vpop.f32.mrb[0].mxu0
      %v837 = vadd.f32 0.0, %v836
      %v838 = vpop.f32.mrb[0].mxu0
      %839 = vmatprep.mubr.bf16.mxu0 0
      %840 = vmatmul.mubr.bf16.gmra.mrb[0].mxu0 %v731
      %v841 = vpop.f32.mrb[0].mxu0
      %v842 = vadd.f32 0.0, %v841
      %v843 = vpop.f32.mrb[0].mxu0
      %v844 = vpop.f32.mrb[0].mxu0
      %v845 = vadd.f32 0.0, %v844
      %v846 = vpop.f32.mrb[0].mxu0
      %847 = vmatprep.mubr.bf16.mxu0 0
      %848 = vmatmul.mubr.bf16.gmra.mrb[0].mxu0 %v732
      %v849 = vpop.f32.mrb[0].mxu0
      %v850 = vadd.f32 0.0, %v849
      %v851 = vpop.f32.mrb[0].mxu0
      %v852 = vpop.f32.mrb[0].mxu0
      %v853 = vadd.f32 0.0, %v852
      %v854 = vpop.f32.mrb[0].mxu0
      %855 = vmatprep.mubr.bf16.mxu0 0
      %856 = vmatmul.mubr.bf16.gmra.mrb[0].mxu0 %v733
      %v857 = vpop.f32.mrb[0].mxu0
      %v858 = vadd.f32 0.0, %v857
      %v859 = vpop.f32.mrb[0].mxu0
      %v860 = vpop.f32.mrb[0].mxu0
      %v861 = vadd.f32 0.0, %v860
      %v862 = vpop.f32.mrb[0].mxu0
      %863 = vdwg.mxu0
      %v864 = vadd.f32 %v722, %v834
      %v865 = vadd.f32 %v723, %v837
      %v866 = vadd.f32 %v724, %v842
      %v867 = vadd.f32 %v725, %v845
      %v868 = vadd.f32 %v726, %v850
      %v869 = vadd.f32 %v727, %v853
      %v870 = vadd.f32 %v728, %v858
      %v871 = vadd.f32 %v729, %v861
      %v874 = vrot.slane %v235, 1
      %v875 = vrot.slane %v236, 1
      %v876 = vsel %vm275, %v874, %v875
      %v878 = vpack.c.bf16 %v284, %v281
      %v879 = vpack.c.bf16 %v290, %v287
      %v880 = vpack.c.bf16 %v296, %v293
      %v881 = vpack.c.bf16 %v876, %v299
      %s882 = scalar_lea.vmem %s1, 256
      %v883 = vld [vmem:[%s882] sm:$0xf]
      %v884 = vld [vmem:[%s882 + $0x4] sm:$0xf]
      %v885 = vld [vmem:[%s882 + $0x8] sm:$0xf]
      %v886 = vld [vmem:[%s882 + $0xc] sm:$0xf]
      %v887 = vld [vmem:[%s882 + $0x10] sm:$0xf]
      %v888 = vld [vmem:[%s882 + $0x14] sm:$0xf]
      %v889 = vld [vmem:[%s882 + $0x18] sm:$0xf]
      %v890 = vld [vmem:[%s882 + $0x1c] sm:$0xf]
      %v891 = vld [vmem:[%s882 + $0x20] sm:$0xf]
      %v892 = vld [vmem:[%s882 + $0x24] sm:$0xf]
      %v893 = vld [vmem:[%s882 + $0x28] sm:$0xf]
      %v894 = vld [vmem:[%s882 + $0x2c] sm:$0xf]
      %v895 = vld [vmem:[%s882 + $0x30] sm:$0xf]
      %v896 = vld [vmem:[%s882 + $0x34] sm:$0xf]
      %v897 = vld [vmem:[%s882 + $0x38] sm:$0xf]
      %v898 = vld [vmem:[%s882 + $0x3c] sm:$0xf]
      %v915 = vunpack.c.l.b16 %v883
      %v916 = vunpack.c.l.b16 %v884
      %v917 = vunpack.c.l.b16 %v885
      %v918 = vunpack.c.l.b16 %v886
      %v919 = vunpack.c.l.b16 %v887
      %v920 = vunpack.c.l.b16 %v888
      %v921 = vunpack.c.l.b16 %v889
      %v922 = vunpack.c.l.b16 %v890
      %v923 = vunpack.c.l.b16 %v891
      %v924 = vunpack.c.l.b16 %v892
      %v925 = vunpack.c.l.b16 %v893
      %v926 = vunpack.c.l.b16 %v894
      %v927 = vunpack.c.l.b16 %v895
      %v928 = vunpack.c.l.b16 %v896
      %v929 = vunpack.c.l.b16 %v897
      %v930 = vunpack.c.l.b16 %v898
      %v931 = vpack.c.b16 %v916, %v915
      %v932 = vpack.c.b16 %v918, %v917
      %v933 = vpack.c.b16 %v920, %v919
      %v934 = vpack.c.b16 %v922, %v921
      %v935 = vpack.c.b16 %v924, %v923
      %v936 = vpack.c.b16 %v926, %v925
      %v937 = vpack.c.b16 %v928, %v927
      %v938 = vpack.c.b16 %v930, %v929
      %947 = vmatprep.subr.bf16.mxu0 0
      %948 = vmatpush1.bf16.msra.mxu0 %v931
      %949 = vmatprep.subr.bf16.mxu0 0
      %950 = vmatpush1.bf16.msra.mxu0 %v932
      %951 = vmatprep.subr.bf16.mxu0 0
      %952 = vmatpush1.bf16.msra.mxu0 %v933
      %953 = vmatprep.subr.bf16.mxu0 0
      %954 = vmatpush1.bf16.msra.mxu0 %v934
      %955 = vmatprep.subr.bf16.mxu0 0
      %956 = vmatpush1.bf16.msra.mxu0 %v935
      %957 = vmatprep.subr.bf16.mxu0 0
      %958 = vmatpush1.bf16.msra.mxu0 %v936
      %959 = vmatprep.subr.bf16.mxu0 0
      %960 = vmatpush1.bf16.msra.mxu0 %v937
      %961 = vmatprep.subr.bf16.mxu0 0
      %962 = vmatpush1.bf16.msra.mxu0 %v938
      %963 = vmatprep.subr.bf16.mxu0 0
      %964 = vmatpush1.bf16.msra.mxu0 0
      %965 = vmatprep.subr.bf16.mxu0 0
      %966 = vmatpush1.bf16.msra.mxu0 0
      %967 = vmatprep.subr.bf16.mxu0 0
      %968 = vmatpush1.bf16.msra.mxu0 0
      %969 = vmatprep.subr.bf16.mxu0 0
      %970 = vmatpush1.bf16.msra.mxu0 0
      %971 = vmatprep.subr.bf16.mxu0 0
      %972 = vmatpush1.bf16.msra.mxu0 0
      %973 = vmatprep.subr.bf16.mxu0 0
      %974 = vmatpush1.bf16.msra.mxu0 0
      %975 = vmatprep.subr.bf16.mxu0 0
      %976 = vmatpush1.bf16.msra.mxu0 0
      %977 = vmatprep.subr.bf16.mxu0 0
      %978 = vmatpush1.bf16.msra.mxu0 0
      %979 = vmatprep.mubr.bf16.mxu0 0
      %980 = vmatmul.mubr.bf16.gmra.mrb[0].mxu0 %v878
      %v981 = vpop.f32.mrb[0].mxu0
      %v982 = vadd.f32 0.0, %v981
      %v983 = vpop.f32.mrb[0].mxu0
      %v984 = vpop.f32.mrb[0].mxu0
      %v985 = vadd.f32 0.0, %v984
      %v986 = vpop.f32.mrb[0].mxu0
      %987 = vmatprep.mubr.bf16.mxu0 0
      %988 = vmatmul.mubr.bf16.gmra.mrb[0].mxu0 %v879
      %v989 = vpop.f32.mrb[0].mxu0
      %v990 = vadd.f32 0.0, %v989
      %v991 = vpop.f32.mrb[0].mxu0
      %v992 = vpop.f32.mrb[0].mxu0
      %v993 = vadd.f32 0.0, %v992
      %v994 = vpop.f32.mrb[0].mxu0
      %995 = vmatprep.mubr.bf16.mxu0 0
      %996 = vmatmul.mubr.bf16.gmra.mrb[0].mxu0 %v880
      %v997 = vpop.f32.mrb[0].mxu0
      %v998 = vadd.f32 0.0, %v997
      %v999 = vpop.f32.mrb[0].mxu0
      %v1000 = vpop.f32.mrb[0].mxu0
      %v1001 = vadd.f32 0.0, %v1000
      %v1002 = vpop.f32.mrb[0].mxu0
      %1003 = vmatprep.mubr.bf16.mxu0 0
      %1004 = vmatmul.mubr.bf16.gmra.mrb[0].mxu0 %v881
      %v1005 = vpop.f32.mrb[0].mxu0
      %v1006 = vadd.f32 0.0, %v1005
      %v1007 = vpop.f32.mrb[0].mxu0
      %v1008 = vpop.f32.mrb[0].mxu0
      %v1009 = vadd.f32 0.0, %v1008
      %v1010 = vpop.f32.mrb[0].mxu0
      %1011 = vdwg.mxu0
      %v1012 = vadd.f32 %v864, %v982
      %v1013 = vadd.f32 %v865, %v985
      %v1014 = vadd.f32 %v866, %v990
      %v1015 = vadd.f32 %v867, %v993
      %v1016 = vadd.f32 %v868, %v998
      %v1017 = vadd.f32 %v869, %v1001
      %v1018 = vadd.f32 %v870, %v1006
      %v1019 = vadd.f32 %v871, %v1009
      %v1020 = vrot.slane %v235, 2
      %v1021 = vrot.slane %v236, 2
      %v1022 = vsel %vm555, %v1020, %v1021
      %v1024 = vpack.c.bf16 %v564, %v561
      %v1025 = vpack.c.bf16 %v570, %v567
      %v1026 = vpack.c.bf16 %v576, %v573
      %v1027 = vpack.c.bf16 %v1022, %v579
      %s1028 = scalar_lea.vmem %s1, 320
      %v1029 = vld [vmem:[%s1028] sm:$0xf]
      %v1030 = vld [vmem:[%s1028 + $0x4] sm:$0xf]
      %v1031 = vld [vmem:[%s1028 + $0x8] sm:$0xf]
      %v1032 = vld [vmem:[%s1028 + $0xc] sm:$0xf]
      %v1033 = vld [vmem:[%s1028 + $0x10] sm:$0xf]
      %v1034 = vld [vmem:[%s1028 + $0x14] sm:$0xf]
      %v1035 = vld [vmem:[%s1028 + $0x18] sm:$0xf]
      %v1036 = vld [vmem:[%s1028 + $0x1c] sm:$0xf]
      %v1037 = vld [vmem:[%s1028 + $0x20] sm:$0xf]
      %v1038 = vld [vmem:[%s1028 + $0x24] sm:$0xf]
      %v1039 = vld [vmem:[%s1028 + $0x28] sm:$0xf]
      %v1040 = vld [vmem:[%s1028 + $0x2c] sm:$0xf]
      %v1041 = vld [vmem:[%s1028 + $0x30] sm:$0xf]
      %v1042 = vld [vmem:[%s1028 + $0x34] sm:$0xf]
      %v1043 = vld [vmem:[%s1028 + $0x38] sm:$0xf]
      %v1044 = vld [vmem:[%s1028 + $0x3c] sm:$0xf]
      %v1061 = vunpack.c.l.b16 %v1029
      %v1062 = vunpack.c.l.b16 %v1030
      %v1063 = vunpack.c.l.b16 %v1031
      %v1064 = vunpack.c.l.b16 %v1032
      %v1065 = vunpack.c.l.b16 %v1033
      %v1066 = vunpack.c.l.b16 %v1034
      %v1067 = vunpack.c.l.b16 %v1035
      %v1068 = vunpack.c.l.b16 %v1036
      %v1069 = vunpack.c.l.b16 %v1037
      %v1070 = vunpack.c.l.b16 %v1038
      %v1071 = vunpack.c.l.b16 %v1039
      %v1072 = vunpack.c.l.b16 %v1040
      %v1073 = vunpack.c.l.b16 %v1041
      %v1074 = vunpack.c.l.b16 %v1042
      %v1075 = vunpack.c.l.b16 %v1043
      %v1076 = vunpack.c.l.b16 %v1044
      %v1077 = vpack.c.b16 %v1062, %v1061
      %v1078 = vpack.c.b16 %v1064, %v1063
      %v1079 = vpack.c.b16 %v1066, %v1065
      %v1080 = vpack.c.b16 %v1068, %v1067
      %v1081 = vpack.c.b16 %v1070, %v1069
      %v1082 = vpack.c.b16 %v1072, %v1071
      %v1083 = vpack.c.b16 %v1074, %v1073
      %v1084 = vpack.c.b16 %v1076, %v1075
      %1093 = vmatprep.subr.bf16.mxu0 0
      %1094 = vmatpush1.bf16.msra.mxu0 %v1077
      %1095 = vmatprep.subr.bf16.mxu0 0
      %1096 = vmatpush1.bf16.msra.mxu0 %v1078
      %1097 = vmatprep.subr.bf16.mxu0 0
      %1098 = vmatpush1.bf16.msra.mxu0 %v1079
      %1099 = vmatprep.subr.bf16.mxu0 0
      %1100 = vmatpush1.bf16.msra.mxu0 %v1080
      %1101 = vmatprep.subr.bf16.mxu0 0
      %1102 = vmatpush1.bf16.msra.mxu0 %v1081
      %1103 = vmatprep.subr.bf16.mxu0 0
      %1104 = vmatpush1.bf16.msra.mxu0 %v1082
      %1105 = vmatprep.subr.bf16.mxu0 0
      %1106 = vmatpush1.bf16.msra.mxu0 %v1083
      %1107 = vmatprep.subr.bf16.mxu0 0
      %1108 = vmatpush1.bf16.msra.mxu0 %v1084
      %1109 = vmatprep.subr.bf16.mxu0 0
      %1110 = vmatpush1.bf16.msra.mxu0 0
      %1111 = vmatprep.subr.bf16.mxu0 0
      %1112 = vmatpush1.bf16.msra.mxu0 0
      %1113 = vmatprep.subr.bf16.mxu0 0
      %1114 = vmatpush1.bf16.msra.mxu0 0
      %1115 = vmatprep.subr.bf16.mxu0 0
      %1116 = vmatpush1.bf16.msra.mxu0 0
      %1117 = vmatprep.subr.bf16.mxu0 0
      %1118 = vmatpush1.bf16.msra.mxu0 0
      %1119 = vmatprep.subr.bf16.mxu0 0
      %1120 = vmatpush1.bf16.msra.mxu0 0
      %1121 = vmatprep.subr.bf16.mxu0 0
      %1122 = vmatpush1.bf16.msra.mxu0 0
      %1123 = vmatprep.subr.bf16.mxu0 0
      %1124 = vmatpush1.bf16.msra.mxu0 0
      %1125 = vmatprep.mubr.bf16.mxu0 0
      %1126 = vmatmul.mubr.bf16.gmra.mrb[0].mxu0 %v1024
      %v1127 = vpop.f32.mrb[0].mxu0
      %v1128 = vadd.f32 0.0, %v1127
      %v1129 = vpop.f32.mrb[0].mxu0
      %v1130 = vpop.f32.mrb[0].mxu0
      %v1131 = vadd.f32 0.0, %v1130
      %v1132 = vpop.f32.mrb[0].mxu0
      %1133 = vmatprep.mubr.bf16.mxu0 0
      %1134 = vmatmul.mubr.bf16.gmra.mrb[0].mxu0 %v1025
      %v1135 = vpop.f32.mrb[0].mxu0
      %v1136 = vadd.f32 0.0, %v1135
      %v1137 = vpop.f32.mrb[0].mxu0
      %v1138 = vpop.f32.mrb[0].mxu0
      %v1139 = vadd.f32 0.0, %v1138
      %v1140 = vpop.f32.mrb[0].mxu0
      %1141 = vmatprep.mubr.bf16.mxu0 0
      %1142 = vmatmul.mubr.bf16.gmra.mrb[0].mxu0 %v1026
      %v1143 = vpop.f32.mrb[0].mxu0
      %v1144 = vadd.f32 0.0, %v1143
      %v1145 = vpop.f32.mrb[0].mxu0
      %v1146 = vpop.f32.mrb[0].mxu0
      %v1147 = vadd.f32 0.0, %v1146
      %v1148 = vpop.f32.mrb[0].mxu0
      %1149 = vmatprep.mubr.bf16.mxu0 0
      %1150 = vmatmul.mubr.bf16.gmra.mrb[0].mxu0 %v1027
      %v1151 = vpop.f32.mrb[0].mxu0
      %v1152 = vadd.f32 0.0, %v1151
      %v1153 = vpop.f32.mrb[0].mxu0
      %v1154 = vpop.f32.mrb[0].mxu0
      %v1155 = vadd.f32 0.0, %v1154
      %v1156 = vpop.f32.mrb[0].mxu0
      %1157 = vdwg.mxu0
      %v1158 = vadd.f32 %v1012, %v1128
      %v1159 = vadd.f32 %v1013, %v1131
      %v1160 = vadd.f32 %v1014, %v1136
      %v1161 = vadd.f32 %v1015, %v1139
      %v1162 = vadd.f32 %v1016, %v1144
      %v1163 = vadd.f32 %v1017, %v1147
      %v1164 = vadd.f32 %v1018, %v1152
      %v1165 = vadd.f32 %v1019, %v1155
      %v1166 = vpack.c.bf16 %v237, %v235
      %s1167 = scalar_lea.vmem %s1, 384
      %v1168 = vld [vmem:[%s1167] sm:$0xf]
      %v1169 = vld [vmem:[%s1167 + $0x4] sm:$0xf]
      %v1170 = vld [vmem:[%s1167 + $0x8] sm:$0xf]
      %v1171 = vld [vmem:[%s1167 + $0xc] sm:$0xf]
      %v1172 = vld [vmem:[%s1167 + $0x10] sm:$0xf]
      %v1173 = vld [vmem:[%s1167 + $0x14] sm:$0xf]
      %v1174 = vld [vmem:[%s1167 + $0x18] sm:$0xf]
      %v1175 = vld [vmem:[%s1167 + $0x1c] sm:$0xf]
      %v1176 = vld [vmem:[%s1167 + $0x20] sm:$0xf]
      %v1177 = vld [vmem:[%s1167 + $0x24] sm:$0xf]
      %v1178 = vld [vmem:[%s1167 + $0x28] sm:$0xf]
      %v1179 = vld [vmem:[%s1167 + $0x2c] sm:$0xf]
      %v1180 = vld [vmem:[%s1167 + $0x30] sm:$0xf]
      %v1181 = vld [vmem:[%s1167 + $0x34] sm:$0xf]
      %v1182 = vld [vmem:[%s1167 + $0x38] sm:$0xf]
      %v1183 = vld [vmem:[%s1167 + $0x3c] sm:$0xf]
      %v1200 = vunpack.c.l.b16 %v1168
      %v1201 = vunpack.c.l.b16 %v1169
      %v1202 = vunpack.c.l.b16 %v1170
      %v1203 = vunpack.c.l.b16 %v1171
      %v1204 = vunpack.c.l.b16 %v1172
      %v1205 = vunpack.c.l.b16 %v1173
      %v1206 = vunpack.c.l.b16 %v1174
      %v1207 = vunpack.c.l.b16 %v1175
      %v1208 = vunpack.c.l.b16 %v1176
      %v1209 = vunpack.c.l.b16 %v1177
      %v1210 = vunpack.c.l.b16 %v1178
      %v1211 = vunpack.c.l.b16 %v1179
      %v1212 = vunpack.c.l.b16 %v1180
      %v1213 = vunpack.c.l.b16 %v1181
      %v1214 = vunpack.c.l.b16 %v1182
      %v1215 = vunpack.c.l.b16 %v1183
      %v1216 = vpack.c.b16 %v1201, %v1200
      %v1217 = vpack.c.b16 %v1203, %v1202
      %v1218 = vpack.c.b16 %v1205, %v1204
      %v1219 = vpack.c.b16 %v1207, %v1206
      %v1220 = vpack.c.b16 %v1209, %v1208
      %v1221 = vpack.c.b16 %v1211, %v1210
      %v1222 = vpack.c.b16 %v1213, %v1212
      %v1223 = vpack.c.b16 %v1215, %v1214
      %1232 = vmatprep.subr.bf16.mxu0 0
      %1233 = vmatpush1.bf16.msra.mxu0 %v1216
      %1234 = vmatprep.subr.bf16.mxu0 0
      %1235 = vmatpush1.bf16.msra.mxu0 %v1217
      %1236 = vmatprep.subr.bf16.mxu0 0
      %1237 = vmatpush1.bf16.msra.mxu0 %v1218
      %1238 = vmatprep.subr.bf16.mxu0 0
      %1239 = vmatpush1.bf16.msra.mxu0 %v1219
      %1240 = vmatprep.subr.bf16.mxu0 0
      %1241 = vmatpush1.bf16.msra.mxu0 %v1220
      %1242 = vmatprep.subr.bf16.mxu0 0
      %1243 = vmatpush1.bf16.msra.mxu0 %v1221
      %1244 = vmatprep.subr.bf16.mxu0 0
      %1245 = vmatpush1.bf16.msra.mxu0 %v1222
      %1246 = vmatprep.subr.bf16.mxu0 0
      %1247 = vmatpush1.bf16.msra.mxu0 %v1223
      %1248 = vmatprep.subr.bf16.mxu0 0
      %1249 = vmatpush1.bf16.msra.mxu0 0
      %1250 = vmatprep.subr.bf16.mxu0 0
      %1251 = vmatpush1.bf16.msra.mxu0 0
      %1252 = vmatprep.subr.bf16.mxu0 0
      %1253 = vmatpush1.bf16.msra.mxu0 0
      %1254 = vmatprep.subr.bf16.mxu0 0
      %1255 = vmatpush1.bf16.msra.mxu0 0
      %1256 = vmatprep.subr.bf16.mxu0 0
      %1257 = vmatpush1.bf16.msra.mxu0 0
      %1258 = vmatprep.subr.bf16.mxu0 0
      %1259 = vmatpush1.bf16.msra.mxu0 0
      %1260 = vmatprep.subr.bf16.mxu0 0
      %1261 = vmatpush1.bf16.msra.mxu0 0
      %1262 = vmatprep.subr.bf16.mxu0 0
      %1263 = vmatpush1.bf16.msra.mxu0 0
      %1264 = vmatprep.mubr.bf16.mxu0 0
      %1265 = vmatmul.mubr.bf16.gmra.mrb[0].mxu0 %v240
      %v1266 = vpop.f32.mrb[0].mxu0
      %v1267 = vadd.f32 0.0, %v1266
      %v1268 = vpop.f32.mrb[0].mxu0
      %v1269 = vpop.f32.mrb[0].mxu0
      %v1270 = vadd.f32 0.0, %v1269
      %v1271 = vpop.f32.mrb[0].mxu0
      %1272 = vmatprep.mubr.bf16.mxu0 0
      %1273 = vmatmul.mubr.bf16.gmra.mrb[0].mxu0 %v241
      %v1274 = vpop.f32.mrb[0].mxu0
      %v1275 = vadd.f32 0.0, %v1274
      %v1276 = vpop.f32.mrb[0].mxu0
      %v1277 = vpop.f32.mrb[0].mxu0
      %v1278 = vadd.f32 0.0, %v1277
      %v1279 = vpop.f32.mrb[0].mxu0
      %1280 = vmatprep.mubr.bf16.mxu0 0
      %1281 = vmatmul.mubr.bf16.gmra.mrb[0].mxu0 %v242
      %v1282 = vpop.f32.mrb[0].mxu0
      %v1283 = vadd.f32 0.0, %v1282
      %v1284 = vpop.f32.mrb[0].mxu0
      %v1285 = vpop.f32.mrb[0].mxu0
      %v1286 = vadd.f32 0.0, %v1285
      %v1287 = vpop.f32.mrb[0].mxu0
      %1288 = vmatprep.mubr.bf16.mxu0 0
      %1289 = vmatmul.mubr.bf16.gmra.mrb[0].mxu0 %v1166
      %v1290 = vpop.f32.mrb[0].mxu0
      %v1291 = vadd.f32 0.0, %v1290
      %v1292 = vpop.f32.mrb[0].mxu0
      %v1293 = vpop.f32.mrb[0].mxu0
      %v1294 = vadd.f32 0.0, %v1293
      %v1295 = vpop.f32.mrb[0].mxu0
      %1296 = vdwg.mxu0
      %v1297 = vadd.f32 %v1158, %v1267
      %v1298 = vadd.f32 %v1159, %v1270
      %v1299 = vadd.f32 %v1160, %v1275
      %v1300 = vadd.f32 %v1161, %v1278
      %v1301 = vadd.f32 %v1162, %v1283
      %v1302 = vadd.f32 %v1163, %v1286
      %v1303 = vadd.f32 %v1164, %v1291
      %v1304 = vadd.f32 %v1165, %v1294
      %v1307 = vrot.slane %v237, 1
      %v1308 = vrot.slane %v238, 1
      %v1309 = vsel %vm275, %v1307, %v1308
      %v1311 = vpack.c.bf16 %v1309, %v876
      %s1312 = scalar_lea.vmem %s1, 448
      %v1313 = vld [vmem:[%s1312] sm:$0xf]
      %v1314 = vld [vmem:[%s1312 + $0x4] sm:$0xf]
      %v1315 = vld [vmem:[%s1312 + $0x8] sm:$0xf]
      %v1316 = vld [vmem:[%s1312 + $0xc] sm:$0xf]
      %v1317 = vld [vmem:[%s1312 + $0x10] sm:$0xf]
      %v1318 = vld [vmem:[%s1312 + $0x14] sm:$0xf]
      %v1319 = vld [vmem:[%s1312 + $0x18] sm:$0xf]
      %v1320 = vld [vmem:[%s1312 + $0x1c] sm:$0xf]
      %v1321 = vld [vmem:[%s1312 + $0x20] sm:$0xf]
      %v1322 = vld [vmem:[%s1312 + $0x24] sm:$0xf]
      %v1323 = vld [vmem:[%s1312 + $0x28] sm:$0xf]
      %v1324 = vld [vmem:[%s1312 + $0x2c] sm:$0xf]
      %v1325 = vld [vmem:[%s1312 + $0x30] sm:$0xf]
      %v1326 = vld [vmem:[%s1312 + $0x34] sm:$0xf]
      %v1327 = vld [vmem:[%s1312 + $0x38] sm:$0xf]
      %v1328 = vld [vmem:[%s1312 + $0x3c] sm:$0xf]
      %v1345 = vunpack.c.l.b16 %v1313
      %v1346 = vunpack.c.l.b16 %v1314
      %v1347 = vunpack.c.l.b16 %v1315
      %v1348 = vunpack.c.l.b16 %v1316
      %v1349 = vunpack.c.l.b16 %v1317
      %v1350 = vunpack.c.l.b16 %v1318
      %v1351 = vunpack.c.l.b16 %v1319
      %v1352 = vunpack.c.l.b16 %v1320
      %v1353 = vunpack.c.l.b16 %v1321
      %v1354 = vunpack.c.l.b16 %v1322
      %v1355 = vunpack.c.l.b16 %v1323
      %v1356 = vunpack.c.l.b16 %v1324
      %v1357 = vunpack.c.l.b16 %v1325
      %v1358 = vunpack.c.l.b16 %v1326
      %v1359 = vunpack.c.l.b16 %v1327
      %v1360 = vunpack.c.l.b16 %v1328
      %v1361 = vpack.c.b16 %v1346, %v1345
      %v1362 = vpack.c.b16 %v1348, %v1347
      %v1363 = vpack.c.b16 %v1350, %v1349
      %v1364 = vpack.c.b16 %v1352, %v1351
      %v1365 = vpack.c.b16 %v1354, %v1353
      %v1366 = vpack.c.b16 %v1356, %v1355
      %v1367 = vpack.c.b16 %v1358, %v1357
      %v1368 = vpack.c.b16 %v1360, %v1359
      %1377 = vmatprep.subr.bf16.mxu0 0
      %1378 = vmatpush1.bf16.msra.mxu0 %v1361
      %1379 = vmatprep.subr.bf16.mxu0 0
      %1380 = vmatpush1.bf16.msra.mxu0 %v1362
      %1381 = vmatprep.subr.bf16.mxu0 0
      %1382 = vmatpush1.bf16.msra.mxu0 %v1363
      %1383 = vmatprep.subr.bf16.mxu0 0
      %1384 = vmatpush1.bf16.msra.mxu0 %v1364
      %1385 = vmatprep.subr.bf16.mxu0 0
      %1386 = vmatpush1.bf16.msra.mxu0 %v1365
      %1387 = vmatprep.subr.bf16.mxu0 0
      %1388 = vmatpush1.bf16.msra.mxu0 %v1366
      %1389 = vmatprep.subr.bf16.mxu0 0
      %1390 = vmatpush1.bf16.msra.mxu0 %v1367
      %1391 = vmatprep.subr.bf16.mxu0 0
      %1392 = vmatpush1.bf16.msra.mxu0 %v1368
      %1393 = vmatprep.subr.bf16.mxu0 0
      %1394 = vmatpush1.bf16.msra.mxu0 0
      %1395 = vmatprep.subr.bf16.mxu0 0
      %1396 = vmatpush1.bf16.msra.mxu0 0
      %1397 = vmatprep.subr.bf16.mxu0 0
      %1398 = vmatpush1.bf16.msra.mxu0 0
      %1399 = vmatprep.subr.bf16.mxu0 0
      %1400 = vmatpush1.bf16.msra.mxu0 0
      %1401 = vmatprep.subr.bf16.mxu0 0
      %1402 = vmatpush1.bf16.msra.mxu0 0
      %1403 = vmatprep.subr.bf16.mxu0 0
      %1404 = vmatpush1.bf16.msra.mxu0 0
      %1405 = vmatprep.subr.bf16.mxu0 0
      %1406 = vmatpush1.bf16.msra.mxu0 0
      %1407 = vmatprep.subr.bf16.mxu0 0
      %1408 = vmatpush1.bf16.msra.mxu0 0
      %1409 = vmatprep.mubr.bf16.mxu0 0
      %1410 = vmatmul.mubr.bf16.gmra.mrb[0].mxu0 %v309
      %v1411 = vpop.f32.mrb[0].mxu0
      %v1412 = vadd.f32 0.0, %v1411
      %v1413 = vpop.f32.mrb[0].mxu0
      %v1414 = vpop.f32.mrb[0].mxu0
      %v1415 = vadd.f32 0.0, %v1414
      %v1416 = vpop.f32.mrb[0].mxu0
      %1417 = vmatprep.mubr.bf16.mxu0 0
      %1418 = vmatmul.mubr.bf16.gmra.mrb[0].mxu0 %v310
      %v1419 = vpop.f32.mrb[0].mxu0
      %v1420 = vadd.f32 0.0, %v1419
      %v1421 = vpop.f32.mrb[0].mxu0
      %v1422 = vpop.f32.mrb[0].mxu0
      %v1423 = vadd.f32 0.0, %v1422
      %v1424 = vpop.f32.mrb[0].mxu0
      %1425 = vmatprep.mubr.bf16.mxu0 0
      %1426 = vmatmul.mubr.bf16.gmra.mrb[0].mxu0 %v311
      %v1427 = vpop.f32.mrb[0].mxu0
      %v1428 = vadd.f32 0.0, %v1427
      %v1429 = vpop.f32.mrb[0].mxu0
      %v1430 = vpop.f32.mrb[0].mxu0
      %v1431 = vadd.f32 0.0, %v1430
      %v1432 = vpop.f32.mrb[0].mxu0
      %1433 = vmatprep.mubr.bf16.mxu0 0
      %1434 = vmatmul.mubr.bf16.gmra.mrb[0].mxu0 %v1311
      %v1435 = vpop.f32.mrb[0].mxu0
      %v1436 = vadd.f32 0.0, %v1435
      %v1437 = vpop.f32.mrb[0].mxu0
      %v1438 = vpop.f32.mrb[0].mxu0
      %v1439 = vadd.f32 0.0, %v1438
      %v1440 = vpop.f32.mrb[0].mxu0
      %1441 = vdwg.mxu0
      %v1442 = vadd.f32 %v1297, %v1412
      %v1443 = vadd.f32 %v1298, %v1415
      %v1444 = vadd.f32 %v1299, %v1420
      %v1445 = vadd.f32 %v1300, %v1423
      %v1446 = vadd.f32 %v1301, %v1428
      %v1447 = vadd.f32 %v1302, %v1431
      %v1448 = vadd.f32 %v1303, %v1436
      %v1449 = vadd.f32 %v1304, %v1439
      %v1450 = vrot.slane %v237, 2
      %v1451 = vrot.slane %v238, 2
      %v1452 = vsel %vm555, %v1450, %v1451
      %v1454 = vpack.c.bf16 %v1452, %v1022
      %s1455 = scalar_lea.vmem %s1, 512
      %v1456 = vld [vmem:[%s1455] sm:$0xf]
      %v1457 = vld [vmem:[%s1455 + $0x4] sm:$0xf]
      %v1458 = vld [vmem:[%s1455 + $0x8] sm:$0xf]
      %v1459 = vld [vmem:[%s1455 + $0xc] sm:$0xf]
      %v1460 = vld [vmem:[%s1455 + $0x10] sm:$0xf]
      %v1461 = vld [vmem:[%s1455 + $0x14] sm:$0xf]
      %v1462 = vld [vmem:[%s1455 + $0x18] sm:$0xf]
      %v1463 = vld [vmem:[%s1455 + $0x1c] sm:$0xf]
      %v1464 = vld [vmem:[%s1455 + $0x20] sm:$0xf]
      %v1465 = vld [vmem:[%s1455 + $0x24] sm:$0xf]
      %v1466 = vld [vmem:[%s1455 + $0x28] sm:$0xf]
      %v1467 = vld [vmem:[%s1455 + $0x2c] sm:$0xf]
      %v1468 = vld [vmem:[%s1455 + $0x30] sm:$0xf]
      %v1469 = vld [vmem:[%s1455 + $0x34] sm:$0xf]
      %v1470 = vld [vmem:[%s1455 + $0x38] sm:$0xf]
      %v1471 = vld [vmem:[%s1455 + $0x3c] sm:$0xf]
      %v1488 = vunpack.c.l.b16 %v1456
      %v1489 = vunpack.c.l.b16 %v1457
      %v1490 = vunpack.c.l.b16 %v1458
      %v1491 = vunpack.c.l.b16 %v1459
      %v1492 = vunpack.c.l.b16 %v1460
      %v1493 = vunpack.c.l.b16 %v1461
      %v1494 = vunpack.c.l.b16 %v1462
      %v1495 = vunpack.c.l.b16 %v1463
      %v1496 = vunpack.c.l.b16 %v1464
      %v1497 = vunpack.c.l.b16 %v1465
      %v1498 = vunpack.c.l.b16 %v1466
      %v1499 = vunpack.c.l.b16 %v1467
      %v1500 = vunpack.c.l.b16 %v1468
      %v1501 = vunpack.c.l.b16 %v1469
      %v1502 = vunpack.c.l.b16 %v1470
      %v1503 = vunpack.c.l.b16 %v1471
      %v1504 = vpack.c.b16 %v1489, %v1488
      %v1505 = vpack.c.b16 %v1491, %v1490
      %v1506 = vpack.c.b16 %v1493, %v1492
      %v1507 = vpack.c.b16 %v1495, %v1494
      %v1508 = vpack.c.b16 %v1497, %v1496
      %v1509 = vpack.c.b16 %v1499, %v1498
      %v1510 = vpack.c.b16 %v1501, %v1500
      %v1511 = vpack.c.b16 %v1503, %v1502
      %1520 = vmatprep.subr.bf16.mxu0 0
      %1521 = vmatpush1.bf16.msra.mxu0 %v1504
      %1522 = vmatprep.subr.bf16.mxu0 0
      %1523 = vmatpush1.bf16.msra.mxu0 %v1505
      %1524 = vmatprep.subr.bf16.mxu0 0
      %1525 = vmatpush1.bf16.msra.mxu0 %v1506
      %1526 = vmatprep.subr.bf16.mxu0 0
      %1527 = vmatpush1.bf16.msra.mxu0 %v1507
      %1528 = vmatprep.subr.bf16.mxu0 0
      %1529 = vmatpush1.bf16.msra.mxu0 %v1508
      %1530 = vmatprep.subr.bf16.mxu0 0
      %1531 = vmatpush1.bf16.msra.mxu0 %v1509
      %1532 = vmatprep.subr.bf16.mxu0 0
      %1533 = vmatpush1.bf16.msra.mxu0 %v1510
      %1534 = vmatprep.subr.bf16.mxu0 0
      %1535 = vmatpush1.bf16.msra.mxu0 %v1511
      %1536 = vmatprep.subr.bf16.mxu0 0
      %1537 = vmatpush1.bf16.msra.mxu0 0
      %1538 = vmatprep.subr.bf16.mxu0 0
      %1539 = vmatpush1.bf16.msra.mxu0 0
      %1540 = vmatprep.subr.bf16.mxu0 0
      %1541 = vmatpush1.bf16.msra.mxu0 0
      %1542 = vmatprep.subr.bf16.mxu0 0
      %1543 = vmatpush1.bf16.msra.mxu0 0
      %1544 = vmatprep.subr.bf16.mxu0 0
      %1545 = vmatpush1.bf16.msra.mxu0 0
      %1546 = vmatprep.subr.bf16.mxu0 0
      %1547 = vmatpush1.bf16.msra.mxu0 0
      %1548 = vmatprep.subr.bf16.mxu0 0
      %1549 = vmatpush1.bf16.msra.mxu0 0
      %1550 = vmatprep.subr.bf16.mxu0 0
      %1551 = vmatpush1.bf16.msra.mxu0 0
      %1552 = vmatprep.mubr.bf16.mxu0 0
      %1553 = vmatmul.mubr.bf16.gmra.mrb[0].mxu0 %v589
      %v1554 = vpop.f32.mrb[0].mxu0
      %v1555 = vadd.f32 0.0, %v1554
      %v1556 = vpop.f32.mrb[0].mxu0
      %v1557 = vpop.f32.mrb[0].mxu0
      %v1558 = vadd.f32 0.0, %v1557
      %v1559 = vpop.f32.mrb[0].mxu0
      %1560 = vmatprep.mubr.bf16.mxu0 0
      %1561 = vmatmul.mubr.bf16.gmra.mrb[0].mxu0 %v590
      %v1562 = vpop.f32.mrb[0].mxu0
      %v1563 = vadd.f32 0.0, %v1562
      %v1564 = vpop.f32.mrb[0].mxu0
      %v1565 = vpop.f32.mrb[0].mxu0
      %v1566 = vadd.f32 0.0, %v1565
      %v1567 = vpop.f32.mrb[0].mxu0
      %1568 = vmatprep.mubr.bf16.mxu0 0
      %1569 = vmatmul.mubr.bf16.gmra.mrb[0].mxu0 %v591
      %v1570 = vpop.f32.mrb[0].mxu0
      %v1571 = vadd.f32 0.0, %v1570
      %v1572 = vpop.f32.mrb[0].mxu0
      %v1573 = vpop.f32.mrb[0].mxu0
      %v1574 = vadd.f32 0.0, %v1573
      %v1575 = vpop.f32.mrb[0].mxu0
      %1576 = vmatprep.mubr.bf16.mxu0 0
      %1577 = vmatmul.mubr.bf16.gmra.mrb[0].mxu0 %v1454
      %v1578 = vpop.f32.mrb[0].mxu0
      %v1579 = vadd.f32 0.0, %v1578
      %v1580 = vpop.f32.mrb[0].mxu0
      %v1581 = vpop.f32.mrb[0].mxu0
      %v1582 = vadd.f32 0.0, %v1581
      %v1583 = vpop.f32.mrb[0].mxu0
      %1584 = vdwg.mxu0
      %v1585 = vadd.f32 %v1442, %v1555
      %v1586 = vadd.f32 %v1443, %v1558
      %v1587 = vadd.f32 %v1444, %v1563
      %v1588 = vadd.f32 %v1445, %v1566
      %v1589 = vadd.f32 %v1446, %v1571
      %v1590 = vadd.f32 %v1447, %v1574
      %v1591 = vadd.f32 %v1448, %v1579
      %v1592 = vadd.f32 %v1449, %v1582
      %v1593 = vld [vmem:[%s2] sm:$0x1]
      %v1595 = vlaneseq
      %v1596 = vshrl.u32 %v1595, 7
      %v1597 = vsub.s32 0, %v1596
      %v1598 = vrot.slane %v1593, %v1597
      %v1600 = vmul.f32 %v1585, %v1598
      %v1601 = vmul.f32 %v1586, %v1598
      %v1602 = vmul.f32 %v1587, %v1598
      %v1603 = vmul.f32 %v1588, %v1598
      %v1604 = vmul.f32 %v1589, %v1598
      %v1605 = vmul.f32 %v1590, %v1598
      %v1606 = vmul.f32 %v1591, %v1598
      %v1607 = vmul.f32 %v1592, %v1598
      %v1608 = vld [vmem:[%s3] sm:$0x1]
      %v1610 = vlaneseq
      %v1611 = vshrl.u32 %v1610, 7
      %v1612 = vsub.s32 0, %v1611
      %v1613 = vrot.slane %v1608, %v1612
      %v1615 = vadd.f32 %v1600, %v1613
      %v1616 = vadd.f32 %v1601, %v1613
      %v1617 = vadd.f32 %v1602, %v1613
      %v1618 = vadd.f32 %v1603, %v1613
      %v1619 = vadd.f32 %v1604, %v1613
      %v1620 = vadd.f32 %v1605, %v1613
      %v1621 = vadd.f32 %v1606, %v1613
      %v1622 = vadd.f32 %v1607, %v1613
      %v1623 = vmax.f32 %v1615, 0.0
      %v1624 = vmax.f32 %v1616, 0.0
      %v1625 = vmax.f32 %v1617, 0.0
      %v1626 = vmax.f32 %v1618, 0.0
      %v1627 = vmax.f32 %v1619, 0.0
      %v1628 = vmax.f32 %v1620, 0.0
      %v1629 = vmax.f32 %v1621, 0.0
      %v1630 = vmax.f32 %v1622, 0.0
      %v1631 = vpack.c.bf16 %v1624, %v1623
      %v1632 = vpack.c.bf16 %v1626, %v1625
      %v1633 = vpack.c.bf16 %v1628, %v1627
      %v1634 = vpack.c.bf16 %v1630, %v1629
      %v1639 = vunpack.c.l.b16 %v1631
      %v1640 = vunpack.c.h.b16 %v1631
      %v1641 = vunpack.c.l.b16 %v1632
      %v1642 = vunpack.c.h.b16 %v1632
      %v1643 = vunpack.c.l.b16 %v1633
      %v1644 = vunpack.c.h.b16 %v1633
      %v1645 = vunpack.c.l.b16 %v1634
      %v1646 = vunpack.c.h.b16 %v1634
      %v1647 = vpack.c.b16 %v1639, %v1639
      %v1648 = vpack.c.b16 %v1640, %v1640
      %v1649 = vpack.c.b16 %v1641, %v1641
      %v1650 = vpack.c.b16 %v1642, %v1642
      %v1651 = vpack.c.b16 %v1643, %v1643
      %v1652 = vpack.c.b16 %v1644, %v1644
      %v1653 = vpack.c.b16 %v1645, %v1645
      %v1654 = vpack.c.b16 %v1646, %v1646
      %1663 = vst [vmem:[%s197] sm:$0xf] %v1647
      %1664 = vst [vmem:[%s197 + $0x4] sm:$0xf] %v1648
      %1665 = vst [vmem:[%s197 + $0x8] sm:$0xf] %v1649
      %1666 = vst [vmem:[%s197 + $0xc] sm:$0xf] %v1650
      %1667 = vst [vmem:[%s197 + $0x10] sm:$0xf] %v1651
      %1668 = vst [vmem:[%s197 + $0x14] sm:$0xf] %v1652
      %1669 = vst [vmem:[%s197 + $0x18] sm:$0xf] %v1653
      %1670 = vst [vmem:[%s197 + $0x1c] sm:$0xf] %v1654
      %p1671 = scmp.lt.s32.totalorder %s15, 1
      %s1672 = scalar_select %p1671, %s15, 1
      %s1673 = smul.addr %s1672, 8
      %s1674 = smul.addr %s1673, 4
      %s1675 = scalar_lea.vmem %s4, %s1674
      // Predicated region
      $region37: #{_lambda_.10} parent=35 // pred_check
        %p1676 = pneg %p122
      $region38: #{_lambda_.10} parent=35 // pred_check_branch
        %1678 = sbr.rel (%p1676) target = $region40
      $region39: #{_lambda_.10} parent=35 // pred_region
        _
      $region40: #{_lambda_.10} parent=35 // pred_fallthru
        _
    $region36: #{_lambda_.10} parent=5 // pred_fallthru
      _
    %p1679 = scmp.le.s32.totalorder 2, %s10
    // Predicated region
    $region41: #{_lambda_.10} parent=5 // pred_check
      %p1680 = pneg %p1679
    $region42: #{_lambda_.10} parent=5 // pred_check_branch
      %1682 = sbr.rel (%p1680) target = $region44
    $region43: #{_lambda_.10} parent=5 // pred_region
      %s1683 = ssub.s32 %s10, 2
      // Predicated region
      $region45: #{_lambda_.10} parent=43 // pred_check
        %p1684 = pneg %p128
      $region46: #{_lambda_.10} parent=43 // pred_check_branch
        %1686 = sbr.rel (%p1684) target = $region48
      $region47: #{_lambda_.10} parent=43 // pred_region
        %p1687 = scmp.lt.s32.totalorder %s16, 1
        %s1688 = scalar_select %p1687, %s16, 1
        %s1689 = smul.addr %s1688, 8
        %s1690 = smul.addr %s1689, 4
        %s1691 = scalar_lea.vmem %s4, %s1690
      $region48: #{_lambda_.10} parent=43 // pred_fallthru
        _
    $region44: #{_lambda_.10} parent=5 // pred_fallthru
      _
  $region6: #{_lambda_.10} parent=0 // loop_footer
    %s14 = sadd.s32 1, %s10
  $region7: #{_lambda_.10} parent=0 // loop_footer_branch
    %9 = sbr.rel target = $region3
  $region8: #{_lambda_.10} parent=0 // loop_exit
    _

// kernel: _lambda_.7
$region0: #{_lambda_.7}
  #allocation0 [shape = 'u32[]', space=smem, size = 0x4, offset = 0x4, fixed_abs, tag = 'smem constant byte address 0x4 - core index']
  #allocation1 [shape = 'u32[144,128]{1,0:T(1,128)}', space=vmem, size = 0x12000, scoped, tag = 'internal scratch']
  %s0 = inlined_call_operand.vmem [shape: bf16[2,18,18,128], index: 0, kind: input, shape index: {}]
  %s1 = inlined_call_operand.vmem [shape: bf16[9,128,128], index: 1, kind: input, shape index: {}]
  %s2 = inlined_call_operand.vmem [shape: f32[1,128], index: 2, kind: input, shape index: {}]
  %s3 = inlined_call_operand.vmem [shape: f32[1,128], index: 3, kind: input, shape index: {}]
  %s4 = inlined_call_operand.vmem [shape: bf16[64,256], index: 4, kind: input, shape index: {}]
  %s5 = inlined_call_operand.vmem [shape: bf16[2,64,128], index: 5, kind: output, shape index: {}]
  %s6 = sld [smem:[#allocation0]]
  $region53: #{_lambda_.7} parent=0
    _
  %s8 = ssub.s32 1, %s6
  %s9 = scalar_select 0, %s8, %s6
  loop: start=0, step=1, limit=4
  $region2: #{_lambda_.7} parent=0 // loop_pre_header
    _
  $region3: #{_lambda_.7} parent=0 // loop_header
    %s11 = sphi 0, %s15
    %p12 = scmp.ge.s32.totalorder %s11, 4
    %s21 = sphi 0, %s23
    %s24 = sphi 0, %s21
    %s25 = sphi 0, %s24
    %s41 = sphi 0, %s25
    %s45 = sphi 0, %s45
    %s47 = sphi 0, %s45
    %s48 = sphi 0, %s47
    %s62 = sphi 0, %s48
    %s66 = sphi 0, %s66
    %s68 = sphi 0, %s66
    %s69 = sphi 0, %s68
    %s83 = sphi 0, %s69
    %s87 = sphi 0, %s87
    %s89 = sphi 0, %s87
    %s90 = sphi 0, %s89
    %s104 = sphi 0, %s90
    %s108 = sphi 0, %s108
    %s110 = sphi 0, %s108
    %s111 = sphi 0, %s110
    %s125 = sphi 0, %s111
    %s131 = sphi 0, %s133
    %s134 = sphi 0, %s131
    %s135 = sphi 0, %s134
    %s151 = sphi 0, %s135
  $region4: #{_lambda_.7} parent=0 // loop_header_branch
    %14 = sbr.rel (%p12) target = $region8
  $region5: #{_lambda_.7} parent=0 // loop_body
    %s16 = ssub.s32 %s11, 1
    %s17 = ssub.s32 %s11, 2
    %s18 = sadd.s32 %s11, 1
    %s19 = ssub.s32 %s11, %s18
    %p20 = scmp.eq.s32.totalorder %s19, 0
    %s22 = sadd.s32 %s21, 1
    %s23 = scalar_select %p20, %s21, %s22
    %p26 = pneg %p20
    %p27 = scmp.eq.s32.totalorder %s11, 1
    %p28 = por %p26, %p27
    %p29 = scmp.ne.s32.totalorder %s21, %s24
    %p30 = scmp.eq.s32.totalorder %s11, 0
    %p31 = por %p29, %p30
    %p32 = scmp.ne.s32.totalorder %s21, %s24
    %p33 = scmp.eq.s32.totalorder %s16, 1
    %p34 = por %p32, %p33
    %p35 = scmp.ne.s32.totalorder %s24, %s25
    %p36 = scmp.eq.s32.totalorder %s16, 0
    %p37 = por %p35, %p36
    %p38 = scmp.ne.s32.totalorder %s24, %s25
    %p39 = scmp.eq.s32.totalorder %s17, 1
    %p40 = por %p38, %p39
    %p42 = scmp.ne.s32.totalorder %s25, %s41
    %p43 = scmp.eq.s32.totalorder %s17, 0
    %p44 = por %p42, %p43
    %s46 = sadd.s32 %s45, 1
    %p49 = scmp.eq.s32.totalorder %s11, 1
    %p50 = scmp.ne.s32.totalorder %s45, %s47
    %p51 = scmp.eq.s32.totalorder %s11, 0
    %p52 = por %p50, %p51
    %p53 = scmp.ne.s32.totalorder %s45, %s47
    %p54 = scmp.eq.s32.totalorder %s16, 1
    %p55 = por %p53, %p54
    %p56 = scmp.ne.s32.totalorder %s47, %s48
    %p57 = scmp.eq.s32.totalorder %s16, 0
    %p58 = por %p56, %p57
    %p59 = scmp.ne.s32.totalorder %s47, %s48
    %p60 = scmp.eq.s32.totalorder %s17, 1
    %p61 = por %p59, %p60
    %p63 = scmp.ne.s32.totalorder %s48, %s62
    %p64 = scmp.eq.s32.totalorder %s17, 0
    %p65 = por %p63, %p64
    %s67 = sadd.s32 %s66, 1
    %p70 = scmp.eq.s32.totalorder %s11, 1
    %p71 = scmp.ne.s32.totalorder %s66, %s68
    %p72 = scmp.eq.s32.totalorder %s11, 0
    %p73 = por %p71, %p72
    %p74 = scmp.ne.s32.totalorder %s66, %s68
    %p75 = scmp.eq.s32.totalorder %s16, 1
    %p76 = por %p74, %p75
    %p77 = scmp.ne.s32.totalorder %s68, %s69
    %p78 = scmp.eq.s32.totalorder %s16, 0
    %p79 = por %p77, %p78
    %p80 = scmp.ne.s32.totalorder %s68, %s69
    %p81 = scmp.eq.s32.totalorder %s17, 1
    %p82 = por %p80, %p81
    %p84 = scmp.ne.s32.totalorder %s69, %s83
    %p85 = scmp.eq.s32.totalorder %s17, 0
    %p86 = por %p84, %p85
    %s88 = sadd.s32 %s87, 1
    %p91 = scmp.eq.s32.totalorder %s11, 1
    %p92 = scmp.ne.s32.totalorder %s87, %s89
    %p93 = scmp.eq.s32.totalorder %s11, 0
    %p94 = por %p92, %p93
    %p95 = scmp.ne.s32.totalorder %s87, %s89
    %p96 = scmp.eq.s32.totalorder %s16, 1
    %p97 = por %p95, %p96
    %p98 = scmp.ne.s32.totalorder %s89, %s90
    %p99 = scmp.eq.s32.totalorder %s16, 0
    %p100 = por %p98, %p99
    %p101 = scmp.ne.s32.totalorder %s89, %s90
    %p102 = scmp.eq.s32.totalorder %s17, 1
    %p103 = por %p101, %p102
    %p105 = scmp.ne.s32.totalorder %s90, %s104
    %p106 = scmp.eq.s32.totalorder %s17, 0
    %p107 = por %p105, %p106
    %s109 = sadd.s32 %s108, 1
    %p112 = scmp.eq.s32.totalorder %s11, 1
    %p113 = scmp.ne.s32.totalorder %s108, %s110
    %p114 = scmp.eq.s32.totalorder %s11, 0
    %p115 = por %p113, %p114
    %p116 = scmp.ne.s32.totalorder %s108, %s110
    %p117 = scmp.eq.s32.totalorder %s16, 1
    %p118 = por %p116, %p117
    %p119 = scmp.ne.s32.totalorder %s110, %s111
    %p120 = scmp.eq.s32.totalorder %s16, 0
    %p121 = por %p119, %p120
    %p122 = scmp.ne.s32.totalorder %s110, %s111
    %p123 = scmp.eq.s32.totalorder %s17, 1
    %p124 = por %p122, %p123
    %p126 = scmp.ne.s32.totalorder %s111, %s125
    %p127 = scmp.eq.s32.totalorder %s17, 0
    %p128 = por %p126, %p127
    %s129 = ssub.s32 %s11, %s18
    %p130 = scmp.eq.s32.totalorder %s129, 0
    %s132 = sadd.s32 %s131, 1
    %s133 = scalar_select %p130, %s131, %s132
    %p136 = pneg %p130
    %p137 = scmp.eq.s32.totalorder %s11, 1
    %p138 = por %p136, %p137
    %p139 = scmp.ne.s32.totalorder %s131, %s134
    %p140 = scmp.eq.s32.totalorder %s11, 0
    %p141 = por %p139, %p140
    %p142 = scmp.ne.s32.totalorder %s131, %s134
    %p143 = scmp.eq.s32.totalorder %s16, 1
    %p144 = por %p142, %p143
    %p145 = scmp.ne.s32.totalorder %s134, %s135
    %p146 = scmp.eq.s32.totalorder %s16, 0
    %p147 = por %p145, %p146
    %p148 = scmp.ne.s32.totalorder %s134, %s135
    %p149 = scmp.eq.s32.totalorder %s17, 1
    %p150 = por %p148, %p149
    %p152 = scmp.ne.s32.totalorder %s135, %s151
    %p153 = scmp.eq.s32.totalorder %s17, 0
    %p154 = por %p152, %p153
    %p155 = scmp.le.s32.totalorder 1, %s11
    %p156 = scmp.lt.s32.totalorder %s11, 3
    %p157 = pnand %p155, %p156
    %p158 = pneg %p157
    // Predicated region
    $region9: #{_lambda_.7} parent=5 // pred_check
      _
    $region10: #{_lambda_.7} parent=5 // pred_check_branch
      %160 = sbr.rel (%p157) target = $region12
    $region11: #{_lambda_.7} parent=5 // pred_region
      %s161 = ssub.s32 %s11, 1
      // Predicated region
      $region13: #{_lambda_.7} parent=11 // pred_check
        %p162 = pneg %p58
      $region14: #{_lambda_.7} parent=11 // pred_check_branch
        %164 = sbr.rel (%p162) target = $region16
      $region15: #{_lambda_.7} parent=11 // pred_region
        _
      $region16: #{_lambda_.7} parent=11 // pred_fallthru
        _
      // Predicated region
      $region17: #{_lambda_.7} parent=11 // pred_check
        %p165 = pneg %p79
      $region18: #{_lambda_.7} parent=11 // pred_check_branch
        %167 = sbr.rel (%p165) target = $region20
      $region19: #{_lambda_.7} parent=11 // pred_region
        _
      $region20: #{_lambda_.7} parent=11 // pred_fallthru
        _
      // Predicated region
      $region21: #{_lambda_.7} parent=11 // pred_check
        %p168 = pneg %p100
      $region22: #{_lambda_.7} parent=11 // pred_check_branch
        %170 = sbr.rel (%p168) target = $region24
      $region23: #{_lambda_.7} parent=11 // pred_region
        _
      $region24: #{_lambda_.7} parent=11 // pred_fallthru
        _
      // Predicated region
      $region25: #{_lambda_.7} parent=11 // pred_check
        %p171 = pneg %p121
      $region26: #{_lambda_.7} parent=11 // pred_check_branch
        %173 = sbr.rel (%p171) target = $region28
      $region27: #{_lambda_.7} parent=11 // pred_region
        _
      $region28: #{_lambda_.7} parent=11 // pred_fallthru
        _
    $region12: #{_lambda_.7} parent=5 // pred_fallthru
      _
    %p174 = scmp.lt.s32.totalorder %s11, 2
    // Predicated region
    $region29: #{_lambda_.7} parent=5 // pred_check
      %p175 = pneg %p174
    $region30: #{_lambda_.7} parent=5 // pred_check_branch
      %177 = sbr.rel (%p175) target = $region32
    $region31: #{_lambda_.7} parent=5 // pred_region
      // Predicated region
      $region33: #{_lambda_.7} parent=31 // pred_check
        %p178 = pneg %p31
      $region34: #{_lambda_.7} parent=31 // pred_check_branch
        %180 = sbr.rel (%p178) target = $region36
      $region35: #{_lambda_.7} parent=31 // pred_region
        %p181 = scmp.lt.s32.totalorder %s11, 1
        %s182 = scalar_select %p181, %s11, 1
        %s183 = smul.addr %s182, 54
        %s184 = smul.addr %s183, 4
        %s185 = scalar_lea.vmem %s0, %s184
      $region36: #{_lambda_.7} parent=31 // pred_fallthru
        _
    $region32: #{_lambda_.7} parent=5 // pred_fallthru
      _
    %p186 = scmp.le.s32.totalorder 1, %s11
    %p187 = scmp.lt.s32.totalorder %s11, 3
    %p188 = pnand %p186, %p187
    %p189 = pneg %p188
    // Predicated region
    $region37: #{_lambda_.7} parent=5 // pred_check
      _
    $region38: #{_lambda_.7} parent=5 // pred_check_branch
      %191 = sbr.rel (%p188) target = $region40
    $region39: #{_lambda_.7} parent=5 // pred_region
      %s192 = ssub.s32 %s11, 1
      %p193 = scmp.lt.s32.totalorder %s16, 1
      %s194 = scalar_select %p193, %s16, 1
      %s195 = smul.addr %s194, 54
      %s196 = smul.addr %s195, 4
      %s197 = scalar_lea.vmem %s0, %s196
      %p198 = pneg %p37
      %p199 = pneg %p34
      %p200 = pneg %p58
      %p201 = pneg %p55
      %p202 = pneg %p79
      %p203 = pneg %p76
      %p204 = pneg %p100
      %p205 = pneg %p97
      %p206 = pneg %p121
      %p207 = pneg %p118
      %p208 = pneg %p147
      %p209 = pneg %p144
      %p210 = scmp.lt.s32.totalorder %s16, 1
      %s211 = scalar_select %p210, %s16, 1
      %s212 = smul.addr %s211, 8
      %s213 = smul.addr %s212, 4
      %s214 = scalar_lea.vmem %s5, %s213
      %p215 = scmp.lt.s32.totalorder %s16, 1
      %s216 = scalar_select %p215, %s16, 1
      %s217 = smul.addr %s216, 54
      %s218 = smul.addr %s217, 4
      %s219 = scalar_lea.vmem %s0, %s218
      %p220 = scmp.lt.s32.totalorder %s16, 1
      %s221 = scalar_select %p220, %s16, 1
      %s222 = smul.addr %s221, 8
      %s223 = smul.addr %s222, 4
      %s224 = scalar_lea.vmem %s5, %s223
      %v226 = vld [vmem:[%s219] sm:$0xf]
      %v227 = vld [vmem:[%s219 + $0x4] sm:$0xf]
      %v228 = vld [vmem:[%s219 + $0x8] sm:$0x1]
      %v229 = vld [vmem:[%s219 + $0xc] sm:$0xf]
      %v230 = vld [vmem:[%s219 + $0x10] sm:$0xf]
      %v231 = vld [vmem:[%s219 + $0x14] sm:$0x1]
      %v232 = vld [vmem:[%s219 + $0x18] sm:$0xf]
      %v233 = vld [vmem:[%s219 + $0x1c] sm:$0xf]
      %v234 = vld [vmem:[%s219 + $0x20] sm:$0x1]
      %v235 = vld [vmem:[%s219 + $0x24] sm:$0xf]
      %v236 = vld [vmem:[%s219 + $0x28] sm:$0xf]
      %v237 = vld [vmem:[%s219 + $0x2c] sm:$0x1]
      %v238 = vld [vmem:[%s219 + $0x30] sm:$0xf]
      %v239 = vld [vmem:[%s219 + $0x34] sm:$0xf]
      %v240 = vld [vmem:[%s219 + $0x38] sm:$0x1]
      %v241 = vld [vmem:[%s219 + $0x3c] sm:$0xf]
      %v242 = vld [vmem:[%s219 + $0x40] sm:$0xf]
      %v243 = vld [vmem:[%s219 + $0x44] sm:$0x1]
      %v244 = vld [vmem:[%s219 + $0x48] sm:$0xf]
      %v245 = vld [vmem:[%s219 + $0x4c] sm:$0xf]
      %v246 = vld [vmem:[%s219 + $0x50] sm:$0x1]
      %v247 = vld [vmem:[%s219 + $0x54] sm:$0xf]
      %v248 = vld [vmem:[%s219 + $0x58] sm:$0xf]
      %v249 = vld [vmem:[%s219 + $0x5c] sm:$0x1]
      %v250 = vld [vmem:[%s219 + $0x60] sm:$0xf]
      %v251 = vld [vmem:[%s219 + $0x64] sm:$0xf]
      %v252 = vld [vmem:[%s219 + $0x68] sm:$0x1]
      %v253 = vld [vmem:[%s219 + $0x6c] sm:$0xf]
      %v254 = vld [vmem:[%s219 + $0x70] sm:$0xf]
      %v255 = vld [vmem:[%s219 + $0x74] sm:$0x1]
      %v256 = vld [vmem:[%s219 + $0x78] sm:$0xf]
      %v257 = vld [vmem:[%s219 + $0x7c] sm:$0xf]
      %v258 = vld [vmem:[%s219 + $0x80] sm:$0x1]
      %v259 = vld [vmem:[%s219 + $0x84] sm:$0xf]
      %v260 = vld [vmem:[%s219 + $0x88] sm:$0xf]
      %v261 = vld [vmem:[%s219 + $0x8c] sm:$0x1]
      %v262 = vld [vmem:[%s219 + $0x90] sm:$0xf]
      %v263 = vld [vmem:[%s219 + $0x94] sm:$0xf]
      %v264 = vld [vmem:[%s219 + $0x98] sm:$0x1]
      %v265 = vld [vmem:[%s219 + $0x9c] sm:$0xf]
      %v266 = vld [vmem:[%s219 + $0xa0] sm:$0xf]
      %v267 = vld [vmem:[%s219 + $0xa4] sm:$0x1]
      %v268 = vld [vmem:[%s219 + $0xa8] sm:$0xf]
      %v269 = vld [vmem:[%s219 + $0xac] sm:$0xf]
      %v270 = vld [vmem:[%s219 + $0xb0] sm:$0x1]
      %v271 = vld [vmem:[%s219 + $0xb4] sm:$0xf]
      %v272 = vld [vmem:[%s219 + $0xb8] sm:$0xf]
      %v273 = vld [vmem:[%s219 + $0xbc] sm:$0x1]
      %v274 = vld [vmem:[%s219 + $0xc0] sm:$0xf]
      %v275 = vld [vmem:[%s219 + $0xc4] sm:$0xf]
      %v276 = vld [vmem:[%s219 + $0xc8] sm:$0x1]
      %v277 = vld [vmem:[%s219 + $0xcc] sm:$0xf]
      %v278 = vld [vmem:[%s219 + $0xd0] sm:$0xf]
      %v279 = vld [vmem:[%s219 + $0xd4] sm:$0x1]
      %v280 = vunpack.c.l.bf16 %v226
      %v281 = vunpack.c.l.bf16 %v227
      %v282 = vunpack.c.l.bf16 %v228
      %v283 = vunpack.c.l.bf16 %v229
      %v284 = vunpack.c.l.bf16 %v230
      %v285 = vunpack.c.l.bf16 %v231
      %v286 = vunpack.c.l.bf16 %v232
      %v287 = vunpack.c.l.bf16 %v233
      %v288 = vunpack.c.l.bf16 %v234
      %v289 = vunpack.c.l.bf16 %v235
      %v290 = vunpack.c.l.bf16 %v236
      %v291 = vunpack.c.l.bf16 %v237
      %v292 = vunpack.c.l.bf16 %v238
      %v293 = vunpack.c.l.bf16 %v239
      %v294 = vunpack.c.l.bf16 %v240
      %v295 = vunpack.c.l.bf16 %v241
      %v296 = vunpack.c.l.bf16 %v242
      %v297 = vunpack.c.l.bf16 %v243
      %v298 = vunpack.c.l.bf16 %v244
      %v299 = vunpack.c.l.bf16 %v245
      %v300 = vunpack.c.l.bf16 %v246
      %v301 = vunpack.c.l.bf16 %v247
      %v302 = vunpack.c.l.bf16 %v248
      %v303 = vunpack.c.l.bf16 %v249
      %v304 = vunpack.c.l.bf16 %v250
      %v305 = vunpack.c.l.bf16 %v251
      %v306 = vunpack.c.l.bf16 %v252
      %v307 = vunpack.c.l.bf16 %v253
      %v308 = vunpack.c.l.bf16 %v254
      %v309 = vunpack.c.l.bf16 %v255
      %v310 = vunpack.c.l.bf16 %v256
      %v311 = vunpack.c.l.bf16 %v257
      %v312 = vunpack.c.l.bf16 %v258
      %v313 = vunpack.c.l.bf16 %v259
      %v314 = vunpack.c.l.bf16 %v260
      %v315 = vunpack.c.l.bf16 %v261
      %v316 = vunpack.c.l.bf16 %v262
      %v317 = vunpack.c.l.bf16 %v263
      %v318 = vunpack.c.l.bf16 %v264
      %v319 = vunpack.c.l.bf16 %v265
      %v320 = vunpack.c.l.bf16 %v266
      %v321 = vunpack.c.l.bf16 %v267
      %v322 = vunpack.c.l.bf16 %v268
      %v323 = vunpack.c.l.bf16 %v269
      %v324 = vunpack.c.l.bf16 %v270
      %v325 = vunpack.c.l.bf16 %v271
      %v326 = vunpack.c.l.bf16 %v272
      %v327 = vunpack.c.l.bf16 %v273
      %v328 = vunpack.c.l.bf16 %v274
      %v329 = vunpack.c.l.bf16 %v275
      %v330 = vunpack.c.l.bf16 %v276
      %v331 = vunpack.c.l.bf16 %v277
      %v332 = vunpack.c.l.bf16 %v278
      %v333 = vunpack.c.l.bf16 %v279
      %v334 = vpack.c.bf16 %v281, %v280
      %v335 = vpack.c.bf16 %v284, %v283
      %v336 = vpack.c.bf16 %v287, %v286
      %v337 = vpack.c.bf16 %v290, %v289
      %v338 = vpack.c.bf16 %v293, %v292
      %v339 = vpack.c.bf16 %v296, %v295
      %v340 = vpack.c.bf16 %v299, %v298
      %v341 = vpack.c.bf16 %v302, %v301
      %v342 = vpack.c.bf16 %v305, %v304
      %v343 = vpack.c.bf16 %v308, %v307
      %v344 = vpack.c.bf16 %v311, %v310
      %v345 = vpack.c.bf16 %v314, %v313
      %v346 = vpack.c.bf16 %v317, %v316
      %v347 = vpack.c.bf16 %v320, %v319
      %v348 = vpack.c.bf16 %v323, %v322
      %v349 = vpack.c.bf16 %v326, %v325
      %v350 = vld [vmem:[%s1] sm:$0xf]
      %v351 = vld [vmem:[%s1 + $0x4] sm:$0xf]
      %v352 = vld [vmem:[%s1 + $0x8] sm:$0xf]
      %v353 = vld [vmem:[%s1 + $0xc] sm:$0xf]
      %v354 = vld [vmem:[%s1 + $0x10] sm:$0xf]
      %v355 = vld [vmem:[%s1 + $0x14] sm:$0xf]
      %v356 = vld [vmem:[%s1 + $0x18] sm:$0xf]
      %v357 = vld [vmem:[%s1 + $0x1c] sm:$0xf]
      %v358 = vld [vmem:[%s1 + $0x20] sm:$0xf]
      %v359 = vld [vmem:[%s1 + $0x24] sm:$0xf]
      %v360 = vld [vmem:[%s1 + $0x28] sm:$0xf]
      %v361 = vld [vmem:[%s1 + $0x2c] sm:$0xf]
      %v362 = vld [vmem:[%s1 + $0x30] sm:$0xf]
      %v363 = vld [vmem:[%s1 + $0x34] sm:$0xf]
      %v364 = vld [vmem:[%s1 + $0x38] sm:$0xf]
      %v365 = vld [vmem:[%s1 + $0x3c] sm:$0xf]
      %vm414 = vcmask 1046528
      %v415 = vrot.slane %v280, 1
      %v416 = vrot.slane %v281, 1
      %v417 = vsel %vm414, %v415, %v416
      %v418 = vrot.slane %v282, 1
      %v419 = vsel %vm414, %v416, %v418
      %v420 = vrot.slane %v283, 1
      %v421 = vrot.slane %v284, 1
      %v422 = vsel %vm414, %v420, %v421
      %v423 = vrot.slane %v285, 1
      %v424 = vsel %vm414, %v421, %v423
      %v425 = vrot.slane %v286, 1
      %v426 = vrot.slane %v287, 1
      %v427 = vsel %vm414, %v425, %v426
      %v428 = vrot.slane %v288, 1
      %v429 = vsel %vm414, %v426, %v428
      %v430 = vrot.slane %v289, 1
      %v431 = vrot.slane %v290, 1
      %v432 = vsel %vm414, %v430, %v431
      %v433 = vrot.slane %v291, 1
      %v434 = vsel %vm414, %v431, %v433
      %v435 = vrot.slane %v292, 1
      %v436 = vrot.slane %v293, 1
      %v437 = vsel %vm414, %v435, %v436
      %v438 = vrot.slane %v294, 1
      %v439 = vsel %vm414, %v436, %v438
      %v440 = vrot.slane %v295, 1
      %v441 = vrot.slane %v296, 1
      %v442 = vsel %vm414, %v440, %v441
      %v443 = vrot.slane %v297, 1
      %v444 = vsel %vm414, %v441, %v443
      %v445 = vrot.slane %v298, 1
      %v446 = vrot.slane %v299, 1
      %v447 = vsel %vm414, %v445, %v446
      %v448 = vrot.slane %v300, 1
      %v449 = vsel %vm414, %v446, %v448
      %v450 = vrot.slane %v301, 1
      %v451 = vrot.slane %v302, 1
      %v452 = vsel %vm414, %v450, %v451
      %v453 = vrot.slane %v303, 1
      %v454 = vsel %vm414, %v451, %v453
      %v455 = vrot.slane %v304, 1
      %v456 = vrot.slane %v305, 1
      %v457 = vsel %vm414, %v455, %v456
      %v458 = vrot.slane %v306, 1
      %v459 = vsel %vm414, %v456, %v458
      %v460 = vrot.slane %v307, 1
      %v461 = vrot.slane %v308, 1
      %v462 = vsel %vm414, %v460, %v461
      %v463 = vrot.slane %v309, 1
      %v464 = vsel %vm414, %v461, %v463
      %v465 = vrot.slane %v310, 1
      %v466 = vrot.slane %v311, 1
      %v467 = vsel %vm414, %v465, %v466
      %v468 = vrot.slane %v312, 1
      %v469 = vsel %vm414, %v466, %v468
      %v470 = vrot.slane %v313, 1
      %v471 = vrot.slane %v314, 1
      %v472 = vsel %vm414, %v470, %v471
      %v473 = vrot.slane %v315, 1
      %v474 = vsel %vm414, %v471, %v473
      %v475 = vrot.slane %v316, 1
      %v476 = vrot.slane %v317, 1
      %v477 = vsel %vm414, %v475, %v476
      %v478 = vrot.slane %v318, 1
      %v479 = vsel %vm414, %v476, %v478
      %v480 = vrot.slane %v319, 1
      %v481 = vrot.slane %v320, 1
      %v482 = vsel %vm414, %v480, %v481
      %v483 = vrot.slane %v321, 1
      %v484 = vsel %vm414, %v481, %v483
      %v485 = vrot.slane %v322, 1
      %v486 = vrot.slane %v323, 1
      %v487 = vsel %vm414, %v485, %v486
      %v488 = vrot.slane %v324, 1
      %v489 = vsel %vm414, %v486, %v488
      %v490 = vrot.slane %v325, 1
      %v491 = vrot.slane %v326, 1
      %v492 = vsel %vm414, %v490, %v491
      %v493 = vrot.slane %v327, 1
      %v494 = vsel %vm414, %v491, %v493
      %v527 = vpack.c.bf16 %v419, %v417
      %v528 = vpack.c.bf16 %v424, %v422
      %v529 = vpack.c.bf16 %v429, %v427
      %v530 = vpack.c.bf16 %v434, %v432
      %v531 = vpack.c.bf16 %v439, %v437
      %v532 = vpack.c.bf16 %v444, %v442
      %v533 = vpack.c.bf16 %v449, %v447
      %v534 = vpack.c.bf16 %v454, %v452
      %v535 = vpack.c.bf16 %v459, %v457
      %v536 = vpack.c.bf16 %v464, %v462
      %v537 = vpack.c.bf16 %v469, %v467
      %v538 = vpack.c.bf16 %v474, %v472
      %v539 = vpack.c.bf16 %v479, %v477
      %v540 = vpack.c.bf16 %v484, %v482
      %v541 = vpack.c.bf16 %v489, %v487
      %v542 = vpack.c.bf16 %v494, %v492
      %s543 = scalar_lea.vmem %s1, 64
      %v544 = vld [vmem:[%s543] sm:$0xf]
      %v545 = vld [vmem:[%s543 + $0x4] sm:$0xf]
      %v546 = vld [vmem:[%s543 + $0x8] sm:$0xf]
      %v547 = vld [vmem:[%s543 + $0xc] sm:$0xf]
      %v548 = vld [vmem:[%s543 + $0x10] sm:$0xf]
      %v549 = vld [vmem:[%s543 + $0x14] sm:$0xf]
      %v550 = vld [vmem:[%s543 + $0x18] sm:$0xf]
      %v551 = vld [vmem:[%s543 + $0x1c] sm:$0xf]
      %v552 = vld [vmem:[%s543 + $0x20] sm:$0xf]
      %v553 = vld [vmem:[%s543 + $0x24] sm:$0xf]
      %v554 = vld [vmem:[%s543 + $0x28] sm:$0xf]
      %v555 = vld [vmem:[%s543 + $0x2c] sm:$0xf]
      %v556 = vld [vmem:[%s543 + $0x30] sm:$0xf]
      %v557 = vld [vmem:[%s543 + $0x34] sm:$0xf]
      %v558 = vld [vmem:[%s543 + $0x38] sm:$0xf]
      %v559 = vld [vmem:[%s543 + $0x3c] sm:$0xf]
      %v576 = vunpack.c.l.b16 %v544
      %v577 = vunpack.c.l.b16 %v545
      %v578 = vunpack.c.l.b16 %v546
      %v579 = vunpack.c.l.b16 %v547
      %v580 = vunpack.c.l.b16 %v548
      %v581 = vunpack.c.l.b16 %v549
      %v582 = vunpack.c.l.b16 %v550
      %v583 = vunpack.c.l.b16 %v551
      %v584 = vunpack.c.l.b16 %v552
      %v585 = vunpack.c.l.b16 %v553
      %v586 = vunpack.c.l.b16 %v554
      %v587 = vunpack.c.l.b16 %v555
      %v588 = vunpack.c.l.b16 %v556
      %v589 = vunpack.c.l.b16 %v557
      %v590 = vunpack.c.l.b16 %v558
      %v591 = vunpack.c.l.b16 %v559
      %v592 = vpack.c.b16 %v577, %v576
      %v593 = vpack.c.b16 %v579, %v578
      %v594 = vpack.c.b16 %v581, %v580
      %v595 = vpack.c.b16 %v583, %v582
      %v596 = vpack.c.b16 %v585, %v584
      %v597 = vpack.c.b16 %v587, %v586
      %v598 = vpack.c.b16 %v589, %v588
      %v599 = vpack.c.b16 %v591, %v590
      %608 = vmatprep.subr.bf16.mxu0 0
      %609 = vmatpush1.bf16.msra.mxu0 %v592
      %610 = vmatprep.subr.bf16.mxu0 0
      %611 = vmatpush1.bf16.msra.mxu0 %v593
      %612 = vmatprep.subr.bf16.mxu0 0
      %613 = vmatpush1.bf16.msra.mxu0 %v594
      %614 = vmatprep.subr.bf16.mxu0 0
      %615 = vmatpush1.bf16.msra.mxu0 %v595
      %616 = vmatprep.subr.bf16.mxu0 0
      %617 = vmatpush1.bf16.msra.mxu0 %v596
      %618 = vmatprep.subr.bf16.mxu0 0
      %619 = vmatpush1.bf16.msra.mxu0 %v597
      %620 = vmatprep.subr.bf16.mxu0 0
      %621 = vmatpush1.bf16.msra.mxu0 %v598
      %622 = vmatprep.subr.bf16.mxu0 0
      %623 = vmatpush1.bf16.msra.mxu0 %v599
      %624 = vmatprep.subr.bf16.mxu0 0
      %625 = vmatpush1.bf16.msra.mxu0 0
      %626 = vmatprep.subr.bf16.mxu0 0
      %627 = vmatpush1.bf16.msra.mxu0 0
      %628 = vmatprep.subr.bf16.mxu0 0
      %629 = vmatpush1.bf16.msra.mxu0 0
      %630 = vmatprep.subr.bf16.mxu0 0
      %631 = vmatpush1.bf16.msra.mxu0 0
      %632 = vmatprep.subr.bf16.mxu0 0
      %633 = vmatpush1.bf16.msra.mxu0 0
      %634 = vmatprep.subr.bf16.mxu0 0
      %635 = vmatpush1.bf16.msra.mxu0 0
      %636 = vmatprep.subr.bf16.mxu0 0
      %637 = vmatpush1.bf16.msra.mxu0 0
      %638 = vmatprep.subr.bf16.mxu0 0
      %639 = vmatpush1.bf16.msra.mxu0 0
      %640 = vmatprep.mubr.bf16.mxu0 0
      %641 = vmatmul.mubr.bf16.gmra.mrb[0].mxu0 %v527
      %v642 = vpop.f32.mrb[0].mxu0
      %v643 = vadd.f32 0.0, %v642
      %v644 = vpop.f32.mrb[0].mxu0
      %v645 = vpop.f32.mrb[0].mxu0
      %v646 = vadd.f32 0.0, %v645
      %v647 = vpop.f32.mrb[0].mxu0
      %648 = vmatprep.mubr.bf16.mxu0 0
      %649 = vmatmul.mubr.bf16.gmra.mrb[0].mxu0 %v528
      %v650 = vpop.f32.mrb[0].mxu0
      %v651 = vadd.f32 0.0, %v650
      %v652 = vpop.f32.mrb[0].mxu0
      %v653 = vpop.f32.mrb[0].mxu0
      %v654 = vadd.f32 0.0, %v653
      %v655 = vpop.f32.mrb[0].mxu0
      %656 = vmatprep.mubr.bf16.mxu0 0
      %657 = vmatmul.mubr.bf16.gmra.mrb[0].mxu0 %v529
      %v658 = vpop.f32.mrb[0].mxu0
      %v659 = vadd.f32 0.0, %v658
      %v660 = vpop.f32.mrb[0].mxu0
      %v661 = vpop.f32.mrb[0].mxu0
      %v662 = vadd.f32 0.0, %v661
      %v663 = vpop.f32.mrb[0].mxu0
      %664 = vmatprep.mubr.bf16.mxu0 0
      %665 = vmatmul.mubr.bf16.gmra.mrb[0].mxu0 %v530
      %v666 = vpop.f32.mrb[0].mxu0
      %v667 = vadd.f32 0.0, %v666
      %v668 = vpop.f32.mrb[0].mxu0
      %v669 = vpop.f32.mrb[0].mxu0
      %v670 = vadd.f32 0.0, %v669
      %v671 = vpop.f32.mrb[0].mxu0
      %672 = vmatprep.mubr.bf16.mxu0 0
      %673 = vmatmul.mubr.bf16.gmra.mrb[0].mxu0 %v531
      %v674 = vpop.f32.mrb[0].mxu0
      %v675 = vadd.f32 0.0, %v674
      %v676 = vpop.f32.mrb[0].mxu0
      %v677 = vpop.f32.mrb[0].mxu0
      %v678 = vadd.f32 0.0, %v677
      %v679 = vpop.f32.mrb[0].mxu0
      %680 = vmatprep.mubr.bf16.mxu0 0
      %681 = vmatmul.mubr.bf16.gmra.mrb[0].mxu0 %v532
      %v682 = vpop.f32.mrb[0].mxu0
      %v683 = vadd.f32 0.0, %v682
      %v684 = vpop.f32.mrb[0].mxu0
      %v685 = vpop.f32.mrb[0].mxu0
      %v686 = vadd.f32 0.0, %v685
      %v687 = vpop.f32.mrb[0].mxu0
      %688 = vmatprep.mubr.bf16.mxu0 0
      %689 = vmatmul.mubr.bf16.gmra.mrb[0].mxu0 %v533
      %v690 = vpop.f32.mrb[0].mxu0
      %v691 = vadd.f32 0.0, %v690
      %v692 = vpop.f32.mrb[0].mxu0
      %v693 = vpop.f32.mrb[0].mxu0
      %v694 = vadd.f32 0.0, %v693
      %v695 = vpop.f32.mrb[0].mxu0
      %696 = vmatprep.mubr.bf16.mxu0 0
      %697 = vmatmul.mubr.bf16.gmra.mrb[0].mxu0 %v534
      %v698 = vpop.f32.mrb[0].mxu0
      %v699 = vadd.f32 0.0, %v698
      %v700 = vpop.f32.mrb[0].mxu0
      %v701 = vpop.f32.mrb[0].mxu0
      %v702 = vadd.f32 0.0, %v701
      %v703 = vpop.f32.mrb[0].mxu0
      %704 = vmatprep.mubr.bf16.mxu0 0
      %705 = vmatmul.mubr.bf16.gmra.mrb[0].mxu0 %v535
      %v706 = vpop.f32.mrb[0].mxu0
      %v707 = vadd.f32 0.0, %v706
      %v708 = vpop.f32.mrb[0].mxu0
      %v709 = vpop.f32.mrb[0].mxu0
      %v710 = vadd.f32 0.0, %v709
      %v711 = vpop.f32.mrb[0].mxu0
      %712 = vmatprep.mubr.bf16.mxu0 0
      %713 = vmatmul.mubr.bf16.gmra.mrb[0].mxu0 %v536
      %v714 = vpop.f32.mrb[0].mxu0
      %v715 = vadd.f32 0.0, %v714
      %v716 = vpop.f32.mrb[0].mxu0
      %v717 = vpop.f32.mrb[0].mxu0
      %v718 = vadd.f32 0.0, %v717
      %v719 = vpop.f32.mrb[0].mxu0
      %720 = vmatprep.mubr.bf16.mxu0 0
      %721 = vmatmul.mubr.bf16.gmra.mrb[0].mxu0 %v537
      %v722 = vpop.f32.mrb[0].mxu0
      %v723 = vadd.f32 0.0, %v722
      %v724 = vpop.f32.mrb[0].mxu0
      %v725 = vpop.f32.mrb[0].mxu0
      %v726 = vadd.f32 0.0, %v725
      %v727 = vpop.f32.mrb[0].mxu0
      %728 = vmatprep.mubr.bf16.mxu0 0
      %729 = vmatmul.mubr.bf16.gmra.mrb[0].mxu0 %v538
      %v730 = vpop.f32.mrb[0].mxu0
      %v731 = vadd.f32 0.0, %v730
      %v732 = vpop.f32.mrb[0].mxu0
      %v733 = vpop.f32.mrb[0].mxu0
      %v734 = vadd.f32 0.0, %v733
      %v735 = vpop.f32.mrb[0].mxu0
      %736 = vmatprep.mubr.bf16.mxu0 0
      %737 = vmatmul.mubr.bf16.gmra.mrb[0].mxu0 %v539
      %v738 = vpop.f32.mrb[0].mxu0
      %v739 = vadd.f32 0.0, %v738
      %v740 = vpop.f32.mrb[0].mxu0
      %v741 = vpop.f32.mrb[0].mxu0
      %v742 = vadd.f32 0.0, %v741
      %v743 = vpop.f32.mrb[0].mxu0
      %744 = vmatprep.mubr.bf16.mxu0 0
      %745 = vmatmul.mubr.bf16.gmra.mrb[0].mxu0 %v540
      %v746 = vpop.f32.mrb[0].mxu0
      %v747 = vadd.f32 0.0, %v746
      %v748 = vpop.f32.mrb[0].mxu0
      %v749 = vpop.f32.mrb[0].mxu0
      %v750 = vadd.f32 0.0, %v749
      %v751 = vpop.f32.mrb[0].mxu0
      %752 = vmatprep.mubr.bf16.mxu0 0
      %753 = vmatmul.mubr.bf16.gmra.mrb[0].mxu0 %v541
      %v754 = vpop.f32.mrb[0].mxu0
      %v755 = vadd.f32 0.0, %v754
      %v756 = vpop.f32.mrb[0].mxu0
      %v757 = vpop.f32.mrb[0].mxu0
      %v758 = vadd.f32 0.0, %v757
      %v759 = vpop.f32.mrb[0].mxu0
      %760 = vmatprep.mubr.bf16.mxu0 0
      %761 = vmatmul.mubr.bf16.gmra.mrb[0].mxu0 %v542
      %v762 = vpop.f32.mrb[0].mxu0
      %v763 = vadd.f32 0.0, %v762
      %v764 = vpop.f32.mrb[0].mxu0
      %v765 = vpop.f32.mrb[0].mxu0
      %v766 = vadd.f32 0.0, %v765
      %v767 = vpop.f32.mrb[0].mxu0
      %768 = vdwg.mxu0
      %v785 = vunpack.c.l.b16 %v350
      %v786 = vunpack.c.l.b16 %v351
      %v787 = vunpack.c.l.b16 %v352
      %v788 = vunpack.c.l.b16 %v353
      %v789 = vunpack.c.l.b16 %v354
      %v790 = vunpack.c.l.b16 %v355
      %v791 = vunpack.c.l.b16 %v356
      %v792 = vunpack.c.l.b16 %v357
      %v793 = vunpack.c.l.b16 %v358
      %v794 = vunpack.c.l.b16 %v359
      %v795 = vunpack.c.l.b16 %v360
      %v796 = vunpack.c.l.b16 %v361
      %v797 = vunpack.c.l.b16 %v362
      %v798 = vunpack.c.l.b16 %v363
      %v799 = vunpack.c.l.b16 %v364
      %v800 = vunpack.c.l.b16 %v365
      %v801 = vpack.c.b16 %v786, %v785
      %v802 = vpack.c.b16 %v788, %v787
      %v803 = vpack.c.b16 %v790, %v789
      %v804 = vpack.c.b16 %v792, %v791
      %v805 = vpack.c.b16 %v794, %v793
      %v806 = vpack.c.b16 %v796, %v795
      %v807 = vpack.c.b16 %v798, %v797
      %v808 = vpack.c.b16 %v800, %v799
      %817 = vmatprep.subr.bf16.mxu0 0
      %818 = vmatpush1.bf16.msra.mxu0 %v801
      %819 = vmatprep.subr.bf16.mxu0 0
      %820 = vmatpush1.bf16.msra.mxu0 %v802
      %821 = vmatprep.subr.bf16.mxu0 0
      %822 = vmatpush1.bf16.msra.mxu0 %v803
      %823 = vmatprep.subr.bf16.mxu0 0
      %824 = vmatpush1.bf16.msra.mxu0 %v804
      %825 = vmatprep.subr.bf16.mxu0 0
      %826 = vmatpush1.bf16.msra.mxu0 %v805
      %827 = vmatprep.subr.bf16.mxu0 0
      %828 = vmatpush1.bf16.msra.mxu0 %v806
      %829 = vmatprep.subr.bf16.mxu0 0
      %830 = vmatpush1.bf16.msra.mxu0 %v807
      %831 = vmatprep.subr.bf16.mxu0 0
      %832 = vmatpush1.bf16.msra.mxu0 %v808
      %833 = vmatprep.subr.bf16.mxu0 0
      %834 = vmatpush1.bf16.msra.mxu0 0
      %835 = vmatprep.subr.bf16.mxu0 0
      %836 = vmatpush1.bf16.msra.mxu0 0
      %837 = vmatprep.subr.bf16.mxu0 0
      %838 = vmatpush1.bf16.msra.mxu0 0
      %839 = vmatprep.subr.bf16.mxu0 0
      %840 = vmatpush1.bf16.msra.mxu0 0
      %841 = vmatprep.subr.bf16.mxu0 0
      %842 = vmatpush1.bf16.msra.mxu0 0
      %843 = vmatprep.subr.bf16.mxu0 0
      %844 = vmatpush1.bf16.msra.mxu0 0
      %845 = vmatprep.subr.bf16.mxu0 0
      %846 = vmatpush1.bf16.msra.mxu0 0
      %847 = vmatprep.subr.bf16.mxu0 0
      %848 = vmatpush1.bf16.msra.mxu0 0
      %849 = vmatprep.mubr.bf16.mxu0 0
      %850 = vmatmul.mubr.bf16.gmra.mrb[0].mxu0 %v334
      %v851 = vpop.f32.mrb[0].mxu0
      %v852 = vadd.f32 %v643, %v851
      %v853 = vpop.f32.mrb[0].mxu0
      %v854 = vpop.f32.mrb[0].mxu0
      %v855 = vadd.f32 %v646, %v854
      %v856 = vpop.f32.mrb[0].mxu0
      %857 = vmatprep.mubr.bf16.mxu0 0
      %858 = vmatmul.mubr.bf16.gmra.mrb[0].mxu0 %v335
      %v859 = vpop.f32.mrb[0].mxu0
      %v860 = vadd.f32 %v651, %v859
      %v861 = vpop.f32.mrb[0].mxu0
      %v862 = vpop.f32.mrb[0].mxu0
      %v863 = vadd.f32 %v654, %v862
      %v864 = vpop.f32.mrb[0].mxu0
      %865 = vmatprep.mubr.bf16.mxu0 0
      %866 = vmatmul.mubr.bf16.gmra.mrb[0].mxu0 %v336
      %v867 = vpop.f32.mrb[0].mxu0
      %v868 = vadd.f32 %v659, %v867
      %v869 = vpop.f32.mrb[0].mxu0
      %v870 = vpop.f32.mrb[0].mxu0
      %v871 = vadd.f32 %v662, %v870
      %v872 = vpop.f32.mrb[0].mxu0
      %873 = vmatprep.mubr.bf16.mxu0 0
      %874 = vmatmul.mubr.bf16.gmra.mrb[0].mxu0 %v337
      %v875 = vpop.f32.mrb[0].mxu0
      %v876 = vadd.f32 %v667, %v875
      %v877 = vpop.f32.mrb[0].mxu0
      %v878 = vpop.f32.mrb[0].mxu0
      %v879 = vadd.f32 %v670, %v878
      %v880 = vpop.f32.mrb[0].mxu0
      %881 = vmatprep.mubr.bf16.mxu0 0
      %882 = vmatmul.mubr.bf16.gmra.mrb[0].mxu0 %v338
      %v883 = vpop.f32.mrb[0].mxu0
      %v884 = vadd.f32 %v675, %v883
      %v885 = vpop.f32.mrb[0].mxu0
      %v886 = vpop.f32.mrb[0].mxu0
      %v887 = vadd.f32 %v678, %v886
      %v888 = vpop.f32.mrb[0].mxu0
      %889 = vmatprep.mubr.bf16.mxu0 0
      %890 = vmatmul.mubr.bf16.gmra.mrb[0].mxu0 %v339
      %v891 = vpop.f32.mrb[0].mxu0
      %v892 = vadd.f32 %v683, %v891
      %v893 = vpop.f32.mrb[0].mxu0
      %v894 = vpop.f32.mrb[0].mxu0
      %v895 = vadd.f32 %v686, %v894
      %v896 = vpop.f32.mrb[0].mxu0
      %897 = vmatprep.mubr.bf16.mxu0 0
      %898 = vmatmul.mubr.bf16.gmra.mrb[0].mxu0 %v340
      %v899 = vpop.f32.mrb[0].mxu0
      %v900 = vadd.f32 %v691, %v899
      %v901 = vpop.f32.mrb[0].mxu0
      %v902 = vpop.f32.mrb[0].mxu0
      %v903 = vadd.f32 %v694, %v902
      %v904 = vpop.f32.mrb[0].mxu0
      %905 = vmatprep.mubr.bf16.mxu0 0
      %906 = vmatmul.mubr.bf16.gmra.mrb[0].mxu0 %v341
      %v907 = vpop.f32.mrb[0].mxu0
      %v908 = vadd.f32 %v699, %v907
      %v909 = vpop.f32.mrb[0].mxu0
      %v910 = vpop.f32.mrb[0].mxu0
      %v911 = vadd.f32 %v702, %v910
      %v912 = vpop.f32.mrb[0].mxu0
      %913 = vmatprep.mubr.bf16.mxu0 0
      %914 = vmatmul.mubr.bf16.gmra.mrb[0].mxu0 %v342
      %v915 = vpop.f32.mrb[0].mxu0
      %v916 = vadd.f32 %v707, %v915
      %v917 = vpop.f32.mrb[0].mxu0
      %v918 = vpop.f32.mrb[0].mxu0
      %v919 = vadd.f32 %v710, %v918
      %v920 = vpop.f32.mrb[0].mxu0
      %921 = vmatprep.mubr.bf16.mxu0 0
      %922 = vmatmul.mubr.bf16.gmra.mrb[0].mxu0 %v343
      %v923 = vpop.f32.mrb[0].mxu0
      %v924 = vadd.f32 %v715, %v923
      %v925 = vpop.f32.mrb[0].mxu0
      %v926 = vpop.f32.mrb[0].mxu0
      %v927 = vadd.f32 %v718, %v926
      %v928 = vpop.f32.mrb[0].mxu0
      %929 = vmatprep.mubr.bf16.mxu0 0
      %930 = vmatmul.mubr.bf16.gmra.mrb[0].mxu0 %v344
      %v931 = vpop.f32.mrb[0].mxu0
      %v932 = vadd.f32 %v723, %v931
      %v933 = vpop.f32.mrb[0].mxu0
      %v934 = vpop.f32.mrb[0].mxu0
      %v935 = vadd.f32 %v726, %v934
      %v936 = vpop.f32.mrb[0].mxu0
      %937 = vmatprep.mubr.bf16.mxu0 0
      %938 = vmatmul.mubr.bf16.gmra.mrb[0].mxu0 %v345
      %v939 = vpop.f32.mrb[0].mxu0
      %v940 = vadd.f32 %v731, %v939
      %v941 = vpop.f32.mrb[0].mxu0
      %v942 = vpop.f32.mrb[0].mxu0
      %v943 = vadd.f32 %v734, %v942
      %v944 = vpop.f32.mrb[0].mxu0
      %945 = vmatprep.mubr.bf16.mxu0 0
      %946 = vmatmul.mubr.bf16.gmra.mrb[0].mxu0 %v346
      %v947 = vpop.f32.mrb[0].mxu0
      %v948 = vadd.f32 %v739, %v947
      %v949 = vpop.f32.mrb[0].mxu0
      %v950 = vpop.f32.mrb[0].mxu0
      %v951 = vadd.f32 %v742, %v950
      %v952 = vpop.f32.mrb[0].mxu0
      %953 = vmatprep.mubr.bf16.mxu0 0
      %954 = vmatmul.mubr.bf16.gmra.mrb[0].mxu0 %v347
      %v955 = vpop.f32.mrb[0].mxu0
      %v956 = vadd.f32 %v747, %v955
      %v957 = vpop.f32.mrb[0].mxu0
      %v958 = vpop.f32.mrb[0].mxu0
      %v959 = vadd.f32 %v750, %v958
      %v960 = vpop.f32.mrb[0].mxu0
      %961 = vmatprep.mubr.bf16.mxu0 0
      %962 = vmatmul.mubr.bf16.gmra.mrb[0].mxu0 %v348
      %v963 = vpop.f32.mrb[0].mxu0
      %v964 = vadd.f32 %v755, %v963
      %v965 = vpop.f32.mrb[0].mxu0
      %v966 = vpop.f32.mrb[0].mxu0
      %v967 = vadd.f32 %v758, %v966
      %v968 = vpop.f32.mrb[0].mxu0
      %969 = vmatprep.mubr.bf16.mxu0 0
      %970 = vmatmul.mubr.bf16.gmra.mrb[0].mxu0 %v349
      %v971 = vpop.f32.mrb[0].mxu0
      %v972 = vadd.f32 %v763, %v971
      %v973 = vpop.f32.mrb[0].mxu0
      %v974 = vpop.f32.mrb[0].mxu0
      %v975 = vadd.f32 %v766, %v974
      %v976 = vpop.f32.mrb[0].mxu0
      %977 = vdwg.mxu0
      %vm978 = vcmask 1045504
      %v979 = vrot.slane %v280, 2
      %v980 = vrot.slane %v281, 2
      %v981 = vsel %vm978, %v979, %v980
      %v982 = vrot.slane %v282, 2
      %v983 = vsel %vm978, %v980, %v982
      %v984 = vrot.slane %v283, 2
      %v985 = vrot.slane %v284, 2
      %v986 = vsel %vm978, %v984, %v985
      %v987 = vrot.slane %v285, 2
      %v988 = vsel %vm978, %v985, %v987
      %v989 = vrot.slane %v286, 2
      %v990 = vrot.slane %v287, 2
      %v991 = vsel %vm978, %v989, %v990
      %v992 = vrot.slane %v288, 2
      %v993 = vsel %vm978, %v990, %v992
      %v994 = vrot.slane %v289, 2
      %v995 = vrot.slane %v290, 2
      %v996 = vsel %vm978, %v994, %v995
      %v997 = vrot.slane %v291, 2
      %v998 = vsel %vm978, %v995, %v997
      %v999 = vrot.slane %v292, 2
      %v1000 = vrot.slane %v293, 2
      %v1001 = vsel %vm978, %v999, %v1000
      %v1002 = vrot.slane %v294, 2
      %v1003 = vsel %vm978, %v1000, %v1002
      %v1004 = vrot.slane %v295, 2
      %v1005 = vrot.slane %v296, 2
      %v1006 = vsel %vm978, %v1004, %v1005
      %v1007 = vrot.slane %v297, 2
      %v1008 = vsel %vm978, %v1005, %v1007
      %v1009 = vrot.slane %v298, 2
      %v1010 = vrot.slane %v299, 2
      %v1011 = vsel %vm978, %v1009, %v1010
      %v1012 = vrot.slane %v300, 2
      %v1013 = vsel %vm978, %v1010, %v1012
      %v1014 = vrot.slane %v301, 2
      %v1015 = vrot.slane %v302, 2
      %v1016 = vsel %vm978, %v1014, %v1015
      %v1017 = vrot.slane %v303, 2
      %v1018 = vsel %vm978, %v1015, %v1017
      %v1019 = vrot.slane %v304, 2
      %v1020 = vrot.slane %v305, 2
      %v1021 = vsel %vm978, %v1019, %v1020
      %v1022 = vrot.slane %v306, 2
      %v1023 = vsel %vm978, %v1020, %v1022
      %v1024 = vrot.slane %v307, 2
      %v1025 = vrot.slane %v308, 2
      %v1026 = vsel %vm978, %v1024, %v1025
      %v1027 = vrot.slane %v309, 2
      %v1028 = vsel %vm978, %v1025, %v1027
      %v1029 = vrot.slane %v310, 2
      %v1030 = vrot.slane %v311, 2
      %v1031 = vsel %vm978, %v1029, %v1030
      %v1032 = vrot.slane %v312, 2
      %v1033 = vsel %vm978, %v1030, %v1032
      %v1034 = vrot.slane %v313, 2
      %v1035 = vrot.slane %v314, 2
      %v1036 = vsel %vm978, %v1034, %v1035
      %v1037 = vrot.slane %v315, 2
      %v1038 = vsel %vm978, %v1035, %v1037
      %v1039 = vrot.slane %v316, 2
      %v1040 = vrot.slane %v317, 2
      %v1041 = vsel %vm978, %v1039, %v1040
      %v1042 = vrot.slane %v318, 2
      %v1043 = vsel %vm978, %v1040, %v1042
      %v1044 = vrot.slane %v319, 2
      %v1045 = vrot.slane %v320, 2
      %v1046 = vsel %vm978, %v1044, %v1045
      %v1047 = vrot.slane %v321, 2
      %v1048 = vsel %vm978, %v1045, %v1047
      %v1049 = vrot.slane %v322, 2
      %v1050 = vrot.slane %v323, 2
      %v1051 = vsel %vm978, %v1049, %v1050
      %v1052 = vrot.slane %v324, 2
      %v1053 = vsel %vm978, %v1050, %v1052
      %v1054 = vrot.slane %v325, 2
      %v1055 = vrot.slane %v326, 2
      %v1056 = vsel %vm978, %v1054, %v1055
      %v1057 = vrot.slane %v327, 2
      %v1058 = vsel %vm978, %v1055, %v1057
      %v1091 = vpack.c.bf16 %v983, %v981
      %v1092 = vpack.c.bf16 %v988, %v986
      %v1093 = vpack.c.bf16 %v993, %v991
      %v1094 = vpack.c.bf16 %v998, %v996
      %v1095 = vpack.c.bf16 %v1003, %v1001
      %v1096 = vpack.c.bf16 %v1008, %v1006
      %v1097 = vpack.c.bf16 %v1013, %v1011
      %v1098 = vpack.c.bf16 %v1018, %v1016
      %v1099 = vpack.c.bf16 %v1023, %v1021
      %v1100 = vpack.c.bf16 %v1028, %v1026
      %v1101 = vpack.c.bf16 %v1033, %v1031
      %v1102 = vpack.c.bf16 %v1038, %v1036
      %v1103 = vpack.c.bf16 %v1043, %v1041
      %v1104 = vpack.c.bf16 %v1048, %v1046
      %v1105 = vpack.c.bf16 %v1053, %v1051
      %v1106 = vpack.c.bf16 %v1058, %v1056
      %s1107 = scalar_lea.vmem %s1, 128
      %v1108 = vld [vmem:[%s1107] sm:$0xf]
      %v1109 = vld [vmem:[%s1107 + $0x4] sm:$0xf]
      %v1110 = vld [vmem:[%s1107 + $0x8] sm:$0xf]
      %v1111 = vld [vmem:[%s1107 + $0xc] sm:$0xf]
      %v1112 = vld [vmem:[%s1107 + $0x10] sm:$0xf]
      %v1113 = vld [vmem:[%s1107 + $0x14] sm:$0xf]
      %v1114 = vld [vmem:[%s1107 + $0x18] sm:$0xf]
      %v1115 = vld [vmem:[%s1107 + $0x1c] sm:$0xf]
      %v1116 = vld [vmem:[%s1107 + $0x20] sm:$0xf]
      %v1117 = vld [vmem:[%s1107 + $0x24] sm:$0xf]
      %v1118 = vld [vmem:[%s1107 + $0x28] sm:$0xf]
      %v1119 = vld [vmem:[%s1107 + $0x2c] sm:$0xf]
      %v1120 = vld [vmem:[%s1107 + $0x30] sm:$0xf]
      %v1121 = vld [vmem:[%s1107 + $0x34] sm:$0xf]
      %v1122 = vld [vmem:[%s1107 + $0x38] sm:$0xf]
      %v1123 = vld [vmem:[%s1107 + $0x3c] sm:$0xf]
      %v1140 = vunpack.c.l.b16 %v1108
      %v1141 = vunpack.c.l.b16 %v1109
      %v1142 = vunpack.c.l.b16 %v1110
      %v1143 = vunpack.c.l.b16 %v1111
      %v1144 = vunpack.c.l.b16 %v1112
      %v1145 = vunpack.c.l.b16 %v1113
      %v1146 = vunpack.c.l.b16 %v1114
      %v1147 = vunpack.c.l.b16 %v1115
      %v1148 = vunpack.c.l.b16 %v1116
      %v1149 = vunpack.c.l.b16 %v1117
      %v1150 = vunpack.c.l.b16 %v1118
      %v1151 = vunpack.c.l.b16 %v1119
      %v1152 = vunpack.c.l.b16 %v1120
      %v1153 = vunpack.c.l.b16 %v1121
      %v1154 = vunpack.c.l.b16 %v1122
      %v1155 = vunpack.c.l.b16 %v1123
      %v1156 = vpack.c.b16 %v1141, %v1140
      %v1157 = vpack.c.b16 %v1143, %v1142
      %v1158 = vpack.c.b16 %v1145, %v1144
      %v1159 = vpack.c.b16 %v1147, %v1146
      %v1160 = vpack.c.b16 %v1149, %v1148
      %v1161 = vpack.c.b16 %v1151, %v1150
      %v1162 = vpack.c.b16 %v1153, %v1152
      %v1163 = vpack.c.b16 %v1155, %v1154
      %1172 = vmatprep.subr.bf16.mxu0 0
      %1173 = vmatpush1.bf16.msra.mxu0 %v1156
      %1174 = vmatprep.subr.bf16.mxu0 0
      %1175 = vmatpush1.bf16.msra.mxu0 %v1157
      %1176 = vmatprep.subr.bf16.mxu0 0
      %1177 = vmatpush1.bf16.msra.mxu0 %v1158
      %1178 = vmatprep.subr.bf16.mxu0 0
      %1179 = vmatpush1.bf16.msra.mxu0 %v1159
      %1180 = vmatprep.subr.bf16.mxu0 0
      %1181 = vmatpush1.bf16.msra.mxu0 %v1160
      %1182 = vmatprep.subr.bf16.mxu0 0
      %1183 = vmatpush1.bf16.msra.mxu0 %v1161
      %1184 = vmatprep.subr.bf16.mxu0 0
      %1185 = vmatpush1.bf16.msra.mxu0 %v1162
      %1186 = vmatprep.subr.bf16.mxu0 0
      %1187 = vmatpush1.bf16.msra.mxu0 %v1163
      %1188 = vmatprep.subr.bf16.mxu0 0
      %1189 = vmatpush1.bf16.msra.mxu0 0
      %1190 = vmatprep.subr.bf16.mxu0 0
      %1191 = vmatpush1.bf16.msra.mxu0 0
      %1192 = vmatprep.subr.bf16.mxu0 0
      %1193 = vmatpush1.bf16.msra.mxu0 0
      %1194 = vmatprep.subr.bf16.mxu0 0
      %1195 = vmatpush1.bf16.msra.mxu0 0
      %1196 = vmatprep.subr.bf16.mxu0 0
      %1197 = vmatpush1.bf16.msra.mxu0 0
      %1198 = vmatprep.subr.bf16.mxu0 0
      %1199 = vmatpush1.bf16.msra.mxu0 0
      %1200 = vmatprep.subr.bf16.mxu0 0
      %1201 = vmatpush1.bf16.msra.mxu0 0
      %1202 = vmatprep.subr.bf16.mxu0 0
      %1203 = vmatpush1.bf16.msra.mxu0 0
      %1204 = vmatprep.mubr.bf16.mxu0 0
      %1205 = vmatmul.mubr.bf16.gmra.mrb[0].mxu0 %v1091
      %v1206 = vpop.f32.mrb[0].mxu0
      %v1207 = vadd.f32 0.0, %v1206
      %v1208 = vpop.f32.mrb[0].mxu0
      %v1209 = vpop.f32.mrb[0].mxu0
      %v1210 = vadd.f32 0.0, %v1209
      %v1211 = vpop.f32.mrb[0].mxu0
      %1212 = vmatprep.mubr.bf16.mxu0 0
      %1213 = vmatmul.mubr.bf16.gmra.mrb[0].mxu0 %v1092
      %v1214 = vpop.f32.mrb[0].mxu0
      %v1215 = vadd.f32 0.0, %v1214
      %v1216 = vpop.f32.mrb[0].mxu0
      %v1217 = vpop.f32.mrb[0].mxu0
      %v1218 = vadd.f32 0.0, %v1217
      %v1219 = vpop.f32.mrb[0].mxu0
      %1220 = vmatprep.mubr.bf16.mxu0 0
      %1221 = vmatmul.mubr.bf16.gmra.mrb[0].mxu0 %v1093
      %v1222 = vpop.f32.mrb[0].mxu0
      %v1223 = vadd.f32 0.0, %v1222
      %v1224 = vpop.f32.mrb[0].mxu0
      %v1225 = vpop.f32.mrb[0].mxu0
      %v1226 = vadd.f32 0.0, %v1225
      %v1227 = vpop.f32.mrb[0].mxu0
      %1228 = vmatprep.mubr.bf16.mxu0 0
      %1229 = vmatmul.mubr.bf16.gmra.mrb[0].mxu0 %v1094
      %v1230 = vpop.f32.mrb[0].mxu0
      %v1231 = vadd.f32 0.0, %v1230
      %v1232 = vpop.f32.mrb[0].mxu0
      %v1233 = vpop.f32.mrb[0].mxu0
      %v1234 = vadd.f32 0.0, %v1233
      %v1235 = vpop.f32.mrb[0].mxu0
      %1236 = vmatprep.mubr.bf16.mxu0 0
      %1237 = vmatmul.mubr.bf16.gmra.mrb[0].mxu0 %v1095
      %v1238 = vpop.f32.mrb[0].mxu0
      %v1239 = vadd.f32 0.0, %v1238
      %v1240 = vpop.f32.mrb[0].mxu0
      %v1241 = vpop.f32.mrb[0].mxu0
      %v1242 = vadd.f32 0.0, %v1241
      %v1243 = vpop.f32.mrb[0].mxu0
      %1244 = vmatprep.mubr.bf16.mxu0 0
      %1245 = vmatmul.mubr.bf16.gmra.mrb[0].mxu0 %v1096
      %v1246 = vpop.f32.mrb[0].mxu0
      %v1247 = vadd.f32 0.0, %v1246
      %v1248 = vpop.f32.mrb[0].mxu0
      %v1249 = vpop.f32.mrb[0].mxu0
      %v1250 = vadd.f32 0.0, %v1249
      %v1251 = vpop.f32.mrb[0].mxu0
      %1252 = vmatprep.mubr.bf16.mxu0 0
      %1253 = vmatmul.mubr.bf16.gmra.mrb[0].mxu0 %v1097
      %v1254 = vpop.f32.mrb[0].mxu0
      %v1255 = vadd.f32 0.0, %v1254
      %v1256 = vpop.f32.mrb[0].mxu0
      %v1257 = vpop.f32.mrb[0].mxu0
      %v1258 = vadd.f32 0.0, %v1257
      %v1259 = vpop.f32.mrb[0].mxu0
      %1260 = vmatprep.mubr.bf16.mxu0 0
      %1261 = vmatmul.mubr.bf16.gmra.mrb[0].mxu0 %v1098
      %v1262 = vpop.f32.mrb[0].mxu0
      %v1263 = vadd.f32 0.0, %v1262
      %v1264 = vpop.f32.mrb[0].mxu0
      %v1265 = vpop.f32.mrb[0].mxu0
      %v1266 = vadd.f32 0.0, %v1265
      %v1267 = vpop.f32.mrb[0].mxu0
      %1268 = vmatprep.mubr.bf16.mxu0 0
      %1269 = vmatmul.mubr.bf16.gmra.mrb[0].mxu0 %v1099
      %v1270 = vpop.f32.mrb[0].mxu0
      %v1271 = vadd.f32 0.0, %v1270
      %v1272 = vpop.f32.mrb[0].mxu0
      %v1273 = vpop.f32.mrb[0].mxu0
      %v1274 = vadd.f32 0.0, %v1273
      %v1275 = vpop.f32.mrb[0].mxu0
      %1276 = vmatprep.mubr.bf16.mxu0 0
      %1277 = vmatmul.mubr.bf16.gmra.mrb[0].mxu0 %v1100
      %v1278 = vpop.f32.mrb[0].mxu0
      %v1279 = vadd.f32 0.0, %v1278
      %v1280 = vpop.f32.mrb[0].mxu0
      %v1281 = vpop.f32.mrb[0].mxu0
      %v1282 = vadd.f32 0.0, %v1281
      %v1283 = vpop.f32.mrb[0].mxu0
      %1284 = vmatprep.mubr.bf16.mxu0 0
      %1285 = vmatmul.mubr.bf16.gmra.mrb[0].mxu0 %v1101
      %v1286 = vpop.f32.mrb[0].mxu0
      %v1287 = vadd.f32 0.0, %v1286
      %v1288 = vpop.f32.mrb[0].mxu0
      %v1289 = vpop.f32.mrb[0].mxu0
      %v1290 = vadd.f32 0.0, %v1289
      %v1291 = vpop.f32.mrb[0].mxu0
      %1292 = vmatprep.mubr.bf16.mxu0 0
      %1293 = vmatmul.mubr.bf16.gmra.mrb[0].mxu0 %v1102
      %v1294 = vpop.f32.mrb[0].mxu0
      %v1295 = vadd.f32 0.0, %v1294
      %v1296 = vpop.f32.mrb[0].mxu0
      %v1297 = vpop.f32.mrb[0].mxu0
      %v1298 = vadd.f32 0.0, %v1297
      %v1299 = vpop.f32.mrb[0].mxu0
      %1300 = vmatprep.mubr.bf16.mxu0 0
      %1301 = vmatmul.mubr.bf16.gmra.mrb[0].mxu0 %v1103
      %v1302 = vpop.f32.mrb[0].mxu0
      %v1303 = vadd.f32 0.0, %v1302
      %v1304 = vpop.f32.mrb[0].mxu0
      %v1305 = vpop.f32.mrb[0].mxu0
      %v1306 = vadd.f32 0.0, %v1305
      %v1307 = vpop.f32.mrb[0].mxu0
      %1308 = vmatprep.mubr.bf16.mxu0 0
      %1309 = vmatmul.mubr.bf16.gmra.mrb[0].mxu0 %v1104
      %v1310 = vpop.f32.mrb[0].mxu0
      %v1311 = vadd.f32 0.0, %v1310
      %v1312 = vpop.f32.mrb[0].mxu0
      %v1313 = vpop.f32.mrb[0].mxu0
      %v1314 = vadd.f32 0.0, %v1313
      %v1315 = vpop.f32.mrb[0].mxu0
      %1316 = vmatprep.mubr.bf16.mxu0 0
      %1317 = vmatmul.mubr.bf16.gmra.mrb[0].mxu0 %v1105
      %v1318 = vpop.f32.mrb[0].mxu0
      %v1319 = vadd.f32 0.0, %v1318
      %v1320 = vpop.f32.mrb[0].mxu0
      %v1321 = vpop.f32.mrb[0].mxu0
      %v1322 = vadd.f32 0.0, %v1321
      %v1323 = vpop.f32.mrb[0].mxu0
      %1324 = vmatprep.mubr.bf16.mxu0 0
      %1325 = vmatmul.mubr.bf16.gmra.mrb[0].mxu0 %v1106
      %v1326 = vpop.f32.mrb[0].mxu0
      %v1327 = vadd.f32 0.0, %v1326
      %v1328 = vpop.f32.mrb[0].mxu0
      %v1329 = vpop.f32.mrb[0].mxu0
      %v1330 = vadd.f32 0.0, %v1329
      %v1331 = vpop.f32.mrb[0].mxu0
      %1332 = vdwg.mxu0
      %v1333 = vadd.f32 %v852, %v1207
      %v1334 = vadd.f32 %v855, %v1210
      %v1335 = vadd.f32 %v860, %v1215
      %v1336 = vadd.f32 %v863, %v1218
      %v1337 = vadd.f32 %v868, %v1223
      %v1338 = vadd.f32 %v871, %v1226
      %v1339 = vadd.f32 %v876, %v1231
      %v1340 = vadd.f32 %v879, %v1234
      %v1341 = vadd.f32 %v884, %v1239
      %v1342 = vadd.f32 %v887, %v1242
      %v1343 = vadd.f32 %v892, %v1247
      %v1344 = vadd.f32 %v895, %v1250
      %v1345 = vadd.f32 %v900, %v1255
      %v1346 = vadd.f32 %v903, %v1258
      %v1347 = vadd.f32 %v908, %v1263
      %v1348 = vadd.f32 %v911, %v1266
      %v1349 = vadd.f32 %v916, %v1271
      %v1350 = vadd.f32 %v919, %v1274
      %v1351 = vadd.f32 %v924, %v1279
      %v1352 = vadd.f32 %v927, %v1282
      %v1353 = vadd.f32 %v932, %v1287
      %v1354 = vadd.f32 %v935, %v1290
      %v1355 = vadd.f32 %v940, %v1295
      %v1356 = vadd.f32 %v943, %v1298
      %v1357 = vadd.f32 %v948, %v1303
      %v1358 = vadd.f32 %v951, %v1306
      %v1359 = vadd.f32 %v956, %v1311
      %v1360 = vadd.f32 %v959, %v1314
      %v1361 = vadd.f32 %v964, %v1319
      %v1362 = vadd.f32 %v967, %v1322
      %v1363 = vadd.f32 %v972, %v1327
      %v1364 = vadd.f32 %v975, %v1330
      %v1365 = vpack.c.bf16 %v329, %v328
      %s1366 = scalar_lea.vmem %s1, 192
      %v1367 = vld [vmem:[%s1366] sm:$0xf]
      %v1368 = vld [vmem:[%s1366 + $0x4] sm:$0xf]
      %v1369 = vld [vmem:[%s1366 + $0x8] sm:$0xf]
      %v1370 = vld [vmem:[%s1366 + $0xc] sm:$0xf]
      %v1371 = vld [vmem:[%s1366 + $0x10] sm:$0xf]
      %v1372 = vld [vmem:[%s1366 + $0x14] sm:$0xf]
      %v1373 = vld [vmem:[%s1366 + $0x18] sm:$0xf]
      %v1374 = vld [vmem:[%s1366 + $0x1c] sm:$0xf]
      %v1375 = vld [vmem:[%s1366 + $0x20] sm:$0xf]
      %v1376 = vld [vmem:[%s1366 + $0x24] sm:$0xf]
      %v1377 = vld [vmem:[%s1366 + $0x28] sm:$0xf]
      %v1378 = vld [vmem:[%s1366 + $0x2c] sm:$0xf]
      %v1379 = vld [vmem:[%s1366 + $0x30] sm:$0xf]
      %v1380 = vld [vmem:[%s1366 + $0x34] sm:$0xf]
      %v1381 = vld [vmem:[%s1366 + $0x38] sm:$0xf]
      %v1382 = vld [vmem:[%s1366 + $0x3c] sm:$0xf]
      %v1399 = vunpack.c.l.b16 %v1367
      %v1400 = vunpack.c.l.b16 %v1368
      %v1401 = vunpack.c.l.b16 %v1369
      %v1402 = vunpack.c.l.b16 %v1370
      %v1403 = vunpack.c.l.b16 %v1371
      %v1404 = vunpack.c.l.b16 %v1372
      %v1405 = vunpack.c.l.b16 %v1373
      %v1406 = vunpack.c.l.b16 %v1374
      %v1407 = vunpack.c.l.b16 %v1375
      %v1408 = vunpack.c.l.b16 %v1376
      %v1409 = vunpack.c.l.b16 %v1377
      %v1410 = vunpack.c.l.b16 %v1378
      %v1411 = vunpack.c.l.b16 %v1379
      %v1412 = vunpack.c.l.b16 %v1380
      %v1413 = vunpack.c.l.b16 %v1381
      %v1414 = vunpack.c.l.b16 %v1382
      %v1415 = vpack.c.b16 %v1400, %v1399
      %v1416 = vpack.c.b16 %v1402, %v1401
      %v1417 = vpack.c.b16 %v1404, %v1403
      %v1418 = vpack.c.b16 %v1406, %v1405
      %v1419 = vpack.c.b16 %v1408, %v1407
      %v1420 = vpack.c.b16 %v1410, %v1409
      %v1421 = vpack.c.b16 %v1412, %v1411
      %v1422 = vpack.c.b16 %v1414, %v1413
      %1431 = vmatprep.subr.bf16.mxu0 0
      %1432 = vmatpush1.bf16.msra.mxu0 %v1415
      %1433 = vmatprep.subr.bf16.mxu0 0
      %1434 = vmatpush1.bf16.msra.mxu0 %v1416
      %1435 = vmatprep.subr.bf16.mxu0 0
      %1436 = vmatpush1.bf16.msra.mxu0 %v1417
      %1437 = vmatprep.subr.bf16.mxu0 0
      %1438 = vmatpush1.bf16.msra.mxu0 %v1418
      %1439 = vmatprep.subr.bf16.mxu0 0
      %1440 = vmatpush1.bf16.msra.mxu0 %v1419
      %1441 = vmatprep.subr.bf16.mxu0 0
      %1442 = vmatpush1.bf16.msra.mxu0 %v1420
      %1443 = vmatprep.subr.bf16.mxu0 0
      %1444 = vmatpush1.bf16.msra.mxu0 %v1421
      %1445 = vmatprep.subr.bf16.mxu0 0
      %1446 = vmatpush1.bf16.msra.mxu0 %v1422
      %1447 = vmatprep.subr.bf16.mxu0 0
      %1448 = vmatpush1.bf16.msra.mxu0 0
      %1449 = vmatprep.subr.bf16.mxu0 0
      %1450 = vmatpush1.bf16.msra.mxu0 0
      %1451 = vmatprep.subr.bf16.mxu0 0
      %1452 = vmatpush1.bf16.msra.mxu0 0
      %1453 = vmatprep.subr.bf16.mxu0 0
      %1454 = vmatpush1.bf16.msra.mxu0 0
      %1455 = vmatprep.subr.bf16.mxu0 0
      %1456 = vmatpush1.bf16.msra.mxu0 0
      %1457 = vmatprep.subr.bf16.mxu0 0
      %1458 = vmatpush1.bf16.msra.mxu0 0
      %1459 = vmatprep.subr.bf16.mxu0 0
      %1460 = vmatpush1.bf16.msra.mxu0 0
      %1461 = vmatprep.subr.bf16.mxu0 0
      %1462 = vmatpush1.bf16.msra.mxu0 0
      %1463 = vmatprep.mubr.bf16.mxu0 0
      %1464 = vmatmul.mubr.bf16.gmra.mrb[0].mxu0 %v335
      %v1465 = vpop.f32.mrb[0].mxu0
      %v1466 = vadd.f32 0.0, %v1465
      %v1467 = vpop.f32.mrb[0].mxu0
      %v1468 = vpop.f32.mrb[0].mxu0
      %v1469 = vadd.f32 0.0, %v1468
      %v1470 = vpop.f32.mrb[0].mxu0
      %1471 = vmatprep.mubr.bf16.mxu0 0
      %1472 = vmatmul.mubr.bf16.gmra.mrb[0].mxu0 %v336
      %v1473 = vpop.f32.mrb[0].mxu0
      %v1474 = vadd.f32 0.0, %v1473
      %v1475 = vpop.f32.mrb[0].mxu0
      %v1476 = vpop.f32.mrb[0].mxu0
      %v1477 = vadd.f32 0.0, %v1476
      %v1478 = vpop.f32.mrb[0].mxu0
      %1479 = vmatprep.mubr.bf16.mxu0 0
      %1480 = vmatmul.mubr.bf16.gmra.mrb[0].mxu0 %v337
      %v1481 = vpop.f32.mrb[0].mxu0
      %v1482 = vadd.f32 0.0, %v1481
      %v1483 = vpop.f32.mrb[0].mxu0
      %v1484 = vpop.f32.mrb[0].mxu0
      %v1485 = vadd.f32 0.0, %v1484
      %v1486 = vpop.f32.mrb[0].mxu0
      %1487 = vmatprep.mubr.bf16.mxu0 0
      %1488 = vmatmul.mubr.bf16.gmra.mrb[0].mxu0 %v338
      %v1489 = vpop.f32.mrb[0].mxu0
      %v1490 = vadd.f32 0.0, %v1489
      %v1491 = vpop.f32.mrb[0].mxu0
      %v1492 = vpop.f32.mrb[0].mxu0
      %v1493 = vadd.f32 0.0, %v1492
      %v1494 = vpop.f32.mrb[0].mxu0
      %1495 = vmatprep.mubr.bf16.mxu0 0
      %1496 = vmatmul.mubr.bf16.gmra.mrb[0].mxu0 %v339
      %v1497 = vpop.f32.mrb[0].mxu0
      %v1498 = vadd.f32 0.0, %v1497
      %v1499 = vpop.f32.mrb[0].mxu0
      %v1500 = vpop.f32.mrb[0].mxu0
      %v1501 = vadd.f32 0.0, %v1500
      %v1502 = vpop.f32.mrb[0].mxu0
      %1503 = vmatprep.mubr.bf16.mxu0 0
      %1504 = vmatmul.mubr.bf16.gmra.mrb[0].mxu0 %v340
      %v1505 = vpop.f32.mrb[0].mxu0
      %v1506 = vadd.f32 0.0, %v1505
      %v1507 = vpop.f32.mrb[0].mxu0
      %v1508 = vpop.f32.mrb[0].mxu0
      %v1509 = vadd.f32 0.0, %v1508
      %v1510 = vpop.f32.mrb[0].mxu0
      %1511 = vmatprep.mubr.bf16.mxu0 0
      %1512 = vmatmul.mubr.bf16.gmra.mrb[0].mxu0 %v341
      %v1513 = vpop.f32.mrb[0].mxu0
      %v1514 = vadd.f32 0.0, %v1513
      %v1515 = vpop.f32.mrb[0].mxu0
      %v1516 = vpop.f32.mrb[0].mxu0
      %v1517 = vadd.f32 0.0, %v1516
      %v1518 = vpop.f32.mrb[0].mxu0
      %1519 = vmatprep.mubr.bf16.mxu0 0
      %1520 = vmatmul.mubr.bf16.gmra.mrb[0].mxu0 %v342
      %v1521 = vpop.f32.mrb[0].mxu0
      %v1522 = vadd.f32 0.0, %v1521
      %v1523 = vpop.f32.mrb[0].mxu0
      %v1524 = vpop.f32.mrb[0].mxu0
      %v1525 = vadd.f32 0.0, %v1524
      %v1526 = vpop.f32.mrb[0].mxu0
      %1527 = vmatprep.mubr.bf16.mxu0 0
      %1528 = vmatmul.mubr.bf16.gmra.mrb[0].mxu0 %v343
      %v1529 = vpop.f32.mrb[0].mxu0
      %v1530 = vadd.f32 0.0, %v1529
      %v1531 = vpop.f32.mrb[0].mxu0
      %v1532 = vpop.f32.mrb[0].mxu0
      %v1533 = vadd.f32 0.0, %v1532
      %v1534 = vpop.f32.mrb[0].mxu0
      %1535 = vmatprep.mubr.bf16.mxu0 0
      %1536 = vmatmul.mubr.bf16.gmra.mrb[0].mxu0 %v344
      %v1537 = vpop.f32.mrb[0].mxu0
      %v1538 = vadd.f32 0.0, %v1537
      %v1539 = vpop.f32.mrb[0].mxu0
      %v1540 = vpop.f32.mrb[0].mxu0
      %v1541 = vadd.f32 0.0, %v1540
      %v1542 = vpop.f32.mrb[0].mxu0
      %1543 = vmatprep.mubr.bf16.mxu0 0
      %1544 = vmatmul.mubr.bf16.gmra.mrb[0].mxu0 %v345
      %v1545 = vpop.f32.mrb[0].mxu0
      %v1546 = vadd.f32 0.0, %v1545
      %v1547 = vpop.f32.mrb[0].mxu0
      %v1548 = vpop.f32.mrb[0].mxu0
      %v1549 = vadd.f32 0.0, %v1548
      %v1550 = vpop.f32.mrb[0].mxu0
      %1551 = vmatprep.mubr.bf16.mxu0 0
      %1552 = vmatmul.mubr.bf16.gmra.mrb[0].mxu0 %v346
      %v1553 = vpop.f32.mrb[0].mxu0
      %v1554 = vadd.f32 0.0, %v1553
      %v1555 = vpop.f32.mrb[0].mxu0
      %v1556 = vpop.f32.mrb[0].mxu0
      %v1557 = vadd.f32 0.0, %v1556
      %v1558 = vpop.f32.mrb[0].mxu0
      %1559 = vmatprep.mubr.bf16.mxu0 0
      %1560 = vmatmul.mubr.bf16.gmra.mrb[0].mxu0 %v347
      %v1561 = vpop.f32.mrb[0].mxu0
      %v1562 = vadd.f32 0.0, %v1561
      %v1563 = vpop.f32.mrb[0].mxu0
      %v1564 = vpop.f32.mrb[0].mxu0
      %v1565 = vadd.f32 0.0, %v1564
      %v1566 = vpop.f32.mrb[0].mxu0
      %1567 = vmatprep.mubr.bf16.mxu0 0
      %1568 = vmatmul.mubr.bf16.gmra.mrb[0].mxu0 %v348
      %v1569 = vpop.f32.mrb[0].mxu0
      %v1570 = vadd.f32 0.0, %v1569
      %v1571 = vpop.f32.mrb[0].mxu0
      %v1572 = vpop.f32.mrb[0].mxu0
      %v1573 = vadd.f32 0.0, %v1572
      %v1574 = vpop.f32.mrb[0].mxu0
      %1575 = vmatprep.mubr.bf16.mxu0 0
      %1576 = vmatmul.mubr.bf16.gmra.mrb[0].mxu0 %v349
      %v1577 = vpop.f32.mrb[0].mxu0
      %v1578 = vadd.f32 0.0, %v1577
      %v1579 = vpop.f32.mrb[0].mxu0
      %v1580 = vpop.f32.mrb[0].mxu0
      %v1581 = vadd.f32 0.0, %v1580
      %v1582 = vpop.f32.mrb[0].mxu0
      %1583 = vmatprep.mubr.bf16.mxu0 0
      %1584 = vmatmul.mubr.bf16.gmra.mrb[0].mxu0 %v1365
      %v1585 = vpop.f32.mrb[0].mxu0
      %v1586 = vadd.f32 0.0, %v1585
      %v1587 = vpop.f32.mrb[0].mxu0
      %v1588 = vpop.f32.mrb[0].mxu0
      %v1589 = vadd.f32 0.0, %v1588
      %v1590 = vpop.f32.mrb[0].mxu0
      %1591 = vdwg.mxu0
      %v1592 = vadd.f32 %v1333, %v1466
      %v1593 = vadd.f32 %v1334, %v1469
      %v1594 = vadd.f32 %v1335, %v1474
      %v1595 = vadd.f32 %v1336, %v1477
      %v1596 = vadd.f32 %v1337, %v1482
      %v1597 = vadd.f32 %v1338, %v1485
      %v1598 = vadd.f32 %v1339, %v1490
      %v1599 = vadd.f32 %v1340, %v1493
      %v1600 = vadd.f32 %v1341, %v1498
      %v1601 = vadd.f32 %v1342, %v1501
      %v1602 = vadd.f32 %v1343, %v1506
      %v1603 = vadd.f32 %v1344, %v1509
      %v1604 = vadd.f32 %v1345, %v1514
      %v1605 = vadd.f32 %v1346, %v1517
      %v1606 = vadd.f32 %v1347, %v1522
      %v1607 = vadd.f32 %v1348, %v1525
      %v1608 = vadd.f32 %v1349, %v1530
      %v1609 = vadd.f32 %v1350, %v1533
      %v1610 = vadd.f32 %v1351, %v1538
      %v1611 = vadd.f32 %v1352, %v1541
      %v1612 = vadd.f32 %v1353, %v1546
      %v1613 = vadd.f32 %v1354, %v1549
      %v1614 = vadd.f32 %v1355, %v1554
      %v1615 = vadd.f32 %v1356, %v1557
      %v1616 = vadd.f32 %v1357, %v1562
      %v1617 = vadd.f32 %v1358, %v1565
      %v1618 = vadd.f32 %v1359, %v1570
      %v1619 = vadd.f32 %v1360, %v1573
      %v1620 = vadd.f32 %v1361, %v1578
      %v1621 = vadd.f32 %v1362, %v1581
      %v1622 = vadd.f32 %v1363, %v1586
      %v1623 = vadd.f32 %v1364, %v1589
      %v1627 = vrot.slane %v328, 1
      %v1628 = vrot.slane %v329, 1
      %v1629 = vsel %vm414, %v1627, %v1628
      %v1630 = vrot.slane %v330, 1
      %v1631 = vsel %vm414, %v1628, %v1630
      %v1634 = vpack.c.bf16 %v1631, %v1629
      %s1635 = scalar_lea.vmem %s1, 256
      %v1636 = vld [vmem:[%s1635] sm:$0xf]
      %v1637 = vld [vmem:[%s1635 + $0x4] sm:$0xf]
      %v1638 = vld [vmem:[%s1635 + $0x8] sm:$0xf]
      %v1639 = vld [vmem:[%s1635 + $0xc] sm:$0xf]
      %v1640 = vld [vmem:[%s1635 + $0x10] sm:$0xf]
      %v1641 = vld [vmem:[%s1635 + $0x14] sm:$0xf]
      %v1642 = vld [vmem:[%s1635 + $0x18] sm:$0xf]
      %v1643 = vld [vmem:[%s1635 + $0x1c] sm:$0xf]
      %v1644 = vld [vmem:[%s1635 + $0x20] sm:$0xf]
      %v1645 = vld [vmem:[%s1635 + $0x24] sm:$0xf]
      %v1646 = vld [vmem:[%s1635 + $0x28] sm:$0xf]
      %v1647 = vld [vmem:[%s1635 + $0x2c] sm:$0xf]
      %v1648 = vld [vmem:[%s1635 + $0x30] sm:$0xf]
      %v1649 = vld [vmem:[%s1635 + $0x34] sm:$0xf]
      %v1650 = vld [vmem:[%s1635 + $0x38] sm:$0xf]
      %v1651 = vld [vmem:[%s1635 + $0x3c] sm:$0xf]
      %v1668 = vunpack.c.l.b16 %v1636
      %v1669 = vunpack.c.l.b16 %v1637
      %v1670 = vunpack.c.l.b16 %v1638
      %v1671 = vunpack.c.l.b16 %v1639
      %v1672 = vunpack.c.l.b16 %v1640
      %v1673 = vunpack.c.l.b16 %v1641
      %v1674 = vunpack.c.l.b16 %v1642
      %v1675 = vunpack.c.l.b16 %v1643
      %v1676 = vunpack.c.l.b16 %v1644
      %v1677 = vunpack.c.l.b16 %v1645
      %v1678 = vunpack.c.l.b16 %v1646
      %v1679 = vunpack.c.l.b16 %v1647
      %v1680 = vunpack.c.l.b16 %v1648
      %v1681 = vunpack.c.l.b16 %v1649
      %v1682 = vunpack.c.l.b16 %v1650
      %v1683 = vunpack.c.l.b16 %v1651
      %v1684 = vpack.c.b16 %v1669, %v1668
      %v1685 = vpack.c.b16 %v1671, %v1670
      %v1686 = vpack.c.b16 %v1673, %v1672
      %v1687 = vpack.c.b16 %v1675, %v1674
      %v1688 = vpack.c.b16 %v1677, %v1676
      %v1689 = vpack.c.b16 %v1679, %v1678
      %v1690 = vpack.c.b16 %v1681, %v1680
      %v1691 = vpack.c.b16 %v1683, %v1682
      %1700 = vmatprep.subr.bf16.mxu0 0
      %1701 = vmatpush1.bf16.msra.mxu0 %v1684
      %1702 = vmatprep.subr.bf16.mxu0 0
      %1703 = vmatpush1.bf16.msra.mxu0 %v1685
      %1704 = vmatprep.subr.bf16.mxu0 0
      %1705 = vmatpush1.bf16.msra.mxu0 %v1686
      %1706 = vmatprep.subr.bf16.mxu0 0
      %1707 = vmatpush1.bf16.msra.mxu0 %v1687
      %1708 = vmatprep.subr.bf16.mxu0 0
      %1709 = vmatpush1.bf16.msra.mxu0 %v1688
      %1710 = vmatprep.subr.bf16.mxu0 0
      %1711 = vmatpush1.bf16.msra.mxu0 %v1689
      %1712 = vmatprep.subr.bf16.mxu0 0
      %1713 = vmatpush1.bf16.msra.mxu0 %v1690
      %1714 = vmatprep.subr.bf16.mxu0 0
      %1715 = vmatpush1.bf16.msra.mxu0 %v1691
      %1716 = vmatprep.subr.bf16.mxu0 0
      %1717 = vmatpush1.bf16.msra.mxu0 0
      %1718 = vmatprep.subr.bf16.mxu0 0
      %1719 = vmatpush1.bf16.msra.mxu0 0
      %1720 = vmatprep.subr.bf16.mxu0 0
      %1721 = vmatpush1.bf16.msra.mxu0 0
      %1722 = vmatprep.subr.bf16.mxu0 0
      %1723 = vmatpush1.bf16.msra.mxu0 0
      %1724 = vmatprep.subr.bf16.mxu0 0
      %1725 = vmatpush1.bf16.msra.mxu0 0
      %1726 = vmatprep.subr.bf16.mxu0 0
      %1727 = vmatpush1.bf16.msra.mxu0 0
      %1728 = vmatprep.subr.bf16.mxu0 0
      %1729 = vmatpush1.bf16.msra.mxu0 0
      %1730 = vmatprep.subr.bf16.mxu0 0
      %1731 = vmatpush1.bf16.msra.mxu0 0
      %1732 = vmatprep.mubr.bf16.mxu0 0
      %1733 = vmatmul.mubr.bf16.gmra.mrb[0].mxu0 %v528
      %v1734 = vpop.f32.mrb[0].mxu0
      %v1735 = vadd.f32 0.0, %v1734
      %v1736 = vpop.f32.mrb[0].mxu0
      %v1737 = vpop.f32.mrb[0].mxu0
      %v1738 = vadd.f32 0.0, %v1737
      %v1739 = vpop.f32.mrb[0].mxu0
      %1740 = vmatprep.mubr.bf16.mxu0 0
      %1741 = vmatmul.mubr.bf16.gmra.mrb[0].mxu0 %v529
      %v1742 = vpop.f32.mrb[0].mxu0
      %v1743 = vadd.f32 0.0, %v1742
      %v1744 = vpop.f32.mrb[0].mxu0
      %v1745 = vpop.f32.mrb[0].mxu0
      %v1746 = vadd.f32 0.0, %v1745
      %v1747 = vpop.f32.mrb[0].mxu0
      %1748 = vmatprep.mubr.bf16.mxu0 0
      %1749 = vmatmul.mubr.bf16.gmra.mrb[0].mxu0 %v530
      %v1750 = vpop.f32.mrb[0].mxu0
      %v1751 = vadd.f32 0.0, %v1750
      %v1752 = vpop.f32.mrb[0].mxu0
      %v1753 = vpop.f32.mrb[0].mxu0
      %v1754 = vadd.f32 0.0, %v1753
      %v1755 = vpop.f32.mrb[0].mxu0
      %1756 = vmatprep.mubr.bf16.mxu0 0
      %1757 = vmatmul.mubr.bf16.gmra.mrb[0].mxu0 %v531
      %v1758 = vpop.f32.mrb[0].mxu0
      %v1759 = vadd.f32 0.0, %v1758
      %v1760 = vpop.f32.mrb[0].mxu0
      %v1761 = vpop.f32.mrb[0].mxu0
      %v1762 = vadd.f32 0.0, %v1761
      %v1763 = vpop.f32.mrb[0].mxu0
      %1764 = vmatprep.mubr.bf16.mxu0 0
      %1765 = vmatmul.mubr.bf16.gmra.mrb[0].mxu0 %v532
      %v1766 = vpop.f32.mrb[0].mxu0
      %v1767 = vadd.f32 0.0, %v1766
      %v1768 = vpop.f32.mrb[0].mxu0
      %v1769 = vpop.f32.mrb[0].mxu0
      %v1770 = vadd.f32 0.0, %v1769
      %v1771 = vpop.f32.mrb[0].mxu0
      %1772 = vmatprep.mubr.bf16.mxu0 0
      %1773 = vmatmul.mubr.bf16.gmra.mrb[0].mxu0 %v533
      %v1774 = vpop.f32.mrb[0].mxu0
      %v1775 = vadd.f32 0.0, %v1774
      %v1776 = vpop.f32.mrb[0].mxu0
      %v1777 = vpop.f32.mrb[0].mxu0
      %v1778 = vadd.f32 0.0, %v1777
      %v1779 = vpop.f32.mrb[0].mxu0
      %1780 = vmatprep.mubr.bf16.mxu0 0
      %1781 = vmatmul.mubr.bf16.gmra.mrb[0].mxu0 %v534
      %v1782 = vpop.f32.mrb[0].mxu0
      %v1783 = vadd.f32 0.0, %v1782
      %v1784 = vpop.f32.mrb[0].mxu0
      %v1785 = vpop.f32.mrb[0].mxu0
      %v1786 = vadd.f32 0.0, %v1785
      %v1787 = vpop.f32.mrb[0].mxu0
      %1788 = vmatprep.mubr.bf16.mxu0 0
      %1789 = vmatmul.mubr.bf16.gmra.mrb[0].mxu0 %v535
      %v1790 = vpop.f32.mrb[0].mxu0
      %v1791 = vadd.f32 0.0, %v1790
      %v1792 = vpop.f32.mrb[0].mxu0
      %v1793 = vpop.f32.mrb[0].mxu0
      %v1794 = vadd.f32 0.0, %v1793
      %v1795 = vpop.f32.mrb[0].mxu0
      %1796 = vmatprep.mubr.bf16.mxu0 0
      %1797 = vmatmul.mubr.bf16.gmra.mrb[0].mxu0 %v536
      %v1798 = vpop.f32.mrb[0].mxu0
      %v1799 = vadd.f32 0.0, %v1798
      %v1800 = vpop.f32.mrb[0].mxu0
      %v1801 = vpop.f32.mrb[0].mxu0
      %v1802 = vadd.f32 0.0, %v1801
      %v1803 = vpop.f32.mrb[0].mxu0
      %1804 = vmatprep.mubr.bf16.mxu0 0
      %1805 = vmatmul.mubr.bf16.gmra.mrb[0].mxu0 %v537
      %v1806 = vpop.f32.mrb[0].mxu0
      %v1807 = vadd.f32 0.0, %v1806
      %v1808 = vpop.f32.mrb[0].mxu0
      %v1809 = vpop.f32.mrb[0].mxu0
      %v1810 = vadd.f32 0.0, %v1809
      %v1811 = vpop.f32.mrb[0].mxu0
      %1812 = vmatprep.mubr.bf16.mxu0 0
      %1813 = vmatmul.mubr.bf16.gmra.mrb[0].mxu0 %v538
      %v1814 = vpop.f32.mrb[0].mxu0
      %v1815 = vadd.f32 0.0, %v1814
      %v1816 = vpop.f32.mrb[0].mxu0
      %v1817 = vpop.f32.mrb[0].mxu0
      %v1818 = vadd.f32 0.0, %v1817
      %v1819 = vpop.f32.mrb[0].mxu0
      %1820 = vmatprep.mubr.bf16.mxu0 0
      %1821 = vmatmul.mubr.bf16.gmra.mrb[0].mxu0 %v539
      %v1822 = vpop.f32.mrb[0].mxu0
      %v1823 = vadd.f32 0.0, %v1822
      %v1824 = vpop.f32.mrb[0].mxu0
      %v1825 = vpop.f32.mrb[0].mxu0
      %v1826 = vadd.f32 0.0, %v1825
      %v1827 = vpop.f32.mrb[0].mxu0
      %1828 = vmatprep.mubr.bf16.mxu0 0
      %1829 = vmatmul.mubr.bf16.gmra.mrb[0].mxu0 %v540
      %v1830 = vpop.f32.mrb[0].mxu0
      %v1831 = vadd.f32 0.0, %v1830
      %v1832 = vpop.f32.mrb[0].mxu0
      %v1833 = vpop.f32.mrb[0].mxu0
      %v1834 = vadd.f32 0.0, %v1833
      %v1835 = vpop.f32.mrb[0].mxu0
      %1836 = vmatprep.mubr.bf16.mxu0 0
      %1837 = vmatmul.mubr.bf16.gmra.mrb[0].mxu0 %v541
      %v1838 = vpop.f32.mrb[0].mxu0
      %v1839 = vadd.f32 0.0, %v1838
      %v1840 = vpop.f32.mrb[0].mxu0
      %v1841 = vpop.f32.mrb[0].mxu0
      %v1842 = vadd.f32 0.0, %v1841
      %v1843 = vpop.f32.mrb[0].mxu0
      %1844 = vmatprep.mubr.bf16.mxu0 0
      %1845 = vmatmul.mubr.bf16.gmra.mrb[0].mxu0 %v542
      %v1846 = vpop.f32.mrb[0].mxu0
      %v1847 = vadd.f32 0.0, %v1846
      %v1848 = vpop.f32.mrb[0].mxu0
      %v1849 = vpop.f32.mrb[0].mxu0
      %v1850 = vadd.f32 0.0, %v1849
      %v1851 = vpop.f32.mrb[0].mxu0
      %1852 = vmatprep.mubr.bf16.mxu0 0
      %1853 = vmatmul.mubr.bf16.gmra.mrb[0].mxu0 %v1634
      %v1854 = vpop.f32.mrb[0].mxu0
      %v1855 = vadd.f32 0.0, %v1854
      %v1856 = vpop.f32.mrb[0].mxu0
      %v1857 = vpop.f32.mrb[0].mxu0
      %v1858 = vadd.f32 0.0, %v1857
      %v1859 = vpop.f32.mrb[0].mxu0
      %1860 = vdwg.mxu0
      %v1861 = vadd.f32 %v1592, %v1735
      %v1862 = vadd.f32 %v1593, %v1738
      %v1863 = vadd.f32 %v1594, %v1743
      %v1864 = vadd.f32 %v1595, %v1746
      %v1865 = vadd.f32 %v1596, %v1751
      %v1866 = vadd.f32 %v1597, %v1754
      %v1867 = vadd.f32 %v1598, %v1759
      %v1868 = vadd.f32 %v1599, %v1762
      %v1869 = vadd.f32 %v1600, %v1767
      %v1870 = vadd.f32 %v1601, %v1770
      %v1871 = vadd.f32 %v1602, %v1775
      %v1872 = vadd.f32 %v1603, %v1778
      %v1873 = vadd.f32 %v1604, %v1783
      %v1874 = vadd.f32 %v1605, %v1786
      %v1875 = vadd.f32 %v1606, %v1791
      %v1876 = vadd.f32 %v1607, %v1794
      %v1877 = vadd.f32 %v1608, %v1799
      %v1878 = vadd.f32 %v1609, %v1802
      %v1879 = vadd.f32 %v1610, %v1807
      %v1880 = vadd.f32 %v1611, %v1810
      %v1881 = vadd.f32 %v1612, %v1815
      %v1882 = vadd.f32 %v1613, %v1818
      %v1883 = vadd.f32 %v1614, %v1823
      %v1884 = vadd.f32 %v1615, %v1826
      %v1885 = vadd.f32 %v1616, %v1831
      %v1886 = vadd.f32 %v1617, %v1834
      %v1887 = vadd.f32 %v1618, %v1839
      %v1888 = vadd.f32 %v1619, %v1842
      %v1889 = vadd.f32 %v1620, %v1847
      %v1890 = vadd.f32 %v1621, %v1850
      %v1891 = vadd.f32 %v1622, %v1855
      %v1892 = vadd.f32 %v1623, %v1858
      %v1893 = vrot.slane %v328, 2
      %v1894 = vrot.slane %v329, 2
      %v1895 = vsel %vm978, %v1893, %v1894
      %v1896 = vrot.slane %v330, 2
      %v1897 = vsel %vm978, %v1894, %v1896
      %v1900 = vpack.c.bf16 %v1897, %v1895
      %s1901 = scalar_lea.vmem %s1, 320
      %v1902 = vld [vmem:[%s1901] sm:$0xf]
      %v1903 = vld [vmem:[%s1901 + $0x4] sm:$0xf]
      %v1904 = vld [vmem:[%s1901 + $0x8] sm:$0xf]
      %v1905 = vld [vmem:[%s1901 + $0xc] sm:$0xf]
      %v1906 = vld [vmem:[%s1901 + $0x10] sm:$0xf]
      %v1907 = vld [vmem:[%s1901 + $0x14] sm:$0xf]
      %v1908 = vld [vmem:[%s1901 + $0x18] sm:$0xf]
      %v1909 = vld [vmem:[%s1901 + $0x1c] sm:$0xf]
      %v1910 = vld [vmem:[%s1901 + $0x20] sm:$0xf]
      %v1911 = vld [vmem:[%s1901 + $0x24] sm:$0xf]
      %v1912 = vld [vmem:[%s1901 + $0x28] sm:$0xf]
      %v1913 = vld [vmem:[%s1901 + $0x2c] sm:$0xf]
      %v1914 = vld [vmem:[%s1901 + $0x30] sm:$0xf]
      %v1915 = vld [vmem:[%s1901 + $0x34] sm:$0xf]
      %v1916 = vld [vmem:[%s1901 + $0x38] sm:$0xf]
      %v1917 = vld [vmem:[%s1901 + $0x3c] sm:$0xf]
      %v1934 = vunpack.c.l.b16 %v1902
      %v1935 = vunpack.c.l.b16 %v1903
      %v1936 = vunpack.c.l.b16 %v1904
      %v1937 = vunpack.c.l.b16 %v1905
      %v1938 = vunpack.c.l.b16 %v1906
      %v1939 = vunpack.c.l.b16 %v1907
      %v1940 = vunpack.c.l.b16 %v1908
      %v1941 = vunpack.c.l.b16 %v1909
      %v1942 = vunpack.c.l.b16 %v1910
      %v1943 = vunpack.c.l.b16 %v1911
      %v1944 = vunpack.c.l.b16 %v1912
      %v1945 = vunpack.c.l.b16 %v1913
      %v1946 = vunpack.c.l.b16 %v1914
      %v1947 = vunpack.c.l.b16 %v1915
      %v1948 = vunpack.c.l.b16 %v1916
      %v1949 = vunpack.c.l.b16 %v1917
      %v1950 = vpack.c.b16 %v1935, %v1934
      %v1951 = vpack.c.b16 %v1937, %v1936
      %v1952 = vpack.c.b16 %v1939, %v1938
      %v1953 = vpack.c.b16 %v1941, %v1940
      %v1954 = vpack.c.b16 %v1943, %v1942
      %v1955 = vpack.c.b16 %v1945, %v1944
      %v1956 = vpack.c.b16 %v1947, %v1946
      %v1957 = vpack.c.b16 %v1949, %v1948
      %1966 = vmatprep.subr.bf16.mxu0 0
      %1967 = vmatpush1.bf16.msra.mxu0 %v1950
      %1968 = vmatprep.subr.bf16.mxu0 0
      %1969 = vmatpush1.bf16.msra.mxu0 %v1951
      %1970 = vmatprep.subr.bf16.mxu0 0
      %1971 = vmatpush1.bf16.msra.mxu0 %v1952
      %1972 = vmatprep.subr.bf16.mxu0 0
      %1973 = vmatpush1.bf16.msra.mxu0 %v1953
      %1974 = vmatprep.subr.bf16.mxu0 0
      %1975 = vmatpush1.bf16.msra.mxu0 %v1954
      %1976 = vmatprep.subr.bf16.mxu0 0
      %1977 = vmatpush1.bf16.msra.mxu0 %v1955
      %1978 = vmatprep.subr.bf16.mxu0 0
      %1979 = vmatpush1.bf16.msra.mxu0 %v1956
      %1980 = vmatprep.subr.bf16.mxu0 0
      %1981 = vmatpush1.bf16.msra.mxu0 %v1957
      %1982 = vmatprep.subr.bf16.mxu0 0
      %1983 = vmatpush1.bf16.msra.mxu0 0
      %1984 = vmatprep.subr.bf16.mxu0 0
      %1985 = vmatpush1.bf16.msra.mxu0 0
      %1986 = vmatprep.subr.bf16.mxu0 0
      %1987 = vmatpush1.bf16.msra.mxu0 0
      %1988 = vmatprep.subr.bf16.mxu0 0
      %1989 = vmatpush1.bf16.msra.mxu0 0
      %1990 = vmatprep.subr.bf16.mxu0 0
      %1991 = vmatpush1.bf16.msra.mxu0 0
      %1992 = vmatprep.subr.bf16.mxu0 0
      %1993 = vmatpush1.bf16.msra.mxu0 0
      %1994 = vmatprep.subr.bf16.mxu0 0
      %1995 = vmatpush1.bf16.msra.mxu0 0
      %1996 = vmatprep.subr.bf16.mxu0 0
      %1997 = vmatpush1.bf16.msra.mxu0 0
      %1998 = vmatprep.mubr.bf16.mxu0 0
      %1999 = vmatmul.mubr.bf16.gmra.mrb[0].mxu0 %v1092
      %v2000 = vpop.f32.mrb[0].mxu0
      %v2001 = vadd.f32 0.0, %v2000
      %v2002 = vpop.f32.mrb[0].mxu0
      %v2003 = vpop.f32.mrb[0].mxu0
      %v2004 = vadd.f32 0.0, %v2003
      %v2005 = vpop.f32.mrb[0].mxu0
      %2006 = vmatprep.mubr.bf16.mxu0 0
      %2007 = vmatmul.mubr.bf16.gmra.mrb[0].mxu0 %v1093
      %v2008 = vpop.f32.mrb[0].mxu0
      %v2009 = vadd.f32 0.0, %v2008
      %v2010 = vpop.f32.mrb[0].mxu0
      %v2011 = vpop.f32.mrb[0].mxu0
      %v2012 = vadd.f32 0.0, %v2011
      %v2013 = vpop.f32.mrb[0].mxu0
      %2014 = vmatprep.mubr.bf16.mxu0 0
      %2015 = vmatmul.mubr.bf16.gmra.mrb[0].mxu0 %v1094
      %v2016 = vpop.f32.mrb[0].mxu0
      %v2017 = vadd.f32 0.0, %v2016
      %v2018 = vpop.f32.mrb[0].mxu0
      %v2019 = vpop.f32.mrb[0].mxu0
      %v2020 = vadd.f32 0.0, %v2019
      %v2021 = vpop.f32.mrb[0].mxu0
      %2022 = vmatprep.mubr.bf16.mxu0 0
      %2023 = vmatmul.mubr.bf16.gmra.mrb[0].mxu0 %v1095
      %v2024 = vpop.f32.mrb[0].mxu0
      %v2025 = vadd.f32 0.0, %v2024
      %v2026 = vpop.f32.mrb[0].mxu0
      %v2027 = vpop.f32.mrb[0].mxu0
      %v2028 = vadd.f32 0.0, %v2027
      %v2029 = vpop.f32.mrb[0].mxu0
      %2030 = vmatprep.mubr.bf16.mxu0 0
      %2031 = vmatmul.mubr.bf16.gmra.mrb[0].mxu0 %v1096
      %v2032 = vpop.f32.mrb[0].mxu0
      %v2033 = vadd.f32 0.0, %v2032
      %v2034 = vpop.f32.mrb[0].mxu0
      %v2035 = vpop.f32.mrb[0].mxu0
      %v2036 = vadd.f32 0.0, %v2035
      %v2037 = vpop.f32.mrb[0].mxu0
      %2038 = vmatprep.mubr.bf16.mxu0 0
      %2039 = vmatmul.mubr.bf16.gmra.mrb[0].mxu0 %v1097
      %v2040 = vpop.f32.mrb[0].mxu0
      %v2041 = vadd.f32 0.0, %v2040
      %v2042 = vpop.f32.mrb[0].mxu0
      %v2043 = vpop.f32.mrb[0].mxu0
      %v2044 = vadd.f32 0.0, %v2043
      %v2045 = vpop.f32.mrb[0].mxu0
      %2046 = vmatprep.mubr.bf16.mxu0 0
      %2047 = vmatmul.mubr.bf16.gmra.mrb[0].mxu0 %v1098
      %v2048 = vpop.f32.mrb[0].mxu0
      %v2049 = vadd.f32 0.0, %v2048
      %v2050 = vpop.f32.mrb[0].mxu0
      %v2051 = vpop.f32.mrb[0].mxu0
      %v2052 = vadd.f32 0.0, %v2051
      %v2053 = vpop.f32.mrb[0].mxu0
      %2054 = vmatprep.mubr.bf16.mxu0 0
      %2055 = vmatmul.mubr.bf16.gmra.mrb[0].mxu0 %v1099
      %v2056 = vpop.f32.mrb[0].mxu0
      %v2057 = vadd.f32 0.0, %v2056
      %v2058 = vpop.f32.mrb[0].mxu0
      %v2059 = vpop.f32.mrb[0].mxu0
      %v2060 = vadd.f32 0.0, %v2059
      %v2061 = vpop.f32.mrb[0].mxu0
      %2062 = vmatprep.mubr.bf16.mxu0 0
      %2063 = vmatmul.mubr.bf16.gmra.mrb[0].mxu0 %v1100
      %v2064 = vpop.f32.mrb[0].mxu0
      %v2065 = vadd.f32 0.0, %v2064
      %v2066 = vpop.f32.mrb[0].mxu0
      %v2067 = vpop.f32.mrb[0].mxu0
      %v2068 = vadd.f32 0.0, %v2067
      %v2069 = vpop.f32.mrb[0].mxu0
      %2070 = vmatprep.mubr.bf16.mxu0 0
      %2071 = vmatmul.mubr.bf16.gmra.mrb[0].mxu0 %v1101
      %v2072 = vpop.f32.mrb[0].mxu0
      %v2073 = vadd.f32 0.0, %v2072
      %v2074 = vpop.f32.mrb[0].mxu0
      %v2075 = vpop.f32.mrb[0].mxu0
      %v2076 = vadd.f32 0.0, %v2075
      %v2077 = vpop.f32.mrb[0].mxu0
      %2078 = vmatprep.mubr.bf16.mxu0 0
      %2079 = vmatmul.mubr.bf16.gmra.mrb[0].mxu0 %v1102
      %v2080 = vpop.f32.mrb[0].mxu0
      %v2081 = vadd.f32 0.0, %v2080
      %v2082 = vpop.f32.mrb[0].mxu0
      %v2083 = vpop.f32.mrb[0].mxu0
      %v2084 = vadd.f32 0.0, %v2083
      %v2085 = vpop.f32.mrb[0].mxu0
      %2086 = vmatprep.mubr.bf16.mxu0 0
      %2087 = vmatmul.mubr.bf16.gmra.mrb[0].mxu0 %v1103
      %v2088 = vpop.f32.mrb[0].mxu0
      %v2089 = vadd.f32 0.0, %v2088
      %v2090 = vpop.f32.mrb[0].mxu0
      %v2091 = vpop.f32.mrb[0].mxu0
      %v2092 = vadd.f32 0.0, %v2091
      %v2093 = vpop.f32.mrb[0].mxu0
      %2094 = vmatprep.mubr.bf16.mxu0 0
      %2095 = vmatmul.mubr.bf16.gmra.mrb[0].mxu0 %v1104
      %v2096 = vpop.f32.mrb[0].mxu0
      %v2097 = vadd.f32 0.0, %v2096
      %v2098 = vpop.f32.mrb[0].mxu0
      %v2099 = vpop.f32.mrb[0].mxu0
      %v2100 = vadd.f32 0.0, %v2099
      %v2101 = vpop.f32.mrb[0].mxu0
      %2102 = vmatprep.mubr.bf16.mxu0 0
      %2103 = vmatmul.mubr.bf16.gmra.mrb[0].mxu0 %v1105
      %v2104 = vpop.f32.mrb[0].mxu0
      %v2105 = vadd.f32 0.0, %v2104
      %v2106 = vpop.f32.mrb[0].mxu0
      %v2107 = vpop.f32.mrb[0].mxu0
      %v2108 = vadd.f32 0.0, %v2107
      %v2109 = vpop.f32.mrb[0].mxu0
      %2110 = vmatprep.mubr.bf16.mxu0 0
      %2111 = vmatmul.mubr.bf16.gmra.mrb[0].mxu0 %v1106
      %v2112 = vpop.f32.mrb[0].mxu0
      %v2113 = vadd.f32 0.0, %v2112
      %v2114 = vpop.f32.mrb[0].mxu0
      %v2115 = vpop.f32.mrb[0].mxu0
      %v2116 = vadd.f32 0.0, %v2115
      %v2117 = vpop.f32.mrb[0].mxu0
      %2118 = vmatprep.mubr.bf16.mxu0 0
      %2119 = vmatmul.mubr.bf16.gmra.mrb[0].mxu0 %v1900
      %v2120 = vpop.f32.mrb[0].mxu0
      %v2121 = vadd.f32 0.0, %v2120
      %v2122 = vpop.f32.mrb[0].mxu0
      %v2123 = vpop.f32.mrb[0].mxu0
      %v2124 = vadd.f32 0.0, %v2123
      %v2125 = vpop.f32.mrb[0].mxu0
      %2126 = vdwg.mxu0
      %v2127 = vadd.f32 %v1861, %v2001
      %v2128 = vadd.f32 %v1862, %v2004
      %v2129 = vadd.f32 %v1863, %v2009
      %v2130 = vadd.f32 %v1864, %v2012
      %v2131 = vadd.f32 %v1865, %v2017
      %v2132 = vadd.f32 %v1866, %v2020
      %v2133 = vadd.f32 %v1867, %v2025
      %v2134 = vadd.f32 %v1868, %v2028
      %v2135 = vadd.f32 %v1869, %v2033
      %v2136 = vadd.f32 %v1870, %v2036
      %v2137 = vadd.f32 %v1871, %v2041
      %v2138 = vadd.f32 %v1872, %v2044
      %v2139 = vadd.f32 %v1873, %v2049
      %v2140 = vadd.f32 %v1874, %v2052
      %v2141 = vadd.f32 %v1875, %v2057
      %v2142 = vadd.f32 %v1876, %v2060
      %v2143 = vadd.f32 %v1877, %v2065
      %v2144 = vadd.f32 %v1878, %v2068
      %v2145 = vadd.f32 %v1879, %v2073
      %v2146 = vadd.f32 %v1880, %v2076
      %v2147 = vadd.f32 %v1881, %v2081
      %v2148 = vadd.f32 %v1882, %v2084
      %v2149 = vadd.f32 %v1883, %v2089
      %v2150 = vadd.f32 %v1884, %v2092
      %v2151 = vadd.f32 %v1885, %v2097
      %v2152 = vadd.f32 %v1886, %v2100
      %v2153 = vadd.f32 %v1887, %v2105
      %v2154 = vadd.f32 %v1888, %v2108
      %v2155 = vadd.f32 %v1889, %v2113
      %v2156 = vadd.f32 %v1890, %v2116
      %v2157 = vadd.f32 %v1891, %v2121
      %v2158 = vadd.f32 %v1892, %v2124
      %v2159 = vpack.c.bf16 %v332, %v331
      %s2160 = scalar_lea.vmem %s1, 384
      %v2161 = vld [vmem:[%s2160] sm:$0xf]
      %v2162 = vld [vmem:[%s2160 + $0x4] sm:$0xf]
      %v2163 = vld [vmem:[%s2160 + $0x8] sm:$0xf]
      %v2164 = vld [vmem:[%s2160 + $0xc] sm:$0xf]
      %v2165 = vld [vmem:[%s2160 + $0x10] sm:$0xf]
      %v2166 = vld [vmem:[%s2160 + $0x14] sm:$0xf]
      %v2167 = vld [vmem:[%s2160 + $0x18] sm:$0xf]
      %v2168 = vld [vmem:[%s2160 + $0x1c] sm:$0xf]
      %v2169 = vld [vmem:[%s2160 + $0x20] sm:$0xf]
      %v2170 = vld [vmem:[%s2160 + $0x24] sm:$0xf]
      %v2171 = vld [vmem:[%s2160 + $0x28] sm:$0xf]
      %v2172 = vld [vmem:[%s2160 + $0x2c] sm:$0xf]
      %v2173 = vld [vmem:[%s2160 + $0x30] sm:$0xf]
      %v2174 = vld [vmem:[%s2160 + $0x34] sm:$0xf]
      %v2175 = vld [vmem:[%s2160 + $0x38] sm:$0xf]
      %v2176 = vld [vmem:[%s2160 + $0x3c] sm:$0xf]
      %v2193 = vunpack.c.l.b16 %v2161
      %v2194 = vunpack.c.l.b16 %v2162
      %v2195 = vunpack.c.l.b16 %v2163
      %v2196 = vunpack.c.l.b16 %v2164
      %v2197 = vunpack.c.l.b16 %v2165
      %v2198 = vunpack.c.l.b16 %v2166
      %v2199 = vunpack.c.l.b16 %v2167
      %v2200 = vunpack.c.l.b16 %v2168
      %v2201 = vunpack.c.l.b16 %v2169
      %v2202 = vunpack.c.l.b16 %v2170
      %v2203 = vunpack.c.l.b16 %v2171
      %v2204 = vunpack.c.l.b16 %v2172
      %v2205 = vunpack.c.l.b16 %v2173
      %v2206 = vunpack.c.l.b16 %v2174
      %v2207 = vunpack.c.l.b16 %v2175
      %v2208 = vunpack.c.l.b16 %v2176
      %v2209 = vpack.c.b16 %v2194, %v2193
      %v2210 = vpack.c.b16 %v2196, %v2195
      %v2211 = vpack.c.b16 %v2198, %v2197
      %v2212 = vpack.c.b16 %v2200, %v2199
      %v2213 = vpack.c.b16 %v2202, %v2201
      %v2214 = vpack.c.b16 %v2204, %v2203
      %v2215 = vpack.c.b16 %v2206, %v2205
      %v2216 = vpack.c.b16 %v2208, %v2207
      %2225 = vmatprep.subr.bf16.mxu0 0
      %2226 = vmatpush1.bf16.msra.mxu0 %v2209
      %2227 = vmatprep.subr.bf16.mxu0 0
      %2228 = vmatpush1.bf16.msra.mxu0 %v2210
      %2229 = vmatprep.subr.bf16.mxu0 0
      %2230 = vmatpush1.bf16.msra.mxu0 %v2211
      %2231 = vmatprep.subr.bf16.mxu0 0
      %2232 = vmatpush1.bf16.msra.mxu0 %v2212
      %2233 = vmatprep.subr.bf16.mxu0 0
      %2234 = vmatpush1.bf16.msra.mxu0 %v2213
      %2235 = vmatprep.subr.bf16.mxu0 0
      %2236 = vmatpush1.bf16.msra.mxu0 %v2214
      %2237 = vmatprep.subr.bf16.mxu0 0
      %2238 = vmatpush1.bf16.msra.mxu0 %v2215
      %2239 = vmatprep.subr.bf16.mxu0 0
      %2240 = vmatpush1.bf16.msra.mxu0 %v2216
      %2241 = vmatprep.subr.bf16.mxu0 0
      %2242 = vmatpush1.bf16.msra.mxu0 0
      %2243 = vmatprep.subr.bf16.mxu0 0
      %2244 = vmatpush1.bf16.msra.mxu0 0
      %2245 = vmatprep.subr.bf16.mxu0 0
      %2246 = vmatpush1.bf16.msra.mxu0 0
      %2247 = vmatprep.subr.bf16.mxu0 0
      %2248 = vmatpush1.bf16.msra.mxu0 0
      %2249 = vmatprep.subr.bf16.mxu0 0
      %2250 = vmatpush1.bf16.msra.mxu0 0
      %2251 = vmatprep.subr.bf16.mxu0 0
      %2252 = vmatpush1.bf16.msra.mxu0 0
      %2253 = vmatprep.subr.bf16.mxu0 0
      %2254 = vmatpush1.bf16.msra.mxu0 0
      %2255 = vmatprep.subr.bf16.mxu0 0
      %2256 = vmatpush1.bf16.msra.mxu0 0
      %2257 = vmatprep.mubr.bf16.mxu0 0
      %2258 = vmatmul.mubr.bf16.gmra.mrb[0].mxu0 %v336
      %v2259 = vpop.f32.mrb[0].mxu0
      %v2260 = vadd.f32 0.0, %v2259
      %v2261 = vpop.f32.mrb[0].mxu0
      %v2262 = vpop.f32.mrb[0].mxu0
      %v2263 = vadd.f32 0.0, %v2262
      %v2264 = vpop.f32.mrb[0].mxu0
      %2265 = vmatprep.mubr.bf16.mxu0 0
      %2266 = vmatmul.mubr.bf16.gmra.mrb[0].mxu0 %v337
      %v2267 = vpop.f32.mrb[0].mxu0
      %v2268 = vadd.f32 0.0, %v2267
      %v2269 = vpop.f32.mrb[0].mxu0
      %v2270 = vpop.f32.mrb[0].mxu0
      %v2271 = vadd.f32 0.0, %v2270
      %v2272 = vpop.f32.mrb[0].mxu0
      %2273 = vmatprep.mubr.bf16.mxu0 0
      %2274 = vmatmul.mubr.bf16.gmra.mrb[0].mxu0 %v338
      %v2275 = vpop.f32.mrb[0].mxu0
      %v2276 = vadd.f32 0.0, %v2275
      %v2277 = vpop.f32.mrb[0].mxu0
      %v2278 = vpop.f32.mrb[0].mxu0
      %v2279 = vadd.f32 0.0, %v2278
      %v2280 = vpop.f32.mrb[0].mxu0
      %2281 = vmatprep.mubr.bf16.mxu0 0
      %2282 = vmatmul.mubr.bf16.gmra.mrb[0].mxu0 %v339
      %v2283 = vpop.f32.mrb[0].mxu0
      %v2284 = vadd.f32 0.0, %v2283
      %v2285 = vpop.f32.mrb[0].mxu0
      %v2286 = vpop.f32.mrb[0].mxu0
      %v2287 = vadd.f32 0.0, %v2286
      %v2288 = vpop.f32.mrb[0].mxu0
      %2289 = vmatprep.mubr.bf16.mxu0 0
      %2290 = vmatmul.mubr.bf16.gmra.mrb[0].mxu0 %v340
      %v2291 = vpop.f32.mrb[0].mxu0
      %v2292 = vadd.f32 0.0, %v2291
      %v2293 = vpop.f32.mrb[0].mxu0
      %v2294 = vpop.f32.mrb[0].mxu0
      %v2295 = vadd.f32 0.0, %v2294
      %v2296 = vpop.f32.mrb[0].mxu0
      %2297 = vmatprep.mubr.bf16.mxu0 0
      %2298 = vmatmul.mubr.bf16.gmra.mrb[0].mxu0 %v341
      %v2299 = vpop.f32.mrb[0].mxu0
      %v2300 = vadd.f32 0.0, %v2299
      %v2301 = vpop.f32.mrb[0].mxu0
      %v2302 = vpop.f32.mrb[0].mxu0
      %v2303 = vadd.f32 0.0, %v2302
      %v2304 = vpop.f32.mrb[0].mxu0
      %2305 = vmatprep.mubr.bf16.mxu0 0
      %2306 = vmatmul.mubr.bf16.gmra.mrb[0].mxu0 %v342
      %v2307 = vpop.f32.mrb[0].mxu0
      %v2308 = vadd.f32 0.0, %v2307
      %v2309 = vpop.f32.mrb[0].mxu0
      %v2310 = vpop.f32.mrb[0].mxu0
      %v2311 = vadd.f32 0.0, %v2310
      %v2312 = vpop.f32.mrb[0].mxu0
      %2313 = vmatprep.mubr.bf16.mxu0 0
      %2314 = vmatmul.mubr.bf16.gmra.mrb[0].mxu0 %v343
      %v2315 = vpop.f32.mrb[0].mxu0
      %v2316 = vadd.f32 0.0, %v2315
      %v2317 = vpop.f32.mrb[0].mxu0
      %v2318 = vpop.f32.mrb[0].mxu0
      %v2319 = vadd.f32 0.0, %v2318
      %v2320 = vpop.f32.mrb[0].mxu0
      %2321 = vmatprep.mubr.bf16.mxu0 0
      %2322 = vmatmul.mubr.bf16.gmra.mrb[0].mxu0 %v344
      %v2323 = vpop.f32.mrb[0].mxu0
      %v2324 = vadd.f32 0.0, %v2323
      %v2325 = vpop.f32.mrb[0].mxu0
      %v2326 = vpop.f32.mrb[0].mxu0
      %v2327 = vadd.f32 0.0, %v2326
      %v2328 = vpop.f32.mrb[0].mxu0
      %2329 = vmatprep.mubr.bf16.mxu0 0
      %2330 = vmatmul.mubr.bf16.gmra.mrb[0].mxu0 %v345
      %v2331 = vpop.f32.mrb[0].mxu0
      %v2332 = vadd.f32 0.0, %v2331
      %v2333 = vpop.f32.mrb[0].mxu0
      %v2334 = vpop.f32.mrb[0].mxu0
      %v2335 = vadd.f32 0.0, %v2334
      %v2336 = vpop.f32.mrb[0].mxu0
      %2337 = vmatprep.mubr.bf16.mxu0 0
      %2338 = vmatmul.mubr.bf16.gmra.mrb[0].mxu0 %v346
      %v2339 = vpop.f32.mrb[0].mxu0
      %v2340 = vadd.f32 0.0, %v2339
      %v2341 = vpop.f32.mrb[0].mxu0
      %v2342 = vpop.f32.mrb[0].mxu0
      %v2343 = vadd.f32 0.0, %v2342
      %v2344 = vpop.f32.mrb[0].mxu0
      %2345 = vmatprep.mubr.bf16.mxu0 0
      %2346 = vmatmul.mubr.bf16.gmra.mrb[0].mxu0 %v347
      %v2347 = vpop.f32.mrb[0].mxu0
      %v2348 = vadd.f32 0.0, %v2347
      %v2349 = vpop.f32.mrb[0].mxu0
      %v2350 = vpop.f32.mrb[0].mxu0
      %v2351 = vadd.f32 0.0, %v2350
      %v2352 = vpop.f32.mrb[0].mxu0
      %2353 = vmatprep.mubr.bf16.mxu0 0
      %2354 = vmatmul.mubr.bf16.gmra.mrb[0].mxu0 %v348
      %v2355 = vpop.f32.mrb[0].mxu0
      %v2356 = vadd.f32 0.0, %v2355
      %v2357 = vpop.f32.mrb[0].mxu0
      %v2358 = vpop.f32.mrb[0].mxu0
      %v2359 = vadd.f32 0.0, %v2358
      %v2360 = vpop.f32.mrb[0].mxu0
      %2361 = vmatprep.mubr.bf16.mxu0 0
      %2362 = vmatmul.mubr.bf16.gmra.mrb[0].mxu0 %v349
      %v2363 = vpop.f32.mrb[0].mxu0
      %v2364 = vadd.f32 0.0, %v2363
      %v2365 = vpop.f32.mrb[0].mxu0
      %v2366 = vpop.f32.mrb[0].mxu0
      %v2367 = vadd.f32 0.0, %v2366
      %v2368 = vpop.f32.mrb[0].mxu0
      %2369 = vmatprep.mubr.bf16.mxu0 0
      %2370 = vmatmul.mubr.bf16.gmra.mrb[0].mxu0 %v1365
      %v2371 = vpop.f32.mrb[0].mxu0
      %v2372 = vadd.f32 0.0, %v2371
      %v2373 = vpop.f32.mrb[0].mxu0
      %v2374 = vpop.f32.mrb[0].mxu0
      %v2375 = vadd.f32 0.0, %v2374
      %v2376 = vpop.f32.mrb[0].mxu0
      %2377 = vmatprep.mubr.bf16.mxu0 0
      %2378 = vmatmul.mubr.bf16.gmra.mrb[0].mxu0 %v2159
      %v2379 = vpop.f32.mrb[0].mxu0
      %v2380 = vadd.f32 0.0, %v2379
      %v2381 = vpop.f32.mrb[0].mxu0
      %v2382 = vpop.f32.mrb[0].mxu0
      %v2383 = vadd.f32 0.0, %v2382
      %v2384 = vpop.f32.mrb[0].mxu0
      %2385 = vdwg.mxu0
      %v2386 = vadd.f32 %v2127, %v2260
      %v2387 = vadd.f32 %v2128, %v2263
      %v2388 = vadd.f32 %v2129, %v2268
      %v2389 = vadd.f32 %v2130, %v2271
      %v2390 = vadd.f32 %v2131, %v2276
      %v2391 = vadd.f32 %v2132, %v2279
      %v2392 = vadd.f32 %v2133, %v2284
      %v2393 = vadd.f32 %v2134, %v2287
      %v2394 = vadd.f32 %v2135, %v2292
      %v2395 = vadd.f32 %v2136, %v2295
      %v2396 = vadd.f32 %v2137, %v2300
      %v2397 = vadd.f32 %v2138, %v2303
      %v2398 = vadd.f32 %v2139, %v2308
      %v2399 = vadd.f32 %v2140, %v2311
      %v2400 = vadd.f32 %v2141, %v2316
      %v2401 = vadd.f32 %v2142, %v2319
      %v2402 = vadd.f32 %v2143, %v2324
      %v2403 = vadd.f32 %v2144, %v2327
      %v2404 = vadd.f32 %v2145, %v2332
      %v2405 = vadd.f32 %v2146, %v2335
      %v2406 = vadd.f32 %v2147, %v2340
      %v2407 = vadd.f32 %v2148, %v2343
      %v2408 = vadd.f32 %v2149, %v2348
      %v2409 = vadd.f32 %v2150, %v2351
      %v2410 = vadd.f32 %v2151, %v2356
      %v2411 = vadd.f32 %v2152, %v2359
      %v2412 = vadd.f32 %v2153, %v2364
      %v2413 = vadd.f32 %v2154, %v2367
      %v2414 = vadd.f32 %v2155, %v2372
      %v2415 = vadd.f32 %v2156, %v2375
      %v2416 = vadd.f32 %v2157, %v2380
      %v2417 = vadd.f32 %v2158, %v2383
      %v2421 = vrot.slane %v331, 1
      %v2422 = vrot.slane %v332, 1
      %v2423 = vsel %vm414, %v2421, %v2422
      %v2424 = vrot.slane %v333, 1
      %v2425 = vsel %vm414, %v2422, %v2424
      %v2428 = vpack.c.bf16 %v2425, %v2423
      %s2429 = scalar_lea.vmem %s1, 448
      %v2430 = vld [vmem:[%s2429] sm:$0xf]
      %v2431 = vld [vmem:[%s2429 + $0x4] sm:$0xf]
      %v2432 = vld [vmem:[%s2429 + $0x8] sm:$0xf]
      %v2433 = vld [vmem:[%s2429 + $0xc] sm:$0xf]
      %v2434 = vld [vmem:[%s2429 + $0x10] sm:$0xf]
      %v2435 = vld [vmem:[%s2429 + $0x14] sm:$0xf]
      %v2436 = vld [vmem:[%s2429 + $0x18] sm:$0xf]
      %v2437 = vld [vmem:[%s2429 + $0x1c] sm:$0xf]
      %v2438 = vld [vmem:[%s2429 + $0x20] sm:$0xf]
      %v2439 = vld [vmem:[%s2429 + $0x24] sm:$0xf]
      %v2440 = vld [vmem:[%s2429 + $0x28] sm:$0xf]
      %v2441 = vld [vmem:[%s2429 + $0x2c] sm:$0xf]
      %v2442 = vld [vmem:[%s2429 + $0x30] sm:$0xf]
      %v2443 = vld [vmem:[%s2429 + $0x34] sm:$0xf]
      %v2444 = vld [vmem:[%s2429 + $0x38] sm:$0xf]
      %v2445 = vld [vmem:[%s2429 + $0x3c] sm:$0xf]
      %v2462 = vunpack.c.l.b16 %v2430
      %v2463 = vunpack.c.l.b16 %v2431
      %v2464 = vunpack.c.l.b16 %v2432
      %v2465 = vunpack.c.l.b16 %v2433
      %v2466 = vunpack.c.l.b16 %v2434
      %v2467 = vunpack.c.l.b16 %v2435
      %v2468 = vunpack.c.l.b16 %v2436
      %v2469 = vunpack.c.l.b16 %v2437
      %v2470 = vunpack.c.l.b16 %v2438
      %v2471 = vunpack.c.l.b16 %v2439
      %v2472 = vunpack.c.l.b16 %v2440
      %v2473 = vunpack.c.l.b16 %v2441
      %v2474 = vunpack.c.l.b16 %v2442
      %v2475 = vunpack.c.l.b16 %v2443
      %v2476 = vunpack.c.l.b16 %v2444
      %v2477 = vunpack.c.l.b16 %v2445
      %v2478 = vpack.c.b16 %v2463, %v2462
      %v2479 = vpack.c.b16 %v2465, %v2464
      %v2480 = vpack.c.b16 %v2467, %v2466
      %v2481 = vpack.c.b16 %v2469, %v2468
      %v2482 = vpack.c.b16 %v2471, %v2470
      %v2483 = vpack.c.b16 %v2473, %v2472
      %v2484 = vpack.c.b16 %v2475, %v2474
      %v2485 = vpack.c.b16 %v2477, %v2476
      %2494 = vmatprep.subr.bf16.mxu0 0
      %2495 = vmatpush1.bf16.msra.mxu0 %v2478
      %2496 = vmatprep.subr.bf16.mxu0 0
      %2497 = vmatpush1.bf16.msra.mxu0 %v2479
      %2498 = vmatprep.subr.bf16.mxu0 0
      %2499 = vmatpush1.bf16.msra.mxu0 %v2480
      %2500 = vmatprep.subr.bf16.mxu0 0
      %2501 = vmatpush1.bf16.msra.mxu0 %v2481
      %2502 = vmatprep.subr.bf16.mxu0 0
      %2503 = vmatpush1.bf16.msra.mxu0 %v2482
      %2504 = vmatprep.subr.bf16.mxu0 0
      %2505 = vmatpush1.bf16.msra.mxu0 %v2483
      %2506 = vmatprep.subr.bf16.mxu0 0
      %2507 = vmatpush1.bf16.msra.mxu0 %v2484
      %2508 = vmatprep.subr.bf16.mxu0 0
      %2509 = vmatpush1.bf16.msra.mxu0 %v2485
      %2510 = vmatprep.subr.bf16.mxu0 0
      %2511 = vmatpush1.bf16.msra.mxu0 0
      %2512 = vmatprep.subr.bf16.mxu0 0
      %2513 = vmatpush1.bf16.msra.mxu0 0
      %2514 = vmatprep.subr.bf16.mxu0 0
      %2515 = vmatpush1.bf16.msra.mxu0 0
      %2516 = vmatprep.subr.bf16.mxu0 0
      %2517 = vmatpush1.bf16.msra.mxu0 0
      %2518 = vmatprep.subr.bf16.mxu0 0
      %2519 = vmatpush1.bf16.msra.mxu0 0
      %2520 = vmatprep.subr.bf16.mxu0 0
      %2521 = vmatpush1.bf16.msra.mxu0 0
      %2522 = vmatprep.subr.bf16.mxu0 0
      %2523 = vmatpush1.bf16.msra.mxu0 0
      %2524 = vmatprep.subr.bf16.mxu0 0
      %2525 = vmatpush1.bf16.msra.mxu0 0
      %2526 = vmatprep.mubr.bf16.mxu0 0
      %2527 = vmatmul.mubr.bf16.gmra.mrb[0].mxu0 %v529
      %v2528 = vpop.f32.mrb[0].mxu0
      %v2529 = vadd.f32 0.0, %v2528
      %v2530 = vpop.f32.mrb[0].mxu0
      %v2531 = vpop.f32.mrb[0].mxu0
      %v2532 = vadd.f32 0.0, %v2531
      %v2533 = vpop.f32.mrb[0].mxu0
      %2534 = vmatprep.mubr.bf16.mxu0 0
      %2535 = vmatmul.mubr.bf16.gmra.mrb[0].mxu0 %v530
      %v2536 = vpop.f32.mrb[0].mxu0
      %v2537 = vadd.f32 0.0, %v2536
      %v2538 = vpop.f32.mrb[0].mxu0
      %v2539 = vpop.f32.mrb[0].mxu0
      %v2540 = vadd.f32 0.0, %v2539
      %v2541 = vpop.f32.mrb[0].mxu0
      %2542 = vmatprep.mubr.bf16.mxu0 0
      %2543 = vmatmul.mubr.bf16.gmra.mrb[0].mxu0 %v531
      %v2544 = vpop.f32.mrb[0].mxu0
      %v2545 = vadd.f32 0.0, %v2544
      %v2546 = vpop.f32.mrb[0].mxu0
      %v2547 = vpop.f32.mrb[0].mxu0
      %v2548 = vadd.f32 0.0, %v2547
      %v2549 = vpop.f32.mrb[0].mxu0
      %2550 = vmatprep.mubr.bf16.mxu0 0
      %2551 = vmatmul.mubr.bf16.gmra.mrb[0].mxu0 %v532
      %v2552 = vpop.f32.mrb[0].mxu0
      %v2553 = vadd.f32 0.0, %v2552
      %v2554 = vpop.f32.mrb[0].mxu0
      %v2555 = vpop.f32.mrb[0].mxu0
      %v2556 = vadd.f32 0.0, %v2555
      %v2557 = vpop.f32.mrb[0].mxu0
      %2558 = vmatprep.mubr.bf16.mxu0 0
      %2559 = vmatmul.mubr.bf16.gmra.mrb[0].mxu0 %v533
      %v2560 = vpop.f32.mrb[0].mxu0
      %v2561 = vadd.f32 0.0, %v2560
      %v2562 = vpop.f32.mrb[0].mxu0
      %v2563 = vpop.f32.mrb[0].mxu0
      %v2564 = vadd.f32 0.0, %v2563
      %v2565 = vpop.f32.mrb[0].mxu0
      %2566 = vmatprep.mubr.bf16.mxu0 0
      %2567 = vmatmul.mubr.bf16.gmra.mrb[0].mxu0 %v534
      %v2568 = vpop.f32.mrb[0].mxu0
      %v2569 = vadd.f32 0.0, %v2568
      %v2570 = vpop.f32.mrb[0].mxu0
      %v2571 = vpop.f32.mrb[0].mxu0
      %v2572 = vadd.f32 0.0, %v2571
      %v2573 = vpop.f32.mrb[0].mxu0
      %2574 = vmatprep.mubr.bf16.mxu0 0
      %2575 = vmatmul.mubr.bf16.gmra.mrb[0].mxu0 %v535
      %v2576 = vpop.f32.mrb[0].mxu0
      %v2577 = vadd.f32 0.0, %v2576
      %v2578 = vpop.f32.mrb[0].mxu0
      %v2579 = vpop.f32.mrb[0].mxu0
      %v2580 = vadd.f32 0.0, %v2579
      %v2581 = vpop.f32.mrb[0].mxu0
      %2582 = vmatprep.mubr.bf16.mxu0 0
      %2583 = vmatmul.mubr.bf16.gmra.mrb[0].mxu0 %v536
      %v2584 = vpop.f32.mrb[0].mxu0
      %v2585 = vadd.f32 0.0, %v2584
      %v2586 = vpop.f32.mrb[0].mxu0
      %v2587 = vpop.f32.mrb[0].mxu0
      %v2588 = vadd.f32 0.0, %v2587
      %v2589 = vpop.f32.mrb[0].mxu0
      %2590 = vmatprep.mubr.bf16.mxu0 0
      %2591 = vmatmul.mubr.bf16.gmra.mrb[0].mxu0 %v537
      %v2592 = vpop.f32.mrb[0].mxu0
      %v2593 = vadd.f32 0.0, %v2592
      %v2594 = vpop.f32.mrb[0].mxu0
      %v2595 = vpop.f32.mrb[0].mxu0
      %v2596 = vadd.f32 0.0, %v2595
      %v2597 = vpop.f32.mrb[0].mxu0
      %2598 = vmatprep.mubr.bf16.mxu0 0
      %2599 = vmatmul.mubr.bf16.gmra.mrb[0].mxu0 %v538
      %v2600 = vpop.f32.mrb[0].mxu0
      %v2601 = vadd.f32 0.0, %v2600
      %v2602 = vpop.f32.mrb[0].mxu0
      %v2603 = vpop.f32.mrb[0].mxu0
      %v2604 = vadd.f32 0.0, %v2603
      %v2605 = vpop.f32.mrb[0].mxu0
      %2606 = vmatprep.mubr.bf16.mxu0 0
      %2607 = vmatmul.mubr.bf16.gmra.mrb[0].mxu0 %v539
      %v2608 = vpop.f32.mrb[0].mxu0
      %v2609 = vadd.f32 0.0, %v2608
      %v2610 = vpop.f32.mrb[0].mxu0
      %v2611 = vpop.f32.mrb[0].mxu0
      %v2612 = vadd.f32 0.0, %v2611
      %v2613 = vpop.f32.mrb[0].mxu0
      %2614 = vmatprep.mubr.bf16.mxu0 0
      %2615 = vmatmul.mubr.bf16.gmra.mrb[0].mxu0 %v540
      %v2616 = vpop.f32.mrb[0].mxu0
      %v2617 = vadd.f32 0.0, %v2616
      %v2618 = vpop.f32.mrb[0].mxu0
      %v2619 = vpop.f32.mrb[0].mxu0
      %v2620 = vadd.f32 0.0, %v2619
      %v2621 = vpop.f32.mrb[0].mxu0
      %2622 = vmatprep.mubr.bf16.mxu0 0
      %2623 = vmatmul.mubr.bf16.gmra.mrb[0].mxu0 %v541
      %v2624 = vpop.f32.mrb[0].mxu0
      %v2625 = vadd.f32 0.0, %v2624
      %v2626 = vpop.f32.mrb[0].mxu0
      %v2627 = vpop.f32.mrb[0].mxu0
      %v2628 = vadd.f32 0.0, %v2627
      %v2629 = vpop.f32.mrb[0].mxu0
      %2630 = vmatprep.mubr.bf16.mxu0 0
      %2631 = vmatmul.mubr.bf16.gmra.mrb[0].mxu0 %v542
      %v2632 = vpop.f32.mrb[0].mxu0
      %v2633 = vadd.f32 0.0, %v2632
      %v2634 = vpop.f32.mrb[0].mxu0
      %v2635 = vpop.f32.mrb[0].mxu0
      %v2636 = vadd.f32 0.0, %v2635
      %v2637 = vpop.f32.mrb[0].mxu0
      %2638 = vmatprep.mubr.bf16.mxu0 0
      %2639 = vmatmul.mubr.bf16.gmra.mrb[0].mxu0 %v1634
      %v2640 = vpop.f32.mrb[0].mxu0
      %v2641 = vadd.f32 0.0, %v2640
      %v2642 = vpop.f32.mrb[0].mxu0
      %v2643 = vpop.f32.mrb[0].mxu0
      %v2644 = vadd.f32 0.0, %v2643
      %v2645 = vpop.f32.mrb[0].mxu0
      %2646 = vmatprep.mubr.bf16.mxu0 0
      %2647 = vmatmul.mubr.bf16.gmra.mrb[0].mxu0 %v2428
      %v2648 = vpop.f32.mrb[0].mxu0
      %v2649 = vadd.f32 0.0, %v2648
      %v2650 = vpop.f32.mrb[0].mxu0
      %v2651 = vpop.f32.mrb[0].mxu0
      %v2652 = vadd.f32 0.0, %v2651
      %v2653 = vpop.f32.mrb[0].mxu0
      %2654 = vdwg.mxu0
      %v2655 = vadd.f32 %v2386, %v2529
      %v2656 = vadd.f32 %v2387, %v2532
      %v2657 = vadd.f32 %v2388, %v2537
      %v2658 = vadd.f32 %v2389, %v2540
      %v2659 = vadd.f32 %v2390, %v2545
      %v2660 = vadd.f32 %v2391, %v2548
      %v2661 = vadd.f32 %v2392, %v2553
      %v2662 = vadd.f32 %v2393, %v2556
      %v2663 = vadd.f32 %v2394, %v2561
      %v2664 = vadd.f32 %v2395, %v2564
      %v2665 = vadd.f32 %v2396, %v2569
      %v2666 = vadd.f32 %v2397, %v2572
      %v2667 = vadd.f32 %v2398, %v2577
      %v2668 = vadd.f32 %v2399, %v2580
      %v2669 = vadd.f32 %v2400, %v2585
      %v2670 = vadd.f32 %v2401, %v2588
      %v2671 = vadd.f32 %v2402, %v2593
      %v2672 = vadd.f32 %v2403, %v2596
      %v2673 = vadd.f32 %v2404, %v2601
      %v2674 = vadd.f32 %v2405, %v2604
      %v2675 = vadd.f32 %v2406, %v2609
      %v2676 = vadd.f32 %v2407, %v2612
      %v2677 = vadd.f32 %v2408, %v2617
      %v2678 = vadd.f32 %v2409, %v2620
      %v2679 = vadd.f32 %v2410, %v2625
      %v2680 = vadd.f32 %v2411, %v2628
      %v2681 = vadd.f32 %v2412, %v2633
      %v2682 = vadd.f32 %v2413, %v2636
      %v2683 = vadd.f32 %v2414, %v2641
      %v2684 = vadd.f32 %v2415, %v2644
      %v2685 = vadd.f32 %v2416, %v2649
      %v2686 = vadd.f32 %v2417, %v2652
      %v2687 = vrot.slane %v331, 2
      %v2688 = vrot.slane %v332, 2
      %v2689 = vsel %vm978, %v2687, %v2688
      %v2690 = vrot.slane %v333, 2
      %v2691 = vsel %vm978, %v2688, %v2690
      %v2694 = vpack.c.bf16 %v2691, %v2689
      %s2695 = scalar_lea.vmem %s1, 512
      %v2696 = vld [vmem:[%s2695] sm:$0xf]
      %v2697 = vld [vmem:[%s2695 + $0x4] sm:$0xf]
      %v2698 = vld [vmem:[%s2695 + $0x8] sm:$0xf]
      %v2699 = vld [vmem:[%s2695 + $0xc] sm:$0xf]
      %v2700 = vld [vmem:[%s2695 + $0x10] sm:$0xf]
      %v2701 = vld [vmem:[%s2695 + $0x14] sm:$0xf]
      %v2702 = vld [vmem:[%s2695 + $0x18] sm:$0xf]
      %v2703 = vld [vmem:[%s2695 + $0x1c] sm:$0xf]
      %v2704 = vld [vmem:[%s2695 + $0x20] sm:$0xf]
      %v2705 = vld [vmem:[%s2695 + $0x24] sm:$0xf]
      %v2706 = vld [vmem:[%s2695 + $0x28] sm:$0xf]
      %v2707 = vld [vmem:[%s2695 + $0x2c] sm:$0xf]
      %v2708 = vld [vmem:[%s2695 + $0x30] sm:$0xf]
      %v2709 = vld [vmem:[%s2695 + $0x34] sm:$0xf]
      %v2710 = vld [vmem:[%s2695 + $0x38] sm:$0xf]
      %v2711 = vld [vmem:[%s2695 + $0x3c] sm:$0xf]
      %v2728 = vunpack.c.l.b16 %v2696
      %v2729 = vunpack.c.l.b16 %v2697
      %v2730 = vunpack.c.l.b16 %v2698
      %v2731 = vunpack.c.l.b16 %v2699
      %v2732 = vunpack.c.l.b16 %v2700
      %v2733 = vunpack.c.l.b16 %v2701
      %v2734 = vunpack.c.l.b16 %v2702
      %v2735 = vunpack.c.l.b16 %v2703
      %v2736 = vunpack.c.l.b16 %v2704
      %v2737 = vunpack.c.l.b16 %v2705
      %v2738 = vunpack.c.l.b16 %v2706
      %v2739 = vunpack.c.l.b16 %v2707
      %v2740 = vunpack.c.l.b16 %v2708
      %v2741 = vunpack.c.l.b16 %v2709
      %v2742 = vunpack.c.l.b16 %v2710
      %v2743 = vunpack.c.l.b16 %v2711
      %v2744 = vpack.c.b16 %v2729, %v2728
      %v2745 = vpack.c.b16 %v2731, %v2730
      %v2746 = vpack.c.b16 %v2733, %v2732
      %v2747 = vpack.c.b16 %v2735, %v2734
      %v2748 = vpack.c.b16 %v2737, %v2736
      %v2749 = vpack.c.b16 %v2739, %v2738
      %v2750 = vpack.c.b16 %v2741, %v2740
      %v2751 = vpack.c.b16 %v2743, %v2742
      %2760 = vmatprep.subr.bf16.mxu0 0
      %2761 = vmatpush1.bf16.msra.mxu0 %v2744
      %2762 = vmatprep.subr.bf16.mxu0 0
      %2763 = vmatpush1.bf16.msra.mxu0 %v2745
      %2764 = vmatprep.subr.bf16.mxu0 0
      %2765 = vmatpush1.bf16.msra.mxu0 %v2746
      %2766 = vmatprep.subr.bf16.mxu0 0
      %2767 = vmatpush1.bf16.msra.mxu0 %v2747
      %2768 = vmatprep.subr.bf16.mxu0 0
      %2769 = vmatpush1.bf16.msra.mxu0 %v2748
      %2770 = vmatprep.subr.bf16.mxu0 0
      %2771 = vmatpush1.bf16.msra.mxu0 %v2749
      %2772 = vmatprep.subr.bf16.mxu0 0
      %2773 = vmatpush1.bf16.msra.mxu0 %v2750
      %2774 = vmatprep.subr.bf16.mxu0 0
      %2775 = vmatpush1.bf16.msra.mxu0 %v2751
      %2776 = vmatprep.subr.bf16.mxu0 0
      %2777 = vmatpush1.bf16.msra.mxu0 0
      %2778 = vmatprep.subr.bf16.mxu0 0
      %2779 = vmatpush1.bf16.msra.mxu0 0
      %2780 = vmatprep.subr.bf16.mxu0 0
      %2781 = vmatpush1.bf16.msra.mxu0 0
      %2782 = vmatprep.subr.bf16.mxu0 0
      %2783 = vmatpush1.bf16.msra.mxu0 0
      %2784 = vmatprep.subr.bf16.mxu0 0
      %2785 = vmatpush1.bf16.msra.mxu0 0
      %2786 = vmatprep.subr.bf16.mxu0 0
      %2787 = vmatpush1.bf16.msra.mxu0 0
      %2788 = vmatprep.subr.bf16.mxu0 0
      %2789 = vmatpush1.bf16.msra.mxu0 0
      %2790 = vmatprep.subr.bf16.mxu0 0
      %2791 = vmatpush1.bf16.msra.mxu0 0
      %2792 = vmatprep.mubr.bf16.mxu0 0
      %2793 = vmatmul.mubr.bf16.gmra.mrb[0].mxu0 %v1093
      %v2794 = vpop.f32.mrb[0].mxu0
      %v2795 = vadd.f32 0.0, %v2794
      %v2796 = vpop.f32.mrb[0].mxu0
      %v2797 = vpop.f32.mrb[0].mxu0
      %v2798 = vadd.f32 0.0, %v2797
      %v2799 = vpop.f32.mrb[0].mxu0
      %2800 = vmatprep.mubr.bf16.mxu0 0
      %2801 = vmatmul.mubr.bf16.gmra.mrb[0].mxu0 %v1094
      %v2802 = vpop.f32.mrb[0].mxu0
      %v2803 = vadd.f32 0.0, %v2802
      %v2804 = vpop.f32.mrb[0].mxu0
      %v2805 = vpop.f32.mrb[0].mxu0
      %v2806 = vadd.f32 0.0, %v2805
      %v2807 = vpop.f32.mrb[0].mxu0
      %2808 = vmatprep.mubr.bf16.mxu0 0
      %2809 = vmatmul.mubr.bf16.gmra.mrb[0].mxu0 %v1095
      %v2810 = vpop.f32.mrb[0].mxu0
      %v2811 = vadd.f32 0.0, %v2810
      %v2812 = vpop.f32.mrb[0].mxu0
      %v2813 = vpop.f32.mrb[0].mxu0
      %v2814 = vadd.f32 0.0, %v2813
      %v2815 = vpop.f32.mrb[0].mxu0
      %2816 = vmatprep.mubr.bf16.mxu0 0
      %2817 = vmatmul.mubr.bf16.gmra.mrb[0].mxu0 %v1096
      %v2818 = vpop.f32.mrb[0].mxu0
      %v2819 = vadd.f32 0.0, %v2818
      %v2820 = vpop.f32.mrb[0].mxu0
      %v2821 = vpop.f32.mrb[0].mxu0
      %v2822 = vadd.f32 0.0, %v2821
      %v2823 = vpop.f32.mrb[0].mxu0
      %2824 = vmatprep.mubr.bf16.mxu0 0
      %2825 = vmatmul.mubr.bf16.gmra.mrb[0].mxu0 %v1097
      %v2826 = vpop.f32.mrb[0].mxu0
      %v2827 = vadd.f32 0.0, %v2826
      %v2828 = vpop.f32.mrb[0].mxu0
      %v2829 = vpop.f32.mrb[0].mxu0
      %v2830 = vadd.f32 0.0, %v2829
      %v2831 = vpop.f32.mrb[0].mxu0
      %2832 = vmatprep.mubr.bf16.mxu0 0
      %2833 = vmatmul.mubr.bf16.gmra.mrb[0].mxu0 %v1098
      %v2834 = vpop.f32.mrb[0].mxu0
      %v2835 = vadd.f32 0.0, %v2834
      %v2836 = vpop.f32.mrb[0].mxu0
      %v2837 = vpop.f32.mrb[0].mxu0
      %v2838 = vadd.f32 0.0, %v2837
      %v2839 = vpop.f32.mrb[0].mxu0
      %2840 = vmatprep.mubr.bf16.mxu0 0
      %2841 = vmatmul.mubr.bf16.gmra.mrb[0].mxu0 %v1099
      %v2842 = vpop.f32.mrb[0].mxu0
      %v2843 = vadd.f32 0.0, %v2842
      %v2844 = vpop.f32.mrb[0].mxu0
      %v2845 = vpop.f32.mrb[0].mxu0
      %v2846 = vadd.f32 0.0, %v2845
      %v2847 = vpop.f32.mrb[0].mxu0
      %2848 = vmatprep.mubr.bf16.mxu0 0
      %2849 = vmatmul.mubr.bf16.gmra.mrb[0].mxu0 %v1100
      %v2850 = vpop.f32.mrb[0].mxu0
      %v2851 = vadd.f32 0.0, %v2850
      %v2852 = vpop.f32.mrb[0].mxu0
      %v2853 = vpop.f32.mrb[0].mxu0
      %v2854 = vadd.f32 0.0, %v2853
      %v2855 = vpop.f32.mrb[0].mxu0
      %2856 = vmatprep.mubr.bf16.mxu0 0
      %2857 = vmatmul.mubr.bf16.gmra.mrb[0].mxu0 %v1101
      %v2858 = vpop.f32.mrb[0].mxu0
      %v2859 = vadd.f32 0.0, %v2858
      %v2860 = vpop.f32.mrb[0].mxu0
      %v2861 = vpop.f32.mrb[0].mxu0
      %v2862 = vadd.f32 0.0, %v2861
      %v2863 = vpop.f32.mrb[0].mxu0
      %2864 = vmatprep.mubr.bf16.mxu0 0
      %2865 = vmatmul.mubr.bf16.gmra.mrb[0].mxu0 %v1102
      %v2866 = vpop.f32.mrb[0].mxu0
      %v2867 = vadd.f32 0.0, %v2866
      %v2868 = vpop.f32.mrb[0].mxu0
      %v2869 = vpop.f32.mrb[0].mxu0
      %v2870 = vadd.f32 0.0, %v2869
      %v2871 = vpop.f32.mrb[0].mxu0
      %2872 = vmatprep.mubr.bf16.mxu0 0
      %2873 = vmatmul.mubr.bf16.gmra.mrb[0].mxu0 %v1103
      %v2874 = vpop.f32.mrb[0].mxu0
      %v2875 = vadd.f32 0.0, %v2874
      %v2876 = vpop.f32.mrb[0].mxu0
      %v2877 = vpop.f32.mrb[0].mxu0
      %v2878 = vadd.f32 0.0, %v2877
      %v2879 = vpop.f32.mrb[0].mxu0
      %2880 = vmatprep.mubr.bf16.mxu0 0
      %2881 = vmatmul.mubr.bf16.gmra.mrb[0].mxu0 %v1104
      %v2882 = vpop.f32.mrb[0].mxu0
      %v2883 = vadd.f32 0.0, %v2882
      %v2884 = vpop.f32.mrb[0].mxu0
      %v2885 = vpop.f32.mrb[0].mxu0
      %v2886 = vadd.f32 0.0, %v2885
      %v2887 = vpop.f32.mrb[0].mxu0
      %2888 = vmatprep.mubr.bf16.mxu0 0
      %2889 = vmatmul.mubr.bf16.gmra.mrb[0].mxu0 %v1105
      %v2890 = vpop.f32.mrb[0].mxu0
      %v2891 = vadd.f32 0.0, %v2890
      %v2892 = vpop.f32.mrb[0].mxu0
      %v2893 = vpop.f32.mrb[0].mxu0
      %v2894 = vadd.f32 0.0, %v2893
      %v2895 = vpop.f32.mrb[0].mxu0
      %2896 = vmatprep.mubr.bf16.mxu0 0
      %2897 = vmatmul.mubr.bf16.gmra.mrb[0].mxu0 %v1106
      %v2898 = vpop.f32.mrb[0].mxu0
      %v2899 = vadd.f32 0.0, %v2898
      %v2900 = vpop.f32.mrb[0].mxu0
      %v2901 = vpop.f32.mrb[0].mxu0
      %v2902 = vadd.f32 0.0, %v2901
      %v2903 = vpop.f32.mrb[0].mxu0
      %2904 = vmatprep.mubr.bf16.mxu0 0
      %2905 = vmatmul.mubr.bf16.gmra.mrb[0].mxu0 %v1900
      %v2906 = vpop.f32.mrb[0].mxu0
      %v2907 = vadd.f32 0.0, %v2906
      %v2908 = vpop.f32.mrb[0].mxu0
      %v2909 = vpop.f32.mrb[0].mxu0
      %v2910 = vadd.f32 0.0, %v2909
      %v2911 = vpop.f32.mrb[0].mxu0
      %2912 = vmatprep.mubr.bf16.mxu0 0
      %2913 = vmatmul.mubr.bf16.gmra.mrb[0].mxu0 %v2694
      %v2914 = vpop.f32.mrb[0].mxu0
      %v2915 = vadd.f32 0.0, %v2914
      %v2916 = vpop.f32.mrb[0].mxu0
      %v2917 = vpop.f32.mrb[0].mxu0
      %v2918 = vadd.f32 0.0, %v2917
      %v2919 = vpop.f32.mrb[0].mxu0
      %2920 = vdwg.mxu0
      %v2921 = vadd.f32 %v2655, %v2795
      %v2922 = vadd.f32 %v2656, %v2798
      %v2923 = vadd.f32 %v2657, %v2803
      %v2924 = vadd.f32 %v2658, %v2806
      %v2925 = vadd.f32 %v2659, %v2811
      %v2926 = vadd.f32 %v2660, %v2814
      %v2927 = vadd.f32 %v2661, %v2819
      %v2928 = vadd.f32 %v2662, %v2822
      %v2929 = vadd.f32 %v2663, %v2827
      %v2930 = vadd.f32 %v2664, %v2830
      %v2931 = vadd.f32 %v2665, %v2835
      %v2932 = vadd.f32 %v2666, %v2838
      %v2933 = vadd.f32 %v2667, %v2843
      %v2934 = vadd.f32 %v2668, %v2846
      %v2935 = vadd.f32 %v2669, %v2851
      %v2936 = vadd.f32 %v2670, %v2854
      %v2937 = vadd.f32 %v2671, %v2859
      %v2938 = vadd.f32 %v2672, %v2862
      %v2939 = vadd.f32 %v2673, %v2867
      %v2940 = vadd.f32 %v2674, %v2870
      %v2941 = vadd.f32 %v2675, %v2875
      %v2942 = vadd.f32 %v2676, %v2878
      %v2943 = vadd.f32 %v2677, %v2883
      %v2944 = vadd.f32 %v2678, %v2886
      %v2945 = vadd.f32 %v2679, %v2891
      %v2946 = vadd.f32 %v2680, %v2894
      %v2947 = vadd.f32 %v2681, %v2899
      %v2948 = vadd.f32 %v2682, %v2902
      %v2949 = vadd.f32 %v2683, %v2907
      %v2950 = vadd.f32 %v2684, %v2910
      %v2951 = vadd.f32 %v2685, %v2915
      %v2952 = vadd.f32 %v2686, %v2918
      %v2953 = vld [vmem:[%s2] sm:$0x1]
      %v2955 = vlaneseq
      %v2956 = vshrl.u32 %v2955, 7
      %v2957 = vsub.s32 0, %v2956
      %v2958 = vrot.slane %v2953, %v2957
      %v2960 = vmul.f32 %v2921, %v2958
      %v2961 = vmul.f32 %v2922, %v2958
      %v2962 = vmul.f32 %v2923, %v2958
      %v2963 = vmul.f32 %v2924, %v2958
      %v2964 = vmul.f32 %v2925, %v2958
      %v2965 = vmul.f32 %v2926, %v2958
      %v2966 = vmul.f32 %v2927, %v2958
      %v2967 = vmul.f32 %v2928, %v2958
      %v2968 = vmul.f32 %v2929, %v2958
      %v2969 = vmul.f32 %v2930, %v2958
      %v2970 = vmul.f32 %v2931, %v2958
      %v2971 = vmul.f32 %v2932, %v2958
      %v2972 = vmul.f32 %v2933, %v2958
      %v2973 = vmul.f32 %v2934, %v2958
      %v2974 = vmul.f32 %v2935, %v2958
      %v2975 = vmul.f32 %v2936, %v2958
      %v2976 = vmul.f32 %v2937, %v2958
      %v2977 = vmul.f32 %v2938, %v2958
      %v2978 = vmul.f32 %v2939, %v2958
      %v2979 = vmul.f32 %v2940, %v2958
      %v2980 = vmul.f32 %v2941, %v2958
      %v2981 = vmul.f32 %v2942, %v2958
      %v2982 = vmul.f32 %v2943, %v2958
      %v2983 = vmul.f32 %v2944, %v2958
      %v2984 = vmul.f32 %v2945, %v2958
      %v2985 = vmul.f32 %v2946, %v2958
      %v2986 = vmul.f32 %v2947, %v2958
      %v2987 = vmul.f32 %v2948, %v2958
      %v2988 = vmul.f32 %v2949, %v2958
      %v2989 = vmul.f32 %v2950, %v2958
      %v2990 = vmul.f32 %v2951, %v2958
      %v2991 = vmul.f32 %v2952, %v2958
      %v2992 = vld [vmem:[%s3] sm:$0x1]
      %v2994 = vlaneseq
      %v2995 = vshrl.u32 %v2994, 7
      %v2996 = vsub.s32 0, %v2995
      %v2997 = vrot.slane %v2992, %v2996
      %v2999 = vadd.f32 %v2960, %v2997
      %v3000 = vadd.f32 %v2961, %v2997
      %v3001 = vadd.f32 %v2962, %v2997
      %v3002 = vadd.f32 %v2963, %v2997
      %v3003 = vadd.f32 %v2964, %v2997
      %v3004 = vadd.f32 %v2965, %v2997
      %v3005 = vadd.f32 %v2966, %v2997
      %v3006 = vadd.f32 %v2967, %v2997
      %v3007 = vadd.f32 %v2968, %v2997
      %v3008 = vadd.f32 %v2969, %v2997
      %v3009 = vadd.f32 %v2970, %v2997
      %v3010 = vadd.f32 %v2971, %v2997
      %v3011 = vadd.f32 %v2972, %v2997
      %v3012 = vadd.f32 %v2973, %v2997
      %v3013 = vadd.f32 %v2974, %v2997
      %v3014 = vadd.f32 %v2975, %v2997
      %v3015 = vadd.f32 %v2976, %v2997
      %v3016 = vadd.f32 %v2977, %v2997
      %v3017 = vadd.f32 %v2978, %v2997
      %v3018 = vadd.f32 %v2979, %v2997
      %v3019 = vadd.f32 %v2980, %v2997
      %v3020 = vadd.f32 %v2981, %v2997
      %v3021 = vadd.f32 %v2982, %v2997
      %v3022 = vadd.f32 %v2983, %v2997
      %v3023 = vadd.f32 %v2984, %v2997
      %v3024 = vadd.f32 %v2985, %v2997
      %v3025 = vadd.f32 %v2986, %v2997
      %v3026 = vadd.f32 %v2987, %v2997
      %v3027 = vadd.f32 %v2988, %v2997
      %v3028 = vadd.f32 %v2989, %v2997
      %v3029 = vadd.f32 %v2990, %v2997
      %v3030 = vadd.f32 %v2991, %v2997
      %v3031 = vmax.f32 %v2999, 0.0
      %v3032 = vmax.f32 %v3000, 0.0
      %v3033 = vmax.f32 %v3001, 0.0
      %v3034 = vmax.f32 %v3002, 0.0
      %v3035 = vmax.f32 %v3003, 0.0
      %v3036 = vmax.f32 %v3004, 0.0
      %v3037 = vmax.f32 %v3005, 0.0
      %v3038 = vmax.f32 %v3006, 0.0
      %v3039 = vmax.f32 %v3007, 0.0
      %v3040 = vmax.f32 %v3008, 0.0
      %v3041 = vmax.f32 %v3009, 0.0
      %v3042 = vmax.f32 %v3010, 0.0
      %v3043 = vmax.f32 %v3011, 0.0
      %v3044 = vmax.f32 %v3012, 0.0
      %v3045 = vmax.f32 %v3013, 0.0
      %v3046 = vmax.f32 %v3014, 0.0
      %v3047 = vmax.f32 %v3015, 0.0
      %v3048 = vmax.f32 %v3016, 0.0
      %v3049 = vmax.f32 %v3017, 0.0
      %v3050 = vmax.f32 %v3018, 0.0
      %v3051 = vmax.f32 %v3019, 0.0
      %v3052 = vmax.f32 %v3020, 0.0
      %v3053 = vmax.f32 %v3021, 0.0
      %v3054 = vmax.f32 %v3022, 0.0
      %v3055 = vmax.f32 %v3023, 0.0
      %v3056 = vmax.f32 %v3024, 0.0
      %v3057 = vmax.f32 %v3025, 0.0
      %v3058 = vmax.f32 %v3026, 0.0
      %v3059 = vmax.f32 %v3027, 0.0
      %v3060 = vmax.f32 %v3028, 0.0
      %v3061 = vmax.f32 %v3029, 0.0
      %v3062 = vmax.f32 %v3030, 0.0
      %v3063 = vld [vmem:[%s4] sm:$0xff]
      %v3064 = vld [vmem:[%s4 + $0x8] sm:$0xff]
      %v3065 = vld [vmem:[%s4 + $0x10] sm:$0xff]
      %v3066 = vld [vmem:[%s4 + $0x18] sm:$0xff]
      %v3067 = vld [vmem:[%s4 + $0x20] sm:$0xff]
      %v3068 = vld [vmem:[%s4 + $0x28] sm:$0xff]
      %v3069 = vld [vmem:[%s4 + $0x30] sm:$0xff]
      %v3070 = vld [vmem:[%s4 + $0x38] sm:$0xff]
      %v3071 = vpack.c.bf16 %v3032, %v3031
      %v3072 = vpack.c.bf16 %v3034, %v3033
      %v3073 = vpack.c.bf16 %v3036, %v3035
      %v3074 = vpack.c.bf16 %v3038, %v3037
      %v3075 = vpack.c.bf16 %v3040, %v3039
      %v3076 = vpack.c.bf16 %v3042, %v3041
      %v3077 = vpack.c.bf16 %v3044, %v3043
      %v3078 = vpack.c.bf16 %v3046, %v3045
      %v3079 = vpack.c.bf16 %v3048, %v3047
      %v3080 = vpack.c.bf16 %v3050, %v3049
      %v3081 = vpack.c.bf16 %v3052, %v3051
      %v3082 = vpack.c.bf16 %v3054, %v3053
      %v3083 = vpack.c.bf16 %v3056, %v3055
      %v3084 = vpack.c.bf16 %v3058, %v3057
      %v3085 = vpack.c.bf16 %v3060, %v3059
      %v3086 = vpack.c.bf16 %v3062, %v3061
      %v3095 = vunpack.c.l.b16 %v3063
      %v3096 = vunpack.c.h.b16 %v3063
      %v3097 = vunpack.c.l.b16 %v3064
      %v3098 = vunpack.c.h.b16 %v3064
      %v3099 = vunpack.c.l.b16 %v3065
      %v3100 = vunpack.c.h.b16 %v3065
      %v3101 = vunpack.c.l.b16 %v3066
      %v3102 = vunpack.c.h.b16 %v3066
      %v3103 = vunpack.c.l.b16 %v3067
      %v3104 = vunpack.c.h.b16 %v3067
      %v3105 = vunpack.c.l.b16 %v3068
      %v3106 = vunpack.c.h.b16 %v3068
      %v3107 = vunpack.c.l.b16 %v3069
      %v3108 = vunpack.c.h.b16 %v3069
      %v3109 = vunpack.c.l.b16 %v3070
      %v3110 = vunpack.c.h.b16 %v3070
      %v3111 = vpack.c.b16 %v3097, %v3095
      %v3112 = vpack.c.b16 %v3098, %v3096
      %v3113 = vpack.c.b16 %v3101, %v3099
      %v3114 = vpack.c.b16 %v3102, %v3100
      %v3115 = vpack.c.b16 %v3105, %v3103
      %v3116 = vpack.c.b16 %v3106, %v3104
      %v3117 = vpack.c.b16 %v3109, %v3107
      %v3118 = vpack.c.b16 %v3110, %v3108
      %3127 = vmatprep.subr.bf16.mxu0 0
      %3128 = vmatpush1.bf16.msra.mxu0 %v3071
      %3129 = vmatprep.subr.bf16.mxu0 0
      %3130 = vmatpush1.bf16.msra.mxu0 %v3072
      %3131 = vmatprep.subr.bf16.mxu0 0
      %3132 = vmatpush1.bf16.msra.mxu0 %v3073
      %3133 = vmatprep.subr.bf16.mxu0 0
      %3134 = vmatpush1.bf16.msra.mxu0 %v3074
      %3135 = vmatprep.subr.bf16.mxu0 0
      %3136 = vmatpush1.bf16.msra.mxu0 %v3075
      %3137 = vmatprep.subr.bf16.mxu0 0
      %3138 = vmatpush1.bf16.msra.mxu0 %v3076
      %3139 = vmatprep.subr.bf16.mxu0 0
      %3140 = vmatpush1.bf16.msra.mxu0 %v3077
      %3141 = vmatprep.subr.bf16.mxu0 0
      %3142 = vmatpush1.bf16.msra.mxu0 %v3078
      %3143 = vmatprep.subr.bf16.mxu0 0
      %3144 = vmatpush1.bf16.msra.mxu0 %v3079
      %3145 = vmatprep.subr.bf16.mxu0 0
      %3146 = vmatpush1.bf16.msra.mxu0 %v3080
      %3147 = vmatprep.subr.bf16.mxu0 0
      %3148 = vmatpush1.bf16.msra.mxu0 %v3081
      %3149 = vmatprep.subr.bf16.mxu0 0
      %3150 = vmatpush1.bf16.msra.mxu0 %v3082
      %3151 = vmatprep.subr.bf16.mxu0 0
      %3152 = vmatpush1.bf16.msra.mxu0 %v3083
      %3153 = vmatprep.subr.bf16.mxu0 0
      %3154 = vmatpush1.bf16.msra.mxu0 %v3084
      %3155 = vmatprep.subr.bf16.mxu0 0
      %3156 = vmatpush1.bf16.msra.mxu0 %v3085
      %3157 = vmatprep.subr.bf16.mxu0 0
      %3158 = vmatpush1.bf16.msra.mxu0 %v3086
      %3159 = vmatprep.mubr.bf16.mxu0 %v3112
      %3160 = vmatmul.mubr.bf16.gmra.mrb[0].mxu0 %v3111
      %v3161 = vpop.f32.mrb[0].mxu0
      %v3162 = vadd.f32 0.0, %v3161
      %v3163 = vpop.f32.mrb[0].mxu0
      %v3164 = vpop.f32.mrb[0].mxu0
      %v3165 = vadd.f32 0.0, %v3164
      %v3166 = vpop.f32.mrb[0].mxu0
      %3167 = vmatprep.mubr.bf16.mxu0 %v3114
      %3168 = vmatmul.mubr.bf16.gmra.mrb[0].mxu0 %v3113
      %v3169 = vpop.f32.mrb[0].mxu0
      %v3170 = vadd.f32 0.0, %v3169
      %v3171 = vpop.f32.mrb[0].mxu0
      %v3172 = vpop.f32.mrb[0].mxu0
      %v3173 = vadd.f32 0.0, %v3172
      %v3174 = vpop.f32.mrb[0].mxu0
      %3175 = vmatprep.mubr.bf16.mxu0 %v3116
      %3176 = vmatmul.mubr.bf16.gmra.mrb[0].mxu0 %v3115
      %v3177 = vpop.f32.mrb[0].mxu0
      %v3178 = vadd.f32 0.0, %v3177
      %v3179 = vpop.f32.mrb[0].mxu0
      %v3180 = vpop.f32.mrb[0].mxu0
      %v3181 = vadd.f32 0.0, %v3180
      %v3182 = vpop.f32.mrb[0].mxu0
      %3183 = vmatprep.mubr.bf16.mxu0 %v3118
      %3184 = vmatmul.mubr.bf16.gmra.mrb[0].mxu0 %v3117
      %v3185 = vpop.f32.mrb[0].mxu0
      %v3186 = vadd.f32 0.0, %v3185
      %v3187 = vpop.f32.mrb[0].mxu0
      %v3188 = vpop.f32.mrb[0].mxu0
      %v3189 = vadd.f32 0.0, %v3188
      %v3190 = vpop.f32.mrb[0].mxu0
      %3191 = vdwg.mxu0
      %v3192 = vpack.c.bf16 %v3165, %v3162
      %v3193 = vpack.c.bf16 %v3173, %v3170
      %v3194 = vpack.c.bf16 %v3181, %v3178
      %v3195 = vpack.c.bf16 %v3189, %v3186
      %v3200 = vunpack.c.l.b16 %v3192
      %v3201 = vunpack.c.h.b16 %v3192
      %v3202 = vunpack.c.l.b16 %v3193
      %v3203 = vunpack.c.h.b16 %v3193
      %v3204 = vunpack.c.l.b16 %v3194
      %v3205 = vunpack.c.h.b16 %v3194
      %v3206 = vunpack.c.l.b16 %v3195
      %v3207 = vunpack.c.h.b16 %v3195
      %v3208 = vpack.c.b16 %v3200, %v3200
      %v3209 = vpack.c.b16 %v3201, %v3201
      %v3210 = vpack.c.b16 %v3202, %v3202
      %v3211 = vpack.c.b16 %v3203, %v3203
      %v3212 = vpack.c.b16 %v3204, %v3204
      %v3213 = vpack.c.b16 %v3205, %v3205
      %v3214 = vpack.c.b16 %v3206, %v3206
      %v3215 = vpack.c.b16 %v3207, %v3207
      %3224 = vst [vmem:[%s224] sm:$0xf] %v3208
      %3225 = vst [vmem:[%s224 + $0x4] sm:$0xf] %v3209
      %3226 = vst [vmem:[%s224 + $0x8] sm:$0xf] %v3210
      %3227 = vst [vmem:[%s224 + $0xc] sm:$0xf] %v3211
      %3228 = vst [vmem:[%s224 + $0x10] sm:$0xf] %v3212
      %3229 = vst [vmem:[%s224 + $0x14] sm:$0xf] %v3213
      %3230 = vst [vmem:[%s224 + $0x18] sm:$0xf] %v3214
      %3231 = vst [vmem:[%s224 + $0x1c] sm:$0xf] %v3215
      %p3232 = scmp.lt.s32.totalorder %s16, 1
      %s3233 = scalar_select %p3232, %s16, 1
      %s3234 = smul.addr %s3233, 8
      %s3235 = smul.addr %s3234, 4
      %s3236 = scalar_lea.vmem %s5, %s3235
      // Predicated region
      $region41: #{_lambda_.7} parent=39 // pred_check
        %p3237 = pneg %p144
      $region42: #{_lambda_.7} parent=39 // pred_check_branch
        %3239 = sbr.rel (%p3237) target = $region44
      $region43: #{_lambda_.7} parent=39 // pred_region
        _
      $region44: #{_lambda_.7} parent=39 // pred_fallthru
        _
    $region40: #{_lambda_.7} parent=5 // pred_fallthru
      _
    %p3240 = scmp.le.s32.totalorder 2, %s11
    // Predicated region
    $region45: #{_lambda_.7} parent=5 // pred_check
      %p3241 = pneg %p3240
    $region46: #{_lambda_.7} parent=5 // pred_check_branch
      %3243 = sbr.rel (%p3241) target = $region48
    $region47: #{_lambda_.7} parent=5 // pred_region
      %s3244 = ssub.s32 %s11, 2
      // Predicated region
      $region49: #{_lambda_.7} parent=47 // pred_check
        %p3245 = pneg %p150
      $region50: #{_lambda_.7} parent=47 // pred_check_branch
        %3247 = sbr.rel (%p3245) target = $region52
      $region51: #{_lambda_.7} parent=47 // pred_region
        %p3248 = scmp.lt.s32.totalorder %s17, 1
        %s3249 = scalar_select %p3248, %s17, 1
        %s3250 = smul.addr %s3249, 8
        %s3251 = smul.addr %s3250, 4
        %s3252 = scalar_lea.vmem %s5, %s3251
      $region52: #{_lambda_.7} parent=47 // pred_fallthru
        _
    $region48: #{_lambda_.7} parent=5 // pred_fallthru
      _
  $region6: #{_lambda_.7} parent=0 // loop_footer
    %s15 = sadd.s32 1, %s11
  $region7: #{_lambda_.7} parent=0 // loop_footer_branch
    %10 = sbr.rel target = $region3
  $region8: #{_lambda_.7} parent=0 // loop_exit
    _

</llo_original>
